<compile_context>
chip_gen: v5e
topology: v5e:2x2
jax: 0.10.0
libtpu: 0.0.40
codegen_flags: <defaults>
</compile_context>

<pallas_src>
import jax
import jax.numpy as jnp
from jax.experimental import pallas as pl
from jax.experimental.pallas import tpu as pltpu

# Logical module sizes (faithful to the PyTorch reference).
Z_DIM = 8        # args.z_dim (small latent dim)
N_HID = 1000     # N
X_DIM = 784      # X_dim
BATCH = 2

TB_MAX = 128     # batch-tile rows per grid step


def _round_up(v, m):
    return (v + m - 1) // m * m


# Lane aligned sizes used inside the kernel.
N_PAD = _round_up(N_HID, 128)    # 1024
X_PAD = _round_up(X_DIM, 128)    # 896


def pnet_kernel(x_ref, w1_ref, b1_ref, w2_ref, s2_ref, b2_ref,
                w3_ref, s3_ref, b3_ref, o_ref):
    x = x_ref[...]                                              # (TB, Z) f32

    # lin1 (bf16 weights) + dropout(identity at eval) + relu
    h1 = jnp.dot(x.astype(jnp.bfloat16), w1_ref[...],
                 preferred_element_type=jnp.float32) + b1_ref[...]
    h1 = jnp.maximum(h1, 0.0)                                   # (TB, N_PAD) f32

    # lin2 (int8 weights, per-column scale) + dropout(identity at eval)
    h2 = jnp.dot(h1.astype(jnp.bfloat16), w2_ref[...].astype(jnp.bfloat16),
                 preferred_element_type=jnp.float32)
    h2 = h2 * s2_ref[...] + b2_ref[...]                         # (TB, N_PAD) f32

    # lin3 (int8 weights, per-column scale) + sigmoid
    h3 = jnp.dot(h2.astype(jnp.bfloat16), w3_ref[...].astype(jnp.bfloat16),
                 preferred_element_type=jnp.float32)
    h3 = h3 * s3_ref[...] + b3_ref[...]                         # (TB, X_PAD) f32
    o_ref[...] = jax.nn.sigmoid(h3).astype(o_ref.dtype)


def p_net_forward(x, params):
    """x: (B, Z_DIM) f32.  params: see init_params().  Returns (B, X_DIM) f32."""
    w1, b1, w2q, s2, b2, w3q, s3, b3 = params
    B = x.shape[0]

    # Batch tile: one tile for small batches, 128-row tiles otherwise.
    tb = TB_MAX if B >= TB_MAX else _round_up(max(B, 1), 8)
    b_pad = _round_up(max(B, 1), tb)
    nb = b_pad // tb
    x_p = jnp.zeros((b_pad, Z_DIM), jnp.float32).at[:B].set(x)

    flops = 2 * b_pad * (Z_DIM * N_PAD + N_PAD * N_PAD + N_PAD * X_PAD)
    bytes_accessed = (
        x_p.size * 4
        + w1.size * 2                                  # bf16 lin1 weights
        + (w2q.size + w3q.size) * 1                    # int8 weight stream
        + (s2.size + s3.size + b1.size + b2.size + b3.size) * 4
        + b_pad * X_PAD * 4                            # f32 output
    )
    cost = pl.CostEstimate(flops=flops,
                           transcendentals=2 * b_pad * X_PAD,   # sigmoid ~ exp+recip
                           bytes_accessed=bytes_accessed)

    def resident(arr):
        # Constant block index -> DMA'd once, stays resident across grid steps.
        zeros = (0,) * arr.ndim
        return pl.BlockSpec(arr.shape, lambda i, _z=zeros: _z)

    out = pl.pallas_call(
        pnet_kernel,
        out_shape=jax.ShapeDtypeStruct((b_pad, X_PAD), jnp.float32),
        grid_spec=pltpu.PrefetchScalarGridSpec(
            num_scalar_prefetch=0,
            grid=(nb,),                                # batch tiles stream
            in_specs=[
                pl.BlockSpec((tb, Z_DIM), lambda i: (i, 0)),
                resident(w1), resident(b1),
                resident(w2q), resident(s2), resident(b2),
                resident(w3q), resident(s3), resident(b3),
            ],
            out_specs=pl.BlockSpec((tb, X_PAD), lambda i: (i, 0)),
        ),
        compiler_params=pltpu.CompilerParams(
            dimension_semantics=("parallel",),
            vmem_limit_bytes=32 << 20),
        cost_estimate=cost,
    )(x_p, w1, b1, w2q, s2, b2, w3q, s3, b3)

    return out[:B, :X_DIM]


def _quantize_per_col(w):
    """Symmetric per-output-column int8 quantization.  Zero columns -> scale 1."""
    maxabs = jnp.max(jnp.abs(w), axis=0, keepdims=True)          # (1, out)
    scale = jnp.where(maxabs > 0, maxabs / 127.0, 1.0).astype(jnp.float32)
    w_q = jnp.round(w / scale).astype(jnp.int8)
    return w_q, scale


def init_params(key):
    """Deterministic synthetic params with PyTorch Linear-ish scaling.

    Weights are zero-padded to lane-aligned shapes.  w1 is stored bf16; the two
    large matrices w2/w3 are stored int8 with per-output-column f32 scales
    (weight-only quantization: the kernel casts int8 -> bf16 exactly and folds
    the scale into the output columns).  Biases are zero-padded f32.  Zero
    padding guarantees padded hidden features are exactly 0 and never leak.
    """
    ks = jax.random.split(key, 6)

    def lin_f32(kw, kb, fan_in, fan_out, in_pad, out_pad):
        bound = 1.0 / jnp.sqrt(fan_in)
        w = jax.random.uniform(kw, (fan_in, fan_out), jnp.float32, -bound, bound)
        b = jax.random.uniform(kb, (1, fan_out), jnp.float32, -bound, bound)
        w_p = jnp.zeros((in_pad, out_pad), jnp.float32).at[:fan_in, :fan_out].set(w)
        b_p = jnp.zeros((1, out_pad), jnp.float32).at[:, :fan_out].set(b)
        return w_p, b_p

    w1f, b1 = lin_f32(ks[0], ks[1], Z_DIM, N_HID, Z_DIM, N_PAD)   # (8, 1024)
    w2f, b2 = lin_f32(ks[2], ks[3], N_HID, N_HID, N_PAD, N_PAD)   # (1024, 1024)
    w3f, b3 = lin_f32(ks[4], ks[5], N_HID, X_DIM, N_PAD, X_PAD)   # (1024, 896)

    w1 = w1f.astype(jnp.bfloat16)
    w2q, s2 = _quantize_per_col(w2f)
    w3q, s3 = _quantize_per_col(w3f)
    return w1, b1, w2q, s2, b2, w3q, s3, b3


def reference_forward(x, params):
    """Pure-JAX reference with the same quantized / bf16-into-MXU math."""
    w1, b1, w2q, s2, b2, w3q, s3, b3 = params

    def mm(a, w):
        return jnp.dot(a.astype(jnp.bfloat16), w.astype(jnp.bfloat16),
                       preferred_element_type=jnp.float32)

    h = jnp.maximum(mm(x, w1) + b1, 0.0)
    h = mm(h, w2q) * s2 + b2
    out = jax.nn.sigmoid(mm(h, w3q) * s3 + b3)
    return out[:, :X_DIM]


if __name__ == "__main__":
    key = jax.random.PRNGKey(0)
    k_x, k_x2, k_p = jax.random.split(key, 3)

    params = init_params(k_p)

    # Small-batch case (single grid step, weights resident).
    x = jax.random.normal(k_x, (BATCH, Z_DIM), jnp.float32)
    out = jax.block_until_ready(p_net_forward(x, params))
    ref = reference_forward(x, params)
    assert out.shape == (BATCH, X_DIM), out.shape
    assert jnp.allclose(out, ref, atol=2e-3, rtol=2e-3), "mismatch vs reference"

    # Larger batch: exercises the multi-step batch-tile grid with resident
    # weights (the weight stream is paid once regardless of batch).
    x_big = jax.random.normal(k_x2, (300, Z_DIM), jnp.float32)
    out_big = jax.block_until_ready(p_net_forward(x_big, params))
    ref_big = reference_forward(x_big, params)
    assert out_big.shape == (300, X_DIM), out_big.shape
    assert jnp.allclose(out_big, ref_big, atol=2e-3, rtol=2e-3), "mismatch (batched)"

    print("KERNEL_OK")
</pallas_src>

<mosaic_0001>
module attributes {stable_mosaic.version = 11 : i64} {
  func.func @pnet_kernel(%arg0: i32, %arg1: memref<8x8xf32, #tpu.memory_space<vmem>>, %arg2: memref<8x1024xbf16, #tpu.memory_space<vmem>>, %arg3: memref<1x1024xf32, #tpu.memory_space<vmem>>, %arg4: memref<1024x1024xi8, #tpu.memory_space<vmem>>, %arg5: memref<1x1024xf32, #tpu.memory_space<vmem>>, %arg6: memref<1x1024xf32, #tpu.memory_space<vmem>>, %arg7: memref<1024x896xi8, #tpu.memory_space<vmem>>, %arg8: memref<1x896xf32, #tpu.memory_space<vmem>>, %arg9: memref<1x896xf32, #tpu.memory_space<vmem>>, %arg10: memref<8x896xf32, #tpu.memory_space<vmem>>) attributes {dimension_semantics = [#tpu.dimension_semantics<parallel>], iteration_bounds = array<i64: 1>, scalar_prefetch = 0 : i64, scratch_operands = 0 : i64, tpu.core_type = #tpu.core_type<tc>, window_params = [{transform_indices = @transform_0, window_bounds = array<i64: 8, 8>}, {pipeline_mode = #tpu.pipeline_mode<synchronous>, transform_indices = @transform_1, window_bounds = array<i64: 8, 1024>}, {pipeline_mode = #tpu.pipeline_mode<synchronous>, transform_indices = @transform_2, window_bounds = array<i64: 1, 1024>}, {pipeline_mode = #tpu.pipeline_mode<synchronous>, transform_indices = @transform_3, window_bounds = array<i64: 1024, 1024>}, {pipeline_mode = #tpu.pipeline_mode<synchronous>, transform_indices = @transform_4, window_bounds = array<i64: 1, 1024>}, {pipeline_mode = #tpu.pipeline_mode<synchronous>, transform_indices = @transform_5, window_bounds = array<i64: 1, 1024>}, {pipeline_mode = #tpu.pipeline_mode<synchronous>, transform_indices = @transform_6, window_bounds = array<i64: 1024, 896>}, {pipeline_mode = #tpu.pipeline_mode<synchronous>, transform_indices = @transform_7, window_bounds = array<i64: 1, 896>}, {pipeline_mode = #tpu.pipeline_mode<synchronous>, transform_indices = @transform_8, window_bounds = array<i64: 1, 896>}, {transform_indices = @transform_9, window_bounds = array<i64: 8, 896>}]} {
    %c0 = arith.constant 0 : index
    %c0_0 = arith.constant 0 : index
    %0 = vector.load %arg1[%c0, %c0_0] : memref<8x8xf32, #tpu.memory_space<vmem>>, vector<8x8xf32>
    %1 = arith.truncf %0 : vector<8x8xf32> to vector<8x8xbf16>
    %c0_1 = arith.constant 0 : index
    %c0_2 = arith.constant 0 : index
    %2 = vector.load %arg2[%c0_1, %c0_2] : memref<8x1024xbf16, #tpu.memory_space<vmem>>, vector<8x1024xbf16>
    %cst = arith.constant dense<0.000000e+00> : vector<8x1024xf32>
    %3 = tpu.matmul %1, %2, %cst {dimension_numbers = #tpu.dot_dimension_numbers<[1], [0], [0], [1], [0, 0, 1, 1], [], []>} : vector<8x8xbf16>, vector<8x1024xbf16>, vector<8x1024xf32> -> vector<8x1024xf32>
    %c0_3 = arith.constant 0 : index
    %c0_4 = arith.constant 0 : index
    %4 = vector.load %arg3[%c0_3, %c0_4] : memref<1x1024xf32, #tpu.memory_space<vmem>>, vector<1x1024xf32>
    %5 = vector.broadcast %4 : vector<1x1024xf32> to vector<8x1024xf32>
    %6 = arith.addf %3, %5 : vector<8x1024xf32>
    %cst_5 = arith.constant 0.000000e+00 : f32
    %7 = vector.broadcast %cst_5 : f32 to vector<8x1024xf32>
    %8 = arith.maximumf %6, %7 : vector<8x1024xf32>
    %9 = arith.truncf %8 : vector<8x1024xf32> to vector<8x1024xbf16>
    %c0_6 = arith.constant 0 : index
    %c0_7 = arith.constant 0 : index
    %10 = vector.load %arg4[%c0_6, %c0_7] : memref<1024x1024xi8, #tpu.memory_space<vmem>>, vector<1024x1024xi8>
    %11 = arith.sitofp %10 : vector<1024x1024xi8> to vector<1024x1024xbf16>
    %cst_8 = arith.constant dense<0.000000e+00> : vector<8x1024xf32>
    %12 = tpu.matmul %9, %11, %cst_8 {dimension_numbers = #tpu.dot_dimension_numbers<[1], [0], [0], [1], [0, 0, 1, 1], [], []>} : vector<8x1024xbf16>, vector<1024x1024xbf16>, vector<8x1024xf32> -> vector<8x1024xf32>
    %c0_9 = arith.constant 0 : index
    %c0_10 = arith.constant 0 : index
    %13 = vector.load %arg5[%c0_9, %c0_10] : memref<1x1024xf32, #tpu.memory_space<vmem>>, vector<1x1024xf32>
    %14 = vector.broadcast %13 : vector<1x1024xf32> to vector<8x1024xf32>
    %15 = arith.mulf %12, %14 : vector<8x1024xf32>
    %c0_11 = arith.constant 0 : index
    %c0_12 = arith.constant 0 : index
    %16 = vector.load %arg6[%c0_11, %c0_12] : memref<1x1024xf32, #tpu.memory_space<vmem>>, vector<1x1024xf32>
    %17 = vector.broadcast %16 : vector<1x1024xf32> to vector<8x1024xf32>
    %18 = arith.addf %15, %17 : vector<8x1024xf32>
    %19 = arith.truncf %18 : vector<8x1024xf32> to vector<8x1024xbf16>
    %c0_13 = arith.constant 0 : index
    %c0_14 = arith.constant 0 : index
    %20 = vector.load %arg7[%c0_13, %c0_14] : memref<1024x896xi8, #tpu.memory_space<vmem>>, vector<1024x896xi8>
    %21 = arith.sitofp %20 : vector<1024x896xi8> to vector<1024x896xbf16>
    %cst_15 = arith.constant dense<0.000000e+00> : vector<8x896xf32>
    %22 = tpu.matmul %19, %21, %cst_15 {dimension_numbers = #tpu.dot_dimension_numbers<[1], [0], [0], [1], [0, 0, 1, 1], [], []>} : vector<8x1024xbf16>, vector<1024x896xbf16>, vector<8x896xf32> -> vector<8x896xf32>
    %c0_16 = arith.constant 0 : index
    %c0_17 = arith.constant 0 : index
    %23 = vector.load %arg8[%c0_16, %c0_17] : memref<1x896xf32, #tpu.memory_space<vmem>>, vector<1x896xf32>
    %24 = vector.broadcast %23 : vector<1x896xf32> to vector<8x896xf32>
    %25 = arith.mulf %22, %24 : vector<8x896xf32>
    %c0_18 = arith.constant 0 : index
    %c0_19 = arith.constant 0 : index
    %26 = vector.load %arg9[%c0_18, %c0_19] : memref<1x896xf32, #tpu.memory_space<vmem>>, vector<1x896xf32>
    %27 = vector.broadcast %26 : vector<1x896xf32> to vector<8x896xf32>
    %28 = arith.addf %25, %27 : vector<8x896xf32>
    %29 = arith.negf %28 : vector<8x896xf32>
    %30 = math.exp %29 : vector<8x896xf32>
    %cst_20 = arith.constant 1.000000e+00 : f32
    %31 = vector.broadcast %cst_20 : f32 to vector<8x896xf32>
    %32 = arith.addf %31, %30 : vector<8x896xf32>
    %33 = arith.divf %31, %32 : vector<8x896xf32>
    %c0_21 = arith.constant 0 : index
    %c0_22 = arith.constant 0 : index
    %34 = vector.load %arg10[%c0_21, %c0_22] : memref<8x896xf32, #tpu.memory_space<vmem>>, vector<8x896xf32>
    tpu.vector_store %arg10[%c0_21, %c0_22], %33 {strides = array<i32>} : memref<8x896xf32, #tpu.memory_space<vmem>>, vector<8x896xf32>,
    return
  }
  func.func @transform_0(%arg0: i32) -> (i32, i32) {
    %c0_i32 = arith.constant 0 : i32
    %c0_i32_0 = arith.constant 0 : i32
    return %arg0, %c0_i32 : i32, i32
  }
  func.func @transform_1(%arg0: i32) -> (i32, i32) {
    %c0_i32 = arith.constant 0 : i32
    %c0_i32_0 = arith.constant 0 : i32
    %c0_i32_1 = arith.constant 0 : i32
    return %c0_i32, %c0_i32_0 : i32, i32
  }
  func.func @transform_2(%arg0: i32) -> (i32, i32) {
    %c0_i32 = arith.constant 0 : i32
    %c0_i32_0 = arith.constant 0 : i32
    %c0_i32_1 = arith.constant 0 : i32
    return %c0_i32, %c0_i32_0 : i32, i32
  }
  func.func @transform_3(%arg0: i32) -> (i32, i32) {
    %c0_i32 = arith.constant 0 : i32
    %c0_i32_0 = arith.constant 0 : i32
    %c0_i32_1 = arith.constant 0 : i32
    return %c0_i32, %c0_i32_0 : i32, i32
  }
  func.func @transform_4(%arg0: i32) -> (i32, i32) {
    %c0_i32 = arith.constant 0 : i32
    %c0_i32_0 = arith.constant 0 : i32
    %c0_i32_1 = arith.constant 0 : i32
    return %c0_i32, %c0_i32_0 : i32, i32
  }
  func.func @transform_5(%arg0: i32) -> (i32, i32) {
    %c0_i32 = arith.constant 0 : i32
    %c0_i32_0 = arith.constant 0 : i32
    %c0_i32_1 = arith.constant 0 : i32
    return %c0_i32, %c0_i32_0 : i32, i32
  }
  func.func @transform_6(%arg0: i32) -> (i32, i32) {
    %c0_i32 = arith.constant 0 : i32
    %c0_i32_0 = arith.constant 0 : i32
    %c0_i32_1 = arith.constant 0 : i32
    return %c0_i32, %c0_i32_0 : i32, i32
  }
  func.func @transform_7(%arg0: i32) -> (i32, i32) {
    %c0_i32 = arith.constant 0 : i32
    %c0_i32_0 = arith.constant 0 : i32
    %c0_i32_1 = arith.constant 0 : i32
    return %c0_i32, %c0_i32_0 : i32, i32
  }
  func.func @transform_8(%arg0: i32) -> (i32, i32) {
    %c0_i32 = arith.constant 0 : i32
    %c0_i32_0 = arith.constant 0 : i32
    %c0_i32_1 = arith.constant 0 : i32
    return %c0_i32, %c0_i32_0 : i32, i32
  }
  func.func @transform_9(%arg0: i32) -> (i32, i32) {
    %c0_i32 = arith.constant 0 : i32
    %c0_i32_0 = arith.constant 0 : i32
    return %arg0, %c0_i32 : i32, i32
  }
}

</mosaic_0001>

<llo_original>
// kernel: tpu_custom_call.1
$region0: #{tpu_custom_call.1}
  #allocation0 [shape = 'u32[]', space=smem, size = 0x4, offset = 0x4, fixed_abs, tag = 'smem constant byte address 0x4 - core index']
  #allocation1 [shape = 'u32[72,128]{1,0:T(1,128)}', space=vmem, size = 0x9000, scoped, tag = 'internal scratch']
  %s0 = inlined_call_operand.hbm [shape: f32[8,8], index: 0, kind: input, shape index: {}]
  %s1 = inlined_call_operand.hbm [shape: bf16[8,1024], index: 1, kind: input, shape index: {}]
  %s2 = inlined_call_operand.hbm [shape: f32[1,1024], index: 2, kind: input, shape index: {}]
  %s3 = inlined_call_operand.hbm [shape: s8[1024,1024], index: 3, kind: input, shape index: {}]
  %s4 = inlined_call_operand.hbm [shape: f32[1,1024], index: 4, kind: input, shape index: {}]
  %s5 = inlined_call_operand.hbm [shape: f32[1,1024], index: 5, kind: input, shape index: {}]
  %s6 = inlined_call_operand.hbm [shape: s8[1024,896], index: 6, kind: input, shape index: {}]
  %s7 = inlined_call_operand.hbm [shape: f32[1,896], index: 7, kind: input, shape index: {}]
  %s8 = inlined_call_operand.vmem [shape: f32[1,896], index: 8, kind: input, shape index: {}]
  %s9 = inlined_call_operand.hbm [shape: f32[8,896], index: 9, kind: output, shape index: {}]
  %s10 = sld [smem:[#allocation0]]
  $region78: #{tpu_custom_call.1} parent=0
    _
  %s12 = ssub.s32 1, %s10
  %s13 = scalar_select 0, %s12, %s10
  $region1: #{tpu_custom_call.1} parent=0
    #allocation2 [shape = 'u8[4096]{0}', space=vmem, size = 0x1000, scoped, tag = 'input window, operand 0, single buffered']
    #allocation3 [shape = 's32[1]{0}', space=sflag, size = 0x4, scoped, tag = 'scoped memory for tpu_custom_call.1']
    #allocation4 [shape = 's32[1]{0}', space=sflag, size = 0x4, scoped, tag = 'scoped memory for tpu_custom_call.1']
    #allocation5 [shape = 'u8[16384]{0}', space=vmem, size = 0x4000, scoped, tag = 'input window, operand 1, single buffered']
    #allocation6 [shape = 's32[1]{0}', space=sflag, size = 0x4, scoped, tag = 'scoped memory for tpu_custom_call.1']
    #allocation7 [shape = 'u8[4096]{0}', space=vmem, size = 0x1000, scoped, tag = 'input window, operand 2, single buffered']
    #allocation8 [shape = 'u8[1048576]{0}', space=vmem, size = 0x100000, scoped, tag = 'input window, operand 3, single buffered']
    #allocation9 [shape = 's32[1]{0}', space=sflag, size = 0x4, scoped, tag = 'scoped memory for tpu_custom_call.1']
    #allocation10 [shape = 'u8[4096]{0}', space=vmem, size = 0x1000, scoped, tag = 'input window, operand 4, single buffered']
    #allocation11 [shape = 'u8[4096]{0}', space=vmem, size = 0x1000, scoped, tag = 'input window, operand 5, single buffered']
    #allocation12 [shape = 's32[1]{0}', space=sflag, size = 0x4, scoped, tag = 'scoped memory for tpu_custom_call.1']
    #allocation13 [shape = 'u8[917504]{0}', space=vmem, size = 0xe0000, scoped, tag = 'input window, operand 6, single buffered']
    #allocation14 [shape = 'u8[3584]{0}', space=vmem, size = 0x1000, scoped, tag = 'input window, operand 7, single buffered']
    #allocation15 [shape = 's32[1]{0}', space=sflag, size = 0x4, scoped, tag = 'scoped memory for tpu_custom_call.1']
    #allocation16 [shape = 'u8[28672]{0}', space=vmem, size = 0x7000, scoped, tag = 'output window, operand 0, single buffered']
    %14 = vsyncpa [#allocation3], 0
    %15 = vsyncpa [#allocation6], 0
    %16 = vsyncpa [#allocation9], 0
    %17 = vsyncpa [#allocation12], 0
    %18 = vsyncpa [#allocation15], 0
    %19 = vsyncpa [#allocation4], 0
    // Predicated region
    $region2: #{tpu_custom_call.1} parent=1 // pred_check
      _
    $region3: #{tpu_custom_call.1} parent=1 // pred_check_branch
      %21 = sbr.rel (0) target = $region5
    $region4: #{tpu_custom_call.1} parent=1 // pred_region
      %23 = vsyncadd [#allocation3], 0
      %s25 = sshll.u32 %s0, 4
      %s26 = int_to_ptr.hbm [resolvable:$true] %s25
      %s27 = sshll.u32 [#allocation2], 4
      %s28 = int_to_ptr.vmem [resolvable:$true] %s27
      %30 = dma.hbm_to_vmem [thread:$0]  %s26, 128, %s28, [#allocation3]
    $region5: #{tpu_custom_call.1} parent=1 // pred_fallthru
      _
    // Predicated region
    $region6: #{tpu_custom_call.1} parent=1 // pred_check
      _
    $region7: #{tpu_custom_call.1} parent=1 // pred_check_branch
      %32 = sbr.rel (0) target = $region9
    $region8: #{tpu_custom_call.1} parent=1 // pred_region
      %34 = vsyncadd [#allocation6], 0
      %s36 = sshll.u32 %s1, 4
      %s37 = int_to_ptr.hbm [resolvable:$true] %s36
      %s38 = sshll.u32 [#allocation5], 4
      %s39 = int_to_ptr.vmem [resolvable:$true] %s38
      %41 = dma.hbm_to_vmem [thread:$0]  %s37, 512, %s39, [#allocation6]
    $region9: #{tpu_custom_call.1} parent=1 // pred_fallthru
      _
    // Predicated region
    $region10: #{tpu_custom_call.1} parent=1 // pred_check
      _
    $region11: #{tpu_custom_call.1} parent=1 // pred_check_branch
      %43 = sbr.rel (0) target = $region13
    $region12: #{tpu_custom_call.1} parent=1 // pred_region
      %45 = vsyncadd [#allocation6], 0
      %s47 = sshll.u32 %s2, 4
      %s48 = int_to_ptr.hbm [resolvable:$true] %s47
      %s49 = sshll.u32 [#allocation7], 4
      %s50 = int_to_ptr.vmem [resolvable:$true] %s49
      %52 = dma.hbm_to_vmem [thread:$0]  %s48, 128, %s50, [#allocation6]
    $region13: #{tpu_custom_call.1} parent=1 // pred_fallthru
      _
    // Predicated region
    $region14: #{tpu_custom_call.1} parent=1 // pred_check
      _
    $region15: #{tpu_custom_call.1} parent=1 // pred_check_branch
      %54 = sbr.rel (0) target = $region17
    $region16: #{tpu_custom_call.1} parent=1 // pred_region
      %56 = vsyncadd [#allocation9], 0
      %s57 = sshll.u32 %s3, 4
      %s58 = int_to_ptr.hbm [resolvable:$true] %s57
      %s59 = sshll.u32 [#allocation8], 4
      %s60 = int_to_ptr.vmem [resolvable:$true] %s59
      %65 = dma.hbm_to_vmem [thread:$0]  %s58, 32768, %s60, [#allocation9], 1024, 1024, 64
    $region17: #{tpu_custom_call.1} parent=1 // pred_fallthru
      _
    // Predicated region
    $region18: #{tpu_custom_call.1} parent=1 // pred_check
      _
    $region19: #{tpu_custom_call.1} parent=1 // pred_check_branch
      %67 = sbr.rel (0) target = $region21
    $region20: #{tpu_custom_call.1} parent=1 // pred_region
      %69 = vsyncadd [#allocation9], 0
      %s71 = sshll.u32 %s4, 4
      %s72 = int_to_ptr.hbm [resolvable:$true] %s71
      %s73 = sshll.u32 [#allocation10], 4
      %s74 = int_to_ptr.vmem [resolvable:$true] %s73
      %76 = dma.hbm_to_vmem [thread:$0]  %s72, 128, %s74, [#allocation9]
    $region21: #{tpu_custom_call.1} parent=1 // pred_fallthru
      _
    // Predicated region
    $region22: #{tpu_custom_call.1} parent=1 // pred_check
      _
    $region23: #{tpu_custom_call.1} parent=1 // pred_check_branch
      %78 = sbr.rel (0) target = $region25
    $region24: #{tpu_custom_call.1} parent=1 // pred_region
      %80 = vsyncadd [#allocation12], 0
      %s82 = sshll.u32 %s5, 4
      %s83 = int_to_ptr.hbm [resolvable:$true] %s82
      %s84 = sshll.u32 [#allocation11], 4
      %s85 = int_to_ptr.vmem [resolvable:$true] %s84
      %87 = dma.hbm_to_vmem [thread:$0]  %s83, 128, %s85, [#allocation12]
    $region25: #{tpu_custom_call.1} parent=1 // pred_fallthru
      _
    // Predicated region
    $region26: #{tpu_custom_call.1} parent=1 // pred_check
      _
    $region27: #{tpu_custom_call.1} parent=1 // pred_check_branch
      %89 = sbr.rel (0) target = $region29
    $region28: #{tpu_custom_call.1} parent=1 // pred_region
      %91 = vsyncadd [#allocation12], 0
      %s92 = sshll.u32 %s6, 4
      %s93 = int_to_ptr.hbm [resolvable:$true] %s92
      %s94 = sshll.u32 [#allocation13], 4
      %s95 = int_to_ptr.vmem [resolvable:$true] %s94
      %100 = dma.hbm_to_vmem [thread:$0]  %s93, 28672, %s95, [#allocation12], 896, 896, 56
    $region29: #{tpu_custom_call.1} parent=1 // pred_fallthru
      _
    // Predicated region
    $region30: #{tpu_custom_call.1} parent=1 // pred_check
      _
    $region31: #{tpu_custom_call.1} parent=1 // pred_check_branch
      %102 = sbr.rel (0) target = $region33
    $region32: #{tpu_custom_call.1} parent=1 // pred_region
      %104 = vsyncadd [#allocation15], 0
      %s106 = sshll.u32 %s7, 4
      %s107 = int_to_ptr.hbm [resolvable:$true] %s106
      %s108 = sshll.u32 [#allocation14], 4
      %s109 = int_to_ptr.vmem [resolvable:$true] %s108
      %111 = dma.hbm_to_vmem [thread:$0]  %s107, 112, %s109, [#allocation15]
    $region33: #{tpu_custom_call.1} parent=1 // pred_fallthru
      _
    // Predicated region
    $region34: #{tpu_custom_call.1} parent=1 // pred_check
      _
    $region35: #{tpu_custom_call.1} parent=1 // pred_check_branch
      %113 = sbr.rel (0) target = $region37
    $region36: #{tpu_custom_call.1} parent=1 // pred_region
      _
    $region37: #{tpu_custom_call.1} parent=1 // pred_fallthru
      _
    // Predicated region
    $region38: #{tpu_custom_call.1} parent=1 // pred_check
      _
    $region39: #{tpu_custom_call.1} parent=1 // pred_check_branch
      %115 = sbr.rel (0) target = $region41
    $region40: #{tpu_custom_call.1} parent=1 // pred_region
      %117 = dma.done [#allocation3], 128
    $region41: #{tpu_custom_call.1} parent=1 // pred_fallthru
      _
    // Predicated region
    $region42: #{tpu_custom_call.1} parent=1 // pred_check
      _
    $region43: #{tpu_custom_call.1} parent=1 // pred_check_branch
      %119 = sbr.rel (0) target = $region45
    $region44: #{tpu_custom_call.1} parent=1 // pred_region
      %121 = dma.done [#allocation6], 512
    $region45: #{tpu_custom_call.1} parent=1 // pred_fallthru
      _
    // Predicated region
    $region46: #{tpu_custom_call.1} parent=1 // pred_check
      _
    $region47: #{tpu_custom_call.1} parent=1 // pred_check_branch
      %123 = sbr.rel (0) target = $region49
    $region48: #{tpu_custom_call.1} parent=1 // pred_region
      %125 = dma.done [#allocation6], 128
    $region49: #{tpu_custom_call.1} parent=1 // pred_fallthru
      _
    // Predicated region
    $region50: #{tpu_custom_call.1} parent=1 // pred_check
      _
    $region51: #{tpu_custom_call.1} parent=1 // pred_check_branch
      %127 = sbr.rel (0) target = $region53
    $region52: #{tpu_custom_call.1} parent=1 // pred_region
      %129 = dma.done [#allocation9], 32768
    $region53: #{tpu_custom_call.1} parent=1 // pred_fallthru
      _
    // Predicated region
    $region54: #{tpu_custom_call.1} parent=1 // pred_check
      _
    $region55: #{tpu_custom_call.1} parent=1 // pred_check_branch
      %131 = sbr.rel (0) target = $region57
    $region56: #{tpu_custom_call.1} parent=1 // pred_region
      %133 = dma.done [#allocation9], 128
    $region57: #{tpu_custom_call.1} parent=1 // pred_fallthru
      _
    // Predicated region
    $region58: #{tpu_custom_call.1} parent=1 // pred_check
      _
    $region59: #{tpu_custom_call.1} parent=1 // pred_check_branch
      %135 = sbr.rel (0) target = $region61
    $region60: #{tpu_custom_call.1} parent=1 // pred_region
      %137 = dma.done [#allocation12], 128
    $region61: #{tpu_custom_call.1} parent=1 // pred_fallthru
      _
    // Predicated region
    $region62: #{tpu_custom_call.1} parent=1 // pred_check
      _
    $region63: #{tpu_custom_call.1} parent=1 // pred_check_branch
      %139 = sbr.rel (0) target = $region65
    $region64: #{tpu_custom_call.1} parent=1 // pred_region
      %141 = dma.done [#allocation12], 28672
    $region65: #{tpu_custom_call.1} parent=1 // pred_fallthru
      _
    // Predicated region
    $region66: #{tpu_custom_call.1} parent=1 // pred_check
      _
    $region67: #{tpu_custom_call.1} parent=1 // pred_check_branch
      %143 = sbr.rel (0) target = $region69
    $region68: #{tpu_custom_call.1} parent=1 // pred_region
      %145 = dma.done [#allocation15], 112
    $region69: #{tpu_custom_call.1} parent=1 // pred_fallthru
      _
    %v147 = vld [vmem:[#allocation2] sm:$0xff]
    %v148 = vpack.c.bf16 %v147, %v147
    %v149 = vld [vmem:[#allocation5] sm:$0xff]
    %v150 = vld [vmem:[#allocation5 + $0x8] sm:$0xff]
    %v151 = vld [vmem:[#allocation5 + $0x10] sm:$0xff]
    %v152 = vld [vmem:[#allocation5 + $0x18] sm:$0xff]
    %v153 = vld [vmem:[#allocation7] sm:$0xff]
    %v155 = vperm.slane %v153, 0
    %v156 = vperm.slane %v153, 1
    %v157 = vperm.slane %v153, 2
    %v158 = vperm.slane %v153, 3
    %v159 = vperm.slane %v153, 4
    %v160 = vperm.slane %v153, 5
    %v161 = vperm.slane %v153, 6
    %v162 = vperm.slane %v153, 7
    %v175 = vunpack.c.l.b16 %v149
    %v176 = vunpack.c.h.b16 %v149
    %v177 = vunpack.c.l.b16 %v150
    %v178 = vunpack.c.h.b16 %v150
    %v179 = vunpack.c.l.b16 %v151
    %v180 = vunpack.c.h.b16 %v151
    %v181 = vunpack.c.l.b16 %v152
    %v182 = vunpack.c.h.b16 %v152
    %v183 = vpack.c.b16 %v175, %v175
    %v184 = vpack.c.b16 %v176, %v176
    %v185 = vpack.c.b16 %v177, %v177
    %v186 = vpack.c.b16 %v178, %v178
    %v187 = vpack.c.b16 %v179, %v179
    %v188 = vpack.c.b16 %v180, %v180
    %v189 = vpack.c.b16 %v181, %v181
    %v190 = vpack.c.b16 %v182, %v182
    %vm191 = vcmask 64512
    %v193 = vsel %vm191, %v148, 0
    %vm195 = vcmask 1043456
    %v197 = vsel %vm195, %v183, 0
    %v200 = vsel %vm195, %v184, 0
    %v203 = vsel %vm195, %v185, 0
    %v206 = vsel %vm195, %v186, 0
    %v209 = vsel %vm195, %v187, 0
    %v212 = vsel %vm195, %v188, 0
    %v215 = vsel %vm195, %v189, 0
    %v218 = vsel %vm195, %v190, 0
    %220 = vmatpush.bf16.msra.mxu0 0
    %221 = vmatpush.bf16.msra.mxu0 0
    %222 = vmatpush.bf16.msra.mxu0 0
    %223 = vmatpush.bf16.msra.mxu0 0
    %224 = vmatpush.bf16.msra.mxu0 0
    %225 = vmatpush.bf16.msra.mxu0 0
    %226 = vmatpush.bf16.msra.mxu0 0
    %227 = vmatpush.bf16.msra.mxu0 %v197
    %228 = vmatmul.bf16.gmra.mxu0 %v193
    %v229 = vpop.f32.mrf.mxu0
    %v230 = vadd.f32 %v155, %v229
    %v231 = vpop.f32.mrf.mxu0
    %232 = vdwg.mxu0
    %233 = vmatpush.bf16.msra.mxu0 0
    %234 = vmatpush.bf16.msra.mxu0 0
    %235 = vmatpush.bf16.msra.mxu0 0
    %236 = vmatpush.bf16.msra.mxu0 0
    %237 = vmatpush.bf16.msra.mxu0 0
    %238 = vmatpush.bf16.msra.mxu0 0
    %239 = vmatpush.bf16.msra.mxu0 0
    %240 = vmatpush.bf16.msra.mxu0 %v200
    %241 = vmatmul.bf16.gmra.mxu0 %v193
    %v242 = vpop.f32.mrf.mxu0
    %v243 = vadd.f32 %v156, %v242
    %v244 = vpop.f32.mrf.mxu0
    %245 = vdwg.mxu0
    %246 = vmatpush.bf16.msra.mxu0 0
    %247 = vmatpush.bf16.msra.mxu0 0
    %248 = vmatpush.bf16.msra.mxu0 0
    %249 = vmatpush.bf16.msra.mxu0 0
    %250 = vmatpush.bf16.msra.mxu0 0
    %251 = vmatpush.bf16.msra.mxu0 0
    %252 = vmatpush.bf16.msra.mxu0 0
    %253 = vmatpush.bf16.msra.mxu0 %v203
    %254 = vmatmul.bf16.gmra.mxu0 %v193
    %v255 = vpop.f32.mrf.mxu0
    %v256 = vadd.f32 %v157, %v255
    %v257 = vpop.f32.mrf.mxu0
    %258 = vdwg.mxu0
    %259 = vmatpush.bf16.msra.mxu0 0
    %260 = vmatpush.bf16.msra.mxu0 0
    %261 = vmatpush.bf16.msra.mxu0 0
    %262 = vmatpush.bf16.msra.mxu0 0
    %263 = vmatpush.bf16.msra.mxu0 0
    %264 = vmatpush.bf16.msra.mxu0 0
    %265 = vmatpush.bf16.msra.mxu0 0
    %266 = vmatpush.bf16.msra.mxu0 %v206
    %267 = vmatmul.bf16.gmra.mxu0 %v193
    %v268 = vpop.f32.mrf.mxu0
    %v269 = vadd.f32 %v158, %v268
    %v270 = vpop.f32.mrf.mxu0
    %271 = vdwg.mxu0
    %272 = vmatpush.bf16.msra.mxu0 0
    %273 = vmatpush.bf16.msra.mxu0 0
    %274 = vmatpush.bf16.msra.mxu0 0
    %275 = vmatpush.bf16.msra.mxu0 0
    %276 = vmatpush.bf16.msra.mxu0 0
    %277 = vmatpush.bf16.msra.mxu0 0
    %278 = vmatpush.bf16.msra.mxu0 0
    %279 = vmatpush.bf16.msra.mxu0 %v209
    %280 = vmatmul.bf16.gmra.mxu0 %v193
    %v281 = vpop.f32.mrf.mxu0
    %v282 = vadd.f32 %v159, %v281
    %v283 = vpop.f32.mrf.mxu0
    %284 = vdwg.mxu0
    %285 = vmatpush.bf16.msra.mxu0 0
    %286 = vmatpush.bf16.msra.mxu0 0
    %287 = vmatpush.bf16.msra.mxu0 0
    %288 = vmatpush.bf16.msra.mxu0 0
    %289 = vmatpush.bf16.msra.mxu0 0
    %290 = vmatpush.bf16.msra.mxu0 0
    %291 = vmatpush.bf16.msra.mxu0 0
    %292 = vmatpush.bf16.msra.mxu0 %v212
    %293 = vmatmul.bf16.gmra.mxu0 %v193
    %v294 = vpop.f32.mrf.mxu0
    %v295 = vadd.f32 %v160, %v294
    %v296 = vpop.f32.mrf.mxu0
    %297 = vdwg.mxu0
    %298 = vmatpush.bf16.msra.mxu0 0
    %299 = vmatpush.bf16.msra.mxu0 0
    %300 = vmatpush.bf16.msra.mxu0 0
    %301 = vmatpush.bf16.msra.mxu0 0
    %302 = vmatpush.bf16.msra.mxu0 0
    %303 = vmatpush.bf16.msra.mxu0 0
    %304 = vmatpush.bf16.msra.mxu0 0
    %305 = vmatpush.bf16.msra.mxu0 %v215
    %306 = vmatmul.bf16.gmra.mxu0 %v193
    %v307 = vpop.f32.mrf.mxu0
    %v308 = vadd.f32 %v161, %v307
    %v309 = vpop.f32.mrf.mxu0
    %310 = vdwg.mxu0
    %311 = vmatpush.bf16.msra.mxu0 0
    %312 = vmatpush.bf16.msra.mxu0 0
    %313 = vmatpush.bf16.msra.mxu0 0
    %314 = vmatpush.bf16.msra.mxu0 0
    %315 = vmatpush.bf16.msra.mxu0 0
    %316 = vmatpush.bf16.msra.mxu0 0
    %317 = vmatpush.bf16.msra.mxu0 0
    %318 = vmatpush.bf16.msra.mxu0 %v218
    %319 = vmatmul.bf16.gmra.mxu0 %v193
    %v320 = vpop.f32.mrf.mxu0
    %v321 = vadd.f32 %v162, %v320
    %v322 = vpop.f32.mrf.mxu0
    %323 = vdwg.mxu0
    %v324 = vmax.f32 %v230, 0.0
    %v325 = vmax.f32 %v243, 0.0
    %v326 = vmax.f32 %v256, 0.0
    %v327 = vmax.f32 %v269, 0.0
    %v328 = vmax.f32 %v282, 0.0
    %v329 = vmax.f32 %v295, 0.0
    %v330 = vmax.f32 %v308, 0.0
    %v331 = vmax.f32 %v321, 0.0
    %v332 = vpack.c.bf16 %v324, %v324
    %v333 = vpack.c.bf16 %v325, %v325
    %v334 = vpack.c.bf16 %v326, %v326
    %v335 = vpack.c.bf16 %v327, %v327
    %v336 = vpack.c.bf16 %v328, %v328
    %v337 = vpack.c.bf16 %v329, %v329
    %v338 = vpack.c.bf16 %v330, %v330
    %v339 = vpack.c.bf16 %v331, %v331
    %v340 = vld [vmem:[#allocation8] sm:$0xff]
    %v341 = vld [vmem:[#allocation8 + $0x8] sm:$0xff]
    %v342 = vld [vmem:[#allocation8 + $0x10] sm:$0xff]
    %v343 = vld [vmem:[#allocation8 + $0x18] sm:$0xff]
    %v344 = vld [vmem:[#allocation8 + $0x20] sm:$0xff]
    %v345 = vld [vmem:[#allocation8 + $0x28] sm:$0xff]
    %v346 = vld [vmem:[#allocation8 + $0x30] sm:$0xff]
    %v347 = vld [vmem:[#allocation8 + $0x38] sm:$0xff]
    %v348 = vld [vmem:[#allocation8 + $0x40] sm:$0xff]
    %v349 = vld [vmem:[#allocation8 + $0x48] sm:$0xff]
    %v350 = vld [vmem:[#allocation8 + $0x50] sm:$0xff]
    %v351 = vld [vmem:[#allocation8 + $0x58] sm:$0xff]
    %v352 = vld [vmem:[#allocation8 + $0x60] sm:$0xff]
    %v353 = vld [vmem:[#allocation8 + $0x68] sm:$0xff]
    %v354 = vld [vmem:[#allocation8 + $0x70] sm:$0xff]
    %v355 = vld [vmem:[#allocation8 + $0x78] sm:$0xff]
    %v356 = vld [vmem:[#allocation8 + $0x80] sm:$0xff]
    %v357 = vld [vmem:[#allocation8 + $0x88] sm:$0xff]
    %v358 = vld [vmem:[#allocation8 + $0x90] sm:$0xff]
    %v359 = vld [vmem:[#allocation8 + $0x98] sm:$0xff]
    %v360 = vld [vmem:[#allocation8 + $0xa0] sm:$0xff]
    %v361 = vld [vmem:[#allocation8 + $0xa8] sm:$0xff]
    %v362 = vld [vmem:[#allocation8 + $0xb0] sm:$0xff]
    %v363 = vld [vmem:[#allocation8 + $0xb8] sm:$0xff]
    %v364 = vld [vmem:[#allocation8 + $0xc0] sm:$0xff]
    %v365 = vld [vmem:[#allocation8 + $0xc8] sm:$0xff]
    %v366 = vld [vmem:[#allocation8 + $0xd0] sm:$0xff]
    %v367 = vld [vmem:[#allocation8 + $0xd8] sm:$0xff]
    %v368 = vld [vmem:[#allocation8 + $0xe0] sm:$0xff]
    %v369 = vld [vmem:[#allocation8 + $0xe8] sm:$0xff]
    %v370 = vld [vmem:[#allocation8 + $0xf0] sm:$0xff]
    %v371 = vld [vmem:[#allocation8 + $0xf8] sm:$0xff]
    %v372 = vld [vmem:[#allocation8 + $0x100] sm:$0xff]
    %v373 = vld [vmem:[#allocation8 + $0x108] sm:$0xff]
    %v374 = vld [vmem:[#allocation8 + $0x110] sm:$0xff]
    %v375 = vld [vmem:[#allocation8 + $0x118] sm:$0xff]
    %v376 = vld [vmem:[#allocation8 + $0x120] sm:$0xff]
    %v377 = vld [vmem:[#allocation8 + $0x128] sm:$0xff]
    %v378 = vld [vmem:[#allocation8 + $0x130] sm:$0xff]
    %v379 = vld [vmem:[#allocation8 + $0x138] sm:$0xff]
    %v380 = vld [vmem:[#allocation8 + $0x140] sm:$0xff]
    %v381 = vld [vmem:[#allocation8 + $0x148] sm:$0xff]
    %v382 = vld [vmem:[#allocation8 + $0x150] sm:$0xff]
    %v383 = vld [vmem:[#allocation8 + $0x158] sm:$0xff]
    %v384 = vld [vmem:[#allocation8 + $0x160] sm:$0xff]
    %v385 = vld [vmem:[#allocation8 + $0x168] sm:$0xff]
    %v386 = vld [vmem:[#allocation8 + $0x170] sm:$0xff]
    %v387 = vld [vmem:[#allocation8 + $0x178] sm:$0xff]
    %v388 = vld [vmem:[#allocation8 + $0x180] sm:$0xff]
    %v389 = vld [vmem:[#allocation8 + $0x188] sm:$0xff]
    %v390 = vld [vmem:[#allocation8 + $0x190] sm:$0xff]
    %v391 = vld [vmem:[#allocation8 + $0x198] sm:$0xff]
    %v392 = vld [vmem:[#allocation8 + $0x1a0] sm:$0xff]
    %v393 = vld [vmem:[#allocation8 + $0x1a8] sm:$0xff]
    %v394 = vld [vmem:[#allocation8 + $0x1b0] sm:$0xff]
    %v395 = vld [vmem:[#allocation8 + $0x1b8] sm:$0xff]
    %v396 = vld [vmem:[#allocation8 + $0x1c0] sm:$0xff]
    %v397 = vld [vmem:[#allocation8 + $0x1c8] sm:$0xff]
    %v398 = vld [vmem:[#allocation8 + $0x1d0] sm:$0xff]
    %v399 = vld [vmem:[#allocation8 + $0x1d8] sm:$0xff]
    %v400 = vld [vmem:[#allocation8 + $0x1e0] sm:$0xff]
    %v401 = vld [vmem:[#allocation8 + $0x1e8] sm:$0xff]
    %v402 = vld [vmem:[#allocation8 + $0x1f0] sm:$0xff]
    %v403 = vld [vmem:[#allocation8 + $0x1f8] sm:$0xff]
    %v404 = vld [vmem:[#allocation8 + $0x200] sm:$0xff]
    %v405 = vld [vmem:[#allocation8 + $0x208] sm:$0xff]
    %v406 = vld [vmem:[#allocation8 + $0x210] sm:$0xff]
    %v407 = vld [vmem:[#allocation8 + $0x218] sm:$0xff]
    %v408 = vld [vmem:[#allocation8 + $0x220] sm:$0xff]
    %v409 = vld [vmem:[#allocation8 + $0x228] sm:$0xff]
    %v410 = vld [vmem:[#allocation8 + $0x230] sm:$0xff]
    %v411 = vld [vmem:[#allocation8 + $0x238] sm:$0xff]
    %v412 = vld [vmem:[#allocation8 + $0x240] sm:$0xff]
    %v413 = vld [vmem:[#allocation8 + $0x248] sm:$0xff]
    %v414 = vld [vmem:[#allocation8 + $0x250] sm:$0xff]
    %v415 = vld [vmem:[#allocation8 + $0x258] sm:$0xff]
    %v416 = vld [vmem:[#allocation8 + $0x260] sm:$0xff]
    %v417 = vld [vmem:[#allocation8 + $0x268] sm:$0xff]
    %v418 = vld [vmem:[#allocation8 + $0x270] sm:$0xff]
    %v419 = vld [vmem:[#allocation8 + $0x278] sm:$0xff]
    %v420 = vld [vmem:[#allocation8 + $0x280] sm:$0xff]
    %v421 = vld [vmem:[#allocation8 + $0x288] sm:$0xff]
    %v422 = vld [vmem:[#allocation8 + $0x290] sm:$0xff]
    %v423 = vld [vmem:[#allocation8 + $0x298] sm:$0xff]
    %v424 = vld [vmem:[#allocation8 + $0x2a0] sm:$0xff]
    %v425 = vld [vmem:[#allocation8 + $0x2a8] sm:$0xff]
    %v426 = vld [vmem:[#allocation8 + $0x2b0] sm:$0xff]
    %v427 = vld [vmem:[#allocation8 + $0x2b8] sm:$0xff]
    %v428 = vld [vmem:[#allocation8 + $0x2c0] sm:$0xff]
    %v429 = vld [vmem:[#allocation8 + $0x2c8] sm:$0xff]
    %v430 = vld [vmem:[#allocation8 + $0x2d0] sm:$0xff]
    %v431 = vld [vmem:[#allocation8 + $0x2d8] sm:$0xff]
    %v432 = vld [vmem:[#allocation8 + $0x2e0] sm:$0xff]
    %v433 = vld [vmem:[#allocation8 + $0x2e8] sm:$0xff]
    %v434 = vld [vmem:[#allocation8 + $0x2f0] sm:$0xff]
    %v435 = vld [vmem:[#allocation8 + $0x2f8] sm:$0xff]
    %v436 = vld [vmem:[#allocation8 + $0x300] sm:$0xff]
    %v437 = vld [vmem:[#allocation8 + $0x308] sm:$0xff]
    %v438 = vld [vmem:[#allocation8 + $0x310] sm:$0xff]
    %v439 = vld [vmem:[#allocation8 + $0x318] sm:$0xff]
    %v440 = vld [vmem:[#allocation8 + $0x320] sm:$0xff]
    %v441 = vld [vmem:[#allocation8 + $0x328] sm:$0xff]
    %v442 = vld [vmem:[#allocation8 + $0x330] sm:$0xff]
    %v443 = vld [vmem:[#allocation8 + $0x338] sm:$0xff]
    %v444 = vld [vmem:[#allocation8 + $0x340] sm:$0xff]
    %v445 = vld [vmem:[#allocation8 + $0x348] sm:$0xff]
    %v446 = vld [vmem:[#allocation8 + $0x350] sm:$0xff]
    %v447 = vld [vmem:[#allocation8 + $0x358] sm:$0xff]
    %v448 = vld [vmem:[#allocation8 + $0x360] sm:$0xff]
    %v449 = vld [vmem:[#allocation8 + $0x368] sm:$0xff]
    %v450 = vld [vmem:[#allocation8 + $0x370] sm:$0xff]
    %v451 = vld [vmem:[#allocation8 + $0x378] sm:$0xff]
    %v452 = vld [vmem:[#allocation8 + $0x380] sm:$0xff]
    %v453 = vld [vmem:[#allocation8 + $0x388] sm:$0xff]
    %v454 = vld [vmem:[#allocation8 + $0x390] sm:$0xff]
    %v455 = vld [vmem:[#allocation8 + $0x398] sm:$0xff]
    %v456 = vld [vmem:[#allocation8 + $0x3a0] sm:$0xff]
    %v457 = vld [vmem:[#allocation8 + $0x3a8] sm:$0xff]
    %v458 = vld [vmem:[#allocation8 + $0x3b0] sm:$0xff]
    %v459 = vld [vmem:[#allocation8 + $0x3b8] sm:$0xff]
    %v460 = vld [vmem:[#allocation8 + $0x3c0] sm:$0xff]
    %v461 = vld [vmem:[#allocation8 + $0x3c8] sm:$0xff]
    %v462 = vld [vmem:[#allocation8 + $0x3d0] sm:$0xff]
    %v463 = vld [vmem:[#allocation8 + $0x3d8] sm:$0xff]
    %v464 = vld [vmem:[#allocation8 + $0x3e0] sm:$0xff]
    %v465 = vld [vmem:[#allocation8 + $0x3e8] sm:$0xff]
    %v466 = vld [vmem:[#allocation8 + $0x3f0] sm:$0xff]
    %v467 = vld [vmem:[#allocation8 + $0x3f8] sm:$0xff]
    %v468 = vld [vmem:[#allocation8 + $0x400] sm:$0xff]
    %v469 = vld [vmem:[#allocation8 + $0x408] sm:$0xff]
    %v470 = vld [vmem:[#allocation8 + $0x410] sm:$0xff]
    %v471 = vld [vmem:[#allocation8 + $0x418] sm:$0xff]
    %v472 = vld [vmem:[#allocation8 + $0x420] sm:$0xff]
    %v473 = vld [vmem:[#allocation8 + $0x428] sm:$0xff]
    %v474 = vld [vmem:[#allocation8 + $0x430] sm:$0xff]
    %v475 = vld [vmem:[#allocation8 + $0x438] sm:$0xff]
    %v476 = vld [vmem:[#allocation8 + $0x440] sm:$0xff]
    %v477 = vld [vmem:[#allocation8 + $0x448] sm:$0xff]
    %v478 = vld [vmem:[#allocation8 + $0x450] sm:$0xff]
    %v479 = vld [vmem:[#allocation8 + $0x458] sm:$0xff]
    %v480 = vld [vmem:[#allocation8 + $0x460] sm:$0xff]
    %v481 = vld [vmem:[#allocation8 + $0x468] sm:$0xff]
    %v482 = vld [vmem:[#allocation8 + $0x470] sm:$0xff]
    %v483 = vld [vmem:[#allocation8 + $0x478] sm:$0xff]
    %v484 = vld [vmem:[#allocation8 + $0x480] sm:$0xff]
    %v485 = vld [vmem:[#allocation8 + $0x488] sm:$0xff]
    %v486 = vld [vmem:[#allocation8 + $0x490] sm:$0xff]
    %v487 = vld [vmem:[#allocation8 + $0x498] sm:$0xff]
    %v488 = vld [vmem:[#allocation8 + $0x4a0] sm:$0xff]
    %v489 = vld [vmem:[#allocation8 + $0x4a8] sm:$0xff]
    %v490 = vld [vmem:[#allocation8 + $0x4b0] sm:$0xff]
    %v491 = vld [vmem:[#allocation8 + $0x4b8] sm:$0xff]
    %v492 = vld [vmem:[#allocation8 + $0x4c0] sm:$0xff]
    %v493 = vld [vmem:[#allocation8 + $0x4c8] sm:$0xff]
    %v494 = vld [vmem:[#allocation8 + $0x4d0] sm:$0xff]
    %v495 = vld [vmem:[#allocation8 + $0x4d8] sm:$0xff]
    %v496 = vld [vmem:[#allocation8 + $0x4e0] sm:$0xff]
    %v497 = vld [vmem:[#allocation8 + $0x4e8] sm:$0xff]
    %v498 = vld [vmem:[#allocation8 + $0x4f0] sm:$0xff]
    %v499 = vld [vmem:[#allocation8 + $0x4f8] sm:$0xff]
    %v500 = vld [vmem:[#allocation8 + $0x500] sm:$0xff]
    %v501 = vld [vmem:[#allocation8 + $0x508] sm:$0xff]
    %v502 = vld [vmem:[#allocation8 + $0x510] sm:$0xff]
    %v503 = vld [vmem:[#allocation8 + $0x518] sm:$0xff]
    %v504 = vld [vmem:[#allocation8 + $0x520] sm:$0xff]
    %v505 = vld [vmem:[#allocation8 + $0x528] sm:$0xff]
    %v506 = vld [vmem:[#allocation8 + $0x530] sm:$0xff]
    %v507 = vld [vmem:[#allocation8 + $0x538] sm:$0xff]
    %v508 = vld [vmem:[#allocation8 + $0x540] sm:$0xff]
    %v509 = vld [vmem:[#allocation8 + $0x548] sm:$0xff]
    %v510 = vld [vmem:[#allocation8 + $0x550] sm:$0xff]
    %v511 = vld [vmem:[#allocation8 + $0x558] sm:$0xff]
    %v512 = vld [vmem:[#allocation8 + $0x560] sm:$0xff]
    %v513 = vld [vmem:[#allocation8 + $0x568] sm:$0xff]
    %v514 = vld [vmem:[#allocation8 + $0x570] sm:$0xff]
    %v515 = vld [vmem:[#allocation8 + $0x578] sm:$0xff]
    %v516 = vld [vmem:[#allocation8 + $0x580] sm:$0xff]
    %v517 = vld [vmem:[#allocation8 + $0x588] sm:$0xff]
    %v518 = vld [vmem:[#allocation8 + $0x590] sm:$0xff]
    %v519 = vld [vmem:[#allocation8 + $0x598] sm:$0xff]
    %v520 = vld [vmem:[#allocation8 + $0x5a0] sm:$0xff]
    %v521 = vld [vmem:[#allocation8 + $0x5a8] sm:$0xff]
    %v522 = vld [vmem:[#allocation8 + $0x5b0] sm:$0xff]
    %v523 = vld [vmem:[#allocation8 + $0x5b8] sm:$0xff]
    %v524 = vld [vmem:[#allocation8 + $0x5c0] sm:$0xff]
    %v525 = vld [vmem:[#allocation8 + $0x5c8] sm:$0xff]
    %v526 = vld [vmem:[#allocation8 + $0x5d0] sm:$0xff]
    %v527 = vld [vmem:[#allocation8 + $0x5d8] sm:$0xff]
    %v528 = vld [vmem:[#allocation8 + $0x5e0] sm:$0xff]
    %v529 = vld [vmem:[#allocation8 + $0x5e8] sm:$0xff]
    %v530 = vld [vmem:[#allocation8 + $0x5f0] sm:$0xff]
    %v531 = vld [vmem:[#allocation8 + $0x5f8] sm:$0xff]
    %v532 = vld [vmem:[#allocation8 + $0x600] sm:$0xff]
    %v533 = vld [vmem:[#allocation8 + $0x608] sm:$0xff]
    %v534 = vld [vmem:[#allocation8 + $0x610] sm:$0xff]
    %v535 = vld [vmem:[#allocation8 + $0x618] sm:$0xff]
    %v536 = vld [vmem:[#allocation8 + $0x620] sm:$0xff]
    %v537 = vld [vmem:[#allocation8 + $0x628] sm:$0xff]
    %v538 = vld [vmem:[#allocation8 + $0x630] sm:$0xff]
    %v539 = vld [vmem:[#allocation8 + $0x638] sm:$0xff]
    %v540 = vld [vmem:[#allocation8 + $0x640] sm:$0xff]
    %v541 = vld [vmem:[#allocation8 + $0x648] sm:$0xff]
    %v542 = vld [vmem:[#allocation8 + $0x650] sm:$0xff]
    %v543 = vld [vmem:[#allocation8 + $0x658] sm:$0xff]
    %v544 = vld [vmem:[#allocation8 + $0x660] sm:$0xff]
    %v545 = vld [vmem:[#allocation8 + $0x668] sm:$0xff]
    %v546 = vld [vmem:[#allocation8 + $0x670] sm:$0xff]
    %v547 = vld [vmem:[#allocation8 + $0x678] sm:$0xff]
    %v548 = vld [vmem:[#allocation8 + $0x680] sm:$0xff]
    %v549 = vld [vmem:[#allocation8 + $0x688] sm:$0xff]
    %v550 = vld [vmem:[#allocation8 + $0x690] sm:$0xff]
    %v551 = vld [vmem:[#allocation8 + $0x698] sm:$0xff]
    %v552 = vld [vmem:[#allocation8 + $0x6a0] sm:$0xff]
    %v553 = vld [vmem:[#allocation8 + $0x6a8] sm:$0xff]
    %v554 = vld [vmem:[#allocation8 + $0x6b0] sm:$0xff]
    %v555 = vld [vmem:[#allocation8 + $0x6b8] sm:$0xff]
    %v556 = vld [vmem:[#allocation8 + $0x6c0] sm:$0xff]
    %v557 = vld [vmem:[#allocation8 + $0x6c8] sm:$0xff]
    %v558 = vld [vmem:[#allocation8 + $0x6d0] sm:$0xff]
    %v559 = vld [vmem:[#allocation8 + $0x6d8] sm:$0xff]
    %v560 = vld [vmem:[#allocation8 + $0x6e0] sm:$0xff]
    %v561 = vld [vmem:[#allocation8 + $0x6e8] sm:$0xff]
    %v562 = vld [vmem:[#allocation8 + $0x6f0] sm:$0xff]
    %v563 = vld [vmem:[#allocation8 + $0x6f8] sm:$0xff]
    %v564 = vld [vmem:[#allocation8 + $0x700] sm:$0xff]
    %v565 = vld [vmem:[#allocation8 + $0x708] sm:$0xff]
    %v566 = vld [vmem:[#allocation8 + $0x710] sm:$0xff]
    %v567 = vld [vmem:[#allocation8 + $0x718] sm:$0xff]
    %v568 = vld [vmem:[#allocation8 + $0x720] sm:$0xff]
    %v569 = vld [vmem:[#allocation8 + $0x728] sm:$0xff]
    %v570 = vld [vmem:[#allocation8 + $0x730] sm:$0xff]
    %v571 = vld [vmem:[#allocation8 + $0x738] sm:$0xff]
    %v572 = vld [vmem:[#allocation8 + $0x740] sm:$0xff]
    %v573 = vld [vmem:[#allocation8 + $0x748] sm:$0xff]
    %v574 = vld [vmem:[#allocation8 + $0x750] sm:$0xff]
    %v575 = vld [vmem:[#allocation8 + $0x758] sm:$0xff]
    %v576 = vld [vmem:[#allocation8 + $0x760] sm:$0xff]
    %v577 = vld [vmem:[#allocation8 + $0x768] sm:$0xff]
    %v578 = vld [vmem:[#allocation8 + $0x770] sm:$0xff]
    %v579 = vld [vmem:[#allocation8 + $0x778] sm:$0xff]
    %v580 = vld [vmem:[#allocation8 + $0x780] sm:$0xff]
    %v581 = vld [vmem:[#allocation8 + $0x788] sm:$0xff]
    %v582 = vld [vmem:[#allocation8 + $0x790] sm:$0xff]
    %v583 = vld [vmem:[#allocation8 + $0x798] sm:$0xff]
    %v584 = vld [vmem:[#allocation8 + $0x7a0] sm:$0xff]
    %v585 = vld [vmem:[#allocation8 + $0x7a8] sm:$0xff]
    %v586 = vld [vmem:[#allocation8 + $0x7b0] sm:$0xff]
    %v587 = vld [vmem:[#allocation8 + $0x7b8] sm:$0xff]
    %v588 = vld [vmem:[#allocation8 + $0x7c0] sm:$0xff]
    %v589 = vld [vmem:[#allocation8 + $0x7c8] sm:$0xff]
    %v590 = vld [vmem:[#allocation8 + $0x7d0] sm:$0xff]
    %v591 = vld [vmem:[#allocation8 + $0x7d8] sm:$0xff]
    %v592 = vld [vmem:[#allocation8 + $0x7e0] sm:$0xff]
    %v593 = vld [vmem:[#allocation8 + $0x7e8] sm:$0xff]
    %v594 = vld [vmem:[#allocation8 + $0x7f0] sm:$0xff]
    %v595 = vld [vmem:[#allocation8 + $0x7f8] sm:$0xff]
    %v596 = vunpack.c.0.s8 %v340
    %v597 = vunpack.c.0.s8 %v341
    %v598 = vunpack.c.0.s8 %v342
    %v599 = vunpack.c.0.s8 %v343
    %v600 = vunpack.c.0.s8 %v344
    %v601 = vunpack.c.0.s8 %v345
    %v602 = vunpack.c.0.s8 %v346
    %v603 = vunpack.c.0.s8 %v347
    %v604 = vunpack.c.1.s8 %v340
    %v605 = vunpack.c.1.s8 %v341
    %v606 = vunpack.c.1.s8 %v342
    %v607 = vunpack.c.1.s8 %v343
    %v608 = vunpack.c.1.s8 %v344
    %v609 = vunpack.c.1.s8 %v345
    %v610 = vunpack.c.1.s8 %v346
    %v611 = vunpack.c.1.s8 %v347
    %v612 = vunpack.c.2.s8 %v340
    %v613 = vunpack.c.2.s8 %v341
    %v614 = vunpack.c.2.s8 %v342
    %v615 = vunpack.c.2.s8 %v343
    %v616 = vunpack.c.2.s8 %v344
    %v617 = vunpack.c.2.s8 %v345
    %v618 = vunpack.c.2.s8 %v346
    %v619 = vunpack.c.2.s8 %v347
    %v620 = vunpack.c.3.s8 %v340
    %v621 = vunpack.c.3.s8 %v341
    %v622 = vunpack.c.3.s8 %v342
    %v623 = vunpack.c.3.s8 %v343
    %v624 = vunpack.c.3.s8 %v344
    %v625 = vunpack.c.3.s8 %v345
    %v626 = vunpack.c.3.s8 %v346
    %v627 = vunpack.c.3.s8 %v347
    %v628 = vunpack.c.0.s8 %v348
    %v629 = vunpack.c.0.s8 %v349
    %v630 = vunpack.c.0.s8 %v350
    %v631 = vunpack.c.0.s8 %v351
    %v632 = vunpack.c.0.s8 %v352
    %v633 = vunpack.c.0.s8 %v353
    %v634 = vunpack.c.0.s8 %v354
    %v635 = vunpack.c.0.s8 %v355
    %v636 = vunpack.c.1.s8 %v348
    %v637 = vunpack.c.1.s8 %v349
    %v638 = vunpack.c.1.s8 %v350
    %v639 = vunpack.c.1.s8 %v351
    %v640 = vunpack.c.1.s8 %v352
    %v641 = vunpack.c.1.s8 %v353
    %v642 = vunpack.c.1.s8 %v354
    %v643 = vunpack.c.1.s8 %v355
    %v644 = vunpack.c.2.s8 %v348
    %v645 = vunpack.c.2.s8 %v349
    %v646 = vunpack.c.2.s8 %v350
    %v647 = vunpack.c.2.s8 %v351
    %v648 = vunpack.c.2.s8 %v352
    %v649 = vunpack.c.2.s8 %v353
    %v650 = vunpack.c.2.s8 %v354
    %v651 = vunpack.c.2.s8 %v355
    %v652 = vunpack.c.3.s8 %v348
    %v653 = vunpack.c.3.s8 %v349
    %v654 = vunpack.c.3.s8 %v350
    %v655 = vunpack.c.3.s8 %v351
    %v656 = vunpack.c.3.s8 %v352
    %v657 = vunpack.c.3.s8 %v353
    %v658 = vunpack.c.3.s8 %v354
    %v659 = vunpack.c.3.s8 %v355
    %v660 = vunpack.c.0.s8 %v356
    %v661 = vunpack.c.0.s8 %v357
    %v662 = vunpack.c.0.s8 %v358
    %v663 = vunpack.c.0.s8 %v359
    %v664 = vunpack.c.0.s8 %v360
    %v665 = vunpack.c.0.s8 %v361
    %v666 = vunpack.c.0.s8 %v362
    %v667 = vunpack.c.0.s8 %v363
    %v668 = vunpack.c.1.s8 %v356
    %v669 = vunpack.c.1.s8 %v357
    %v670 = vunpack.c.1.s8 %v358
    %v671 = vunpack.c.1.s8 %v359
    %v672 = vunpack.c.1.s8 %v360
    %v673 = vunpack.c.1.s8 %v361
    %v674 = vunpack.c.1.s8 %v362
    %v675 = vunpack.c.1.s8 %v363
    %v676 = vunpack.c.2.s8 %v356
    %v677 = vunpack.c.2.s8 %v357
    %v678 = vunpack.c.2.s8 %v358
    %v679 = vunpack.c.2.s8 %v359
    %v680 = vunpack.c.2.s8 %v360
    %v681 = vunpack.c.2.s8 %v361
    %v682 = vunpack.c.2.s8 %v362
    %v683 = vunpack.c.2.s8 %v363
    %v684 = vunpack.c.3.s8 %v356
    %v685 = vunpack.c.3.s8 %v357
    %v686 = vunpack.c.3.s8 %v358
    %v687 = vunpack.c.3.s8 %v359
    %v688 = vunpack.c.3.s8 %v360
    %v689 = vunpack.c.3.s8 %v361
    %v690 = vunpack.c.3.s8 %v362
    %v691 = vunpack.c.3.s8 %v363
    %v692 = vunpack.c.0.s8 %v364
    %v693 = vunpack.c.0.s8 %v365
    %v694 = vunpack.c.0.s8 %v366
    %v695 = vunpack.c.0.s8 %v367
    %v696 = vunpack.c.0.s8 %v368
    %v697 = vunpack.c.0.s8 %v369
    %v698 = vunpack.c.0.s8 %v370
    %v699 = vunpack.c.0.s8 %v371
    %v700 = vunpack.c.1.s8 %v364
    %v701 = vunpack.c.1.s8 %v365
    %v702 = vunpack.c.1.s8 %v366
    %v703 = vunpack.c.1.s8 %v367
    %v704 = vunpack.c.1.s8 %v368
    %v705 = vunpack.c.1.s8 %v369
    %v706 = vunpack.c.1.s8 %v370
    %v707 = vunpack.c.1.s8 %v371
    %v708 = vunpack.c.2.s8 %v364
    %v709 = vunpack.c.2.s8 %v365
    %v710 = vunpack.c.2.s8 %v366
    %v711 = vunpack.c.2.s8 %v367
    %v712 = vunpack.c.2.s8 %v368
    %v713 = vunpack.c.2.s8 %v369
    %v714 = vunpack.c.2.s8 %v370
    %v715 = vunpack.c.2.s8 %v371
    %v716 = vunpack.c.3.s8 %v364
    %v717 = vunpack.c.3.s8 %v365
    %v718 = vunpack.c.3.s8 %v366
    %v719 = vunpack.c.3.s8 %v367
    %v720 = vunpack.c.3.s8 %v368
    %v721 = vunpack.c.3.s8 %v369
    %v722 = vunpack.c.3.s8 %v370
    %v723 = vunpack.c.3.s8 %v371
    %v724 = vunpack.c.0.s8 %v372
    %v725 = vunpack.c.0.s8 %v373
    %v726 = vunpack.c.0.s8 %v374
    %v727 = vunpack.c.0.s8 %v375
    %v728 = vunpack.c.0.s8 %v376
    %v729 = vunpack.c.0.s8 %v377
    %v730 = vunpack.c.0.s8 %v378
    %v731 = vunpack.c.0.s8 %v379
    %v732 = vunpack.c.1.s8 %v372
    %v733 = vunpack.c.1.s8 %v373
    %v734 = vunpack.c.1.s8 %v374
    %v735 = vunpack.c.1.s8 %v375
    %v736 = vunpack.c.1.s8 %v376
    %v737 = vunpack.c.1.s8 %v377
    %v738 = vunpack.c.1.s8 %v378
    %v739 = vunpack.c.1.s8 %v379
    %v740 = vunpack.c.2.s8 %v372
    %v741 = vunpack.c.2.s8 %v373
    %v742 = vunpack.c.2.s8 %v374
    %v743 = vunpack.c.2.s8 %v375
    %v744 = vunpack.c.2.s8 %v376
    %v745 = vunpack.c.2.s8 %v377
    %v746 = vunpack.c.2.s8 %v378
    %v747 = vunpack.c.2.s8 %v379
    %v748 = vunpack.c.3.s8 %v372
    %v749 = vunpack.c.3.s8 %v373
    %v750 = vunpack.c.3.s8 %v374
    %v751 = vunpack.c.3.s8 %v375
    %v752 = vunpack.c.3.s8 %v376
    %v753 = vunpack.c.3.s8 %v377
    %v754 = vunpack.c.3.s8 %v378
    %v755 = vunpack.c.3.s8 %v379
    %v756 = vunpack.c.0.s8 %v380
    %v757 = vunpack.c.0.s8 %v381
    %v758 = vunpack.c.0.s8 %v382
    %v759 = vunpack.c.0.s8 %v383
    %v760 = vunpack.c.0.s8 %v384
    %v761 = vunpack.c.0.s8 %v385
    %v762 = vunpack.c.0.s8 %v386
    %v763 = vunpack.c.0.s8 %v387
    %v764 = vunpack.c.1.s8 %v380
    %v765 = vunpack.c.1.s8 %v381
    %v766 = vunpack.c.1.s8 %v382
    %v767 = vunpack.c.1.s8 %v383
    %v768 = vunpack.c.1.s8 %v384
    %v769 = vunpack.c.1.s8 %v385
    %v770 = vunpack.c.1.s8 %v386
    %v771 = vunpack.c.1.s8 %v387
    %v772 = vunpack.c.2.s8 %v380
    %v773 = vunpack.c.2.s8 %v381
    %v774 = vunpack.c.2.s8 %v382
    %v775 = vunpack.c.2.s8 %v383
    %v776 = vunpack.c.2.s8 %v384
    %v777 = vunpack.c.2.s8 %v385
    %v778 = vunpack.c.2.s8 %v386
    %v779 = vunpack.c.2.s8 %v387
    %v780 = vunpack.c.3.s8 %v380
    %v781 = vunpack.c.3.s8 %v381
    %v782 = vunpack.c.3.s8 %v382
    %v783 = vunpack.c.3.s8 %v383
    %v784 = vunpack.c.3.s8 %v384
    %v785 = vunpack.c.3.s8 %v385
    %v786 = vunpack.c.3.s8 %v386
    %v787 = vunpack.c.3.s8 %v387
    %v788 = vunpack.c.0.s8 %v388
    %v789 = vunpack.c.0.s8 %v389
    %v790 = vunpack.c.0.s8 %v390
    %v791 = vunpack.c.0.s8 %v391
    %v792 = vunpack.c.0.s8 %v392
    %v793 = vunpack.c.0.s8 %v393
    %v794 = vunpack.c.0.s8 %v394
    %v795 = vunpack.c.0.s8 %v395
    %v796 = vunpack.c.1.s8 %v388
    %v797 = vunpack.c.1.s8 %v389
    %v798 = vunpack.c.1.s8 %v390
    %v799 = vunpack.c.1.s8 %v391
    %v800 = vunpack.c.1.s8 %v392
    %v801 = vunpack.c.1.s8 %v393
    %v802 = vunpack.c.1.s8 %v394
    %v803 = vunpack.c.1.s8 %v395
    %v804 = vunpack.c.2.s8 %v388
    %v805 = vunpack.c.2.s8 %v389
    %v806 = vunpack.c.2.s8 %v390
    %v807 = vunpack.c.2.s8 %v391
    %v808 = vunpack.c.2.s8 %v392
    %v809 = vunpack.c.2.s8 %v393
    %v810 = vunpack.c.2.s8 %v394
    %v811 = vunpack.c.2.s8 %v395
    %v812 = vunpack.c.3.s8 %v388
    %v813 = vunpack.c.3.s8 %v389
    %v814 = vunpack.c.3.s8 %v390
    %v815 = vunpack.c.3.s8 %v391
    %v816 = vunpack.c.3.s8 %v392
    %v817 = vunpack.c.3.s8 %v393
    %v818 = vunpack.c.3.s8 %v394
    %v819 = vunpack.c.3.s8 %v395
    %v820 = vunpack.c.0.s8 %v396
    %v821 = vunpack.c.0.s8 %v397
    %v822 = vunpack.c.0.s8 %v398
    %v823 = vunpack.c.0.s8 %v399
    %v824 = vunpack.c.0.s8 %v400
    %v825 = vunpack.c.0.s8 %v401
    %v826 = vunpack.c.0.s8 %v402
    %v827 = vunpack.c.0.s8 %v403
    %v828 = vunpack.c.1.s8 %v396
    %v829 = vunpack.c.1.s8 %v397
    %v830 = vunpack.c.1.s8 %v398
    %v831 = vunpack.c.1.s8 %v399
    %v832 = vunpack.c.1.s8 %v400
    %v833 = vunpack.c.1.s8 %v401
    %v834 = vunpack.c.1.s8 %v402
    %v835 = vunpack.c.1.s8 %v403
    %v836 = vunpack.c.2.s8 %v396
    %v837 = vunpack.c.2.s8 %v397
    %v838 = vunpack.c.2.s8 %v398
    %v839 = vunpack.c.2.s8 %v399
    %v840 = vunpack.c.2.s8 %v400
    %v841 = vunpack.c.2.s8 %v401
    %v842 = vunpack.c.2.s8 %v402
    %v843 = vunpack.c.2.s8 %v403
    %v844 = vunpack.c.3.s8 %v396
    %v845 = vunpack.c.3.s8 %v397
    %v846 = vunpack.c.3.s8 %v398
    %v847 = vunpack.c.3.s8 %v399
    %v848 = vunpack.c.3.s8 %v400
    %v849 = vunpack.c.3.s8 %v401
    %v850 = vunpack.c.3.s8 %v402
    %v851 = vunpack.c.3.s8 %v403
    %v852 = vunpack.c.0.s8 %v404
    %v853 = vunpack.c.0.s8 %v405
    %v854 = vunpack.c.0.s8 %v406
    %v855 = vunpack.c.0.s8 %v407
    %v856 = vunpack.c.0.s8 %v408
    %v857 = vunpack.c.0.s8 %v409
    %v858 = vunpack.c.0.s8 %v410
    %v859 = vunpack.c.0.s8 %v411
    %v860 = vunpack.c.1.s8 %v404
    %v861 = vunpack.c.1.s8 %v405
    %v862 = vunpack.c.1.s8 %v406
    %v863 = vunpack.c.1.s8 %v407
    %v864 = vunpack.c.1.s8 %v408
    %v865 = vunpack.c.1.s8 %v409
    %v866 = vunpack.c.1.s8 %v410
    %v867 = vunpack.c.1.s8 %v411
    %v868 = vunpack.c.2.s8 %v404
    %v869 = vunpack.c.2.s8 %v405
    %v870 = vunpack.c.2.s8 %v406
    %v871 = vunpack.c.2.s8 %v407
    %v872 = vunpack.c.2.s8 %v408
    %v873 = vunpack.c.2.s8 %v409
    %v874 = vunpack.c.2.s8 %v410
    %v875 = vunpack.c.2.s8 %v411
    %v876 = vunpack.c.3.s8 %v404
    %v877 = vunpack.c.3.s8 %v405
    %v878 = vunpack.c.3.s8 %v406
    %v879 = vunpack.c.3.s8 %v407
    %v880 = vunpack.c.3.s8 %v408
    %v881 = vunpack.c.3.s8 %v409
    %v882 = vunpack.c.3.s8 %v410
    %v883 = vunpack.c.3.s8 %v411
    %v884 = vunpack.c.0.s8 %v412
    %v885 = vunpack.c.0.s8 %v413
    %v886 = vunpack.c.0.s8 %v414
    %v887 = vunpack.c.0.s8 %v415
    %v888 = vunpack.c.0.s8 %v416
    %v889 = vunpack.c.0.s8 %v417
    %v890 = vunpack.c.0.s8 %v418
    %v891 = vunpack.c.0.s8 %v419
    %v892 = vunpack.c.1.s8 %v412
    %v893 = vunpack.c.1.s8 %v413
    %v894 = vunpack.c.1.s8 %v414
    %v895 = vunpack.c.1.s8 %v415
    %v896 = vunpack.c.1.s8 %v416
    %v897 = vunpack.c.1.s8 %v417
    %v898 = vunpack.c.1.s8 %v418
    %v899 = vunpack.c.1.s8 %v419
    %v900 = vunpack.c.2.s8 %v412
    %v901 = vunpack.c.2.s8 %v413
    %v902 = vunpack.c.2.s8 %v414
    %v903 = vunpack.c.2.s8 %v415
    %v904 = vunpack.c.2.s8 %v416
    %v905 = vunpack.c.2.s8 %v417
    %v906 = vunpack.c.2.s8 %v418
    %v907 = vunpack.c.2.s8 %v419
    %v908 = vunpack.c.3.s8 %v412
    %v909 = vunpack.c.3.s8 %v413
    %v910 = vunpack.c.3.s8 %v414
    %v911 = vunpack.c.3.s8 %v415
    %v912 = vunpack.c.3.s8 %v416
    %v913 = vunpack.c.3.s8 %v417
    %v914 = vunpack.c.3.s8 %v418
    %v915 = vunpack.c.3.s8 %v419
    %v916 = vunpack.c.0.s8 %v420
    %v917 = vunpack.c.0.s8 %v421
    %v918 = vunpack.c.0.s8 %v422
    %v919 = vunpack.c.0.s8 %v423
    %v920 = vunpack.c.0.s8 %v424
    %v921 = vunpack.c.0.s8 %v425
    %v922 = vunpack.c.0.s8 %v426
    %v923 = vunpack.c.0.s8 %v427
    %v924 = vunpack.c.1.s8 %v420
    %v925 = vunpack.c.1.s8 %v421
    %v926 = vunpack.c.1.s8 %v422
    %v927 = vunpack.c.1.s8 %v423
    %v928 = vunpack.c.1.s8 %v424
    %v929 = vunpack.c.1.s8 %v425
    %v930 = vunpack.c.1.s8 %v426
    %v931 = vunpack.c.1.s8 %v427
    %v932 = vunpack.c.2.s8 %v420
    %v933 = vunpack.c.2.s8 %v421
    %v934 = vunpack.c.2.s8 %v422
    %v935 = vunpack.c.2.s8 %v423
    %v936 = vunpack.c.2.s8 %v424
    %v937 = vunpack.c.2.s8 %v425
    %v938 = vunpack.c.2.s8 %v426
    %v939 = vunpack.c.2.s8 %v427
    %v940 = vunpack.c.3.s8 %v420
    %v941 = vunpack.c.3.s8 %v421
    %v942 = vunpack.c.3.s8 %v422
    %v943 = vunpack.c.3.s8 %v423
    %v944 = vunpack.c.3.s8 %v424
    %v945 = vunpack.c.3.s8 %v425
    %v946 = vunpack.c.3.s8 %v426
    %v947 = vunpack.c.3.s8 %v427
    %v948 = vunpack.c.0.s8 %v428
    %v949 = vunpack.c.0.s8 %v429
    %v950 = vunpack.c.0.s8 %v430
    %v951 = vunpack.c.0.s8 %v431
    %v952 = vunpack.c.0.s8 %v432
    %v953 = vunpack.c.0.s8 %v433
    %v954 = vunpack.c.0.s8 %v434
    %v955 = vunpack.c.0.s8 %v435
    %v956 = vunpack.c.1.s8 %v428
    %v957 = vunpack.c.1.s8 %v429
    %v958 = vunpack.c.1.s8 %v430
    %v959 = vunpack.c.1.s8 %v431
    %v960 = vunpack.c.1.s8 %v432
    %v961 = vunpack.c.1.s8 %v433
    %v962 = vunpack.c.1.s8 %v434
    %v963 = vunpack.c.1.s8 %v435
    %v964 = vunpack.c.2.s8 %v428
    %v965 = vunpack.c.2.s8 %v429
    %v966 = vunpack.c.2.s8 %v430
    %v967 = vunpack.c.2.s8 %v431
    %v968 = vunpack.c.2.s8 %v432
    %v969 = vunpack.c.2.s8 %v433
    %v970 = vunpack.c.2.s8 %v434
    %v971 = vunpack.c.2.s8 %v435
    %v972 = vunpack.c.3.s8 %v428
    %v973 = vunpack.c.3.s8 %v429
    %v974 = vunpack.c.3.s8 %v430
    %v975 = vunpack.c.3.s8 %v431
    %v976 = vunpack.c.3.s8 %v432
    %v977 = vunpack.c.3.s8 %v433
    %v978 = vunpack.c.3.s8 %v434
    %v979 = vunpack.c.3.s8 %v435
    %v980 = vunpack.c.0.s8 %v436
    %v981 = vunpack.c.0.s8 %v437
    %v982 = vunpack.c.0.s8 %v438
    %v983 = vunpack.c.0.s8 %v439
    %v984 = vunpack.c.0.s8 %v440
    %v985 = vunpack.c.0.s8 %v441
    %v986 = vunpack.c.0.s8 %v442
    %v987 = vunpack.c.0.s8 %v443
    %v988 = vunpack.c.1.s8 %v436
    %v989 = vunpack.c.1.s8 %v437
    %v990 = vunpack.c.1.s8 %v438
    %v991 = vunpack.c.1.s8 %v439
    %v992 = vunpack.c.1.s8 %v440
    %v993 = vunpack.c.1.s8 %v441
    %v994 = vunpack.c.1.s8 %v442
    %v995 = vunpack.c.1.s8 %v443
    %v996 = vunpack.c.2.s8 %v436
    %v997 = vunpack.c.2.s8 %v437
    %v998 = vunpack.c.2.s8 %v438
    %v999 = vunpack.c.2.s8 %v439
    %v1000 = vunpack.c.2.s8 %v440
    %v1001 = vunpack.c.2.s8 %v441
    %v1002 = vunpack.c.2.s8 %v442
    %v1003 = vunpack.c.2.s8 %v443
    %v1004 = vunpack.c.3.s8 %v436
    %v1005 = vunpack.c.3.s8 %v437
    %v1006 = vunpack.c.3.s8 %v438
    %v1007 = vunpack.c.3.s8 %v439
    %v1008 = vunpack.c.3.s8 %v440
    %v1009 = vunpack.c.3.s8 %v441
    %v1010 = vunpack.c.3.s8 %v442
    %v1011 = vunpack.c.3.s8 %v443
    %v1012 = vunpack.c.0.s8 %v444
    %v1013 = vunpack.c.0.s8 %v445
    %v1014 = vunpack.c.0.s8 %v446
    %v1015 = vunpack.c.0.s8 %v447
    %v1016 = vunpack.c.0.s8 %v448
    %v1017 = vunpack.c.0.s8 %v449
    %v1018 = vunpack.c.0.s8 %v450
    %v1019 = vunpack.c.0.s8 %v451
    %v1020 = vunpack.c.1.s8 %v444
    %v1021 = vunpack.c.1.s8 %v445
    %v1022 = vunpack.c.1.s8 %v446
    %v1023 = vunpack.c.1.s8 %v447
    %v1024 = vunpack.c.1.s8 %v448
    %v1025 = vunpack.c.1.s8 %v449
    %v1026 = vunpack.c.1.s8 %v450
    %v1027 = vunpack.c.1.s8 %v451
    %v1028 = vunpack.c.2.s8 %v444
    %v1029 = vunpack.c.2.s8 %v445
    %v1030 = vunpack.c.2.s8 %v446
    %v1031 = vunpack.c.2.s8 %v447
    %v1032 = vunpack.c.2.s8 %v448
    %v1033 = vunpack.c.2.s8 %v449
    %v1034 = vunpack.c.2.s8 %v450
    %v1035 = vunpack.c.2.s8 %v451
    %v1036 = vunpack.c.3.s8 %v444
    %v1037 = vunpack.c.3.s8 %v445
    %v1038 = vunpack.c.3.s8 %v446
    %v1039 = vunpack.c.3.s8 %v447
    %v1040 = vunpack.c.3.s8 %v448
    %v1041 = vunpack.c.3.s8 %v449
    %v1042 = vunpack.c.3.s8 %v450
    %v1043 = vunpack.c.3.s8 %v451
    %v1044 = vunpack.c.0.s8 %v452
    %v1045 = vunpack.c.0.s8 %v453
    %v1046 = vunpack.c.0.s8 %v454
    %v1047 = vunpack.c.0.s8 %v455
    %v1048 = vunpack.c.0.s8 %v456
    %v1049 = vunpack.c.0.s8 %v457
    %v1050 = vunpack.c.0.s8 %v458
    %v1051 = vunpack.c.0.s8 %v459
    %v1052 = vunpack.c.1.s8 %v452
    %v1053 = vunpack.c.1.s8 %v453
    %v1054 = vunpack.c.1.s8 %v454
    %v1055 = vunpack.c.1.s8 %v455
    %v1056 = vunpack.c.1.s8 %v456
    %v1057 = vunpack.c.1.s8 %v457
    %v1058 = vunpack.c.1.s8 %v458
    %v1059 = vunpack.c.1.s8 %v459
    %v1060 = vunpack.c.2.s8 %v452
    %v1061 = vunpack.c.2.s8 %v453
    %v1062 = vunpack.c.2.s8 %v454
    %v1063 = vunpack.c.2.s8 %v455
    %v1064 = vunpack.c.2.s8 %v456
    %v1065 = vunpack.c.2.s8 %v457
    %v1066 = vunpack.c.2.s8 %v458
    %v1067 = vunpack.c.2.s8 %v459
    %v1068 = vunpack.c.3.s8 %v452
    %v1069 = vunpack.c.3.s8 %v453
    %v1070 = vunpack.c.3.s8 %v454
    %v1071 = vunpack.c.3.s8 %v455
    %v1072 = vunpack.c.3.s8 %v456
    %v1073 = vunpack.c.3.s8 %v457
    %v1074 = vunpack.c.3.s8 %v458
    %v1075 = vunpack.c.3.s8 %v459
    %v1076 = vunpack.c.0.s8 %v460
    %v1077 = vunpack.c.0.s8 %v461
    %v1078 = vunpack.c.0.s8 %v462
    %v1079 = vunpack.c.0.s8 %v463
    %v1080 = vunpack.c.0.s8 %v464
    %v1081 = vunpack.c.0.s8 %v465
    %v1082 = vunpack.c.0.s8 %v466
    %v1083 = vunpack.c.0.s8 %v467
    %v1084 = vunpack.c.1.s8 %v460
    %v1085 = vunpack.c.1.s8 %v461
    %v1086 = vunpack.c.1.s8 %v462
    %v1087 = vunpack.c.1.s8 %v463
    %v1088 = vunpack.c.1.s8 %v464
    %v1089 = vunpack.c.1.s8 %v465
    %v1090 = vunpack.c.1.s8 %v466
    %v1091 = vunpack.c.1.s8 %v467
    %v1092 = vunpack.c.2.s8 %v460
    %v1093 = vunpack.c.2.s8 %v461
    %v1094 = vunpack.c.2.s8 %v462
    %v1095 = vunpack.c.2.s8 %v463
    %v1096 = vunpack.c.2.s8 %v464
    %v1097 = vunpack.c.2.s8 %v465
    %v1098 = vunpack.c.2.s8 %v466
    %v1099 = vunpack.c.2.s8 %v467
    %v1100 = vunpack.c.3.s8 %v460
    %v1101 = vunpack.c.3.s8 %v461
    %v1102 = vunpack.c.3.s8 %v462
    %v1103 = vunpack.c.3.s8 %v463
    %v1104 = vunpack.c.3.s8 %v464
    %v1105 = vunpack.c.3.s8 %v465
    %v1106 = vunpack.c.3.s8 %v466
    %v1107 = vunpack.c.3.s8 %v467
    %v1108 = vunpack.c.0.s8 %v468
    %v1109 = vunpack.c.0.s8 %v469
    %v1110 = vunpack.c.0.s8 %v470
    %v1111 = vunpack.c.0.s8 %v471
    %v1112 = vunpack.c.0.s8 %v472
    %v1113 = vunpack.c.0.s8 %v473
    %v1114 = vunpack.c.0.s8 %v474
    %v1115 = vunpack.c.0.s8 %v475
    %v1116 = vunpack.c.1.s8 %v468
    %v1117 = vunpack.c.1.s8 %v469
    %v1118 = vunpack.c.1.s8 %v470
    %v1119 = vunpack.c.1.s8 %v471
    %v1120 = vunpack.c.1.s8 %v472
    %v1121 = vunpack.c.1.s8 %v473
    %v1122 = vunpack.c.1.s8 %v474
    %v1123 = vunpack.c.1.s8 %v475
    %v1124 = vunpack.c.2.s8 %v468
    %v1125 = vunpack.c.2.s8 %v469
    %v1126 = vunpack.c.2.s8 %v470
    %v1127 = vunpack.c.2.s8 %v471
    %v1128 = vunpack.c.2.s8 %v472
    %v1129 = vunpack.c.2.s8 %v473
    %v1130 = vunpack.c.2.s8 %v474
    %v1131 = vunpack.c.2.s8 %v475
    %v1132 = vunpack.c.3.s8 %v468
    %v1133 = vunpack.c.3.s8 %v469
    %v1134 = vunpack.c.3.s8 %v470
    %v1135 = vunpack.c.3.s8 %v471
    %v1136 = vunpack.c.3.s8 %v472
    %v1137 = vunpack.c.3.s8 %v473
    %v1138 = vunpack.c.3.s8 %v474
    %v1139 = vunpack.c.3.s8 %v475
    %v1140 = vunpack.c.0.s8 %v476
    %v1141 = vunpack.c.0.s8 %v477
    %v1142 = vunpack.c.0.s8 %v478
    %v1143 = vunpack.c.0.s8 %v479
    %v1144 = vunpack.c.0.s8 %v480
    %v1145 = vunpack.c.0.s8 %v481
    %v1146 = vunpack.c.0.s8 %v482
    %v1147 = vunpack.c.0.s8 %v483
    %v1148 = vunpack.c.1.s8 %v476
    %v1149 = vunpack.c.1.s8 %v477
    %v1150 = vunpack.c.1.s8 %v478
    %v1151 = vunpack.c.1.s8 %v479
    %v1152 = vunpack.c.1.s8 %v480
    %v1153 = vunpack.c.1.s8 %v481
    %v1154 = vunpack.c.1.s8 %v482
    %v1155 = vunpack.c.1.s8 %v483
    %v1156 = vunpack.c.2.s8 %v476
    %v1157 = vunpack.c.2.s8 %v477
    %v1158 = vunpack.c.2.s8 %v478
    %v1159 = vunpack.c.2.s8 %v479
    %v1160 = vunpack.c.2.s8 %v480
    %v1161 = vunpack.c.2.s8 %v481
    %v1162 = vunpack.c.2.s8 %v482
    %v1163 = vunpack.c.2.s8 %v483
    %v1164 = vunpack.c.3.s8 %v476
    %v1165 = vunpack.c.3.s8 %v477
    %v1166 = vunpack.c.3.s8 %v478
    %v1167 = vunpack.c.3.s8 %v479
    %v1168 = vunpack.c.3.s8 %v480
    %v1169 = vunpack.c.3.s8 %v481
    %v1170 = vunpack.c.3.s8 %v482
    %v1171 = vunpack.c.3.s8 %v483
    %v1172 = vunpack.c.0.s8 %v484
    %v1173 = vunpack.c.0.s8 %v485
    %v1174 = vunpack.c.0.s8 %v486
    %v1175 = vunpack.c.0.s8 %v487
    %v1176 = vunpack.c.0.s8 %v488
    %v1177 = vunpack.c.0.s8 %v489
    %v1178 = vunpack.c.0.s8 %v490
    %v1179 = vunpack.c.0.s8 %v491
    %v1180 = vunpack.c.1.s8 %v484
    %v1181 = vunpack.c.1.s8 %v485
    %v1182 = vunpack.c.1.s8 %v486
    %v1183 = vunpack.c.1.s8 %v487
    %v1184 = vunpack.c.1.s8 %v488
    %v1185 = vunpack.c.1.s8 %v489
    %v1186 = vunpack.c.1.s8 %v490
    %v1187 = vunpack.c.1.s8 %v491
    %v1188 = vunpack.c.2.s8 %v484
    %v1189 = vunpack.c.2.s8 %v485
    %v1190 = vunpack.c.2.s8 %v486
    %v1191 = vunpack.c.2.s8 %v487
    %v1192 = vunpack.c.2.s8 %v488
    %v1193 = vunpack.c.2.s8 %v489
    %v1194 = vunpack.c.2.s8 %v490
    %v1195 = vunpack.c.2.s8 %v491
    %v1196 = vunpack.c.3.s8 %v484
    %v1197 = vunpack.c.3.s8 %v485
    %v1198 = vunpack.c.3.s8 %v486
    %v1199 = vunpack.c.3.s8 %v487
    %v1200 = vunpack.c.3.s8 %v488
    %v1201 = vunpack.c.3.s8 %v489
    %v1202 = vunpack.c.3.s8 %v490
    %v1203 = vunpack.c.3.s8 %v491
    %v1204 = vunpack.c.0.s8 %v492
    %v1205 = vunpack.c.0.s8 %v493
    %v1206 = vunpack.c.0.s8 %v494
    %v1207 = vunpack.c.0.s8 %v495
    %v1208 = vunpack.c.0.s8 %v496
    %v1209 = vunpack.c.0.s8 %v497
    %v1210 = vunpack.c.0.s8 %v498
    %v1211 = vunpack.c.0.s8 %v499
    %v1212 = vunpack.c.1.s8 %v492
    %v1213 = vunpack.c.1.s8 %v493
    %v1214 = vunpack.c.1.s8 %v494
    %v1215 = vunpack.c.1.s8 %v495
    %v1216 = vunpack.c.1.s8 %v496
    %v1217 = vunpack.c.1.s8 %v497
    %v1218 = vunpack.c.1.s8 %v498
    %v1219 = vunpack.c.1.s8 %v499
    %v1220 = vunpack.c.2.s8 %v492
    %v1221 = vunpack.c.2.s8 %v493
    %v1222 = vunpack.c.2.s8 %v494
    %v1223 = vunpack.c.2.s8 %v495
    %v1224 = vunpack.c.2.s8 %v496
    %v1225 = vunpack.c.2.s8 %v497
    %v1226 = vunpack.c.2.s8 %v498
    %v1227 = vunpack.c.2.s8 %v499
    %v1228 = vunpack.c.3.s8 %v492
    %v1229 = vunpack.c.3.s8 %v493
    %v1230 = vunpack.c.3.s8 %v494
    %v1231 = vunpack.c.3.s8 %v495
    %v1232 = vunpack.c.3.s8 %v496
    %v1233 = vunpack.c.3.s8 %v497
    %v1234 = vunpack.c.3.s8 %v498
    %v1235 = vunpack.c.3.s8 %v499
    %v1236 = vunpack.c.0.s8 %v500
    %v1237 = vunpack.c.0.s8 %v501
    %v1238 = vunpack.c.0.s8 %v502
    %v1239 = vunpack.c.0.s8 %v503
    %v1240 = vunpack.c.0.s8 %v504
    %v1241 = vunpack.c.0.s8 %v505
    %v1242 = vunpack.c.0.s8 %v506
    %v1243 = vunpack.c.0.s8 %v507
    %v1244 = vunpack.c.1.s8 %v500
    %v1245 = vunpack.c.1.s8 %v501
    %v1246 = vunpack.c.1.s8 %v502
    %v1247 = vunpack.c.1.s8 %v503
    %v1248 = vunpack.c.1.s8 %v504
    %v1249 = vunpack.c.1.s8 %v505
    %v1250 = vunpack.c.1.s8 %v506
    %v1251 = vunpack.c.1.s8 %v507
    %v1252 = vunpack.c.2.s8 %v500
    %v1253 = vunpack.c.2.s8 %v501
    %v1254 = vunpack.c.2.s8 %v502
    %v1255 = vunpack.c.2.s8 %v503
    %v1256 = vunpack.c.2.s8 %v504
    %v1257 = vunpack.c.2.s8 %v505
    %v1258 = vunpack.c.2.s8 %v506
    %v1259 = vunpack.c.2.s8 %v507
    %v1260 = vunpack.c.3.s8 %v500
    %v1261 = vunpack.c.3.s8 %v501
    %v1262 = vunpack.c.3.s8 %v502
    %v1263 = vunpack.c.3.s8 %v503
    %v1264 = vunpack.c.3.s8 %v504
    %v1265 = vunpack.c.3.s8 %v505
    %v1266 = vunpack.c.3.s8 %v506
    %v1267 = vunpack.c.3.s8 %v507
    %v1268 = vunpack.c.0.s8 %v508
    %v1269 = vunpack.c.0.s8 %v509
    %v1270 = vunpack.c.0.s8 %v510
    %v1271 = vunpack.c.0.s8 %v511
    %v1272 = vunpack.c.0.s8 %v512
    %v1273 = vunpack.c.0.s8 %v513
    %v1274 = vunpack.c.0.s8 %v514
    %v1275 = vunpack.c.0.s8 %v515
    %v1276 = vunpack.c.1.s8 %v508
    %v1277 = vunpack.c.1.s8 %v509
    %v1278 = vunpack.c.1.s8 %v510
    %v1279 = vunpack.c.1.s8 %v511
    %v1280 = vunpack.c.1.s8 %v512
    %v1281 = vunpack.c.1.s8 %v513
    %v1282 = vunpack.c.1.s8 %v514
    %v1283 = vunpack.c.1.s8 %v515
    %v1284 = vunpack.c.2.s8 %v508
    %v1285 = vunpack.c.2.s8 %v509
    %v1286 = vunpack.c.2.s8 %v510
    %v1287 = vunpack.c.2.s8 %v511
    %v1288 = vunpack.c.2.s8 %v512
    %v1289 = vunpack.c.2.s8 %v513
    %v1290 = vunpack.c.2.s8 %v514
    %v1291 = vunpack.c.2.s8 %v515
    %v1292 = vunpack.c.3.s8 %v508
    %v1293 = vunpack.c.3.s8 %v509
    %v1294 = vunpack.c.3.s8 %v510
    %v1295 = vunpack.c.3.s8 %v511
    %v1296 = vunpack.c.3.s8 %v512
    %v1297 = vunpack.c.3.s8 %v513
    %v1298 = vunpack.c.3.s8 %v514
    %v1299 = vunpack.c.3.s8 %v515
    %v1300 = vunpack.c.0.s8 %v516
    %v1301 = vunpack.c.0.s8 %v517
    %v1302 = vunpack.c.0.s8 %v518
    %v1303 = vunpack.c.0.s8 %v519
    %v1304 = vunpack.c.0.s8 %v520
    %v1305 = vunpack.c.0.s8 %v521
    %v1306 = vunpack.c.0.s8 %v522
    %v1307 = vunpack.c.0.s8 %v523
    %v1308 = vunpack.c.1.s8 %v516
    %v1309 = vunpack.c.1.s8 %v517
    %v1310 = vunpack.c.1.s8 %v518
    %v1311 = vunpack.c.1.s8 %v519
    %v1312 = vunpack.c.1.s8 %v520
    %v1313 = vunpack.c.1.s8 %v521
    %v1314 = vunpack.c.1.s8 %v522
    %v1315 = vunpack.c.1.s8 %v523
    %v1316 = vunpack.c.2.s8 %v516
    %v1317 = vunpack.c.2.s8 %v517
    %v1318 = vunpack.c.2.s8 %v518
    %v1319 = vunpack.c.2.s8 %v519
    %v1320 = vunpack.c.2.s8 %v520
    %v1321 = vunpack.c.2.s8 %v521
    %v1322 = vunpack.c.2.s8 %v522
    %v1323 = vunpack.c.2.s8 %v523
    %v1324 = vunpack.c.3.s8 %v516
    %v1325 = vunpack.c.3.s8 %v517
    %v1326 = vunpack.c.3.s8 %v518
    %v1327 = vunpack.c.3.s8 %v519
    %v1328 = vunpack.c.3.s8 %v520
    %v1329 = vunpack.c.3.s8 %v521
    %v1330 = vunpack.c.3.s8 %v522
    %v1331 = vunpack.c.3.s8 %v523
    %v1332 = vunpack.c.0.s8 %v524
    %v1333 = vunpack.c.0.s8 %v525
    %v1334 = vunpack.c.0.s8 %v526
    %v1335 = vunpack.c.0.s8 %v527
    %v1336 = vunpack.c.0.s8 %v528
    %v1337 = vunpack.c.0.s8 %v529
    %v1338 = vunpack.c.0.s8 %v530
    %v1339 = vunpack.c.0.s8 %v531
    %v1340 = vunpack.c.1.s8 %v524
    %v1341 = vunpack.c.1.s8 %v525
    %v1342 = vunpack.c.1.s8 %v526
    %v1343 = vunpack.c.1.s8 %v527
    %v1344 = vunpack.c.1.s8 %v528
    %v1345 = vunpack.c.1.s8 %v529
    %v1346 = vunpack.c.1.s8 %v530
    %v1347 = vunpack.c.1.s8 %v531
    %v1348 = vunpack.c.2.s8 %v524
    %v1349 = vunpack.c.2.s8 %v525
    %v1350 = vunpack.c.2.s8 %v526
    %v1351 = vunpack.c.2.s8 %v527
    %v1352 = vunpack.c.2.s8 %v528
    %v1353 = vunpack.c.2.s8 %v529
    %v1354 = vunpack.c.2.s8 %v530
    %v1355 = vunpack.c.2.s8 %v531
    %v1356 = vunpack.c.3.s8 %v524
    %v1357 = vunpack.c.3.s8 %v525
    %v1358 = vunpack.c.3.s8 %v526
    %v1359 = vunpack.c.3.s8 %v527
    %v1360 = vunpack.c.3.s8 %v528
    %v1361 = vunpack.c.3.s8 %v529
    %v1362 = vunpack.c.3.s8 %v530
    %v1363 = vunpack.c.3.s8 %v531
    %v1364 = vunpack.c.0.s8 %v532
    %v1365 = vunpack.c.0.s8 %v533
    %v1366 = vunpack.c.0.s8 %v534
    %v1367 = vunpack.c.0.s8 %v535
    %v1368 = vunpack.c.0.s8 %v536
    %v1369 = vunpack.c.0.s8 %v537
    %v1370 = vunpack.c.0.s8 %v538
    %v1371 = vunpack.c.0.s8 %v539
    %v1372 = vunpack.c.1.s8 %v532
    %v1373 = vunpack.c.1.s8 %v533
    %v1374 = vunpack.c.1.s8 %v534
    %v1375 = vunpack.c.1.s8 %v535
    %v1376 = vunpack.c.1.s8 %v536
    %v1377 = vunpack.c.1.s8 %v537
    %v1378 = vunpack.c.1.s8 %v538
    %v1379 = vunpack.c.1.s8 %v539
    %v1380 = vunpack.c.2.s8 %v532
    %v1381 = vunpack.c.2.s8 %v533
    %v1382 = vunpack.c.2.s8 %v534
    %v1383 = vunpack.c.2.s8 %v535
    %v1384 = vunpack.c.2.s8 %v536
    %v1385 = vunpack.c.2.s8 %v537
    %v1386 = vunpack.c.2.s8 %v538
    %v1387 = vunpack.c.2.s8 %v539
    %v1388 = vunpack.c.3.s8 %v532
    %v1389 = vunpack.c.3.s8 %v533
    %v1390 = vunpack.c.3.s8 %v534
    %v1391 = vunpack.c.3.s8 %v535
    %v1392 = vunpack.c.3.s8 %v536
    %v1393 = vunpack.c.3.s8 %v537
    %v1394 = vunpack.c.3.s8 %v538
    %v1395 = vunpack.c.3.s8 %v539
    %v1396 = vunpack.c.0.s8 %v540
    %v1397 = vunpack.c.0.s8 %v541
    %v1398 = vunpack.c.0.s8 %v542
    %v1399 = vunpack.c.0.s8 %v543
    %v1400 = vunpack.c.0.s8 %v544
    %v1401 = vunpack.c.0.s8 %v545
    %v1402 = vunpack.c.0.s8 %v546
    %v1403 = vunpack.c.0.s8 %v547
    %v1404 = vunpack.c.1.s8 %v540
    %v1405 = vunpack.c.1.s8 %v541
    %v1406 = vunpack.c.1.s8 %v542
    %v1407 = vunpack.c.1.s8 %v543
    %v1408 = vunpack.c.1.s8 %v544
    %v1409 = vunpack.c.1.s8 %v545
    %v1410 = vunpack.c.1.s8 %v546
    %v1411 = vunpack.c.1.s8 %v547
    %v1412 = vunpack.c.2.s8 %v540
    %v1413 = vunpack.c.2.s8 %v541
    %v1414 = vunpack.c.2.s8 %v542
    %v1415 = vunpack.c.2.s8 %v543
    %v1416 = vunpack.c.2.s8 %v544
    %v1417 = vunpack.c.2.s8 %v545
    %v1418 = vunpack.c.2.s8 %v546
    %v1419 = vunpack.c.2.s8 %v547
    %v1420 = vunpack.c.3.s8 %v540
    %v1421 = vunpack.c.3.s8 %v541
    %v1422 = vunpack.c.3.s8 %v542
    %v1423 = vunpack.c.3.s8 %v543
    %v1424 = vunpack.c.3.s8 %v544
    %v1425 = vunpack.c.3.s8 %v545
    %v1426 = vunpack.c.3.s8 %v546
    %v1427 = vunpack.c.3.s8 %v547
    %v1428 = vunpack.c.0.s8 %v548
    %v1429 = vunpack.c.0.s8 %v549
    %v1430 = vunpack.c.0.s8 %v550
    %v1431 = vunpack.c.0.s8 %v551
    %v1432 = vunpack.c.0.s8 %v552
    %v1433 = vunpack.c.0.s8 %v553
    %v1434 = vunpack.c.0.s8 %v554
    %v1435 = vunpack.c.0.s8 %v555
    %v1436 = vunpack.c.1.s8 %v548
    %v1437 = vunpack.c.1.s8 %v549
    %v1438 = vunpack.c.1.s8 %v550
    %v1439 = vunpack.c.1.s8 %v551
    %v1440 = vunpack.c.1.s8 %v552
    %v1441 = vunpack.c.1.s8 %v553
    %v1442 = vunpack.c.1.s8 %v554
    %v1443 = vunpack.c.1.s8 %v555
    %v1444 = vunpack.c.2.s8 %v548
    %v1445 = vunpack.c.2.s8 %v549
    %v1446 = vunpack.c.2.s8 %v550
    %v1447 = vunpack.c.2.s8 %v551
    %v1448 = vunpack.c.2.s8 %v552
    %v1449 = vunpack.c.2.s8 %v553
    %v1450 = vunpack.c.2.s8 %v554
    %v1451 = vunpack.c.2.s8 %v555
    %v1452 = vunpack.c.3.s8 %v548
    %v1453 = vunpack.c.3.s8 %v549
    %v1454 = vunpack.c.3.s8 %v550
    %v1455 = vunpack.c.3.s8 %v551
    %v1456 = vunpack.c.3.s8 %v552
    %v1457 = vunpack.c.3.s8 %v553
    %v1458 = vunpack.c.3.s8 %v554
    %v1459 = vunpack.c.3.s8 %v555
    %v1460 = vunpack.c.0.s8 %v556
    %v1461 = vunpack.c.0.s8 %v557
    %v1462 = vunpack.c.0.s8 %v558
    %v1463 = vunpack.c.0.s8 %v559
    %v1464 = vunpack.c.0.s8 %v560
    %v1465 = vunpack.c.0.s8 %v561
    %v1466 = vunpack.c.0.s8 %v562
    %v1467 = vunpack.c.0.s8 %v563
    %v1468 = vunpack.c.1.s8 %v556
    %v1469 = vunpack.c.1.s8 %v557
    %v1470 = vunpack.c.1.s8 %v558
    %v1471 = vunpack.c.1.s8 %v559
    %v1472 = vunpack.c.1.s8 %v560
    %v1473 = vunpack.c.1.s8 %v561
    %v1474 = vunpack.c.1.s8 %v562
    %v1475 = vunpack.c.1.s8 %v563
    %v1476 = vunpack.c.2.s8 %v556
    %v1477 = vunpack.c.2.s8 %v557
    %v1478 = vunpack.c.2.s8 %v558
    %v1479 = vunpack.c.2.s8 %v559
    %v1480 = vunpack.c.2.s8 %v560
    %v1481 = vunpack.c.2.s8 %v561
    %v1482 = vunpack.c.2.s8 %v562
    %v1483 = vunpack.c.2.s8 %v563
    %v1484 = vunpack.c.3.s8 %v556
    %v1485 = vunpack.c.3.s8 %v557
    %v1486 = vunpack.c.3.s8 %v558
    %v1487 = vunpack.c.3.s8 %v559
    %v1488 = vunpack.c.3.s8 %v560
    %v1489 = vunpack.c.3.s8 %v561
    %v1490 = vunpack.c.3.s8 %v562
    %v1491 = vunpack.c.3.s8 %v563
    %v1492 = vunpack.c.0.s8 %v564
    %v1493 = vunpack.c.0.s8 %v565
    %v1494 = vunpack.c.0.s8 %v566
    %v1495 = vunpack.c.0.s8 %v567
    %v1496 = vunpack.c.0.s8 %v568
    %v1497 = vunpack.c.0.s8 %v569
    %v1498 = vunpack.c.0.s8 %v570
    %v1499 = vunpack.c.0.s8 %v571
    %v1500 = vunpack.c.1.s8 %v564
    %v1501 = vunpack.c.1.s8 %v565
    %v1502 = vunpack.c.1.s8 %v566
    %v1503 = vunpack.c.1.s8 %v567
    %v1504 = vunpack.c.1.s8 %v568
    %v1505 = vunpack.c.1.s8 %v569
    %v1506 = vunpack.c.1.s8 %v570
    %v1507 = vunpack.c.1.s8 %v571
    %v1508 = vunpack.c.2.s8 %v564
    %v1509 = vunpack.c.2.s8 %v565
    %v1510 = vunpack.c.2.s8 %v566
    %v1511 = vunpack.c.2.s8 %v567
    %v1512 = vunpack.c.2.s8 %v568
    %v1513 = vunpack.c.2.s8 %v569
    %v1514 = vunpack.c.2.s8 %v570
    %v1515 = vunpack.c.2.s8 %v571
    %v1516 = vunpack.c.3.s8 %v564
    %v1517 = vunpack.c.3.s8 %v565
    %v1518 = vunpack.c.3.s8 %v566
    %v1519 = vunpack.c.3.s8 %v567
    %v1520 = vunpack.c.3.s8 %v568
    %v1521 = vunpack.c.3.s8 %v569
    %v1522 = vunpack.c.3.s8 %v570
    %v1523 = vunpack.c.3.s8 %v571
    %v1524 = vunpack.c.0.s8 %v572
    %v1525 = vunpack.c.0.s8 %v573
    %v1526 = vunpack.c.0.s8 %v574
    %v1527 = vunpack.c.0.s8 %v575
    %v1528 = vunpack.c.0.s8 %v576
    %v1529 = vunpack.c.0.s8 %v577
    %v1530 = vunpack.c.0.s8 %v578
    %v1531 = vunpack.c.0.s8 %v579
    %v1532 = vunpack.c.1.s8 %v572
    %v1533 = vunpack.c.1.s8 %v573
    %v1534 = vunpack.c.1.s8 %v574
    %v1535 = vunpack.c.1.s8 %v575
    %v1536 = vunpack.c.1.s8 %v576
    %v1537 = vunpack.c.1.s8 %v577
    %v1538 = vunpack.c.1.s8 %v578
    %v1539 = vunpack.c.1.s8 %v579
    %v1540 = vunpack.c.2.s8 %v572
    %v1541 = vunpack.c.2.s8 %v573
    %v1542 = vunpack.c.2.s8 %v574
    %v1543 = vunpack.c.2.s8 %v575
    %v1544 = vunpack.c.2.s8 %v576
    %v1545 = vunpack.c.2.s8 %v577
    %v1546 = vunpack.c.2.s8 %v578
    %v1547 = vunpack.c.2.s8 %v579
    %v1548 = vunpack.c.3.s8 %v572
    %v1549 = vunpack.c.3.s8 %v573
    %v1550 = vunpack.c.3.s8 %v574
    %v1551 = vunpack.c.3.s8 %v575
    %v1552 = vunpack.c.3.s8 %v576
    %v1553 = vunpack.c.3.s8 %v577
    %v1554 = vunpack.c.3.s8 %v578
    %v1555 = vunpack.c.3.s8 %v579
    %v1556 = vunpack.c.0.s8 %v580
    %v1557 = vunpack.c.0.s8 %v581
    %v1558 = vunpack.c.0.s8 %v582
    %v1559 = vunpack.c.0.s8 %v583
    %v1560 = vunpack.c.0.s8 %v584
    %v1561 = vunpack.c.0.s8 %v585
    %v1562 = vunpack.c.0.s8 %v586
    %v1563 = vunpack.c.0.s8 %v587
    %v1564 = vunpack.c.1.s8 %v580
    %v1565 = vunpack.c.1.s8 %v581
    %v1566 = vunpack.c.1.s8 %v582
    %v1567 = vunpack.c.1.s8 %v583
    %v1568 = vunpack.c.1.s8 %v584
    %v1569 = vunpack.c.1.s8 %v585
    %v1570 = vunpack.c.1.s8 %v586
    %v1571 = vunpack.c.1.s8 %v587
    %v1572 = vunpack.c.2.s8 %v580
    %v1573 = vunpack.c.2.s8 %v581
    %v1574 = vunpack.c.2.s8 %v582
    %v1575 = vunpack.c.2.s8 %v583
    %v1576 = vunpack.c.2.s8 %v584
    %v1577 = vunpack.c.2.s8 %v585
    %v1578 = vunpack.c.2.s8 %v586
    %v1579 = vunpack.c.2.s8 %v587
    %v1580 = vunpack.c.3.s8 %v580
    %v1581 = vunpack.c.3.s8 %v581
    %v1582 = vunpack.c.3.s8 %v582
    %v1583 = vunpack.c.3.s8 %v583
    %v1584 = vunpack.c.3.s8 %v584
    %v1585 = vunpack.c.3.s8 %v585
    %v1586 = vunpack.c.3.s8 %v586
    %v1587 = vunpack.c.3.s8 %v587
    %v1588 = vunpack.c.0.s8 %v588
    %v1589 = vunpack.c.0.s8 %v589
    %v1590 = vunpack.c.0.s8 %v590
    %v1591 = vunpack.c.0.s8 %v591
    %v1592 = vunpack.c.0.s8 %v592
    %v1593 = vunpack.c.0.s8 %v593
    %v1594 = vunpack.c.0.s8 %v594
    %v1595 = vunpack.c.0.s8 %v595
    %v1596 = vunpack.c.1.s8 %v588
    %v1597 = vunpack.c.1.s8 %v589
    %v1598 = vunpack.c.1.s8 %v590
    %v1599 = vunpack.c.1.s8 %v591
    %v1600 = vunpack.c.1.s8 %v592
    %v1601 = vunpack.c.1.s8 %v593
    %v1602 = vunpack.c.1.s8 %v594
    %v1603 = vunpack.c.1.s8 %v595
    %v1604 = vunpack.c.2.s8 %v588
    %v1605 = vunpack.c.2.s8 %v589
    %v1606 = vunpack.c.2.s8 %v590
    %v1607 = vunpack.c.2.s8 %v591
    %v1608 = vunpack.c.2.s8 %v592
    %v1609 = vunpack.c.2.s8 %v593
    %v1610 = vunpack.c.2.s8 %v594
    %v1611 = vunpack.c.2.s8 %v595
    %v1612 = vunpack.c.3.s8 %v588
    %v1613 = vunpack.c.3.s8 %v589
    %v1614 = vunpack.c.3.s8 %v590
    %v1615 = vunpack.c.3.s8 %v591
    %v1616 = vunpack.c.3.s8 %v592
    %v1617 = vunpack.c.3.s8 %v593
    %v1618 = vunpack.c.3.s8 %v594
    %v1619 = vunpack.c.3.s8 %v595
    %v1620 = vcvt.s32.f32 %v596
    %v1621 = vcvt.s32.f32 %v597
    %v1622 = vcvt.s32.f32 %v598
    %v1623 = vcvt.s32.f32 %v599
    %v1624 = vcvt.s32.f32 %v600
    %v1625 = vcvt.s32.f32 %v601
    %v1626 = vcvt.s32.f32 %v602
    %v1627 = vcvt.s32.f32 %v603
    %v1628 = vcvt.s32.f32 %v604
    %v1629 = vcvt.s32.f32 %v605
    %v1630 = vcvt.s32.f32 %v606
    %v1631 = vcvt.s32.f32 %v607
    %v1632 = vcvt.s32.f32 %v608
    %v1633 = vcvt.s32.f32 %v609
    %v1634 = vcvt.s32.f32 %v610
    %v1635 = vcvt.s32.f32 %v611
    %v1636 = vcvt.s32.f32 %v612
    %v1637 = vcvt.s32.f32 %v613
    %v1638 = vcvt.s32.f32 %v614
    %v1639 = vcvt.s32.f32 %v615
    %v1640 = vcvt.s32.f32 %v616
    %v1641 = vcvt.s32.f32 %v617
    %v1642 = vcvt.s32.f32 %v618
    %v1643 = vcvt.s32.f32 %v619
    %v1644 = vcvt.s32.f32 %v620
    %v1645 = vcvt.s32.f32 %v621
    %v1646 = vcvt.s32.f32 %v622
    %v1647 = vcvt.s32.f32 %v623
    %v1648 = vcvt.s32.f32 %v624
    %v1649 = vcvt.s32.f32 %v625
    %v1650 = vcvt.s32.f32 %v626
    %v1651 = vcvt.s32.f32 %v627
    %v1652 = vcvt.s32.f32 %v628
    %v1653 = vcvt.s32.f32 %v629
    %v1654 = vcvt.s32.f32 %v630
    %v1655 = vcvt.s32.f32 %v631
    %v1656 = vcvt.s32.f32 %v632
    %v1657 = vcvt.s32.f32 %v633
    %v1658 = vcvt.s32.f32 %v634
    %v1659 = vcvt.s32.f32 %v635
    %v1660 = vcvt.s32.f32 %v636
    %v1661 = vcvt.s32.f32 %v637
    %v1662 = vcvt.s32.f32 %v638
    %v1663 = vcvt.s32.f32 %v639
    %v1664 = vcvt.s32.f32 %v640
    %v1665 = vcvt.s32.f32 %v641
    %v1666 = vcvt.s32.f32 %v642
    %v1667 = vcvt.s32.f32 %v643
    %v1668 = vcvt.s32.f32 %v644
    %v1669 = vcvt.s32.f32 %v645
    %v1670 = vcvt.s32.f32 %v646
    %v1671 = vcvt.s32.f32 %v647
    %v1672 = vcvt.s32.f32 %v648
    %v1673 = vcvt.s32.f32 %v649
    %v1674 = vcvt.s32.f32 %v650
    %v1675 = vcvt.s32.f32 %v651
    %v1676 = vcvt.s32.f32 %v652
    %v1677 = vcvt.s32.f32 %v653
    %v1678 = vcvt.s32.f32 %v654
    %v1679 = vcvt.s32.f32 %v655
    %v1680 = vcvt.s32.f32 %v656
    %v1681 = vcvt.s32.f32 %v657
    %v1682 = vcvt.s32.f32 %v658
    %v1683 = vcvt.s32.f32 %v659
    %v1684 = vcvt.s32.f32 %v660
    %v1685 = vcvt.s32.f32 %v661
    %v1686 = vcvt.s32.f32 %v662
    %v1687 = vcvt.s32.f32 %v663
    %v1688 = vcvt.s32.f32 %v664
    %v1689 = vcvt.s32.f32 %v665
    %v1690 = vcvt.s32.f32 %v666
    %v1691 = vcvt.s32.f32 %v667
    %v1692 = vcvt.s32.f32 %v668
    %v1693 = vcvt.s32.f32 %v669
    %v1694 = vcvt.s32.f32 %v670
    %v1695 = vcvt.s32.f32 %v671
    %v1696 = vcvt.s32.f32 %v672
    %v1697 = vcvt.s32.f32 %v673
    %v1698 = vcvt.s32.f32 %v674
    %v1699 = vcvt.s32.f32 %v675
    %v1700 = vcvt.s32.f32 %v676
    %v1701 = vcvt.s32.f32 %v677
    %v1702 = vcvt.s32.f32 %v678
    %v1703 = vcvt.s32.f32 %v679
    %v1704 = vcvt.s32.f32 %v680
    %v1705 = vcvt.s32.f32 %v681
    %v1706 = vcvt.s32.f32 %v682
    %v1707 = vcvt.s32.f32 %v683
    %v1708 = vcvt.s32.f32 %v684
    %v1709 = vcvt.s32.f32 %v685
    %v1710 = vcvt.s32.f32 %v686
    %v1711 = vcvt.s32.f32 %v687
    %v1712 = vcvt.s32.f32 %v688
    %v1713 = vcvt.s32.f32 %v689
    %v1714 = vcvt.s32.f32 %v690
    %v1715 = vcvt.s32.f32 %v691
    %v1716 = vcvt.s32.f32 %v692
    %v1717 = vcvt.s32.f32 %v693
    %v1718 = vcvt.s32.f32 %v694
    %v1719 = vcvt.s32.f32 %v695
    %v1720 = vcvt.s32.f32 %v696
    %v1721 = vcvt.s32.f32 %v697
    %v1722 = vcvt.s32.f32 %v698
    %v1723 = vcvt.s32.f32 %v699
    %v1724 = vcvt.s32.f32 %v700
    %v1725 = vcvt.s32.f32 %v701
    %v1726 = vcvt.s32.f32 %v702
    %v1727 = vcvt.s32.f32 %v703
    %v1728 = vcvt.s32.f32 %v704
    %v1729 = vcvt.s32.f32 %v705
    %v1730 = vcvt.s32.f32 %v706
    %v1731 = vcvt.s32.f32 %v707
    %v1732 = vcvt.s32.f32 %v708
    %v1733 = vcvt.s32.f32 %v709
    %v1734 = vcvt.s32.f32 %v710
    %v1735 = vcvt.s32.f32 %v711
    %v1736 = vcvt.s32.f32 %v712
    %v1737 = vcvt.s32.f32 %v713
    %v1738 = vcvt.s32.f32 %v714
    %v1739 = vcvt.s32.f32 %v715
    %v1740 = vcvt.s32.f32 %v716
    %v1741 = vcvt.s32.f32 %v717
    %v1742 = vcvt.s32.f32 %v718
    %v1743 = vcvt.s32.f32 %v719
    %v1744 = vcvt.s32.f32 %v720
    %v1745 = vcvt.s32.f32 %v721
    %v1746 = vcvt.s32.f32 %v722
    %v1747 = vcvt.s32.f32 %v723
    %v1748 = vcvt.s32.f32 %v724
    %v1749 = vcvt.s32.f32 %v725
    %v1750 = vcvt.s32.f32 %v726
    %v1751 = vcvt.s32.f32 %v727
    %v1752 = vcvt.s32.f32 %v728
    %v1753 = vcvt.s32.f32 %v729
    %v1754 = vcvt.s32.f32 %v730
    %v1755 = vcvt.s32.f32 %v731
    %v1756 = vcvt.s32.f32 %v732
    %v1757 = vcvt.s32.f32 %v733
    %v1758 = vcvt.s32.f32 %v734
    %v1759 = vcvt.s32.f32 %v735
    %v1760 = vcvt.s32.f32 %v736
    %v1761 = vcvt.s32.f32 %v737
    %v1762 = vcvt.s32.f32 %v738
    %v1763 = vcvt.s32.f32 %v739
    %v1764 = vcvt.s32.f32 %v740
    %v1765 = vcvt.s32.f32 %v741
    %v1766 = vcvt.s32.f32 %v742
    %v1767 = vcvt.s32.f32 %v743
    %v1768 = vcvt.s32.f32 %v744
    %v1769 = vcvt.s32.f32 %v745
    %v1770 = vcvt.s32.f32 %v746
    %v1771 = vcvt.s32.f32 %v747
    %v1772 = vcvt.s32.f32 %v748
    %v1773 = vcvt.s32.f32 %v749
    %v1774 = vcvt.s32.f32 %v750
    %v1775 = vcvt.s32.f32 %v751
    %v1776 = vcvt.s32.f32 %v752
    %v1777 = vcvt.s32.f32 %v753
    %v1778 = vcvt.s32.f32 %v754
    %v1779 = vcvt.s32.f32 %v755
    %v1780 = vcvt.s32.f32 %v756
    %v1781 = vcvt.s32.f32 %v757
    %v1782 = vcvt.s32.f32 %v758
    %v1783 = vcvt.s32.f32 %v759
    %v1784 = vcvt.s32.f32 %v760
    %v1785 = vcvt.s32.f32 %v761
    %v1786 = vcvt.s32.f32 %v762
    %v1787 = vcvt.s32.f32 %v763
    %v1788 = vcvt.s32.f32 %v764
    %v1789 = vcvt.s32.f32 %v765
    %v1790 = vcvt.s32.f32 %v766
    %v1791 = vcvt.s32.f32 %v767
    %v1792 = vcvt.s32.f32 %v768
    %v1793 = vcvt.s32.f32 %v769
    %v1794 = vcvt.s32.f32 %v770
    %v1795 = vcvt.s32.f32 %v771
    %v1796 = vcvt.s32.f32 %v772
    %v1797 = vcvt.s32.f32 %v773
    %v1798 = vcvt.s32.f32 %v774
    %v1799 = vcvt.s32.f32 %v775
    %v1800 = vcvt.s32.f32 %v776
    %v1801 = vcvt.s32.f32 %v777
    %v1802 = vcvt.s32.f32 %v778
    %v1803 = vcvt.s32.f32 %v779
    %v1804 = vcvt.s32.f32 %v780
    %v1805 = vcvt.s32.f32 %v781
    %v1806 = vcvt.s32.f32 %v782
    %v1807 = vcvt.s32.f32 %v783
    %v1808 = vcvt.s32.f32 %v784
    %v1809 = vcvt.s32.f32 %v785
    %v1810 = vcvt.s32.f32 %v786
    %v1811 = vcvt.s32.f32 %v787
    %v1812 = vcvt.s32.f32 %v788
    %v1813 = vcvt.s32.f32 %v789
    %v1814 = vcvt.s32.f32 %v790
    %v1815 = vcvt.s32.f32 %v791
    %v1816 = vcvt.s32.f32 %v792
    %v1817 = vcvt.s32.f32 %v793
    %v1818 = vcvt.s32.f32 %v794
    %v1819 = vcvt.s32.f32 %v795
    %v1820 = vcvt.s32.f32 %v796
    %v1821 = vcvt.s32.f32 %v797
    %v1822 = vcvt.s32.f32 %v798
    %v1823 = vcvt.s32.f32 %v799
    %v1824 = vcvt.s32.f32 %v800
    %v1825 = vcvt.s32.f32 %v801
    %v1826 = vcvt.s32.f32 %v802
    %v1827 = vcvt.s32.f32 %v803
    %v1828 = vcvt.s32.f32 %v804
    %v1829 = vcvt.s32.f32 %v805
    %v1830 = vcvt.s32.f32 %v806
    %v1831 = vcvt.s32.f32 %v807
    %v1832 = vcvt.s32.f32 %v808
    %v1833 = vcvt.s32.f32 %v809
    %v1834 = vcvt.s32.f32 %v810
    %v1835 = vcvt.s32.f32 %v811
    %v1836 = vcvt.s32.f32 %v812
    %v1837 = vcvt.s32.f32 %v813
    %v1838 = vcvt.s32.f32 %v814
    %v1839 = vcvt.s32.f32 %v815
    %v1840 = vcvt.s32.f32 %v816
    %v1841 = vcvt.s32.f32 %v817
    %v1842 = vcvt.s32.f32 %v818
    %v1843 = vcvt.s32.f32 %v819
    %v1844 = vcvt.s32.f32 %v820
    %v1845 = vcvt.s32.f32 %v821
    %v1846 = vcvt.s32.f32 %v822
    %v1847 = vcvt.s32.f32 %v823
    %v1848 = vcvt.s32.f32 %v824
    %v1849 = vcvt.s32.f32 %v825
    %v1850 = vcvt.s32.f32 %v826
    %v1851 = vcvt.s32.f32 %v827
    %v1852 = vcvt.s32.f32 %v828
    %v1853 = vcvt.s32.f32 %v829
    %v1854 = vcvt.s32.f32 %v830
    %v1855 = vcvt.s32.f32 %v831
    %v1856 = vcvt.s32.f32 %v832
    %v1857 = vcvt.s32.f32 %v833
    %v1858 = vcvt.s32.f32 %v834
    %v1859 = vcvt.s32.f32 %v835
    %v1860 = vcvt.s32.f32 %v836
    %v1861 = vcvt.s32.f32 %v837
    %v1862 = vcvt.s32.f32 %v838
    %v1863 = vcvt.s32.f32 %v839
    %v1864 = vcvt.s32.f32 %v840
    %v1865 = vcvt.s32.f32 %v841
    %v1866 = vcvt.s32.f32 %v842
    %v1867 = vcvt.s32.f32 %v843
    %v1868 = vcvt.s32.f32 %v844
    %v1869 = vcvt.s32.f32 %v845
    %v1870 = vcvt.s32.f32 %v846
    %v1871 = vcvt.s32.f32 %v847
    %v1872 = vcvt.s32.f32 %v848
    %v1873 = vcvt.s32.f32 %v849
    %v1874 = vcvt.s32.f32 %v850
    %v1875 = vcvt.s32.f32 %v851
    %v1876 = vcvt.s32.f32 %v852
    %v1877 = vcvt.s32.f32 %v853
    %v1878 = vcvt.s32.f32 %v854
    %v1879 = vcvt.s32.f32 %v855
    %v1880 = vcvt.s32.f32 %v856
    %v1881 = vcvt.s32.f32 %v857
    %v1882 = vcvt.s32.f32 %v858
    %v1883 = vcvt.s32.f32 %v859
    %v1884 = vcvt.s32.f32 %v860
    %v1885 = vcvt.s32.f32 %v861
    %v1886 = vcvt.s32.f32 %v862
    %v1887 = vcvt.s32.f32 %v863
    %v1888 = vcvt.s32.f32 %v864
    %v1889 = vcvt.s32.f32 %v865
    %v1890 = vcvt.s32.f32 %v866
    %v1891 = vcvt.s32.f32 %v867
    %v1892 = vcvt.s32.f32 %v868
    %v1893 = vcvt.s32.f32 %v869
    %v1894 = vcvt.s32.f32 %v870
    %v1895 = vcvt.s32.f32 %v871
    %v1896 = vcvt.s32.f32 %v872
    %v1897 = vcvt.s32.f32 %v873
    %v1898 = vcvt.s32.f32 %v874
    %v1899 = vcvt.s32.f32 %v875
    %v1900 = vcvt.s32.f32 %v876
    %v1901 = vcvt.s32.f32 %v877
    %v1902 = vcvt.s32.f32 %v878
    %v1903 = vcvt.s32.f32 %v879
    %v1904 = vcvt.s32.f32 %v880
    %v1905 = vcvt.s32.f32 %v881
    %v1906 = vcvt.s32.f32 %v882
    %v1907 = vcvt.s32.f32 %v883
    %v1908 = vcvt.s32.f32 %v884
    %v1909 = vcvt.s32.f32 %v885
    %v1910 = vcvt.s32.f32 %v886
    %v1911 = vcvt.s32.f32 %v887
    %v1912 = vcvt.s32.f32 %v888
    %v1913 = vcvt.s32.f32 %v889
    %v1914 = vcvt.s32.f32 %v890
    %v1915 = vcvt.s32.f32 %v891
    %v1916 = vcvt.s32.f32 %v892
    %v1917 = vcvt.s32.f32 %v893
    %v1918 = vcvt.s32.f32 %v894
    %v1919 = vcvt.s32.f32 %v895
    %v1920 = vcvt.s32.f32 %v896
    %v1921 = vcvt.s32.f32 %v897
    %v1922 = vcvt.s32.f32 %v898
    %v1923 = vcvt.s32.f32 %v899
    %v1924 = vcvt.s32.f32 %v900
    %v1925 = vcvt.s32.f32 %v901
    %v1926 = vcvt.s32.f32 %v902
    %v1927 = vcvt.s32.f32 %v903
    %v1928 = vcvt.s32.f32 %v904
    %v1929 = vcvt.s32.f32 %v905
    %v1930 = vcvt.s32.f32 %v906
    %v1931 = vcvt.s32.f32 %v907
    %v1932 = vcvt.s32.f32 %v908
    %v1933 = vcvt.s32.f32 %v909
    %v1934 = vcvt.s32.f32 %v910
    %v1935 = vcvt.s32.f32 %v911
    %v1936 = vcvt.s32.f32 %v912
    %v1937 = vcvt.s32.f32 %v913
    %v1938 = vcvt.s32.f32 %v914
    %v1939 = vcvt.s32.f32 %v915
    %v1940 = vcvt.s32.f32 %v916
    %v1941 = vcvt.s32.f32 %v917
    %v1942 = vcvt.s32.f32 %v918
    %v1943 = vcvt.s32.f32 %v919
    %v1944 = vcvt.s32.f32 %v920
    %v1945 = vcvt.s32.f32 %v921
    %v1946 = vcvt.s32.f32 %v922
    %v1947 = vcvt.s32.f32 %v923
    %v1948 = vcvt.s32.f32 %v924
    %v1949 = vcvt.s32.f32 %v925
    %v1950 = vcvt.s32.f32 %v926
    %v1951 = vcvt.s32.f32 %v927
    %v1952 = vcvt.s32.f32 %v928
    %v1953 = vcvt.s32.f32 %v929
    %v1954 = vcvt.s32.f32 %v930
    %v1955 = vcvt.s32.f32 %v931
    %v1956 = vcvt.s32.f32 %v932
    %v1957 = vcvt.s32.f32 %v933
    %v1958 = vcvt.s32.f32 %v934
    %v1959 = vcvt.s32.f32 %v935
    %v1960 = vcvt.s32.f32 %v936
    %v1961 = vcvt.s32.f32 %v937
    %v1962 = vcvt.s32.f32 %v938
    %v1963 = vcvt.s32.f32 %v939
    %v1964 = vcvt.s32.f32 %v940
    %v1965 = vcvt.s32.f32 %v941
    %v1966 = vcvt.s32.f32 %v942
    %v1967 = vcvt.s32.f32 %v943
    %v1968 = vcvt.s32.f32 %v944
    %v1969 = vcvt.s32.f32 %v945
    %v1970 = vcvt.s32.f32 %v946
    %v1971 = vcvt.s32.f32 %v947
    %v1972 = vcvt.s32.f32 %v948
    %v1973 = vcvt.s32.f32 %v949
    %v1974 = vcvt.s32.f32 %v950
    %v1975 = vcvt.s32.f32 %v951
    %v1976 = vcvt.s32.f32 %v952
    %v1977 = vcvt.s32.f32 %v953
    %v1978 = vcvt.s32.f32 %v954
    %v1979 = vcvt.s32.f32 %v955
    %v1980 = vcvt.s32.f32 %v956
    %v1981 = vcvt.s32.f32 %v957
    %v1982 = vcvt.s32.f32 %v958
    %v1983 = vcvt.s32.f32 %v959
    %v1984 = vcvt.s32.f32 %v960
    %v1985 = vcvt.s32.f32 %v961
    %v1986 = vcvt.s32.f32 %v962
    %v1987 = vcvt.s32.f32 %v963
    %v1988 = vcvt.s32.f32 %v964
    %v1989 = vcvt.s32.f32 %v965
    %v1990 = vcvt.s32.f32 %v966
    %v1991 = vcvt.s32.f32 %v967
    %v1992 = vcvt.s32.f32 %v968
    %v1993 = vcvt.s32.f32 %v969
    %v1994 = vcvt.s32.f32 %v970
    %v1995 = vcvt.s32.f32 %v971
    %v1996 = vcvt.s32.f32 %v972
    %v1997 = vcvt.s32.f32 %v973
    %v1998 = vcvt.s32.f32 %v974
    %v1999 = vcvt.s32.f32 %v975
    %v2000 = vcvt.s32.f32 %v976
    %v2001 = vcvt.s32.f32 %v977
    %v2002 = vcvt.s32.f32 %v978
    %v2003 = vcvt.s32.f32 %v979
    %v2004 = vcvt.s32.f32 %v980
    %v2005 = vcvt.s32.f32 %v981
    %v2006 = vcvt.s32.f32 %v982
    %v2007 = vcvt.s32.f32 %v983
    %v2008 = vcvt.s32.f32 %v984
    %v2009 = vcvt.s32.f32 %v985
    %v2010 = vcvt.s32.f32 %v986
    %v2011 = vcvt.s32.f32 %v987
    %v2012 = vcvt.s32.f32 %v988
    %v2013 = vcvt.s32.f32 %v989
    %v2014 = vcvt.s32.f32 %v990
    %v2015 = vcvt.s32.f32 %v991
    %v2016 = vcvt.s32.f32 %v992
    %v2017 = vcvt.s32.f32 %v993
    %v2018 = vcvt.s32.f32 %v994
    %v2019 = vcvt.s32.f32 %v995
    %v2020 = vcvt.s32.f32 %v996
    %v2021 = vcvt.s32.f32 %v997
    %v2022 = vcvt.s32.f32 %v998
    %v2023 = vcvt.s32.f32 %v999
    %v2024 = vcvt.s32.f32 %v1000
    %v2025 = vcvt.s32.f32 %v1001
    %v2026 = vcvt.s32.f32 %v1002
    %v2027 = vcvt.s32.f32 %v1003
    %v2028 = vcvt.s32.f32 %v1004
    %v2029 = vcvt.s32.f32 %v1005
    %v2030 = vcvt.s32.f32 %v1006
    %v2031 = vcvt.s32.f32 %v1007
    %v2032 = vcvt.s32.f32 %v1008
    %v2033 = vcvt.s32.f32 %v1009
    %v2034 = vcvt.s32.f32 %v1010
    %v2035 = vcvt.s32.f32 %v1011
    %v2036 = vcvt.s32.f32 %v1012
    %v2037 = vcvt.s32.f32 %v1013
    %v2038 = vcvt.s32.f32 %v1014
    %v2039 = vcvt.s32.f32 %v1015
    %v2040 = vcvt.s32.f32 %v1016
    %v2041 = vcvt.s32.f32 %v1017
    %v2042 = vcvt.s32.f32 %v1018
    %v2043 = vcvt.s32.f32 %v1019
    %v2044 = vcvt.s32.f32 %v1020
    %v2045 = vcvt.s32.f32 %v1021
    %v2046 = vcvt.s32.f32 %v1022
    %v2047 = vcvt.s32.f32 %v1023
    %v2048 = vcvt.s32.f32 %v1024
    %v2049 = vcvt.s32.f32 %v1025
    %v2050 = vcvt.s32.f32 %v1026
    %v2051 = vcvt.s32.f32 %v1027
    %v2052 = vcvt.s32.f32 %v1028
    %v2053 = vcvt.s32.f32 %v1029
    %v2054 = vcvt.s32.f32 %v1030
    %v2055 = vcvt.s32.f32 %v1031
    %v2056 = vcvt.s32.f32 %v1032
    %v2057 = vcvt.s32.f32 %v1033
    %v2058 = vcvt.s32.f32 %v1034
    %v2059 = vcvt.s32.f32 %v1035
    %v2060 = vcvt.s32.f32 %v1036
    %v2061 = vcvt.s32.f32 %v1037
    %v2062 = vcvt.s32.f32 %v1038
    %v2063 = vcvt.s32.f32 %v1039
    %v2064 = vcvt.s32.f32 %v1040
    %v2065 = vcvt.s32.f32 %v1041
    %v2066 = vcvt.s32.f32 %v1042
    %v2067 = vcvt.s32.f32 %v1043
    %v2068 = vcvt.s32.f32 %v1044
    %v2069 = vcvt.s32.f32 %v1045
    %v2070 = vcvt.s32.f32 %v1046
    %v2071 = vcvt.s32.f32 %v1047
    %v2072 = vcvt.s32.f32 %v1048
    %v2073 = vcvt.s32.f32 %v1049
    %v2074 = vcvt.s32.f32 %v1050
    %v2075 = vcvt.s32.f32 %v1051
    %v2076 = vcvt.s32.f32 %v1052
    %v2077 = vcvt.s32.f32 %v1053
    %v2078 = vcvt.s32.f32 %v1054
    %v2079 = vcvt.s32.f32 %v1055
    %v2080 = vcvt.s32.f32 %v1056
    %v2081 = vcvt.s32.f32 %v1057
    %v2082 = vcvt.s32.f32 %v1058
    %v2083 = vcvt.s32.f32 %v1059
    %v2084 = vcvt.s32.f32 %v1060
    %v2085 = vcvt.s32.f32 %v1061
    %v2086 = vcvt.s32.f32 %v1062
    %v2087 = vcvt.s32.f32 %v1063
    %v2088 = vcvt.s32.f32 %v1064
    %v2089 = vcvt.s32.f32 %v1065
    %v2090 = vcvt.s32.f32 %v1066
    %v2091 = vcvt.s32.f32 %v1067
    %v2092 = vcvt.s32.f32 %v1068
    %v2093 = vcvt.s32.f32 %v1069
    %v2094 = vcvt.s32.f32 %v1070
    %v2095 = vcvt.s32.f32 %v1071
    %v2096 = vcvt.s32.f32 %v1072
    %v2097 = vcvt.s32.f32 %v1073
    %v2098 = vcvt.s32.f32 %v1074
    %v2099 = vcvt.s32.f32 %v1075
    %v2100 = vcvt.s32.f32 %v1076
    %v2101 = vcvt.s32.f32 %v1077
    %v2102 = vcvt.s32.f32 %v1078
    %v2103 = vcvt.s32.f32 %v1079
    %v2104 = vcvt.s32.f32 %v1080
    %v2105 = vcvt.s32.f32 %v1081
    %v2106 = vcvt.s32.f32 %v1082
    %v2107 = vcvt.s32.f32 %v1083
    %v2108 = vcvt.s32.f32 %v1084
    %v2109 = vcvt.s32.f32 %v1085
    %v2110 = vcvt.s32.f32 %v1086
    %v2111 = vcvt.s32.f32 %v1087
    %v2112 = vcvt.s32.f32 %v1088
    %v2113 = vcvt.s32.f32 %v1089
    %v2114 = vcvt.s32.f32 %v1090
    %v2115 = vcvt.s32.f32 %v1091
    %v2116 = vcvt.s32.f32 %v1092
    %v2117 = vcvt.s32.f32 %v1093
    %v2118 = vcvt.s32.f32 %v1094
    %v2119 = vcvt.s32.f32 %v1095
    %v2120 = vcvt.s32.f32 %v1096
    %v2121 = vcvt.s32.f32 %v1097
    %v2122 = vcvt.s32.f32 %v1098
    %v2123 = vcvt.s32.f32 %v1099
    %v2124 = vcvt.s32.f32 %v1100
    %v2125 = vcvt.s32.f32 %v1101
    %v2126 = vcvt.s32.f32 %v1102
    %v2127 = vcvt.s32.f32 %v1103
    %v2128 = vcvt.s32.f32 %v1104
    %v2129 = vcvt.s32.f32 %v1105
    %v2130 = vcvt.s32.f32 %v1106
    %v2131 = vcvt.s32.f32 %v1107
    %v2132 = vcvt.s32.f32 %v1108
    %v2133 = vcvt.s32.f32 %v1109
    %v2134 = vcvt.s32.f32 %v1110
    %v2135 = vcvt.s32.f32 %v1111
    %v2136 = vcvt.s32.f32 %v1112
    %v2137 = vcvt.s32.f32 %v1113
    %v2138 = vcvt.s32.f32 %v1114
    %v2139 = vcvt.s32.f32 %v1115
    %v2140 = vcvt.s32.f32 %v1116
    %v2141 = vcvt.s32.f32 %v1117
    %v2142 = vcvt.s32.f32 %v1118
    %v2143 = vcvt.s32.f32 %v1119
    %v2144 = vcvt.s32.f32 %v1120
    %v2145 = vcvt.s32.f32 %v1121
    %v2146 = vcvt.s32.f32 %v1122
    %v2147 = vcvt.s32.f32 %v1123
    %v2148 = vcvt.s32.f32 %v1124
    %v2149 = vcvt.s32.f32 %v1125
    %v2150 = vcvt.s32.f32 %v1126
    %v2151 = vcvt.s32.f32 %v1127
    %v2152 = vcvt.s32.f32 %v1128
    %v2153 = vcvt.s32.f32 %v1129
    %v2154 = vcvt.s32.f32 %v1130
    %v2155 = vcvt.s32.f32 %v1131
    %v2156 = vcvt.s32.f32 %v1132
    %v2157 = vcvt.s32.f32 %v1133
    %v2158 = vcvt.s32.f32 %v1134
    %v2159 = vcvt.s32.f32 %v1135
    %v2160 = vcvt.s32.f32 %v1136
    %v2161 = vcvt.s32.f32 %v1137
    %v2162 = vcvt.s32.f32 %v1138
    %v2163 = vcvt.s32.f32 %v1139
    %v2164 = vcvt.s32.f32 %v1140
    %v2165 = vcvt.s32.f32 %v1141
    %v2166 = vcvt.s32.f32 %v1142
    %v2167 = vcvt.s32.f32 %v1143
    %v2168 = vcvt.s32.f32 %v1144
    %v2169 = vcvt.s32.f32 %v1145
    %v2170 = vcvt.s32.f32 %v1146
    %v2171 = vcvt.s32.f32 %v1147
    %v2172 = vcvt.s32.f32 %v1148
    %v2173 = vcvt.s32.f32 %v1149
    %v2174 = vcvt.s32.f32 %v1150
    %v2175 = vcvt.s32.f32 %v1151
    %v2176 = vcvt.s32.f32 %v1152
    %v2177 = vcvt.s32.f32 %v1153
    %v2178 = vcvt.s32.f32 %v1154
    %v2179 = vcvt.s32.f32 %v1155
    %v2180 = vcvt.s32.f32 %v1156
    %v2181 = vcvt.s32.f32 %v1157
    %v2182 = vcvt.s32.f32 %v1158
    %v2183 = vcvt.s32.f32 %v1159
    %v2184 = vcvt.s32.f32 %v1160
    %v2185 = vcvt.s32.f32 %v1161
    %v2186 = vcvt.s32.f32 %v1162
    %v2187 = vcvt.s32.f32 %v1163
    %v2188 = vcvt.s32.f32 %v1164
    %v2189 = vcvt.s32.f32 %v1165
    %v2190 = vcvt.s32.f32 %v1166
    %v2191 = vcvt.s32.f32 %v1167
    %v2192 = vcvt.s32.f32 %v1168
    %v2193 = vcvt.s32.f32 %v1169
    %v2194 = vcvt.s32.f32 %v1170
    %v2195 = vcvt.s32.f32 %v1171
    %v2196 = vcvt.s32.f32 %v1172
    %v2197 = vcvt.s32.f32 %v1173
    %v2198 = vcvt.s32.f32 %v1174
    %v2199 = vcvt.s32.f32 %v1175
    %v2200 = vcvt.s32.f32 %v1176
    %v2201 = vcvt.s32.f32 %v1177
    %v2202 = vcvt.s32.f32 %v1178
    %v2203 = vcvt.s32.f32 %v1179
    %v2204 = vcvt.s32.f32 %v1180
    %v2205 = vcvt.s32.f32 %v1181
    %v2206 = vcvt.s32.f32 %v1182
    %v2207 = vcvt.s32.f32 %v1183
    %v2208 = vcvt.s32.f32 %v1184
    %v2209 = vcvt.s32.f32 %v1185
    %v2210 = vcvt.s32.f32 %v1186
    %v2211 = vcvt.s32.f32 %v1187
    %v2212 = vcvt.s32.f32 %v1188
    %v2213 = vcvt.s32.f32 %v1189
    %v2214 = vcvt.s32.f32 %v1190
    %v2215 = vcvt.s32.f32 %v1191
    %v2216 = vcvt.s32.f32 %v1192
    %v2217 = vcvt.s32.f32 %v1193
    %v2218 = vcvt.s32.f32 %v1194
    %v2219 = vcvt.s32.f32 %v1195
    %v2220 = vcvt.s32.f32 %v1196
    %v2221 = vcvt.s32.f32 %v1197
    %v2222 = vcvt.s32.f32 %v1198
    %v2223 = vcvt.s32.f32 %v1199
    %v2224 = vcvt.s32.f32 %v1200
    %v2225 = vcvt.s32.f32 %v1201
    %v2226 = vcvt.s32.f32 %v1202
    %v2227 = vcvt.s32.f32 %v1203
    %v2228 = vcvt.s32.f32 %v1204
    %v2229 = vcvt.s32.f32 %v1205
    %v2230 = vcvt.s32.f32 %v1206
    %v2231 = vcvt.s32.f32 %v1207
    %v2232 = vcvt.s32.f32 %v1208
    %v2233 = vcvt.s32.f32 %v1209
    %v2234 = vcvt.s32.f32 %v1210
    %v2235 = vcvt.s32.f32 %v1211
    %v2236 = vcvt.s32.f32 %v1212
    %v2237 = vcvt.s32.f32 %v1213
    %v2238 = vcvt.s32.f32 %v1214
    %v2239 = vcvt.s32.f32 %v1215
    %v2240 = vcvt.s32.f32 %v1216
    %v2241 = vcvt.s32.f32 %v1217
    %v2242 = vcvt.s32.f32 %v1218
    %v2243 = vcvt.s32.f32 %v1219
    %v2244 = vcvt.s32.f32 %v1220
    %v2245 = vcvt.s32.f32 %v1221
    %v2246 = vcvt.s32.f32 %v1222
    %v2247 = vcvt.s32.f32 %v1223
    %v2248 = vcvt.s32.f32 %v1224
    %v2249 = vcvt.s32.f32 %v1225
    %v2250 = vcvt.s32.f32 %v1226
    %v2251 = vcvt.s32.f32 %v1227
    %v2252 = vcvt.s32.f32 %v1228
    %v2253 = vcvt.s32.f32 %v1229
    %v2254 = vcvt.s32.f32 %v1230
    %v2255 = vcvt.s32.f32 %v1231
    %v2256 = vcvt.s32.f32 %v1232
    %v2257 = vcvt.s32.f32 %v1233
    %v2258 = vcvt.s32.f32 %v1234
    %v2259 = vcvt.s32.f32 %v1235
    %v2260 = vcvt.s32.f32 %v1236
    %v2261 = vcvt.s32.f32 %v1237
    %v2262 = vcvt.s32.f32 %v1238
    %v2263 = vcvt.s32.f32 %v1239
    %v2264 = vcvt.s32.f32 %v1240
    %v2265 = vcvt.s32.f32 %v1241
    %v2266 = vcvt.s32.f32 %v1242
    %v2267 = vcvt.s32.f32 %v1243
    %v2268 = vcvt.s32.f32 %v1244
    %v2269 = vcvt.s32.f32 %v1245
    %v2270 = vcvt.s32.f32 %v1246
    %v2271 = vcvt.s32.f32 %v1247
    %v2272 = vcvt.s32.f32 %v1248
    %v2273 = vcvt.s32.f32 %v1249
    %v2274 = vcvt.s32.f32 %v1250
    %v2275 = vcvt.s32.f32 %v1251
    %v2276 = vcvt.s32.f32 %v1252
    %v2277 = vcvt.s32.f32 %v1253
    %v2278 = vcvt.s32.f32 %v1254
    %v2279 = vcvt.s32.f32 %v1255
    %v2280 = vcvt.s32.f32 %v1256
    %v2281 = vcvt.s32.f32 %v1257
    %v2282 = vcvt.s32.f32 %v1258
    %v2283 = vcvt.s32.f32 %v1259
    %v2284 = vcvt.s32.f32 %v1260
    %v2285 = vcvt.s32.f32 %v1261
    %v2286 = vcvt.s32.f32 %v1262
    %v2287 = vcvt.s32.f32 %v1263
    %v2288 = vcvt.s32.f32 %v1264
    %v2289 = vcvt.s32.f32 %v1265
    %v2290 = vcvt.s32.f32 %v1266
    %v2291 = vcvt.s32.f32 %v1267
    %v2292 = vcvt.s32.f32 %v1268
    %v2293 = vcvt.s32.f32 %v1269
    %v2294 = vcvt.s32.f32 %v1270
    %v2295 = vcvt.s32.f32 %v1271
    %v2296 = vcvt.s32.f32 %v1272
    %v2297 = vcvt.s32.f32 %v1273
    %v2298 = vcvt.s32.f32 %v1274
    %v2299 = vcvt.s32.f32 %v1275
    %v2300 = vcvt.s32.f32 %v1276
    %v2301 = vcvt.s32.f32 %v1277
    %v2302 = vcvt.s32.f32 %v1278
    %v2303 = vcvt.s32.f32 %v1279
    %v2304 = vcvt.s32.f32 %v1280
    %v2305 = vcvt.s32.f32 %v1281
    %v2306 = vcvt.s32.f32 %v1282
    %v2307 = vcvt.s32.f32 %v1283
    %v2308 = vcvt.s32.f32 %v1284
    %v2309 = vcvt.s32.f32 %v1285
    %v2310 = vcvt.s32.f32 %v1286
    %v2311 = vcvt.s32.f32 %v1287
    %v2312 = vcvt.s32.f32 %v1288
    %v2313 = vcvt.s32.f32 %v1289
    %v2314 = vcvt.s32.f32 %v1290
    %v2315 = vcvt.s32.f32 %v1291
    %v2316 = vcvt.s32.f32 %v1292
    %v2317 = vcvt.s32.f32 %v1293
    %v2318 = vcvt.s32.f32 %v1294
    %v2319 = vcvt.s32.f32 %v1295
    %v2320 = vcvt.s32.f32 %v1296
    %v2321 = vcvt.s32.f32 %v1297
    %v2322 = vcvt.s32.f32 %v1298
    %v2323 = vcvt.s32.f32 %v1299
    %v2324 = vcvt.s32.f32 %v1300
    %v2325 = vcvt.s32.f32 %v1301
    %v2326 = vcvt.s32.f32 %v1302
    %v2327 = vcvt.s32.f32 %v1303
    %v2328 = vcvt.s32.f32 %v1304
    %v2329 = vcvt.s32.f32 %v1305
    %v2330 = vcvt.s32.f32 %v1306
    %v2331 = vcvt.s32.f32 %v1307
    %v2332 = vcvt.s32.f32 %v1308
    %v2333 = vcvt.s32.f32 %v1309
    %v2334 = vcvt.s32.f32 %v1310
    %v2335 = vcvt.s32.f32 %v1311
    %v2336 = vcvt.s32.f32 %v1312
    %v2337 = vcvt.s32.f32 %v1313
    %v2338 = vcvt.s32.f32 %v1314
    %v2339 = vcvt.s32.f32 %v1315
    %v2340 = vcvt.s32.f32 %v1316
    %v2341 = vcvt.s32.f32 %v1317
    %v2342 = vcvt.s32.f32 %v1318
    %v2343 = vcvt.s32.f32 %v1319
    %v2344 = vcvt.s32.f32 %v1320
    %v2345 = vcvt.s32.f32 %v1321
    %v2346 = vcvt.s32.f32 %v1322
    %v2347 = vcvt.s32.f32 %v1323
    %v2348 = vcvt.s32.f32 %v1324
    %v2349 = vcvt.s32.f32 %v1325
    %v2350 = vcvt.s32.f32 %v1326
    %v2351 = vcvt.s32.f32 %v1327
    %v2352 = vcvt.s32.f32 %v1328
    %v2353 = vcvt.s32.f32 %v1329
    %v2354 = vcvt.s32.f32 %v1330
    %v2355 = vcvt.s32.f32 %v1331
    %v2356 = vcvt.s32.f32 %v1332
    %v2357 = vcvt.s32.f32 %v1333
    %v2358 = vcvt.s32.f32 %v1334
    %v2359 = vcvt.s32.f32 %v1335
    %v2360 = vcvt.s32.f32 %v1336
    %v2361 = vcvt.s32.f32 %v1337
    %v2362 = vcvt.s32.f32 %v1338
    %v2363 = vcvt.s32.f32 %v1339
    %v2364 = vcvt.s32.f32 %v1340
    %v2365 = vcvt.s32.f32 %v1341
    %v2366 = vcvt.s32.f32 %v1342
    %v2367 = vcvt.s32.f32 %v1343
    %v2368 = vcvt.s32.f32 %v1344
    %v2369 = vcvt.s32.f32 %v1345
    %v2370 = vcvt.s32.f32 %v1346
    %v2371 = vcvt.s32.f32 %v1347
    %v2372 = vcvt.s32.f32 %v1348
    %v2373 = vcvt.s32.f32 %v1349
    %v2374 = vcvt.s32.f32 %v1350
    %v2375 = vcvt.s32.f32 %v1351
    %v2376 = vcvt.s32.f32 %v1352
    %v2377 = vcvt.s32.f32 %v1353
    %v2378 = vcvt.s32.f32 %v1354
    %v2379 = vcvt.s32.f32 %v1355
    %v2380 = vcvt.s32.f32 %v1356
    %v2381 = vcvt.s32.f32 %v1357
    %v2382 = vcvt.s32.f32 %v1358
    %v2383 = vcvt.s32.f32 %v1359
    %v2384 = vcvt.s32.f32 %v1360
    %v2385 = vcvt.s32.f32 %v1361
    %v2386 = vcvt.s32.f32 %v1362
    %v2387 = vcvt.s32.f32 %v1363
    %v2388 = vcvt.s32.f32 %v1364
    %v2389 = vcvt.s32.f32 %v1365
    %v2390 = vcvt.s32.f32 %v1366
    %v2391 = vcvt.s32.f32 %v1367
    %v2392 = vcvt.s32.f32 %v1368
    %v2393 = vcvt.s32.f32 %v1369
    %v2394 = vcvt.s32.f32 %v1370
    %v2395 = vcvt.s32.f32 %v1371
    %v2396 = vcvt.s32.f32 %v1372
    %v2397 = vcvt.s32.f32 %v1373
    %v2398 = vcvt.s32.f32 %v1374
    %v2399 = vcvt.s32.f32 %v1375
    %v2400 = vcvt.s32.f32 %v1376
    %v2401 = vcvt.s32.f32 %v1377
    %v2402 = vcvt.s32.f32 %v1378
    %v2403 = vcvt.s32.f32 %v1379
    %v2404 = vcvt.s32.f32 %v1380
    %v2405 = vcvt.s32.f32 %v1381
    %v2406 = vcvt.s32.f32 %v1382
    %v2407 = vcvt.s32.f32 %v1383
    %v2408 = vcvt.s32.f32 %v1384
    %v2409 = vcvt.s32.f32 %v1385
    %v2410 = vcvt.s32.f32 %v1386
    %v2411 = vcvt.s32.f32 %v1387
    %v2412 = vcvt.s32.f32 %v1388
    %v2413 = vcvt.s32.f32 %v1389
    %v2414 = vcvt.s32.f32 %v1390
    %v2415 = vcvt.s32.f32 %v1391
    %v2416 = vcvt.s32.f32 %v1392
    %v2417 = vcvt.s32.f32 %v1393
    %v2418 = vcvt.s32.f32 %v1394
    %v2419 = vcvt.s32.f32 %v1395
    %v2420 = vcvt.s32.f32 %v1396
    %v2421 = vcvt.s32.f32 %v1397
    %v2422 = vcvt.s32.f32 %v1398
    %v2423 = vcvt.s32.f32 %v1399
    %v2424 = vcvt.s32.f32 %v1400
    %v2425 = vcvt.s32.f32 %v1401
    %v2426 = vcvt.s32.f32 %v1402
    %v2427 = vcvt.s32.f32 %v1403
    %v2428 = vcvt.s32.f32 %v1404
    %v2429 = vcvt.s32.f32 %v1405
    %v2430 = vcvt.s32.f32 %v1406
    %v2431 = vcvt.s32.f32 %v1407
    %v2432 = vcvt.s32.f32 %v1408
    %v2433 = vcvt.s32.f32 %v1409
    %v2434 = vcvt.s32.f32 %v1410
    %v2435 = vcvt.s32.f32 %v1411
    %v2436 = vcvt.s32.f32 %v1412
    %v2437 = vcvt.s32.f32 %v1413
    %v2438 = vcvt.s32.f32 %v1414
    %v2439 = vcvt.s32.f32 %v1415
    %v2440 = vcvt.s32.f32 %v1416
    %v2441 = vcvt.s32.f32 %v1417
    %v2442 = vcvt.s32.f32 %v1418
    %v2443 = vcvt.s32.f32 %v1419
    %v2444 = vcvt.s32.f32 %v1420
    %v2445 = vcvt.s32.f32 %v1421
    %v2446 = vcvt.s32.f32 %v1422
    %v2447 = vcvt.s32.f32 %v1423
    %v2448 = vcvt.s32.f32 %v1424
    %v2449 = vcvt.s32.f32 %v1425
    %v2450 = vcvt.s32.f32 %v1426
    %v2451 = vcvt.s32.f32 %v1427
    %v2452 = vcvt.s32.f32 %v1428
    %v2453 = vcvt.s32.f32 %v1429
    %v2454 = vcvt.s32.f32 %v1430
    %v2455 = vcvt.s32.f32 %v1431
    %v2456 = vcvt.s32.f32 %v1432
    %v2457 = vcvt.s32.f32 %v1433
    %v2458 = vcvt.s32.f32 %v1434
    %v2459 = vcvt.s32.f32 %v1435
    %v2460 = vcvt.s32.f32 %v1436
    %v2461 = vcvt.s32.f32 %v1437
    %v2462 = vcvt.s32.f32 %v1438
    %v2463 = vcvt.s32.f32 %v1439
    %v2464 = vcvt.s32.f32 %v1440
    %v2465 = vcvt.s32.f32 %v1441
    %v2466 = vcvt.s32.f32 %v1442
    %v2467 = vcvt.s32.f32 %v1443
    %v2468 = vcvt.s32.f32 %v1444
    %v2469 = vcvt.s32.f32 %v1445
    %v2470 = vcvt.s32.f32 %v1446
    %v2471 = vcvt.s32.f32 %v1447
    %v2472 = vcvt.s32.f32 %v1448
    %v2473 = vcvt.s32.f32 %v1449
    %v2474 = vcvt.s32.f32 %v1450
    %v2475 = vcvt.s32.f32 %v1451
    %v2476 = vcvt.s32.f32 %v1452
    %v2477 = vcvt.s32.f32 %v1453
    %v2478 = vcvt.s32.f32 %v1454
    %v2479 = vcvt.s32.f32 %v1455
    %v2480 = vcvt.s32.f32 %v1456
    %v2481 = vcvt.s32.f32 %v1457
    %v2482 = vcvt.s32.f32 %v1458
    %v2483 = vcvt.s32.f32 %v1459
    %v2484 = vcvt.s32.f32 %v1460
    %v2485 = vcvt.s32.f32 %v1461
    %v2486 = vcvt.s32.f32 %v1462
    %v2487 = vcvt.s32.f32 %v1463
    %v2488 = vcvt.s32.f32 %v1464
    %v2489 = vcvt.s32.f32 %v1465
    %v2490 = vcvt.s32.f32 %v1466
    %v2491 = vcvt.s32.f32 %v1467
    %v2492 = vcvt.s32.f32 %v1468
    %v2493 = vcvt.s32.f32 %v1469
    %v2494 = vcvt.s32.f32 %v1470
    %v2495 = vcvt.s32.f32 %v1471
    %v2496 = vcvt.s32.f32 %v1472
    %v2497 = vcvt.s32.f32 %v1473
    %v2498 = vcvt.s32.f32 %v1474
    %v2499 = vcvt.s32.f32 %v1475
    %v2500 = vcvt.s32.f32 %v1476
    %v2501 = vcvt.s32.f32 %v1477
    %v2502 = vcvt.s32.f32 %v1478
    %v2503 = vcvt.s32.f32 %v1479
    %v2504 = vcvt.s32.f32 %v1480
    %v2505 = vcvt.s32.f32 %v1481
    %v2506 = vcvt.s32.f32 %v1482
    %v2507 = vcvt.s32.f32 %v1483
    %v2508 = vcvt.s32.f32 %v1484
    %v2509 = vcvt.s32.f32 %v1485
    %v2510 = vcvt.s32.f32 %v1486
    %v2511 = vcvt.s32.f32 %v1487
    %v2512 = vcvt.s32.f32 %v1488
    %v2513 = vcvt.s32.f32 %v1489
    %v2514 = vcvt.s32.f32 %v1490
    %v2515 = vcvt.s32.f32 %v1491
    %v2516 = vcvt.s32.f32 %v1492
    %v2517 = vcvt.s32.f32 %v1493
    %v2518 = vcvt.s32.f32 %v1494
    %v2519 = vcvt.s32.f32 %v1495
    %v2520 = vcvt.s32.f32 %v1496
    %v2521 = vcvt.s32.f32 %v1497
    %v2522 = vcvt.s32.f32 %v1498
    %v2523 = vcvt.s32.f32 %v1499
    %v2524 = vcvt.s32.f32 %v1500
    %v2525 = vcvt.s32.f32 %v1501
    %v2526 = vcvt.s32.f32 %v1502
    %v2527 = vcvt.s32.f32 %v1503
    %v2528 = vcvt.s32.f32 %v1504
    %v2529 = vcvt.s32.f32 %v1505
    %v2530 = vcvt.s32.f32 %v1506
    %v2531 = vcvt.s32.f32 %v1507
    %v2532 = vcvt.s32.f32 %v1508
    %v2533 = vcvt.s32.f32 %v1509
    %v2534 = vcvt.s32.f32 %v1510
    %v2535 = vcvt.s32.f32 %v1511
    %v2536 = vcvt.s32.f32 %v1512
    %v2537 = vcvt.s32.f32 %v1513
    %v2538 = vcvt.s32.f32 %v1514
    %v2539 = vcvt.s32.f32 %v1515
    %v2540 = vcvt.s32.f32 %v1516
    %v2541 = vcvt.s32.f32 %v1517
    %v2542 = vcvt.s32.f32 %v1518
    %v2543 = vcvt.s32.f32 %v1519
    %v2544 = vcvt.s32.f32 %v1520
    %v2545 = vcvt.s32.f32 %v1521
    %v2546 = vcvt.s32.f32 %v1522
    %v2547 = vcvt.s32.f32 %v1523
    %v2548 = vcvt.s32.f32 %v1524
    %v2549 = vcvt.s32.f32 %v1525
    %v2550 = vcvt.s32.f32 %v1526
    %v2551 = vcvt.s32.f32 %v1527
    %v2552 = vcvt.s32.f32 %v1528
    %v2553 = vcvt.s32.f32 %v1529
    %v2554 = vcvt.s32.f32 %v1530
    %v2555 = vcvt.s32.f32 %v1531
    %v2556 = vcvt.s32.f32 %v1532
    %v2557 = vcvt.s32.f32 %v1533
    %v2558 = vcvt.s32.f32 %v1534
    %v2559 = vcvt.s32.f32 %v1535
    %v2560 = vcvt.s32.f32 %v1536
    %v2561 = vcvt.s32.f32 %v1537
    %v2562 = vcvt.s32.f32 %v1538
    %v2563 = vcvt.s32.f32 %v1539
    %v2564 = vcvt.s32.f32 %v1540
    %v2565 = vcvt.s32.f32 %v1541
    %v2566 = vcvt.s32.f32 %v1542
    %v2567 = vcvt.s32.f32 %v1543
    %v2568 = vcvt.s32.f32 %v1544
    %v2569 = vcvt.s32.f32 %v1545
    %v2570 = vcvt.s32.f32 %v1546
    %v2571 = vcvt.s32.f32 %v1547
    %v2572 = vcvt.s32.f32 %v1548
    %v2573 = vcvt.s32.f32 %v1549
    %v2574 = vcvt.s32.f32 %v1550
    %v2575 = vcvt.s32.f32 %v1551
    %v2576 = vcvt.s32.f32 %v1552
    %v2577 = vcvt.s32.f32 %v1553
    %v2578 = vcvt.s32.f32 %v1554
    %v2579 = vcvt.s32.f32 %v1555
    %v2580 = vcvt.s32.f32 %v1556
    %v2581 = vcvt.s32.f32 %v1557
    %v2582 = vcvt.s32.f32 %v1558
    %v2583 = vcvt.s32.f32 %v1559
    %v2584 = vcvt.s32.f32 %v1560
    %v2585 = vcvt.s32.f32 %v1561
    %v2586 = vcvt.s32.f32 %v1562
    %v2587 = vcvt.s32.f32 %v1563
    %v2588 = vcvt.s32.f32 %v1564
    %v2589 = vcvt.s32.f32 %v1565
    %v2590 = vcvt.s32.f32 %v1566
    %v2591 = vcvt.s32.f32 %v1567
    %v2592 = vcvt.s32.f32 %v1568
    %v2593 = vcvt.s32.f32 %v1569
    %v2594 = vcvt.s32.f32 %v1570
    %v2595 = vcvt.s32.f32 %v1571
    %v2596 = vcvt.s32.f32 %v1572
    %v2597 = vcvt.s32.f32 %v1573
    %v2598 = vcvt.s32.f32 %v1574
    %v2599 = vcvt.s32.f32 %v1575
    %v2600 = vcvt.s32.f32 %v1576
    %v2601 = vcvt.s32.f32 %v1577
    %v2602 = vcvt.s32.f32 %v1578
    %v2603 = vcvt.s32.f32 %v1579
    %v2604 = vcvt.s32.f32 %v1580
    %v2605 = vcvt.s32.f32 %v1581
    %v2606 = vcvt.s32.f32 %v1582
    %v2607 = vcvt.s32.f32 %v1583
    %v2608 = vcvt.s32.f32 %v1584
    %v2609 = vcvt.s32.f32 %v1585
    %v2610 = vcvt.s32.f32 %v1586
    %v2611 = vcvt.s32.f32 %v1587
    %v2612 = vcvt.s32.f32 %v1588
    %v2613 = vcvt.s32.f32 %v1589
    %v2614 = vcvt.s32.f32 %v1590
    %v2615 = vcvt.s32.f32 %v1591
    %v2616 = vcvt.s32.f32 %v1592
    %v2617 = vcvt.s32.f32 %v1593
    %v2618 = vcvt.s32.f32 %v1594
    %v2619 = vcvt.s32.f32 %v1595
    %v2620 = vcvt.s32.f32 %v1596
    %v2621 = vcvt.s32.f32 %v1597
    %v2622 = vcvt.s32.f32 %v1598
    %v2623 = vcvt.s32.f32 %v1599
    %v2624 = vcvt.s32.f32 %v1600
    %v2625 = vcvt.s32.f32 %v1601
    %v2626 = vcvt.s32.f32 %v1602
    %v2627 = vcvt.s32.f32 %v1603
    %v2628 = vcvt.s32.f32 %v1604
    %v2629 = vcvt.s32.f32 %v1605
    %v2630 = vcvt.s32.f32 %v1606
    %v2631 = vcvt.s32.f32 %v1607
    %v2632 = vcvt.s32.f32 %v1608
    %v2633 = vcvt.s32.f32 %v1609
    %v2634 = vcvt.s32.f32 %v1610
    %v2635 = vcvt.s32.f32 %v1611
    %v2636 = vcvt.s32.f32 %v1612
    %v2637 = vcvt.s32.f32 %v1613
    %v2638 = vcvt.s32.f32 %v1614
    %v2639 = vcvt.s32.f32 %v1615
    %v2640 = vcvt.s32.f32 %v1616
    %v2641 = vcvt.s32.f32 %v1617
    %v2642 = vcvt.s32.f32 %v1618
    %v2643 = vcvt.s32.f32 %v1619
    %v2644 = vpack.c.bf16 %v1628, %v1620
    %v2645 = vpack.c.bf16 %v1629, %v1621
    %v2646 = vpack.c.bf16 %v1630, %v1622
    %v2647 = vpack.c.bf16 %v1631, %v1623
    %v2648 = vpack.c.bf16 %v1632, %v1624
    %v2649 = vpack.c.bf16 %v1633, %v1625
    %v2650 = vpack.c.bf16 %v1634, %v1626
    %v2651 = vpack.c.bf16 %v1635, %v1627
    %v2652 = vpack.c.bf16 %v1644, %v1636
    %v2653 = vpack.c.bf16 %v1645, %v1637
    %v2654 = vpack.c.bf16 %v1646, %v1638
    %v2655 = vpack.c.bf16 %v1647, %v1639
    %v2656 = vpack.c.bf16 %v1648, %v1640
    %v2657 = vpack.c.bf16 %v1649, %v1641
    %v2658 = vpack.c.bf16 %v1650, %v1642
    %v2659 = vpack.c.bf16 %v1651, %v1643
    %v2660 = vpack.c.bf16 %v1660, %v1652
    %v2661 = vpack.c.bf16 %v1661, %v1653
    %v2662 = vpack.c.bf16 %v1662, %v1654
    %v2663 = vpack.c.bf16 %v1663, %v1655
    %v2664 = vpack.c.bf16 %v1664, %v1656
    %v2665 = vpack.c.bf16 %v1665, %v1657
    %v2666 = vpack.c.bf16 %v1666, %v1658
    %v2667 = vpack.c.bf16 %v1667, %v1659
    %v2668 = vpack.c.bf16 %v1676, %v1668
    %v2669 = vpack.c.bf16 %v1677, %v1669
    %v2670 = vpack.c.bf16 %v1678, %v1670
    %v2671 = vpack.c.bf16 %v1679, %v1671
    %v2672 = vpack.c.bf16 %v1680, %v1672
    %v2673 = vpack.c.bf16 %v1681, %v1673
    %v2674 = vpack.c.bf16 %v1682, %v1674
    %v2675 = vpack.c.bf16 %v1683, %v1675
    %v2676 = vpack.c.bf16 %v1692, %v1684
    %v2677 = vpack.c.bf16 %v1693, %v1685
    %v2678 = vpack.c.bf16 %v1694, %v1686
    %v2679 = vpack.c.bf16 %v1695, %v1687
    %v2680 = vpack.c.bf16 %v1696, %v1688
    %v2681 = vpack.c.bf16 %v1697, %v1689
    %v2682 = vpack.c.bf16 %v1698, %v1690
    %v2683 = vpack.c.bf16 %v1699, %v1691
    %v2684 = vpack.c.bf16 %v1708, %v1700
    %v2685 = vpack.c.bf16 %v1709, %v1701
    %v2686 = vpack.c.bf16 %v1710, %v1702
    %v2687 = vpack.c.bf16 %v1711, %v1703
    %v2688 = vpack.c.bf16 %v1712, %v1704
    %v2689 = vpack.c.bf16 %v1713, %v1705
    %v2690 = vpack.c.bf16 %v1714, %v1706
    %v2691 = vpack.c.bf16 %v1715, %v1707
    %v2692 = vpack.c.bf16 %v1724, %v1716
    %v2693 = vpack.c.bf16 %v1725, %v1717
    %v2694 = vpack.c.bf16 %v1726, %v1718
    %v2695 = vpack.c.bf16 %v1727, %v1719
    %v2696 = vpack.c.bf16 %v1728, %v1720
    %v2697 = vpack.c.bf16 %v1729, %v1721
    %v2698 = vpack.c.bf16 %v1730, %v1722
    %v2699 = vpack.c.bf16 %v1731, %v1723
    %v2700 = vpack.c.bf16 %v1740, %v1732
    %v2701 = vpack.c.bf16 %v1741, %v1733
    %v2702 = vpack.c.bf16 %v1742, %v1734
    %v2703 = vpack.c.bf16 %v1743, %v1735
    %v2704 = vpack.c.bf16 %v1744, %v1736
    %v2705 = vpack.c.bf16 %v1745, %v1737
    %v2706 = vpack.c.bf16 %v1746, %v1738
    %v2707 = vpack.c.bf16 %v1747, %v1739
    %v2708 = vpack.c.bf16 %v1756, %v1748
    %v2709 = vpack.c.bf16 %v1757, %v1749
    %v2710 = vpack.c.bf16 %v1758, %v1750
    %v2711 = vpack.c.bf16 %v1759, %v1751
    %v2712 = vpack.c.bf16 %v1760, %v1752
    %v2713 = vpack.c.bf16 %v1761, %v1753
    %v2714 = vpack.c.bf16 %v1762, %v1754
    %v2715 = vpack.c.bf16 %v1763, %v1755
    %v2716 = vpack.c.bf16 %v1772, %v1764
    %v2717 = vpack.c.bf16 %v1773, %v1765
    %v2718 = vpack.c.bf16 %v1774, %v1766
    %v2719 = vpack.c.bf16 %v1775, %v1767
    %v2720 = vpack.c.bf16 %v1776, %v1768
    %v2721 = vpack.c.bf16 %v1777, %v1769
    %v2722 = vpack.c.bf16 %v1778, %v1770
    %v2723 = vpack.c.bf16 %v1779, %v1771
    %v2724 = vpack.c.bf16 %v1788, %v1780
    %v2725 = vpack.c.bf16 %v1789, %v1781
    %v2726 = vpack.c.bf16 %v1790, %v1782
    %v2727 = vpack.c.bf16 %v1791, %v1783
    %v2728 = vpack.c.bf16 %v1792, %v1784
    %v2729 = vpack.c.bf16 %v1793, %v1785
    %v2730 = vpack.c.bf16 %v1794, %v1786
    %v2731 = vpack.c.bf16 %v1795, %v1787
    %v2732 = vpack.c.bf16 %v1804, %v1796
    %v2733 = vpack.c.bf16 %v1805, %v1797
    %v2734 = vpack.c.bf16 %v1806, %v1798
    %v2735 = vpack.c.bf16 %v1807, %v1799
    %v2736 = vpack.c.bf16 %v1808, %v1800
    %v2737 = vpack.c.bf16 %v1809, %v1801
    %v2738 = vpack.c.bf16 %v1810, %v1802
    %v2739 = vpack.c.bf16 %v1811, %v1803
    %v2740 = vpack.c.bf16 %v1820, %v1812
    %v2741 = vpack.c.bf16 %v1821, %v1813
    %v2742 = vpack.c.bf16 %v1822, %v1814
    %v2743 = vpack.c.bf16 %v1823, %v1815
    %v2744 = vpack.c.bf16 %v1824, %v1816
    %v2745 = vpack.c.bf16 %v1825, %v1817
    %v2746 = vpack.c.bf16 %v1826, %v1818
    %v2747 = vpack.c.bf16 %v1827, %v1819
    %v2748 = vpack.c.bf16 %v1836, %v1828
    %v2749 = vpack.c.bf16 %v1837, %v1829
    %v2750 = vpack.c.bf16 %v1838, %v1830
    %v2751 = vpack.c.bf16 %v1839, %v1831
    %v2752 = vpack.c.bf16 %v1840, %v1832
    %v2753 = vpack.c.bf16 %v1841, %v1833
    %v2754 = vpack.c.bf16 %v1842, %v1834
    %v2755 = vpack.c.bf16 %v1843, %v1835
    %v2756 = vpack.c.bf16 %v1852, %v1844
    %v2757 = vpack.c.bf16 %v1853, %v1845
    %v2758 = vpack.c.bf16 %v1854, %v1846
    %v2759 = vpack.c.bf16 %v1855, %v1847
    %v2760 = vpack.c.bf16 %v1856, %v1848
    %v2761 = vpack.c.bf16 %v1857, %v1849
    %v2762 = vpack.c.bf16 %v1858, %v1850
    %v2763 = vpack.c.bf16 %v1859, %v1851
    %v2764 = vpack.c.bf16 %v1868, %v1860
    %v2765 = vpack.c.bf16 %v1869, %v1861
    %v2766 = vpack.c.bf16 %v1870, %v1862
    %v2767 = vpack.c.bf16 %v1871, %v1863
    %v2768 = vpack.c.bf16 %v1872, %v1864
    %v2769 = vpack.c.bf16 %v1873, %v1865
    %v2770 = vpack.c.bf16 %v1874, %v1866
    %v2771 = vpack.c.bf16 %v1875, %v1867
    %v2772 = vpack.c.bf16 %v1884, %v1876
    %v2773 = vpack.c.bf16 %v1885, %v1877
    %v2774 = vpack.c.bf16 %v1886, %v1878
    %v2775 = vpack.c.bf16 %v1887, %v1879
    %v2776 = vpack.c.bf16 %v1888, %v1880
    %v2777 = vpack.c.bf16 %v1889, %v1881
    %v2778 = vpack.c.bf16 %v1890, %v1882
    %v2779 = vpack.c.bf16 %v1891, %v1883
    %v2780 = vpack.c.bf16 %v1900, %v1892
    %v2781 = vpack.c.bf16 %v1901, %v1893
    %v2782 = vpack.c.bf16 %v1902, %v1894
    %v2783 = vpack.c.bf16 %v1903, %v1895
    %v2784 = vpack.c.bf16 %v1904, %v1896
    %v2785 = vpack.c.bf16 %v1905, %v1897
    %v2786 = vpack.c.bf16 %v1906, %v1898
    %v2787 = vpack.c.bf16 %v1907, %v1899
    %v2788 = vpack.c.bf16 %v1916, %v1908
    %v2789 = vpack.c.bf16 %v1917, %v1909
    %v2790 = vpack.c.bf16 %v1918, %v1910
    %v2791 = vpack.c.bf16 %v1919, %v1911
    %v2792 = vpack.c.bf16 %v1920, %v1912
    %v2793 = vpack.c.bf16 %v1921, %v1913
    %v2794 = vpack.c.bf16 %v1922, %v1914
    %v2795 = vpack.c.bf16 %v1923, %v1915
    %v2796 = vpack.c.bf16 %v1932, %v1924
    %v2797 = vpack.c.bf16 %v1933, %v1925
    %v2798 = vpack.c.bf16 %v1934, %v1926
    %v2799 = vpack.c.bf16 %v1935, %v1927
    %v2800 = vpack.c.bf16 %v1936, %v1928
    %v2801 = vpack.c.bf16 %v1937, %v1929
    %v2802 = vpack.c.bf16 %v1938, %v1930
    %v2803 = vpack.c.bf16 %v1939, %v1931
    %v2804 = vpack.c.bf16 %v1948, %v1940
    %v2805 = vpack.c.bf16 %v1949, %v1941
    %v2806 = vpack.c.bf16 %v1950, %v1942
    %v2807 = vpack.c.bf16 %v1951, %v1943
    %v2808 = vpack.c.bf16 %v1952, %v1944
    %v2809 = vpack.c.bf16 %v1953, %v1945
    %v2810 = vpack.c.bf16 %v1954, %v1946
    %v2811 = vpack.c.bf16 %v1955, %v1947
    %v2812 = vpack.c.bf16 %v1964, %v1956
    %v2813 = vpack.c.bf16 %v1965, %v1957
    %v2814 = vpack.c.bf16 %v1966, %v1958
    %v2815 = vpack.c.bf16 %v1967, %v1959
    %v2816 = vpack.c.bf16 %v1968, %v1960
    %v2817 = vpack.c.bf16 %v1969, %v1961
    %v2818 = vpack.c.bf16 %v1970, %v1962
    %v2819 = vpack.c.bf16 %v1971, %v1963
    %v2820 = vpack.c.bf16 %v1980, %v1972
    %v2821 = vpack.c.bf16 %v1981, %v1973
    %v2822 = vpack.c.bf16 %v1982, %v1974
    %v2823 = vpack.c.bf16 %v1983, %v1975
    %v2824 = vpack.c.bf16 %v1984, %v1976
    %v2825 = vpack.c.bf16 %v1985, %v1977
    %v2826 = vpack.c.bf16 %v1986, %v1978
    %v2827 = vpack.c.bf16 %v1987, %v1979
    %v2828 = vpack.c.bf16 %v1996, %v1988
    %v2829 = vpack.c.bf16 %v1997, %v1989
    %v2830 = vpack.c.bf16 %v1998, %v1990
    %v2831 = vpack.c.bf16 %v1999, %v1991
    %v2832 = vpack.c.bf16 %v2000, %v1992
    %v2833 = vpack.c.bf16 %v2001, %v1993
    %v2834 = vpack.c.bf16 %v2002, %v1994
    %v2835 = vpack.c.bf16 %v2003, %v1995
    %v2836 = vpack.c.bf16 %v2012, %v2004
    %v2837 = vpack.c.bf16 %v2013, %v2005
    %v2838 = vpack.c.bf16 %v2014, %v2006
    %v2839 = vpack.c.bf16 %v2015, %v2007
    %v2840 = vpack.c.bf16 %v2016, %v2008
    %v2841 = vpack.c.bf16 %v2017, %v2009
    %v2842 = vpack.c.bf16 %v2018, %v2010
    %v2843 = vpack.c.bf16 %v2019, %v2011
    %v2844 = vpack.c.bf16 %v2028, %v2020
    %v2845 = vpack.c.bf16 %v2029, %v2021
    %v2846 = vpack.c.bf16 %v2030, %v2022
    %v2847 = vpack.c.bf16 %v2031, %v2023
    %v2848 = vpack.c.bf16 %v2032, %v2024
    %v2849 = vpack.c.bf16 %v2033, %v2025
    %v2850 = vpack.c.bf16 %v2034, %v2026
    %v2851 = vpack.c.bf16 %v2035, %v2027
    %v2852 = vpack.c.bf16 %v2044, %v2036
    %v2853 = vpack.c.bf16 %v2045, %v2037
    %v2854 = vpack.c.bf16 %v2046, %v2038
    %v2855 = vpack.c.bf16 %v2047, %v2039
    %v2856 = vpack.c.bf16 %v2048, %v2040
    %v2857 = vpack.c.bf16 %v2049, %v2041
    %v2858 = vpack.c.bf16 %v2050, %v2042
    %v2859 = vpack.c.bf16 %v2051, %v2043
    %v2860 = vpack.c.bf16 %v2060, %v2052
    %v2861 = vpack.c.bf16 %v2061, %v2053
    %v2862 = vpack.c.bf16 %v2062, %v2054
    %v2863 = vpack.c.bf16 %v2063, %v2055
    %v2864 = vpack.c.bf16 %v2064, %v2056
    %v2865 = vpack.c.bf16 %v2065, %v2057
    %v2866 = vpack.c.bf16 %v2066, %v2058
    %v2867 = vpack.c.bf16 %v2067, %v2059
    %v2868 = vpack.c.bf16 %v2076, %v2068
    %v2869 = vpack.c.bf16 %v2077, %v2069
    %v2870 = vpack.c.bf16 %v2078, %v2070
    %v2871 = vpack.c.bf16 %v2079, %v2071
    %v2872 = vpack.c.bf16 %v2080, %v2072
    %v2873 = vpack.c.bf16 %v2081, %v2073
    %v2874 = vpack.c.bf16 %v2082, %v2074
    %v2875 = vpack.c.bf16 %v2083, %v2075
    %v2876 = vpack.c.bf16 %v2092, %v2084
    %v2877 = vpack.c.bf16 %v2093, %v2085
    %v2878 = vpack.c.bf16 %v2094, %v2086
    %v2879 = vpack.c.bf16 %v2095, %v2087
    %v2880 = vpack.c.bf16 %v2096, %v2088
    %v2881 = vpack.c.bf16 %v2097, %v2089
    %v2882 = vpack.c.bf16 %v2098, %v2090
    %v2883 = vpack.c.bf16 %v2099, %v2091
    %v2884 = vpack.c.bf16 %v2108, %v2100
    %v2885 = vpack.c.bf16 %v2109, %v2101
    %v2886 = vpack.c.bf16 %v2110, %v2102
    %v2887 = vpack.c.bf16 %v2111, %v2103
    %v2888 = vpack.c.bf16 %v2112, %v2104
    %v2889 = vpack.c.bf16 %v2113, %v2105
    %v2890 = vpack.c.bf16 %v2114, %v2106
    %v2891 = vpack.c.bf16 %v2115, %v2107
    %v2892 = vpack.c.bf16 %v2124, %v2116
    %v2893 = vpack.c.bf16 %v2125, %v2117
    %v2894 = vpack.c.bf16 %v2126, %v2118
    %v2895 = vpack.c.bf16 %v2127, %v2119
    %v2896 = vpack.c.bf16 %v2128, %v2120
    %v2897 = vpack.c.bf16 %v2129, %v2121
    %v2898 = vpack.c.bf16 %v2130, %v2122
    %v2899 = vpack.c.bf16 %v2131, %v2123
    %v2900 = vpack.c.bf16 %v2140, %v2132
    %v2901 = vpack.c.bf16 %v2141, %v2133
    %v2902 = vpack.c.bf16 %v2142, %v2134
    %v2903 = vpack.c.bf16 %v2143, %v2135
    %v2904 = vpack.c.bf16 %v2144, %v2136
    %v2905 = vpack.c.bf16 %v2145, %v2137
    %v2906 = vpack.c.bf16 %v2146, %v2138
    %v2907 = vpack.c.bf16 %v2147, %v2139
    %v2908 = vpack.c.bf16 %v2156, %v2148
    %v2909 = vpack.c.bf16 %v2157, %v2149
    %v2910 = vpack.c.bf16 %v2158, %v2150
    %v2911 = vpack.c.bf16 %v2159, %v2151
    %v2912 = vpack.c.bf16 %v2160, %v2152
    %v2913 = vpack.c.bf16 %v2161, %v2153
    %v2914 = vpack.c.bf16 %v2162, %v2154
    %v2915 = vpack.c.bf16 %v2163, %v2155
    %v2916 = vpack.c.bf16 %v2172, %v2164
    %v2917 = vpack.c.bf16 %v2173, %v2165
    %v2918 = vpack.c.bf16 %v2174, %v2166
    %v2919 = vpack.c.bf16 %v2175, %v2167
    %v2920 = vpack.c.bf16 %v2176, %v2168
    %v2921 = vpack.c.bf16 %v2177, %v2169
    %v2922 = vpack.c.bf16 %v2178, %v2170
    %v2923 = vpack.c.bf16 %v2179, %v2171
    %v2924 = vpack.c.bf16 %v2188, %v2180
    %v2925 = vpack.c.bf16 %v2189, %v2181
    %v2926 = vpack.c.bf16 %v2190, %v2182
    %v2927 = vpack.c.bf16 %v2191, %v2183
    %v2928 = vpack.c.bf16 %v2192, %v2184
    %v2929 = vpack.c.bf16 %v2193, %v2185
    %v2930 = vpack.c.bf16 %v2194, %v2186
    %v2931 = vpack.c.bf16 %v2195, %v2187
    %v2932 = vpack.c.bf16 %v2204, %v2196
    %v2933 = vpack.c.bf16 %v2205, %v2197
    %v2934 = vpack.c.bf16 %v2206, %v2198
    %v2935 = vpack.c.bf16 %v2207, %v2199
    %v2936 = vpack.c.bf16 %v2208, %v2200
    %v2937 = vpack.c.bf16 %v2209, %v2201
    %v2938 = vpack.c.bf16 %v2210, %v2202
    %v2939 = vpack.c.bf16 %v2211, %v2203
    %v2940 = vpack.c.bf16 %v2220, %v2212
    %v2941 = vpack.c.bf16 %v2221, %v2213
    %v2942 = vpack.c.bf16 %v2222, %v2214
    %v2943 = vpack.c.bf16 %v2223, %v2215
    %v2944 = vpack.c.bf16 %v2224, %v2216
    %v2945 = vpack.c.bf16 %v2225, %v2217
    %v2946 = vpack.c.bf16 %v2226, %v2218
    %v2947 = vpack.c.bf16 %v2227, %v2219
    %v2948 = vpack.c.bf16 %v2236, %v2228
    %v2949 = vpack.c.bf16 %v2237, %v2229
    %v2950 = vpack.c.bf16 %v2238, %v2230
    %v2951 = vpack.c.bf16 %v2239, %v2231
    %v2952 = vpack.c.bf16 %v2240, %v2232
    %v2953 = vpack.c.bf16 %v2241, %v2233
    %v2954 = vpack.c.bf16 %v2242, %v2234
    %v2955 = vpack.c.bf16 %v2243, %v2235
    %v2956 = vpack.c.bf16 %v2252, %v2244
    %v2957 = vpack.c.bf16 %v2253, %v2245
    %v2958 = vpack.c.bf16 %v2254, %v2246
    %v2959 = vpack.c.bf16 %v2255, %v2247
    %v2960 = vpack.c.bf16 %v2256, %v2248
    %v2961 = vpack.c.bf16 %v2257, %v2249
    %v2962 = vpack.c.bf16 %v2258, %v2250
    %v2963 = vpack.c.bf16 %v2259, %v2251
    %v2964 = vpack.c.bf16 %v2268, %v2260
    %v2965 = vpack.c.bf16 %v2269, %v2261
    %v2966 = vpack.c.bf16 %v2270, %v2262
    %v2967 = vpack.c.bf16 %v2271, %v2263
    %v2968 = vpack.c.bf16 %v2272, %v2264
    %v2969 = vpack.c.bf16 %v2273, %v2265
    %v2970 = vpack.c.bf16 %v2274, %v2266
    %v2971 = vpack.c.bf16 %v2275, %v2267
    %v2972 = vpack.c.bf16 %v2284, %v2276
    %v2973 = vpack.c.bf16 %v2285, %v2277
    %v2974 = vpack.c.bf16 %v2286, %v2278
    %v2975 = vpack.c.bf16 %v2287, %v2279
    %v2976 = vpack.c.bf16 %v2288, %v2280
    %v2977 = vpack.c.bf16 %v2289, %v2281
    %v2978 = vpack.c.bf16 %v2290, %v2282
    %v2979 = vpack.c.bf16 %v2291, %v2283
    %v2980 = vpack.c.bf16 %v2300, %v2292
    %v2981 = vpack.c.bf16 %v2301, %v2293
    %v2982 = vpack.c.bf16 %v2302, %v2294
    %v2983 = vpack.c.bf16 %v2303, %v2295
    %v2984 = vpack.c.bf16 %v2304, %v2296
    %v2985 = vpack.c.bf16 %v2305, %v2297
    %v2986 = vpack.c.bf16 %v2306, %v2298
    %v2987 = vpack.c.bf16 %v2307, %v2299
    %v2988 = vpack.c.bf16 %v2316, %v2308
    %v2989 = vpack.c.bf16 %v2317, %v2309
    %v2990 = vpack.c.bf16 %v2318, %v2310
    %v2991 = vpack.c.bf16 %v2319, %v2311
    %v2992 = vpack.c.bf16 %v2320, %v2312
    %v2993 = vpack.c.bf16 %v2321, %v2313
    %v2994 = vpack.c.bf16 %v2322, %v2314
    %v2995 = vpack.c.bf16 %v2323, %v2315
    %v2996 = vpack.c.bf16 %v2332, %v2324
    %v2997 = vpack.c.bf16 %v2333, %v2325
    %v2998 = vpack.c.bf16 %v2334, %v2326
    %v2999 = vpack.c.bf16 %v2335, %v2327
    %v3000 = vpack.c.bf16 %v2336, %v2328
    %v3001 = vpack.c.bf16 %v2337, %v2329
    %v3002 = vpack.c.bf16 %v2338, %v2330
    %v3003 = vpack.c.bf16 %v2339, %v2331
    %v3004 = vpack.c.bf16 %v2348, %v2340
    %v3005 = vpack.c.bf16 %v2349, %v2341
    %v3006 = vpack.c.bf16 %v2350, %v2342
    %v3007 = vpack.c.bf16 %v2351, %v2343
    %v3008 = vpack.c.bf16 %v2352, %v2344
    %v3009 = vpack.c.bf16 %v2353, %v2345
    %v3010 = vpack.c.bf16 %v2354, %v2346
    %v3011 = vpack.c.bf16 %v2355, %v2347
    %v3012 = vpack.c.bf16 %v2364, %v2356
    %v3013 = vpack.c.bf16 %v2365, %v2357
    %v3014 = vpack.c.bf16 %v2366, %v2358
    %v3015 = vpack.c.bf16 %v2367, %v2359
    %v3016 = vpack.c.bf16 %v2368, %v2360
    %v3017 = vpack.c.bf16 %v2369, %v2361
    %v3018 = vpack.c.bf16 %v2370, %v2362
    %v3019 = vpack.c.bf16 %v2371, %v2363
    %v3020 = vpack.c.bf16 %v2380, %v2372
    %v3021 = vpack.c.bf16 %v2381, %v2373
    %v3022 = vpack.c.bf16 %v2382, %v2374
    %v3023 = vpack.c.bf16 %v2383, %v2375
    %v3024 = vpack.c.bf16 %v2384, %v2376
    %v3025 = vpack.c.bf16 %v2385, %v2377
    %v3026 = vpack.c.bf16 %v2386, %v2378
    %v3027 = vpack.c.bf16 %v2387, %v2379
    %v3028 = vpack.c.bf16 %v2396, %v2388
    %v3029 = vpack.c.bf16 %v2397, %v2389
    %v3030 = vpack.c.bf16 %v2398, %v2390
    %v3031 = vpack.c.bf16 %v2399, %v2391
    %v3032 = vpack.c.bf16 %v2400, %v2392
    %v3033 = vpack.c.bf16 %v2401, %v2393
    %v3034 = vpack.c.bf16 %v2402, %v2394
    %v3035 = vpack.c.bf16 %v2403, %v2395
    %v3036 = vpack.c.bf16 %v2412, %v2404
    %v3037 = vpack.c.bf16 %v2413, %v2405
    %v3038 = vpack.c.bf16 %v2414, %v2406
    %v3039 = vpack.c.bf16 %v2415, %v2407
    %v3040 = vpack.c.bf16 %v2416, %v2408
    %v3041 = vpack.c.bf16 %v2417, %v2409
    %v3042 = vpack.c.bf16 %v2418, %v2410
    %v3043 = vpack.c.bf16 %v2419, %v2411
    %v3044 = vpack.c.bf16 %v2428, %v2420
    %v3045 = vpack.c.bf16 %v2429, %v2421
    %v3046 = vpack.c.bf16 %v2430, %v2422
    %v3047 = vpack.c.bf16 %v2431, %v2423
    %v3048 = vpack.c.bf16 %v2432, %v2424
    %v3049 = vpack.c.bf16 %v2433, %v2425
    %v3050 = vpack.c.bf16 %v2434, %v2426
    %v3051 = vpack.c.bf16 %v2435, %v2427
    %v3052 = vpack.c.bf16 %v2444, %v2436
    %v3053 = vpack.c.bf16 %v2445, %v2437
    %v3054 = vpack.c.bf16 %v2446, %v2438
    %v3055 = vpack.c.bf16 %v2447, %v2439
    %v3056 = vpack.c.bf16 %v2448, %v2440
    %v3057 = vpack.c.bf16 %v2449, %v2441
    %v3058 = vpack.c.bf16 %v2450, %v2442
    %v3059 = vpack.c.bf16 %v2451, %v2443
    %v3060 = vpack.c.bf16 %v2460, %v2452
    %v3061 = vpack.c.bf16 %v2461, %v2453
    %v3062 = vpack.c.bf16 %v2462, %v2454
    %v3063 = vpack.c.bf16 %v2463, %v2455
    %v3064 = vpack.c.bf16 %v2464, %v2456
    %v3065 = vpack.c.bf16 %v2465, %v2457
    %v3066 = vpack.c.bf16 %v2466, %v2458
    %v3067 = vpack.c.bf16 %v2467, %v2459
    %v3068 = vpack.c.bf16 %v2476, %v2468
    %v3069 = vpack.c.bf16 %v2477, %v2469
    %v3070 = vpack.c.bf16 %v2478, %v2470
    %v3071 = vpack.c.bf16 %v2479, %v2471
    %v3072 = vpack.c.bf16 %v2480, %v2472
    %v3073 = vpack.c.bf16 %v2481, %v2473
    %v3074 = vpack.c.bf16 %v2482, %v2474
    %v3075 = vpack.c.bf16 %v2483, %v2475
    %v3076 = vpack.c.bf16 %v2492, %v2484
    %v3077 = vpack.c.bf16 %v2493, %v2485
    %v3078 = vpack.c.bf16 %v2494, %v2486
    %v3079 = vpack.c.bf16 %v2495, %v2487
    %v3080 = vpack.c.bf16 %v2496, %v2488
    %v3081 = vpack.c.bf16 %v2497, %v2489
    %v3082 = vpack.c.bf16 %v2498, %v2490
    %v3083 = vpack.c.bf16 %v2499, %v2491
    %v3084 = vpack.c.bf16 %v2508, %v2500
    %v3085 = vpack.c.bf16 %v2509, %v2501
    %v3086 = vpack.c.bf16 %v2510, %v2502
    %v3087 = vpack.c.bf16 %v2511, %v2503
    %v3088 = vpack.c.bf16 %v2512, %v2504
    %v3089 = vpack.c.bf16 %v2513, %v2505
    %v3090 = vpack.c.bf16 %v2514, %v2506
    %v3091 = vpack.c.bf16 %v2515, %v2507
    %v3092 = vpack.c.bf16 %v2524, %v2516
    %v3093 = vpack.c.bf16 %v2525, %v2517
    %v3094 = vpack.c.bf16 %v2526, %v2518
    %v3095 = vpack.c.bf16 %v2527, %v2519
    %v3096 = vpack.c.bf16 %v2528, %v2520
    %v3097 = vpack.c.bf16 %v2529, %v2521
    %v3098 = vpack.c.bf16 %v2530, %v2522
    %v3099 = vpack.c.bf16 %v2531, %v2523
    %v3100 = vpack.c.bf16 %v2540, %v2532
    %v3101 = vpack.c.bf16 %v2541, %v2533
    %v3102 = vpack.c.bf16 %v2542, %v2534
    %v3103 = vpack.c.bf16 %v2543, %v2535
    %v3104 = vpack.c.bf16 %v2544, %v2536
    %v3105 = vpack.c.bf16 %v2545, %v2537
    %v3106 = vpack.c.bf16 %v2546, %v2538
    %v3107 = vpack.c.bf16 %v2547, %v2539
    %v3108 = vpack.c.bf16 %v2556, %v2548
    %v3109 = vpack.c.bf16 %v2557, %v2549
    %v3110 = vpack.c.bf16 %v2558, %v2550
    %v3111 = vpack.c.bf16 %v2559, %v2551
    %v3112 = vpack.c.bf16 %v2560, %v2552
    %v3113 = vpack.c.bf16 %v2561, %v2553
    %v3114 = vpack.c.bf16 %v2562, %v2554
    %v3115 = vpack.c.bf16 %v2563, %v2555
    %v3116 = vpack.c.bf16 %v2572, %v2564
    %v3117 = vpack.c.bf16 %v2573, %v2565
    %v3118 = vpack.c.bf16 %v2574, %v2566
    %v3119 = vpack.c.bf16 %v2575, %v2567
    %v3120 = vpack.c.bf16 %v2576, %v2568
    %v3121 = vpack.c.bf16 %v2577, %v2569
    %v3122 = vpack.c.bf16 %v2578, %v2570
    %v3123 = vpack.c.bf16 %v2579, %v2571
    %v3124 = vpack.c.bf16 %v2588, %v2580
    %v3125 = vpack.c.bf16 %v2589, %v2581
    %v3126 = vpack.c.bf16 %v2590, %v2582
    %v3127 = vpack.c.bf16 %v2591, %v2583
    %v3128 = vpack.c.bf16 %v2592, %v2584
    %v3129 = vpack.c.bf16 %v2593, %v2585
    %v3130 = vpack.c.bf16 %v2594, %v2586
    %v3131 = vpack.c.bf16 %v2595, %v2587
    %v3132 = vpack.c.bf16 %v2604, %v2596
    %v3133 = vpack.c.bf16 %v2605, %v2597
    %v3134 = vpack.c.bf16 %v2606, %v2598
    %v3135 = vpack.c.bf16 %v2607, %v2599
    %v3136 = vpack.c.bf16 %v2608, %v2600
    %v3137 = vpack.c.bf16 %v2609, %v2601
    %v3138 = vpack.c.bf16 %v2610, %v2602
    %v3139 = vpack.c.bf16 %v2611, %v2603
    %v3140 = vpack.c.bf16 %v2620, %v2612
    %v3141 = vpack.c.bf16 %v2621, %v2613
    %v3142 = vpack.c.bf16 %v2622, %v2614
    %v3143 = vpack.c.bf16 %v2623, %v2615
    %v3144 = vpack.c.bf16 %v2624, %v2616
    %v3145 = vpack.c.bf16 %v2625, %v2617
    %v3146 = vpack.c.bf16 %v2626, %v2618
    %v3147 = vpack.c.bf16 %v2627, %v2619
    %v3148 = vpack.c.bf16 %v2636, %v2628
    %v3149 = vpack.c.bf16 %v2637, %v2629
    %v3150 = vpack.c.bf16 %v2638, %v2630
    %v3151 = vpack.c.bf16 %v2639, %v2631
    %v3152 = vpack.c.bf16 %v2640, %v2632
    %v3153 = vpack.c.bf16 %v2641, %v2633
    %v3154 = vpack.c.bf16 %v2642, %v2634
    %v3155 = vpack.c.bf16 %v2643, %v2635
    %3156 = vmatpush.bf16.msra.mxu0 %v2700
    %3157 = vmatpush.bf16.msra.mxu0 %v2692
    %3158 = vmatpush.bf16.msra.mxu0 %v2684
    %3159 = vmatpush.bf16.msra.mxu0 %v2676
    %3160 = vmatpush.bf16.msra.mxu0 %v2668
    %3161 = vmatpush.bf16.msra.mxu0 %v2660
    %3162 = vmatpush.bf16.msra.mxu0 %v2652
    %3163 = vmatpush.bf16.msra.mxu0 %v2644
    %3164 = vmatmul.bf16.gmra.mxu0 %v332
    %v3165 = vpop.f32.mrf.mxu0
    %v3166 = vadd.f32 0.0, %v3165
    %v3167 = vpop.f32.mrf.mxu0
    %3168 = vdwg.mxu0
    %3169 = vmatpush.bf16.msra.mxu0 %v2764
    %3170 = vmatpush.bf16.msra.mxu0 %v2756
    %3171 = vmatpush.bf16.msra.mxu0 %v2748
    %3172 = vmatpush.bf16.msra.mxu0 %v2740
    %3173 = vmatpush.bf16.msra.mxu0 %v2732
    %3174 = vmatpush.bf16.msra.mxu0 %v2724
    %3175 = vmatpush.bf16.msra.mxu0 %v2716
    %3176 = vmatpush.bf16.msra.mxu0 %v2708
    %3177 = vmatmul.bf16.gmra.mxu0 %v333
    %v3178 = vpop.f32.mrf.mxu0
    %v3179 = vadd.f32 %v3166, %v3178
    %v3180 = vpop.f32.mrf.mxu0
    %3181 = vdwg.mxu0
    %3182 = vmatpush.bf16.msra.mxu0 %v2828
    %3183 = vmatpush.bf16.msra.mxu0 %v2820
    %3184 = vmatpush.bf16.msra.mxu0 %v2812
    %3185 = vmatpush.bf16.msra.mxu0 %v2804
    %3186 = vmatpush.bf16.msra.mxu0 %v2796
    %3187 = vmatpush.bf16.msra.mxu0 %v2788
    %3188 = vmatpush.bf16.msra.mxu0 %v2780
    %3189 = vmatpush.bf16.msra.mxu0 %v2772
    %3190 = vmatmul.bf16.gmra.mxu0 %v334
    %v3191 = vpop.f32.mrf.mxu0
    %v3192 = vadd.f32 %v3179, %v3191
    %v3193 = vpop.f32.mrf.mxu0
    %3194 = vdwg.mxu0
    %3195 = vmatpush.bf16.msra.mxu0 %v2892
    %3196 = vmatpush.bf16.msra.mxu0 %v2884
    %3197 = vmatpush.bf16.msra.mxu0 %v2876
    %3198 = vmatpush.bf16.msra.mxu0 %v2868
    %3199 = vmatpush.bf16.msra.mxu0 %v2860
    %3200 = vmatpush.bf16.msra.mxu0 %v2852
    %3201 = vmatpush.bf16.msra.mxu0 %v2844
    %3202 = vmatpush.bf16.msra.mxu0 %v2836
    %3203 = vmatmul.bf16.gmra.mxu0 %v335
    %v3204 = vpop.f32.mrf.mxu0
    %v3205 = vadd.f32 %v3192, %v3204
    %v3206 = vpop.f32.mrf.mxu0
    %3207 = vdwg.mxu0
    %3208 = vmatpush.bf16.msra.mxu0 %v2956
    %3209 = vmatpush.bf16.msra.mxu0 %v2948
    %3210 = vmatpush.bf16.msra.mxu0 %v2940
    %3211 = vmatpush.bf16.msra.mxu0 %v2932
    %3212 = vmatpush.bf16.msra.mxu0 %v2924
    %3213 = vmatpush.bf16.msra.mxu0 %v2916
    %3214 = vmatpush.bf16.msra.mxu0 %v2908
    %3215 = vmatpush.bf16.msra.mxu0 %v2900
    %3216 = vmatmul.bf16.gmra.mxu0 %v336
    %v3217 = vpop.f32.mrf.mxu0
    %v3218 = vadd.f32 %v3205, %v3217
    %v3219 = vpop.f32.mrf.mxu0
    %3220 = vdwg.mxu0
    %3221 = vmatpush.bf16.msra.mxu0 %v3020
    %3222 = vmatpush.bf16.msra.mxu0 %v3012
    %3223 = vmatpush.bf16.msra.mxu0 %v3004
    %3224 = vmatpush.bf16.msra.mxu0 %v2996
    %3225 = vmatpush.bf16.msra.mxu0 %v2988
    %3226 = vmatpush.bf16.msra.mxu0 %v2980
    %3227 = vmatpush.bf16.msra.mxu0 %v2972
    %3228 = vmatpush.bf16.msra.mxu0 %v2964
    %3229 = vmatmul.bf16.gmra.mxu0 %v337
    %v3230 = vpop.f32.mrf.mxu0
    %v3231 = vadd.f32 %v3218, %v3230
    %v3232 = vpop.f32.mrf.mxu0
    %3233 = vdwg.mxu0
    %3234 = vmatpush.bf16.msra.mxu0 %v3084
    %3235 = vmatpush.bf16.msra.mxu0 %v3076
    %3236 = vmatpush.bf16.msra.mxu0 %v3068
    %3237 = vmatpush.bf16.msra.mxu0 %v3060
    %3238 = vmatpush.bf16.msra.mxu0 %v3052
    %3239 = vmatpush.bf16.msra.mxu0 %v3044
    %3240 = vmatpush.bf16.msra.mxu0 %v3036
    %3241 = vmatpush.bf16.msra.mxu0 %v3028
    %3242 = vmatmul.bf16.gmra.mxu0 %v338
    %v3243 = vpop.f32.mrf.mxu0
    %v3244 = vadd.f32 %v3231, %v3243
    %v3245 = vpop.f32.mrf.mxu0
    %3246 = vdwg.mxu0
    %3247 = vmatpush.bf16.msra.mxu0 %v3148
    %3248 = vmatpush.bf16.msra.mxu0 %v3140
    %3249 = vmatpush.bf16.msra.mxu0 %v3132
    %3250 = vmatpush.bf16.msra.mxu0 %v3124
    %3251 = vmatpush.bf16.msra.mxu0 %v3116
    %3252 = vmatpush.bf16.msra.mxu0 %v3108
    %3253 = vmatpush.bf16.msra.mxu0 %v3100
    %3254 = vmatpush.bf16.msra.mxu0 %v3092
    %3255 = vmatmul.bf16.gmra.mxu0 %v339
    %v3256 = vpop.f32.mrf.mxu0
    %v3257 = vadd.f32 %v3244, %v3256
    %v3258 = vpop.f32.mrf.mxu0
    %3259 = vdwg.mxu0
    %3260 = vmatpush.bf16.msra.mxu0 %v2701
    %3261 = vmatpush.bf16.msra.mxu0 %v2693
    %3262 = vmatpush.bf16.msra.mxu0 %v2685
    %3263 = vmatpush.bf16.msra.mxu0 %v2677
    %3264 = vmatpush.bf16.msra.mxu0 %v2669
    %3265 = vmatpush.bf16.msra.mxu0 %v2661
    %3266 = vmatpush.bf16.msra.mxu0 %v2653
    %3267 = vmatpush.bf16.msra.mxu0 %v2645
    %3268 = vmatmul.bf16.gmra.mxu0 %v332
    %v3269 = vpop.f32.mrf.mxu0
    %v3270 = vadd.f32 0.0, %v3269
    %v3271 = vpop.f32.mrf.mxu0
    %3272 = vdwg.mxu0
    %3273 = vmatpush.bf16.msra.mxu0 %v2765
    %3274 = vmatpush.bf16.msra.mxu0 %v2757
    %3275 = vmatpush.bf16.msra.mxu0 %v2749
    %3276 = vmatpush.bf16.msra.mxu0 %v2741
    %3277 = vmatpush.bf16.msra.mxu0 %v2733
    %3278 = vmatpush.bf16.msra.mxu0 %v2725
    %3279 = vmatpush.bf16.msra.mxu0 %v2717
    %3280 = vmatpush.bf16.msra.mxu0 %v2709
    %3281 = vmatmul.bf16.gmra.mxu0 %v333
    %v3282 = vpop.f32.mrf.mxu0
    %v3283 = vadd.f32 %v3270, %v3282
    %v3284 = vpop.f32.mrf.mxu0
    %3285 = vdwg.mxu0
    %3286 = vmatpush.bf16.msra.mxu0 %v2829
    %3287 = vmatpush.bf16.msra.mxu0 %v2821
    %3288 = vmatpush.bf16.msra.mxu0 %v2813
    %3289 = vmatpush.bf16.msra.mxu0 %v2805
    %3290 = vmatpush.bf16.msra.mxu0 %v2797
    %3291 = vmatpush.bf16.msra.mxu0 %v2789
    %3292 = vmatpush.bf16.msra.mxu0 %v2781
    %3293 = vmatpush.bf16.msra.mxu0 %v2773
    %3294 = vmatmul.bf16.gmra.mxu0 %v334
    %v3295 = vpop.f32.mrf.mxu0
    %v3296 = vadd.f32 %v3283, %v3295
    %v3297 = vpop.f32.mrf.mxu0
    %3298 = vdwg.mxu0
    %3299 = vmatpush.bf16.msra.mxu0 %v2893
    %3300 = vmatpush.bf16.msra.mxu0 %v2885
    %3301 = vmatpush.bf16.msra.mxu0 %v2877
    %3302 = vmatpush.bf16.msra.mxu0 %v2869
    %3303 = vmatpush.bf16.msra.mxu0 %v2861
    %3304 = vmatpush.bf16.msra.mxu0 %v2853
    %3305 = vmatpush.bf16.msra.mxu0 %v2845
    %3306 = vmatpush.bf16.msra.mxu0 %v2837
    %3307 = vmatmul.bf16.gmra.mxu0 %v335
    %v3308 = vpop.f32.mrf.mxu0
    %v3309 = vadd.f32 %v3296, %v3308
    %v3310 = vpop.f32.mrf.mxu0
    %3311 = vdwg.mxu0
    %3312 = vmatpush.bf16.msra.mxu0 %v2957
    %3313 = vmatpush.bf16.msra.mxu0 %v2949
    %3314 = vmatpush.bf16.msra.mxu0 %v2941
    %3315 = vmatpush.bf16.msra.mxu0 %v2933
    %3316 = vmatpush.bf16.msra.mxu0 %v2925
    %3317 = vmatpush.bf16.msra.mxu0 %v2917
    %3318 = vmatpush.bf16.msra.mxu0 %v2909
    %3319 = vmatpush.bf16.msra.mxu0 %v2901
    %3320 = vmatmul.bf16.gmra.mxu0 %v336
    %v3321 = vpop.f32.mrf.mxu0
    %v3322 = vadd.f32 %v3309, %v3321
    %v3323 = vpop.f32.mrf.mxu0
    %3324 = vdwg.mxu0
    %3325 = vmatpush.bf16.msra.mxu0 %v3021
    %3326 = vmatpush.bf16.msra.mxu0 %v3013
    %3327 = vmatpush.bf16.msra.mxu0 %v3005
    %3328 = vmatpush.bf16.msra.mxu0 %v2997
    %3329 = vmatpush.bf16.msra.mxu0 %v2989
    %3330 = vmatpush.bf16.msra.mxu0 %v2981
    %3331 = vmatpush.bf16.msra.mxu0 %v2973
    %3332 = vmatpush.bf16.msra.mxu0 %v2965
    %3333 = vmatmul.bf16.gmra.mxu0 %v337
    %v3334 = vpop.f32.mrf.mxu0
    %v3335 = vadd.f32 %v3322, %v3334
    %v3336 = vpop.f32.mrf.mxu0
    %3337 = vdwg.mxu0
    %3338 = vmatpush.bf16.msra.mxu0 %v3085
    %3339 = vmatpush.bf16.msra.mxu0 %v3077
    %3340 = vmatpush.bf16.msra.mxu0 %v3069
    %3341 = vmatpush.bf16.msra.mxu0 %v3061
    %3342 = vmatpush.bf16.msra.mxu0 %v3053
    %3343 = vmatpush.bf16.msra.mxu0 %v3045
    %3344 = vmatpush.bf16.msra.mxu0 %v3037
    %3345 = vmatpush.bf16.msra.mxu0 %v3029
    %3346 = vmatmul.bf16.gmra.mxu0 %v338
    %v3347 = vpop.f32.mrf.mxu0
    %v3348 = vadd.f32 %v3335, %v3347
    %v3349 = vpop.f32.mrf.mxu0
    %3350 = vdwg.mxu0
    %3351 = vmatpush.bf16.msra.mxu0 %v3149
    %3352 = vmatpush.bf16.msra.mxu0 %v3141
    %3353 = vmatpush.bf16.msra.mxu0 %v3133
    %3354 = vmatpush.bf16.msra.mxu0 %v3125
    %3355 = vmatpush.bf16.msra.mxu0 %v3117
    %3356 = vmatpush.bf16.msra.mxu0 %v3109
    %3357 = vmatpush.bf16.msra.mxu0 %v3101
    %3358 = vmatpush.bf16.msra.mxu0 %v3093
    %3359 = vmatmul.bf16.gmra.mxu0 %v339
    %v3360 = vpop.f32.mrf.mxu0
    %v3361 = vadd.f32 %v3348, %v3360
    %v3362 = vpop.f32.mrf.mxu0
    %3363 = vdwg.mxu0
    %3364 = vmatpush.bf16.msra.mxu0 %v2702
    %3365 = vmatpush.bf16.msra.mxu0 %v2694
    %3366 = vmatpush.bf16.msra.mxu0 %v2686
    %3367 = vmatpush.bf16.msra.mxu0 %v2678
    %3368 = vmatpush.bf16.msra.mxu0 %v2670
    %3369 = vmatpush.bf16.msra.mxu0 %v2662
    %3370 = vmatpush.bf16.msra.mxu0 %v2654
    %3371 = vmatpush.bf16.msra.mxu0 %v2646
    %3372 = vmatmul.bf16.gmra.mxu0 %v332
    %v3373 = vpop.f32.mrf.mxu0
    %v3374 = vadd.f32 0.0, %v3373
    %v3375 = vpop.f32.mrf.mxu0
    %3376 = vdwg.mxu0
    %3377 = vmatpush.bf16.msra.mxu0 %v2766
    %3378 = vmatpush.bf16.msra.mxu0 %v2758
    %3379 = vmatpush.bf16.msra.mxu0 %v2750
    %3380 = vmatpush.bf16.msra.mxu0 %v2742
    %3381 = vmatpush.bf16.msra.mxu0 %v2734
    %3382 = vmatpush.bf16.msra.mxu0 %v2726
    %3383 = vmatpush.bf16.msra.mxu0 %v2718
    %3384 = vmatpush.bf16.msra.mxu0 %v2710
    %3385 = vmatmul.bf16.gmra.mxu0 %v333
    %v3386 = vpop.f32.mrf.mxu0
    %v3387 = vadd.f32 %v3374, %v3386
    %v3388 = vpop.f32.mrf.mxu0
    %3389 = vdwg.mxu0
    %3390 = vmatpush.bf16.msra.mxu0 %v2830
    %3391 = vmatpush.bf16.msra.mxu0 %v2822
    %3392 = vmatpush.bf16.msra.mxu0 %v2814
    %3393 = vmatpush.bf16.msra.mxu0 %v2806
    %3394 = vmatpush.bf16.msra.mxu0 %v2798
    %3395 = vmatpush.bf16.msra.mxu0 %v2790
    %3396 = vmatpush.bf16.msra.mxu0 %v2782
    %3397 = vmatpush.bf16.msra.mxu0 %v2774
    %3398 = vmatmul.bf16.gmra.mxu0 %v334
    %v3399 = vpop.f32.mrf.mxu0
    %v3400 = vadd.f32 %v3387, %v3399
    %v3401 = vpop.f32.mrf.mxu0
    %3402 = vdwg.mxu0
    %3403 = vmatpush.bf16.msra.mxu0 %v2894
    %3404 = vmatpush.bf16.msra.mxu0 %v2886
    %3405 = vmatpush.bf16.msra.mxu0 %v2878
    %3406 = vmatpush.bf16.msra.mxu0 %v2870
    %3407 = vmatpush.bf16.msra.mxu0 %v2862
    %3408 = vmatpush.bf16.msra.mxu0 %v2854
    %3409 = vmatpush.bf16.msra.mxu0 %v2846
    %3410 = vmatpush.bf16.msra.mxu0 %v2838
    %3411 = vmatmul.bf16.gmra.mxu0 %v335
    %v3412 = vpop.f32.mrf.mxu0
    %v3413 = vadd.f32 %v3400, %v3412
    %v3414 = vpop.f32.mrf.mxu0
    %3415 = vdwg.mxu0
    %3416 = vmatpush.bf16.msra.mxu0 %v2958
    %3417 = vmatpush.bf16.msra.mxu0 %v2950
    %3418 = vmatpush.bf16.msra.mxu0 %v2942
    %3419 = vmatpush.bf16.msra.mxu0 %v2934
    %3420 = vmatpush.bf16.msra.mxu0 %v2926
    %3421 = vmatpush.bf16.msra.mxu0 %v2918
    %3422 = vmatpush.bf16.msra.mxu0 %v2910
    %3423 = vmatpush.bf16.msra.mxu0 %v2902
    %3424 = vmatmul.bf16.gmra.mxu0 %v336
    %v3425 = vpop.f32.mrf.mxu0
    %v3426 = vadd.f32 %v3413, %v3425
    %v3427 = vpop.f32.mrf.mxu0
    %3428 = vdwg.mxu0
    %3429 = vmatpush.bf16.msra.mxu0 %v3022
    %3430 = vmatpush.bf16.msra.mxu0 %v3014
    %3431 = vmatpush.bf16.msra.mxu0 %v3006
    %3432 = vmatpush.bf16.msra.mxu0 %v2998
    %3433 = vmatpush.bf16.msra.mxu0 %v2990
    %3434 = vmatpush.bf16.msra.mxu0 %v2982
    %3435 = vmatpush.bf16.msra.mxu0 %v2974
    %3436 = vmatpush.bf16.msra.mxu0 %v2966
    %3437 = vmatmul.bf16.gmra.mxu0 %v337
    %v3438 = vpop.f32.mrf.mxu0
    %v3439 = vadd.f32 %v3426, %v3438
    %v3440 = vpop.f32.mrf.mxu0
    %3441 = vdwg.mxu0
    %3442 = vmatpush.bf16.msra.mxu0 %v3086
    %3443 = vmatpush.bf16.msra.mxu0 %v3078
    %3444 = vmatpush.bf16.msra.mxu0 %v3070
    %3445 = vmatpush.bf16.msra.mxu0 %v3062
    %3446 = vmatpush.bf16.msra.mxu0 %v3054
    %3447 = vmatpush.bf16.msra.mxu0 %v3046
    %3448 = vmatpush.bf16.msra.mxu0 %v3038
    %3449 = vmatpush.bf16.msra.mxu0 %v3030
    %3450 = vmatmul.bf16.gmra.mxu0 %v338
    %v3451 = vpop.f32.mrf.mxu0
    %v3452 = vadd.f32 %v3439, %v3451
    %v3453 = vpop.f32.mrf.mxu0
    %3454 = vdwg.mxu0
    %3455 = vmatpush.bf16.msra.mxu0 %v3150
    %3456 = vmatpush.bf16.msra.mxu0 %v3142
    %3457 = vmatpush.bf16.msra.mxu0 %v3134
    %3458 = vmatpush.bf16.msra.mxu0 %v3126
    %3459 = vmatpush.bf16.msra.mxu0 %v3118
    %3460 = vmatpush.bf16.msra.mxu0 %v3110
    %3461 = vmatpush.bf16.msra.mxu0 %v3102
    %3462 = vmatpush.bf16.msra.mxu0 %v3094
    %3463 = vmatmul.bf16.gmra.mxu0 %v339
    %v3464 = vpop.f32.mrf.mxu0
    %v3465 = vadd.f32 %v3452, %v3464
    %v3466 = vpop.f32.mrf.mxu0
    %3467 = vdwg.mxu0
    %3468 = vmatpush.bf16.msra.mxu0 %v2703
    %3469 = vmatpush.bf16.msra.mxu0 %v2695
    %3470 = vmatpush.bf16.msra.mxu0 %v2687
    %3471 = vmatpush.bf16.msra.mxu0 %v2679
    %3472 = vmatpush.bf16.msra.mxu0 %v2671
    %3473 = vmatpush.bf16.msra.mxu0 %v2663
    %3474 = vmatpush.bf16.msra.mxu0 %v2655
    %3475 = vmatpush.bf16.msra.mxu0 %v2647
    %3476 = vmatmul.bf16.gmra.mxu0 %v332
    %v3477 = vpop.f32.mrf.mxu0
    %v3478 = vadd.f32 0.0, %v3477
    %v3479 = vpop.f32.mrf.mxu0
    %3480 = vdwg.mxu0
    %3481 = vmatpush.bf16.msra.mxu0 %v2767
    %3482 = vmatpush.bf16.msra.mxu0 %v2759
    %3483 = vmatpush.bf16.msra.mxu0 %v2751
    %3484 = vmatpush.bf16.msra.mxu0 %v2743
    %3485 = vmatpush.bf16.msra.mxu0 %v2735
    %3486 = vmatpush.bf16.msra.mxu0 %v2727
    %3487 = vmatpush.bf16.msra.mxu0 %v2719
    %3488 = vmatpush.bf16.msra.mxu0 %v2711
    %3489 = vmatmul.bf16.gmra.mxu0 %v333
    %v3490 = vpop.f32.mrf.mxu0
    %v3491 = vadd.f32 %v3478, %v3490
    %v3492 = vpop.f32.mrf.mxu0
    %3493 = vdwg.mxu0
    %3494 = vmatpush.bf16.msra.mxu0 %v2831
    %3495 = vmatpush.bf16.msra.mxu0 %v2823
    %3496 = vmatpush.bf16.msra.mxu0 %v2815
    %3497 = vmatpush.bf16.msra.mxu0 %v2807
    %3498 = vmatpush.bf16.msra.mxu0 %v2799
    %3499 = vmatpush.bf16.msra.mxu0 %v2791
    %3500 = vmatpush.bf16.msra.mxu0 %v2783
    %3501 = vmatpush.bf16.msra.mxu0 %v2775
    %3502 = vmatmul.bf16.gmra.mxu0 %v334
    %v3503 = vpop.f32.mrf.mxu0
    %v3504 = vadd.f32 %v3491, %v3503
    %v3505 = vpop.f32.mrf.mxu0
    %3506 = vdwg.mxu0
    %3507 = vmatpush.bf16.msra.mxu0 %v2895
    %3508 = vmatpush.bf16.msra.mxu0 %v2887
    %3509 = vmatpush.bf16.msra.mxu0 %v2879
    %3510 = vmatpush.bf16.msra.mxu0 %v2871
    %3511 = vmatpush.bf16.msra.mxu0 %v2863
    %3512 = vmatpush.bf16.msra.mxu0 %v2855
    %3513 = vmatpush.bf16.msra.mxu0 %v2847
    %3514 = vmatpush.bf16.msra.mxu0 %v2839
    %3515 = vmatmul.bf16.gmra.mxu0 %v335
    %v3516 = vpop.f32.mrf.mxu0
    %v3517 = vadd.f32 %v3504, %v3516
    %v3518 = vpop.f32.mrf.mxu0
    %3519 = vdwg.mxu0
    %3520 = vmatpush.bf16.msra.mxu0 %v2959
    %3521 = vmatpush.bf16.msra.mxu0 %v2951
    %3522 = vmatpush.bf16.msra.mxu0 %v2943
    %3523 = vmatpush.bf16.msra.mxu0 %v2935
    %3524 = vmatpush.bf16.msra.mxu0 %v2927
    %3525 = vmatpush.bf16.msra.mxu0 %v2919
    %3526 = vmatpush.bf16.msra.mxu0 %v2911
    %3527 = vmatpush.bf16.msra.mxu0 %v2903
    %3528 = vmatmul.bf16.gmra.mxu0 %v336
    %v3529 = vpop.f32.mrf.mxu0
    %v3530 = vadd.f32 %v3517, %v3529
    %v3531 = vpop.f32.mrf.mxu0
    %3532 = vdwg.mxu0
    %3533 = vmatpush.bf16.msra.mxu0 %v3023
    %3534 = vmatpush.bf16.msra.mxu0 %v3015
    %3535 = vmatpush.bf16.msra.mxu0 %v3007
    %3536 = vmatpush.bf16.msra.mxu0 %v2999
    %3537 = vmatpush.bf16.msra.mxu0 %v2991
    %3538 = vmatpush.bf16.msra.mxu0 %v2983
    %3539 = vmatpush.bf16.msra.mxu0 %v2975
    %3540 = vmatpush.bf16.msra.mxu0 %v2967
    %3541 = vmatmul.bf16.gmra.mxu0 %v337
    %v3542 = vpop.f32.mrf.mxu0
    %v3543 = vadd.f32 %v3530, %v3542
    %v3544 = vpop.f32.mrf.mxu0
    %3545 = vdwg.mxu0
    %3546 = vmatpush.bf16.msra.mxu0 %v3087
    %3547 = vmatpush.bf16.msra.mxu0 %v3079
    %3548 = vmatpush.bf16.msra.mxu0 %v3071
    %3549 = vmatpush.bf16.msra.mxu0 %v3063
    %3550 = vmatpush.bf16.msra.mxu0 %v3055
    %3551 = vmatpush.bf16.msra.mxu0 %v3047
    %3552 = vmatpush.bf16.msra.mxu0 %v3039
    %3553 = vmatpush.bf16.msra.mxu0 %v3031
    %3554 = vmatmul.bf16.gmra.mxu0 %v338
    %v3555 = vpop.f32.mrf.mxu0
    %v3556 = vadd.f32 %v3543, %v3555
    %v3557 = vpop.f32.mrf.mxu0
    %3558 = vdwg.mxu0
    %3559 = vmatpush.bf16.msra.mxu0 %v3151
    %3560 = vmatpush.bf16.msra.mxu0 %v3143
    %3561 = vmatpush.bf16.msra.mxu0 %v3135
    %3562 = vmatpush.bf16.msra.mxu0 %v3127
    %3563 = vmatpush.bf16.msra.mxu0 %v3119
    %3564 = vmatpush.bf16.msra.mxu0 %v3111
    %3565 = vmatpush.bf16.msra.mxu0 %v3103
    %3566 = vmatpush.bf16.msra.mxu0 %v3095
    %3567 = vmatmul.bf16.gmra.mxu0 %v339
    %v3568 = vpop.f32.mrf.mxu0
    %v3569 = vadd.f32 %v3556, %v3568
    %v3570 = vpop.f32.mrf.mxu0
    %3571 = vdwg.mxu0
    %3572 = vmatpush.bf16.msra.mxu0 %v2704
    %3573 = vmatpush.bf16.msra.mxu0 %v2696
    %3574 = vmatpush.bf16.msra.mxu0 %v2688
    %3575 = vmatpush.bf16.msra.mxu0 %v2680
    %3576 = vmatpush.bf16.msra.mxu0 %v2672
    %3577 = vmatpush.bf16.msra.mxu0 %v2664
    %3578 = vmatpush.bf16.msra.mxu0 %v2656
    %3579 = vmatpush.bf16.msra.mxu0 %v2648
    %3580 = vmatmul.bf16.gmra.mxu0 %v332
    %v3581 = vpop.f32.mrf.mxu0
    %v3582 = vadd.f32 0.0, %v3581
    %v3583 = vpop.f32.mrf.mxu0
    %3584 = vdwg.mxu0
    %3585 = vmatpush.bf16.msra.mxu0 %v2768
    %3586 = vmatpush.bf16.msra.mxu0 %v2760
    %3587 = vmatpush.bf16.msra.mxu0 %v2752
    %3588 = vmatpush.bf16.msra.mxu0 %v2744
    %3589 = vmatpush.bf16.msra.mxu0 %v2736
    %3590 = vmatpush.bf16.msra.mxu0 %v2728
    %3591 = vmatpush.bf16.msra.mxu0 %v2720
    %3592 = vmatpush.bf16.msra.mxu0 %v2712
    %3593 = vmatmul.bf16.gmra.mxu0 %v333
    %v3594 = vpop.f32.mrf.mxu0
    %v3595 = vadd.f32 %v3582, %v3594
    %v3596 = vpop.f32.mrf.mxu0
    %3597 = vdwg.mxu0
    %3598 = vmatpush.bf16.msra.mxu0 %v2832
    %3599 = vmatpush.bf16.msra.mxu0 %v2824
    %3600 = vmatpush.bf16.msra.mxu0 %v2816
    %3601 = vmatpush.bf16.msra.mxu0 %v2808
    %3602 = vmatpush.bf16.msra.mxu0 %v2800
    %3603 = vmatpush.bf16.msra.mxu0 %v2792
    %3604 = vmatpush.bf16.msra.mxu0 %v2784
    %3605 = vmatpush.bf16.msra.mxu0 %v2776
    %3606 = vmatmul.bf16.gmra.mxu0 %v334
    %v3607 = vpop.f32.mrf.mxu0
    %v3608 = vadd.f32 %v3595, %v3607
    %v3609 = vpop.f32.mrf.mxu0
    %3610 = vdwg.mxu0
    %3611 = vmatpush.bf16.msra.mxu0 %v2896
    %3612 = vmatpush.bf16.msra.mxu0 %v2888
    %3613 = vmatpush.bf16.msra.mxu0 %v2880
    %3614 = vmatpush.bf16.msra.mxu0 %v2872
    %3615 = vmatpush.bf16.msra.mxu0 %v2864
    %3616 = vmatpush.bf16.msra.mxu0 %v2856
    %3617 = vmatpush.bf16.msra.mxu0 %v2848
    %3618 = vmatpush.bf16.msra.mxu0 %v2840
    %3619 = vmatmul.bf16.gmra.mxu0 %v335
    %v3620 = vpop.f32.mrf.mxu0
    %v3621 = vadd.f32 %v3608, %v3620
    %v3622 = vpop.f32.mrf.mxu0
    %3623 = vdwg.mxu0
    %3624 = vmatpush.bf16.msra.mxu0 %v2960
    %3625 = vmatpush.bf16.msra.mxu0 %v2952
    %3626 = vmatpush.bf16.msra.mxu0 %v2944
    %3627 = vmatpush.bf16.msra.mxu0 %v2936
    %3628 = vmatpush.bf16.msra.mxu0 %v2928
    %3629 = vmatpush.bf16.msra.mxu0 %v2920
    %3630 = vmatpush.bf16.msra.mxu0 %v2912
    %3631 = vmatpush.bf16.msra.mxu0 %v2904
    %3632 = vmatmul.bf16.gmra.mxu0 %v336
    %v3633 = vpop.f32.mrf.mxu0
    %v3634 = vadd.f32 %v3621, %v3633
    %v3635 = vpop.f32.mrf.mxu0
    %3636 = vdwg.mxu0
    %3637 = vmatpush.bf16.msra.mxu0 %v3024
    %3638 = vmatpush.bf16.msra.mxu0 %v3016
    %3639 = vmatpush.bf16.msra.mxu0 %v3008
    %3640 = vmatpush.bf16.msra.mxu0 %v3000
    %3641 = vmatpush.bf16.msra.mxu0 %v2992
    %3642 = vmatpush.bf16.msra.mxu0 %v2984
    %3643 = vmatpush.bf16.msra.mxu0 %v2976
    %3644 = vmatpush.bf16.msra.mxu0 %v2968
    %3645 = vmatmul.bf16.gmra.mxu0 %v337
    %v3646 = vpop.f32.mrf.mxu0
    %v3647 = vadd.f32 %v3634, %v3646
    %v3648 = vpop.f32.mrf.mxu0
    %3649 = vdwg.mxu0
    %3650 = vmatpush.bf16.msra.mxu0 %v3088
    %3651 = vmatpush.bf16.msra.mxu0 %v3080
    %3652 = vmatpush.bf16.msra.mxu0 %v3072
    %3653 = vmatpush.bf16.msra.mxu0 %v3064
    %3654 = vmatpush.bf16.msra.mxu0 %v3056
    %3655 = vmatpush.bf16.msra.mxu0 %v3048
    %3656 = vmatpush.bf16.msra.mxu0 %v3040
    %3657 = vmatpush.bf16.msra.mxu0 %v3032
    %3658 = vmatmul.bf16.gmra.mxu0 %v338
    %v3659 = vpop.f32.mrf.mxu0
    %v3660 = vadd.f32 %v3647, %v3659
    %v3661 = vpop.f32.mrf.mxu0
    %3662 = vdwg.mxu0
    %3663 = vmatpush.bf16.msra.mxu0 %v3152
    %3664 = vmatpush.bf16.msra.mxu0 %v3144
    %3665 = vmatpush.bf16.msra.mxu0 %v3136
    %3666 = vmatpush.bf16.msra.mxu0 %v3128
    %3667 = vmatpush.bf16.msra.mxu0 %v3120
    %3668 = vmatpush.bf16.msra.mxu0 %v3112
    %3669 = vmatpush.bf16.msra.mxu0 %v3104
    %3670 = vmatpush.bf16.msra.mxu0 %v3096
    %3671 = vmatmul.bf16.gmra.mxu0 %v339
    %v3672 = vpop.f32.mrf.mxu0
    %v3673 = vadd.f32 %v3660, %v3672
    %v3674 = vpop.f32.mrf.mxu0
    %3675 = vdwg.mxu0
    %3676 = vmatpush.bf16.msra.mxu0 %v2705
    %3677 = vmatpush.bf16.msra.mxu0 %v2697
    %3678 = vmatpush.bf16.msra.mxu0 %v2689
    %3679 = vmatpush.bf16.msra.mxu0 %v2681
    %3680 = vmatpush.bf16.msra.mxu0 %v2673
    %3681 = vmatpush.bf16.msra.mxu0 %v2665
    %3682 = vmatpush.bf16.msra.mxu0 %v2657
    %3683 = vmatpush.bf16.msra.mxu0 %v2649
    %3684 = vmatmul.bf16.gmra.mxu0 %v332
    %v3685 = vpop.f32.mrf.mxu0
    %v3686 = vadd.f32 0.0, %v3685
    %v3687 = vpop.f32.mrf.mxu0
    %3688 = vdwg.mxu0
    %3689 = vmatpush.bf16.msra.mxu0 %v2769
    %3690 = vmatpush.bf16.msra.mxu0 %v2761
    %3691 = vmatpush.bf16.msra.mxu0 %v2753
    %3692 = vmatpush.bf16.msra.mxu0 %v2745
    %3693 = vmatpush.bf16.msra.mxu0 %v2737
    %3694 = vmatpush.bf16.msra.mxu0 %v2729
    %3695 = vmatpush.bf16.msra.mxu0 %v2721
    %3696 = vmatpush.bf16.msra.mxu0 %v2713
    %3697 = vmatmul.bf16.gmra.mxu0 %v333
    %v3698 = vpop.f32.mrf.mxu0
    %v3699 = vadd.f32 %v3686, %v3698
    %v3700 = vpop.f32.mrf.mxu0
    %3701 = vdwg.mxu0
    %3702 = vmatpush.bf16.msra.mxu0 %v2833
    %3703 = vmatpush.bf16.msra.mxu0 %v2825
    %3704 = vmatpush.bf16.msra.mxu0 %v2817
    %3705 = vmatpush.bf16.msra.mxu0 %v2809
    %3706 = vmatpush.bf16.msra.mxu0 %v2801
    %3707 = vmatpush.bf16.msra.mxu0 %v2793
    %3708 = vmatpush.bf16.msra.mxu0 %v2785
    %3709 = vmatpush.bf16.msra.mxu0 %v2777
    %3710 = vmatmul.bf16.gmra.mxu0 %v334
    %v3711 = vpop.f32.mrf.mxu0
    %v3712 = vadd.f32 %v3699, %v3711
    %v3713 = vpop.f32.mrf.mxu0
    %3714 = vdwg.mxu0
    %3715 = vmatpush.bf16.msra.mxu0 %v2897
    %3716 = vmatpush.bf16.msra.mxu0 %v2889
    %3717 = vmatpush.bf16.msra.mxu0 %v2881
    %3718 = vmatpush.bf16.msra.mxu0 %v2873
    %3719 = vmatpush.bf16.msra.mxu0 %v2865
    %3720 = vmatpush.bf16.msra.mxu0 %v2857
    %3721 = vmatpush.bf16.msra.mxu0 %v2849
    %3722 = vmatpush.bf16.msra.mxu0 %v2841
    %3723 = vmatmul.bf16.gmra.mxu0 %v335
    %v3724 = vpop.f32.mrf.mxu0
    %v3725 = vadd.f32 %v3712, %v3724
    %v3726 = vpop.f32.mrf.mxu0
    %3727 = vdwg.mxu0
    %3728 = vmatpush.bf16.msra.mxu0 %v2961
    %3729 = vmatpush.bf16.msra.mxu0 %v2953
    %3730 = vmatpush.bf16.msra.mxu0 %v2945
    %3731 = vmatpush.bf16.msra.mxu0 %v2937
    %3732 = vmatpush.bf16.msra.mxu0 %v2929
    %3733 = vmatpush.bf16.msra.mxu0 %v2921
    %3734 = vmatpush.bf16.msra.mxu0 %v2913
    %3735 = vmatpush.bf16.msra.mxu0 %v2905
    %3736 = vmatmul.bf16.gmra.mxu0 %v336
    %v3737 = vpop.f32.mrf.mxu0
    %v3738 = vadd.f32 %v3725, %v3737
    %v3739 = vpop.f32.mrf.mxu0
    %3740 = vdwg.mxu0
    %3741 = vmatpush.bf16.msra.mxu0 %v3025
    %3742 = vmatpush.bf16.msra.mxu0 %v3017
    %3743 = vmatpush.bf16.msra.mxu0 %v3009
    %3744 = vmatpush.bf16.msra.mxu0 %v3001
    %3745 = vmatpush.bf16.msra.mxu0 %v2993
    %3746 = vmatpush.bf16.msra.mxu0 %v2985
    %3747 = vmatpush.bf16.msra.mxu0 %v2977
    %3748 = vmatpush.bf16.msra.mxu0 %v2969
    %3749 = vmatmul.bf16.gmra.mxu0 %v337
    %v3750 = vpop.f32.mrf.mxu0
    %v3751 = vadd.f32 %v3738, %v3750
    %v3752 = vpop.f32.mrf.mxu0
    %3753 = vdwg.mxu0
    %3754 = vmatpush.bf16.msra.mxu0 %v3089
    %3755 = vmatpush.bf16.msra.mxu0 %v3081
    %3756 = vmatpush.bf16.msra.mxu0 %v3073
    %3757 = vmatpush.bf16.msra.mxu0 %v3065
    %3758 = vmatpush.bf16.msra.mxu0 %v3057
    %3759 = vmatpush.bf16.msra.mxu0 %v3049
    %3760 = vmatpush.bf16.msra.mxu0 %v3041
    %3761 = vmatpush.bf16.msra.mxu0 %v3033
    %3762 = vmatmul.bf16.gmra.mxu0 %v338
    %v3763 = vpop.f32.mrf.mxu0
    %v3764 = vadd.f32 %v3751, %v3763
    %v3765 = vpop.f32.mrf.mxu0
    %3766 = vdwg.mxu0
    %3767 = vmatpush.bf16.msra.mxu0 %v3153
    %3768 = vmatpush.bf16.msra.mxu0 %v3145
    %3769 = vmatpush.bf16.msra.mxu0 %v3137
    %3770 = vmatpush.bf16.msra.mxu0 %v3129
    %3771 = vmatpush.bf16.msra.mxu0 %v3121
    %3772 = vmatpush.bf16.msra.mxu0 %v3113
    %3773 = vmatpush.bf16.msra.mxu0 %v3105
    %3774 = vmatpush.bf16.msra.mxu0 %v3097
    %3775 = vmatmul.bf16.gmra.mxu0 %v339
    %v3776 = vpop.f32.mrf.mxu0
    %v3777 = vadd.f32 %v3764, %v3776
    %v3778 = vpop.f32.mrf.mxu0
    %3779 = vdwg.mxu0
    %3780 = vmatpush.bf16.msra.mxu0 %v2706
    %3781 = vmatpush.bf16.msra.mxu0 %v2698
    %3782 = vmatpush.bf16.msra.mxu0 %v2690
    %3783 = vmatpush.bf16.msra.mxu0 %v2682
    %3784 = vmatpush.bf16.msra.mxu0 %v2674
    %3785 = vmatpush.bf16.msra.mxu0 %v2666
    %3786 = vmatpush.bf16.msra.mxu0 %v2658
    %3787 = vmatpush.bf16.msra.mxu0 %v2650
    %3788 = vmatmul.bf16.gmra.mxu0 %v332
    %v3789 = vpop.f32.mrf.mxu0
    %v3790 = vadd.f32 0.0, %v3789
    %v3791 = vpop.f32.mrf.mxu0
    %3792 = vdwg.mxu0
    %3793 = vmatpush.bf16.msra.mxu0 %v2770
    %3794 = vmatpush.bf16.msra.mxu0 %v2762
    %3795 = vmatpush.bf16.msra.mxu0 %v2754
    %3796 = vmatpush.bf16.msra.mxu0 %v2746
    %3797 = vmatpush.bf16.msra.mxu0 %v2738
    %3798 = vmatpush.bf16.msra.mxu0 %v2730
    %3799 = vmatpush.bf16.msra.mxu0 %v2722
    %3800 = vmatpush.bf16.msra.mxu0 %v2714
    %3801 = vmatmul.bf16.gmra.mxu0 %v333
    %v3802 = vpop.f32.mrf.mxu0
    %v3803 = vadd.f32 %v3790, %v3802
    %v3804 = vpop.f32.mrf.mxu0
    %3805 = vdwg.mxu0
    %3806 = vmatpush.bf16.msra.mxu0 %v2834
    %3807 = vmatpush.bf16.msra.mxu0 %v2826
    %3808 = vmatpush.bf16.msra.mxu0 %v2818
    %3809 = vmatpush.bf16.msra.mxu0 %v2810
    %3810 = vmatpush.bf16.msra.mxu0 %v2802
    %3811 = vmatpush.bf16.msra.mxu0 %v2794
    %3812 = vmatpush.bf16.msra.mxu0 %v2786
    %3813 = vmatpush.bf16.msra.mxu0 %v2778
    %3814 = vmatmul.bf16.gmra.mxu0 %v334
    %v3815 = vpop.f32.mrf.mxu0
    %v3816 = vadd.f32 %v3803, %v3815
    %v3817 = vpop.f32.mrf.mxu0
    %3818 = vdwg.mxu0
    %3819 = vmatpush.bf16.msra.mxu0 %v2898
    %3820 = vmatpush.bf16.msra.mxu0 %v2890
    %3821 = vmatpush.bf16.msra.mxu0 %v2882
    %3822 = vmatpush.bf16.msra.mxu0 %v2874
    %3823 = vmatpush.bf16.msra.mxu0 %v2866
    %3824 = vmatpush.bf16.msra.mxu0 %v2858
    %3825 = vmatpush.bf16.msra.mxu0 %v2850
    %3826 = vmatpush.bf16.msra.mxu0 %v2842
    %3827 = vmatmul.bf16.gmra.mxu0 %v335
    %v3828 = vpop.f32.mrf.mxu0
    %v3829 = vadd.f32 %v3816, %v3828
    %v3830 = vpop.f32.mrf.mxu0
    %3831 = vdwg.mxu0
    %3832 = vmatpush.bf16.msra.mxu0 %v2962
    %3833 = vmatpush.bf16.msra.mxu0 %v2954
    %3834 = vmatpush.bf16.msra.mxu0 %v2946
    %3835 = vmatpush.bf16.msra.mxu0 %v2938
    %3836 = vmatpush.bf16.msra.mxu0 %v2930
    %3837 = vmatpush.bf16.msra.mxu0 %v2922
    %3838 = vmatpush.bf16.msra.mxu0 %v2914
    %3839 = vmatpush.bf16.msra.mxu0 %v2906
    %3840 = vmatmul.bf16.gmra.mxu0 %v336
    %v3841 = vpop.f32.mrf.mxu0
    %v3842 = vadd.f32 %v3829, %v3841
    %v3843 = vpop.f32.mrf.mxu0
    %3844 = vdwg.mxu0
    %3845 = vmatpush.bf16.msra.mxu0 %v3026
    %3846 = vmatpush.bf16.msra.mxu0 %v3018
    %3847 = vmatpush.bf16.msra.mxu0 %v3010
    %3848 = vmatpush.bf16.msra.mxu0 %v3002
    %3849 = vmatpush.bf16.msra.mxu0 %v2994
    %3850 = vmatpush.bf16.msra.mxu0 %v2986
    %3851 = vmatpush.bf16.msra.mxu0 %v2978
    %3852 = vmatpush.bf16.msra.mxu0 %v2970
    %3853 = vmatmul.bf16.gmra.mxu0 %v337
    %v3854 = vpop.f32.mrf.mxu0
    %v3855 = vadd.f32 %v3842, %v3854
    %v3856 = vpop.f32.mrf.mxu0
    %3857 = vdwg.mxu0
    %3858 = vmatpush.bf16.msra.mxu0 %v3090
    %3859 = vmatpush.bf16.msra.mxu0 %v3082
    %3860 = vmatpush.bf16.msra.mxu0 %v3074
    %3861 = vmatpush.bf16.msra.mxu0 %v3066
    %3862 = vmatpush.bf16.msra.mxu0 %v3058
    %3863 = vmatpush.bf16.msra.mxu0 %v3050
    %3864 = vmatpush.bf16.msra.mxu0 %v3042
    %3865 = vmatpush.bf16.msra.mxu0 %v3034
    %3866 = vmatmul.bf16.gmra.mxu0 %v338
    %v3867 = vpop.f32.mrf.mxu0
    %v3868 = vadd.f32 %v3855, %v3867
    %v3869 = vpop.f32.mrf.mxu0
    %3870 = vdwg.mxu0
    %3871 = vmatpush.bf16.msra.mxu0 %v3154
    %3872 = vmatpush.bf16.msra.mxu0 %v3146
    %3873 = vmatpush.bf16.msra.mxu0 %v3138
    %3874 = vmatpush.bf16.msra.mxu0 %v3130
    %3875 = vmatpush.bf16.msra.mxu0 %v3122
    %3876 = vmatpush.bf16.msra.mxu0 %v3114
    %3877 = vmatpush.bf16.msra.mxu0 %v3106
    %3878 = vmatpush.bf16.msra.mxu0 %v3098
    %3879 = vmatmul.bf16.gmra.mxu0 %v339
    %v3880 = vpop.f32.mrf.mxu0
    %v3881 = vadd.f32 %v3868, %v3880
    %v3882 = vpop.f32.mrf.mxu0
    %3883 = vdwg.mxu0
    %3884 = vmatpush.bf16.msra.mxu0 %v2707
    %3885 = vmatpush.bf16.msra.mxu0 %v2699
    %3886 = vmatpush.bf16.msra.mxu0 %v2691
    %3887 = vmatpush.bf16.msra.mxu0 %v2683
    %3888 = vmatpush.bf16.msra.mxu0 %v2675
    %3889 = vmatpush.bf16.msra.mxu0 %v2667
    %3890 = vmatpush.bf16.msra.mxu0 %v2659
    %3891 = vmatpush.bf16.msra.mxu0 %v2651
    %3892 = vmatmul.bf16.gmra.mxu0 %v332
    %v3893 = vpop.f32.mrf.mxu0
    %v3894 = vadd.f32 0.0, %v3893
    %v3895 = vpop.f32.mrf.mxu0
    %3896 = vdwg.mxu0
    %3897 = vmatpush.bf16.msra.mxu0 %v2771
    %3898 = vmatpush.bf16.msra.mxu0 %v2763
    %3899 = vmatpush.bf16.msra.mxu0 %v2755
    %3900 = vmatpush.bf16.msra.mxu0 %v2747
    %3901 = vmatpush.bf16.msra.mxu0 %v2739
    %3902 = vmatpush.bf16.msra.mxu0 %v2731
    %3903 = vmatpush.bf16.msra.mxu0 %v2723
    %3904 = vmatpush.bf16.msra.mxu0 %v2715
    %3905 = vmatmul.bf16.gmra.mxu0 %v333
    %v3906 = vpop.f32.mrf.mxu0
    %v3907 = vadd.f32 %v3894, %v3906
    %v3908 = vpop.f32.mrf.mxu0
    %3909 = vdwg.mxu0
    %3910 = vmatpush.bf16.msra.mxu0 %v2835
    %3911 = vmatpush.bf16.msra.mxu0 %v2827
    %3912 = vmatpush.bf16.msra.mxu0 %v2819
    %3913 = vmatpush.bf16.msra.mxu0 %v2811
    %3914 = vmatpush.bf16.msra.mxu0 %v2803
    %3915 = vmatpush.bf16.msra.mxu0 %v2795
    %3916 = vmatpush.bf16.msra.mxu0 %v2787
    %3917 = vmatpush.bf16.msra.mxu0 %v2779
    %3918 = vmatmul.bf16.gmra.mxu0 %v334
    %v3919 = vpop.f32.mrf.mxu0
    %v3920 = vadd.f32 %v3907, %v3919
    %v3921 = vpop.f32.mrf.mxu0
    %3922 = vdwg.mxu0
    %3923 = vmatpush.bf16.msra.mxu0 %v2899
    %3924 = vmatpush.bf16.msra.mxu0 %v2891
    %3925 = vmatpush.bf16.msra.mxu0 %v2883
    %3926 = vmatpush.bf16.msra.mxu0 %v2875
    %3927 = vmatpush.bf16.msra.mxu0 %v2867
    %3928 = vmatpush.bf16.msra.mxu0 %v2859
    %3929 = vmatpush.bf16.msra.mxu0 %v2851
    %3930 = vmatpush.bf16.msra.mxu0 %v2843
    %3931 = vmatmul.bf16.gmra.mxu0 %v335
    %v3932 = vpop.f32.mrf.mxu0
    %v3933 = vadd.f32 %v3920, %v3932
    %v3934 = vpop.f32.mrf.mxu0
    %3935 = vdwg.mxu0
    %3936 = vmatpush.bf16.msra.mxu0 %v2963
    %3937 = vmatpush.bf16.msra.mxu0 %v2955
    %3938 = vmatpush.bf16.msra.mxu0 %v2947
    %3939 = vmatpush.bf16.msra.mxu0 %v2939
    %3940 = vmatpush.bf16.msra.mxu0 %v2931
    %3941 = vmatpush.bf16.msra.mxu0 %v2923
    %3942 = vmatpush.bf16.msra.mxu0 %v2915
    %3943 = vmatpush.bf16.msra.mxu0 %v2907
    %3944 = vmatmul.bf16.gmra.mxu0 %v336
    %v3945 = vpop.f32.mrf.mxu0
    %v3946 = vadd.f32 %v3933, %v3945
    %v3947 = vpop.f32.mrf.mxu0
    %3948 = vdwg.mxu0
    %3949 = vmatpush.bf16.msra.mxu0 %v3027
    %3950 = vmatpush.bf16.msra.mxu0 %v3019
    %3951 = vmatpush.bf16.msra.mxu0 %v3011
    %3952 = vmatpush.bf16.msra.mxu0 %v3003
    %3953 = vmatpush.bf16.msra.mxu0 %v2995
    %3954 = vmatpush.bf16.msra.mxu0 %v2987
    %3955 = vmatpush.bf16.msra.mxu0 %v2979
    %3956 = vmatpush.bf16.msra.mxu0 %v2971
    %3957 = vmatmul.bf16.gmra.mxu0 %v337
    %v3958 = vpop.f32.mrf.mxu0
    %v3959 = vadd.f32 %v3946, %v3958
    %v3960 = vpop.f32.mrf.mxu0
    %3961 = vdwg.mxu0
    %3962 = vmatpush.bf16.msra.mxu0 %v3091
    %3963 = vmatpush.bf16.msra.mxu0 %v3083
    %3964 = vmatpush.bf16.msra.mxu0 %v3075
    %3965 = vmatpush.bf16.msra.mxu0 %v3067
    %3966 = vmatpush.bf16.msra.mxu0 %v3059
    %3967 = vmatpush.bf16.msra.mxu0 %v3051
    %3968 = vmatpush.bf16.msra.mxu0 %v3043
    %3969 = vmatpush.bf16.msra.mxu0 %v3035
    %3970 = vmatmul.bf16.gmra.mxu0 %v338
    %v3971 = vpop.f32.mrf.mxu0
    %v3972 = vadd.f32 %v3959, %v3971
    %v3973 = vpop.f32.mrf.mxu0
    %3974 = vdwg.mxu0
    %3975 = vmatpush.bf16.msra.mxu0 %v3155
    %3976 = vmatpush.bf16.msra.mxu0 %v3147
    %3977 = vmatpush.bf16.msra.mxu0 %v3139
    %3978 = vmatpush.bf16.msra.mxu0 %v3131
    %3979 = vmatpush.bf16.msra.mxu0 %v3123
    %3980 = vmatpush.bf16.msra.mxu0 %v3115
    %3981 = vmatpush.bf16.msra.mxu0 %v3107
    %3982 = vmatpush.bf16.msra.mxu0 %v3099
    %3983 = vmatmul.bf16.gmra.mxu0 %v339
    %v3984 = vpop.f32.mrf.mxu0
    %v3985 = vadd.f32 %v3972, %v3984
    %v3986 = vpop.f32.mrf.mxu0
    %3987 = vdwg.mxu0
    %v3988 = vld [vmem:[#allocation10] sm:$0xff]
    %v3990 = vperm.slane %v3988, 0
    %v3991 = vperm.slane %v3988, 1
    %v3992 = vperm.slane %v3988, 2
    %v3993 = vperm.slane %v3988, 3
    %v3994 = vperm.slane %v3988, 4
    %v3995 = vperm.slane %v3988, 5
    %v3996 = vperm.slane %v3988, 6
    %v3997 = vperm.slane %v3988, 7
    %v4006 = vmul.f32 %v3257, %v3990
    %v4007 = vmul.f32 %v3361, %v3991
    %v4008 = vmul.f32 %v3465, %v3992
    %v4009 = vmul.f32 %v3569, %v3993
    %v4010 = vmul.f32 %v3673, %v3994
    %v4011 = vmul.f32 %v3777, %v3995
    %v4012 = vmul.f32 %v3881, %v3996
    %v4013 = vmul.f32 %v3985, %v3997
    %v4014 = vld [vmem:[#allocation11] sm:$0xff]
    %v4016 = vperm.slane %v4014, 0
    %v4017 = vperm.slane %v4014, 1
    %v4018 = vperm.slane %v4014, 2
    %v4019 = vperm.slane %v4014, 3
    %v4020 = vperm.slane %v4014, 4
    %v4021 = vperm.slane %v4014, 5
    %v4022 = vperm.slane %v4014, 6
    %v4023 = vperm.slane %v4014, 7
    %v4032 = vadd.f32 %v4006, %v4016
    %v4033 = vadd.f32 %v4007, %v4017
    %v4034 = vadd.f32 %v4008, %v4018
    %v4035 = vadd.f32 %v4009, %v4019
    %v4036 = vadd.f32 %v4010, %v4020
    %v4037 = vadd.f32 %v4011, %v4021
    %v4038 = vadd.f32 %v4012, %v4022
    %v4039 = vadd.f32 %v4013, %v4023
    %v4040 = vpack.c.bf16 %v4032, %v4032
    %v4041 = vpack.c.bf16 %v4033, %v4033
    %v4042 = vpack.c.bf16 %v4034, %v4034
    %v4043 = vpack.c.bf16 %v4035, %v4035
    %v4044 = vpack.c.bf16 %v4036, %v4036
    %v4045 = vpack.c.bf16 %v4037, %v4037
    %v4046 = vpack.c.bf16 %v4038, %v4038
    %v4047 = vpack.c.bf16 %v4039, %v4039
    %v4048 = vld [vmem:[#allocation13] sm:$0xff]
    %v4049 = vld [vmem:[#allocation13 + $0x8] sm:$0xff]
    %v4050 = vld [vmem:[#allocation13 + $0x10] sm:$0xff]
    %v4051 = vld [vmem:[#allocation13 + $0x18] sm:$0xff]
    %v4052 = vld [vmem:[#allocation13 + $0x20] sm:$0xff]
    %v4053 = vld [vmem:[#allocation13 + $0x28] sm:$0xff]
    %v4054 = vld [vmem:[#allocation13 + $0x30] sm:$0xff]
    %v4055 = vld [vmem:[#allocation13 + $0x38] sm:$0xff]
    %v4056 = vld [vmem:[#allocation13 + $0x40] sm:$0xff]
    %v4057 = vld [vmem:[#allocation13 + $0x48] sm:$0xff]
    %v4058 = vld [vmem:[#allocation13 + $0x50] sm:$0xff]
    %v4059 = vld [vmem:[#allocation13 + $0x58] sm:$0xff]
    %v4060 = vld [vmem:[#allocation13 + $0x60] sm:$0xff]
    %v4061 = vld [vmem:[#allocation13 + $0x68] sm:$0xff]
    %v4062 = vld [vmem:[#allocation13 + $0x70] sm:$0xff]
    %v4063 = vld [vmem:[#allocation13 + $0x78] sm:$0xff]
    %v4064 = vld [vmem:[#allocation13 + $0x80] sm:$0xff]
    %v4065 = vld [vmem:[#allocation13 + $0x88] sm:$0xff]
    %v4066 = vld [vmem:[#allocation13 + $0x90] sm:$0xff]
    %v4067 = vld [vmem:[#allocation13 + $0x98] sm:$0xff]
    %v4068 = vld [vmem:[#allocation13 + $0xa0] sm:$0xff]
    %v4069 = vld [vmem:[#allocation13 + $0xa8] sm:$0xff]
    %v4070 = vld [vmem:[#allocation13 + $0xb0] sm:$0xff]
    %v4071 = vld [vmem:[#allocation13 + $0xb8] sm:$0xff]
    %v4072 = vld [vmem:[#allocation13 + $0xc0] sm:$0xff]
    %v4073 = vld [vmem:[#allocation13 + $0xc8] sm:$0xff]
    %v4074 = vld [vmem:[#allocation13 + $0xd0] sm:$0xff]
    %v4075 = vld [vmem:[#allocation13 + $0xd8] sm:$0xff]
    %v4076 = vld [vmem:[#allocation13 + $0xe0] sm:$0xff]
    %v4077 = vld [vmem:[#allocation13 + $0xe8] sm:$0xff]
    %v4078 = vld [vmem:[#allocation13 + $0xf0] sm:$0xff]
    %v4079 = vld [vmem:[#allocation13 + $0xf8] sm:$0xff]
    %v4080 = vld [vmem:[#allocation13 + $0x100] sm:$0xff]
    %v4081 = vld [vmem:[#allocation13 + $0x108] sm:$0xff]
    %v4082 = vld [vmem:[#allocation13 + $0x110] sm:$0xff]
    %v4083 = vld [vmem:[#allocation13 + $0x118] sm:$0xff]
    %v4084 = vld [vmem:[#allocation13 + $0x120] sm:$0xff]
    %v4085 = vld [vmem:[#allocation13 + $0x128] sm:$0xff]
    %v4086 = vld [vmem:[#allocation13 + $0x130] sm:$0xff]
    %v4087 = vld [vmem:[#allocation13 + $0x138] sm:$0xff]
    %v4088 = vld [vmem:[#allocation13 + $0x140] sm:$0xff]
    %v4089 = vld [vmem:[#allocation13 + $0x148] sm:$0xff]
    %v4090 = vld [vmem:[#allocation13 + $0x150] sm:$0xff]
    %v4091 = vld [vmem:[#allocation13 + $0x158] sm:$0xff]
    %v4092 = vld [vmem:[#allocation13 + $0x160] sm:$0xff]
    %v4093 = vld [vmem:[#allocation13 + $0x168] sm:$0xff]
    %v4094 = vld [vmem:[#allocation13 + $0x170] sm:$0xff]
    %v4095 = vld [vmem:[#allocation13 + $0x178] sm:$0xff]
    %v4096 = vld [vmem:[#allocation13 + $0x180] sm:$0xff]
    %v4097 = vld [vmem:[#allocation13 + $0x188] sm:$0xff]
    %v4098 = vld [vmem:[#allocation13 + $0x190] sm:$0xff]
    %v4099 = vld [vmem:[#allocation13 + $0x198] sm:$0xff]
    %v4100 = vld [vmem:[#allocation13 + $0x1a0] sm:$0xff]
    %v4101 = vld [vmem:[#allocation13 + $0x1a8] sm:$0xff]
    %v4102 = vld [vmem:[#allocation13 + $0x1b0] sm:$0xff]
    %v4103 = vld [vmem:[#allocation13 + $0x1b8] sm:$0xff]
    %v4104 = vld [vmem:[#allocation13 + $0x1c0] sm:$0xff]
    %v4105 = vld [vmem:[#allocation13 + $0x1c8] sm:$0xff]
    %v4106 = vld [vmem:[#allocation13 + $0x1d0] sm:$0xff]
    %v4107 = vld [vmem:[#allocation13 + $0x1d8] sm:$0xff]
    %v4108 = vld [vmem:[#allocation13 + $0x1e0] sm:$0xff]
    %v4109 = vld [vmem:[#allocation13 + $0x1e8] sm:$0xff]
    %v4110 = vld [vmem:[#allocation13 + $0x1f0] sm:$0xff]
    %v4111 = vld [vmem:[#allocation13 + $0x1f8] sm:$0xff]
    %v4112 = vld [vmem:[#allocation13 + $0x200] sm:$0xff]
    %v4113 = vld [vmem:[#allocation13 + $0x208] sm:$0xff]
    %v4114 = vld [vmem:[#allocation13 + $0x210] sm:$0xff]
    %v4115 = vld [vmem:[#allocation13 + $0x218] sm:$0xff]
    %v4116 = vld [vmem:[#allocation13 + $0x220] sm:$0xff]
    %v4117 = vld [vmem:[#allocation13 + $0x228] sm:$0xff]
    %v4118 = vld [vmem:[#allocation13 + $0x230] sm:$0xff]
    %v4119 = vld [vmem:[#allocation13 + $0x238] sm:$0xff]
    %v4120 = vld [vmem:[#allocation13 + $0x240] sm:$0xff]
    %v4121 = vld [vmem:[#allocation13 + $0x248] sm:$0xff]
    %v4122 = vld [vmem:[#allocation13 + $0x250] sm:$0xff]
    %v4123 = vld [vmem:[#allocation13 + $0x258] sm:$0xff]
    %v4124 = vld [vmem:[#allocation13 + $0x260] sm:$0xff]
    %v4125 = vld [vmem:[#allocation13 + $0x268] sm:$0xff]
    %v4126 = vld [vmem:[#allocation13 + $0x270] sm:$0xff]
    %v4127 = vld [vmem:[#allocation13 + $0x278] sm:$0xff]
    %v4128 = vld [vmem:[#allocation13 + $0x280] sm:$0xff]
    %v4129 = vld [vmem:[#allocation13 + $0x288] sm:$0xff]
    %v4130 = vld [vmem:[#allocation13 + $0x290] sm:$0xff]
    %v4131 = vld [vmem:[#allocation13 + $0x298] sm:$0xff]
    %v4132 = vld [vmem:[#allocation13 + $0x2a0] sm:$0xff]
    %v4133 = vld [vmem:[#allocation13 + $0x2a8] sm:$0xff]
    %v4134 = vld [vmem:[#allocation13 + $0x2b0] sm:$0xff]
    %v4135 = vld [vmem:[#allocation13 + $0x2b8] sm:$0xff]
    %v4136 = vld [vmem:[#allocation13 + $0x2c0] sm:$0xff]
    %v4137 = vld [vmem:[#allocation13 + $0x2c8] sm:$0xff]
    %v4138 = vld [vmem:[#allocation13 + $0x2d0] sm:$0xff]
    %v4139 = vld [vmem:[#allocation13 + $0x2d8] sm:$0xff]
    %v4140 = vld [vmem:[#allocation13 + $0x2e0] sm:$0xff]
    %v4141 = vld [vmem:[#allocation13 + $0x2e8] sm:$0xff]
    %v4142 = vld [vmem:[#allocation13 + $0x2f0] sm:$0xff]
    %v4143 = vld [vmem:[#allocation13 + $0x2f8] sm:$0xff]
    %v4144 = vld [vmem:[#allocation13 + $0x300] sm:$0xff]
    %v4145 = vld [vmem:[#allocation13 + $0x308] sm:$0xff]
    %v4146 = vld [vmem:[#allocation13 + $0x310] sm:$0xff]
    %v4147 = vld [vmem:[#allocation13 + $0x318] sm:$0xff]
    %v4148 = vld [vmem:[#allocation13 + $0x320] sm:$0xff]
    %v4149 = vld [vmem:[#allocation13 + $0x328] sm:$0xff]
    %v4150 = vld [vmem:[#allocation13 + $0x330] sm:$0xff]
    %v4151 = vld [vmem:[#allocation13 + $0x338] sm:$0xff]
    %v4152 = vld [vmem:[#allocation13 + $0x340] sm:$0xff]
    %v4153 = vld [vmem:[#allocation13 + $0x348] sm:$0xff]
    %v4154 = vld [vmem:[#allocation13 + $0x350] sm:$0xff]
    %v4155 = vld [vmem:[#allocation13 + $0x358] sm:$0xff]
    %v4156 = vld [vmem:[#allocation13 + $0x360] sm:$0xff]
    %v4157 = vld [vmem:[#allocation13 + $0x368] sm:$0xff]
    %v4158 = vld [vmem:[#allocation13 + $0x370] sm:$0xff]
    %v4159 = vld [vmem:[#allocation13 + $0x378] sm:$0xff]
    %v4160 = vld [vmem:[#allocation13 + $0x380] sm:$0xff]
    %v4161 = vld [vmem:[#allocation13 + $0x388] sm:$0xff]
    %v4162 = vld [vmem:[#allocation13 + $0x390] sm:$0xff]
    %v4163 = vld [vmem:[#allocation13 + $0x398] sm:$0xff]
    %v4164 = vld [vmem:[#allocation13 + $0x3a0] sm:$0xff]
    %v4165 = vld [vmem:[#allocation13 + $0x3a8] sm:$0xff]
    %v4166 = vld [vmem:[#allocation13 + $0x3b0] sm:$0xff]
    %v4167 = vld [vmem:[#allocation13 + $0x3b8] sm:$0xff]
    %v4168 = vld [vmem:[#allocation13 + $0x3c0] sm:$0xff]
    %v4169 = vld [vmem:[#allocation13 + $0x3c8] sm:$0xff]
    %v4170 = vld [vmem:[#allocation13 + $0x3d0] sm:$0xff]
    %v4171 = vld [vmem:[#allocation13 + $0x3d8] sm:$0xff]
    %v4172 = vld [vmem:[#allocation13 + $0x3e0] sm:$0xff]
    %v4173 = vld [vmem:[#allocation13 + $0x3e8] sm:$0xff]
    %v4174 = vld [vmem:[#allocation13 + $0x3f0] sm:$0xff]
    %v4175 = vld [vmem:[#allocation13 + $0x3f8] sm:$0xff]
    %v4176 = vld [vmem:[#allocation13 + $0x400] sm:$0xff]
    %v4177 = vld [vmem:[#allocation13 + $0x408] sm:$0xff]
    %v4178 = vld [vmem:[#allocation13 + $0x410] sm:$0xff]
    %v4179 = vld [vmem:[#allocation13 + $0x418] sm:$0xff]
    %v4180 = vld [vmem:[#allocation13 + $0x420] sm:$0xff]
    %v4181 = vld [vmem:[#allocation13 + $0x428] sm:$0xff]
    %v4182 = vld [vmem:[#allocation13 + $0x430] sm:$0xff]
    %v4183 = vld [vmem:[#allocation13 + $0x438] sm:$0xff]
    %v4184 = vld [vmem:[#allocation13 + $0x440] sm:$0xff]
    %v4185 = vld [vmem:[#allocation13 + $0x448] sm:$0xff]
    %v4186 = vld [vmem:[#allocation13 + $0x450] sm:$0xff]
    %v4187 = vld [vmem:[#allocation13 + $0x458] sm:$0xff]
    %v4188 = vld [vmem:[#allocation13 + $0x460] sm:$0xff]
    %v4189 = vld [vmem:[#allocation13 + $0x468] sm:$0xff]
    %v4190 = vld [vmem:[#allocation13 + $0x470] sm:$0xff]
    %v4191 = vld [vmem:[#allocation13 + $0x478] sm:$0xff]
    %v4192 = vld [vmem:[#allocation13 + $0x480] sm:$0xff]
    %v4193 = vld [vmem:[#allocation13 + $0x488] sm:$0xff]
    %v4194 = vld [vmem:[#allocation13 + $0x490] sm:$0xff]
    %v4195 = vld [vmem:[#allocation13 + $0x498] sm:$0xff]
    %v4196 = vld [vmem:[#allocation13 + $0x4a0] sm:$0xff]
    %v4197 = vld [vmem:[#allocation13 + $0x4a8] sm:$0xff]
    %v4198 = vld [vmem:[#allocation13 + $0x4b0] sm:$0xff]
    %v4199 = vld [vmem:[#allocation13 + $0x4b8] sm:$0xff]
    %v4200 = vld [vmem:[#allocation13 + $0x4c0] sm:$0xff]
    %v4201 = vld [vmem:[#allocation13 + $0x4c8] sm:$0xff]
    %v4202 = vld [vmem:[#allocation13 + $0x4d0] sm:$0xff]
    %v4203 = vld [vmem:[#allocation13 + $0x4d8] sm:$0xff]
    %v4204 = vld [vmem:[#allocation13 + $0x4e0] sm:$0xff]
    %v4205 = vld [vmem:[#allocation13 + $0x4e8] sm:$0xff]
    %v4206 = vld [vmem:[#allocation13 + $0x4f0] sm:$0xff]
    %v4207 = vld [vmem:[#allocation13 + $0x4f8] sm:$0xff]
    %v4208 = vld [vmem:[#allocation13 + $0x500] sm:$0xff]
    %v4209 = vld [vmem:[#allocation13 + $0x508] sm:$0xff]
    %v4210 = vld [vmem:[#allocation13 + $0x510] sm:$0xff]
    %v4211 = vld [vmem:[#allocation13 + $0x518] sm:$0xff]
    %v4212 = vld [vmem:[#allocation13 + $0x520] sm:$0xff]
    %v4213 = vld [vmem:[#allocation13 + $0x528] sm:$0xff]
    %v4214 = vld [vmem:[#allocation13 + $0x530] sm:$0xff]
    %v4215 = vld [vmem:[#allocation13 + $0x538] sm:$0xff]
    %v4216 = vld [vmem:[#allocation13 + $0x540] sm:$0xff]
    %v4217 = vld [vmem:[#allocation13 + $0x548] sm:$0xff]
    %v4218 = vld [vmem:[#allocation13 + $0x550] sm:$0xff]
    %v4219 = vld [vmem:[#allocation13 + $0x558] sm:$0xff]
    %v4220 = vld [vmem:[#allocation13 + $0x560] sm:$0xff]
    %v4221 = vld [vmem:[#allocation13 + $0x568] sm:$0xff]
    %v4222 = vld [vmem:[#allocation13 + $0x570] sm:$0xff]
    %v4223 = vld [vmem:[#allocation13 + $0x578] sm:$0xff]
    %v4224 = vld [vmem:[#allocation13 + $0x580] sm:$0xff]
    %v4225 = vld [vmem:[#allocation13 + $0x588] sm:$0xff]
    %v4226 = vld [vmem:[#allocation13 + $0x590] sm:$0xff]
    %v4227 = vld [vmem:[#allocation13 + $0x598] sm:$0xff]
    %v4228 = vld [vmem:[#allocation13 + $0x5a0] sm:$0xff]
    %v4229 = vld [vmem:[#allocation13 + $0x5a8] sm:$0xff]
    %v4230 = vld [vmem:[#allocation13 + $0x5b0] sm:$0xff]
    %v4231 = vld [vmem:[#allocation13 + $0x5b8] sm:$0xff]
    %v4232 = vld [vmem:[#allocation13 + $0x5c0] sm:$0xff]
    %v4233 = vld [vmem:[#allocation13 + $0x5c8] sm:$0xff]
    %v4234 = vld [vmem:[#allocation13 + $0x5d0] sm:$0xff]
    %v4235 = vld [vmem:[#allocation13 + $0x5d8] sm:$0xff]
    %v4236 = vld [vmem:[#allocation13 + $0x5e0] sm:$0xff]
    %v4237 = vld [vmem:[#allocation13 + $0x5e8] sm:$0xff]
    %v4238 = vld [vmem:[#allocation13 + $0x5f0] sm:$0xff]
    %v4239 = vld [vmem:[#allocation13 + $0x5f8] sm:$0xff]
    %v4240 = vld [vmem:[#allocation13 + $0x600] sm:$0xff]
    %v4241 = vld [vmem:[#allocation13 + $0x608] sm:$0xff]
    %v4242 = vld [vmem:[#allocation13 + $0x610] sm:$0xff]
    %v4243 = vld [vmem:[#allocation13 + $0x618] sm:$0xff]
    %v4244 = vld [vmem:[#allocation13 + $0x620] sm:$0xff]
    %v4245 = vld [vmem:[#allocation13 + $0x628] sm:$0xff]
    %v4246 = vld [vmem:[#allocation13 + $0x630] sm:$0xff]
    %v4247 = vld [vmem:[#allocation13 + $0x638] sm:$0xff]
    %v4248 = vld [vmem:[#allocation13 + $0x640] sm:$0xff]
    %v4249 = vld [vmem:[#allocation13 + $0x648] sm:$0xff]
    %v4250 = vld [vmem:[#allocation13 + $0x650] sm:$0xff]
    %v4251 = vld [vmem:[#allocation13 + $0x658] sm:$0xff]
    %v4252 = vld [vmem:[#allocation13 + $0x660] sm:$0xff]
    %v4253 = vld [vmem:[#allocation13 + $0x668] sm:$0xff]
    %v4254 = vld [vmem:[#allocation13 + $0x670] sm:$0xff]
    %v4255 = vld [vmem:[#allocation13 + $0x678] sm:$0xff]
    %v4256 = vld [vmem:[#allocation13 + $0x680] sm:$0xff]
    %v4257 = vld [vmem:[#allocation13 + $0x688] sm:$0xff]
    %v4258 = vld [vmem:[#allocation13 + $0x690] sm:$0xff]
    %v4259 = vld [vmem:[#allocation13 + $0x698] sm:$0xff]
    %v4260 = vld [vmem:[#allocation13 + $0x6a0] sm:$0xff]
    %v4261 = vld [vmem:[#allocation13 + $0x6a8] sm:$0xff]
    %v4262 = vld [vmem:[#allocation13 + $0x6b0] sm:$0xff]
    %v4263 = vld [vmem:[#allocation13 + $0x6b8] sm:$0xff]
    %v4264 = vld [vmem:[#allocation13 + $0x6c0] sm:$0xff]
    %v4265 = vld [vmem:[#allocation13 + $0x6c8] sm:$0xff]
    %v4266 = vld [vmem:[#allocation13 + $0x6d0] sm:$0xff]
    %v4267 = vld [vmem:[#allocation13 + $0x6d8] sm:$0xff]
    %v4268 = vld [vmem:[#allocation13 + $0x6e0] sm:$0xff]
    %v4269 = vld [vmem:[#allocation13 + $0x6e8] sm:$0xff]
    %v4270 = vld [vmem:[#allocation13 + $0x6f0] sm:$0xff]
    %v4271 = vld [vmem:[#allocation13 + $0x6f8] sm:$0xff]
    %v4272 = vunpack.c.0.s8 %v4048
    %v4273 = vunpack.c.0.s8 %v4049
    %v4274 = vunpack.c.0.s8 %v4050
    %v4275 = vunpack.c.0.s8 %v4051
    %v4276 = vunpack.c.0.s8 %v4052
    %v4277 = vunpack.c.0.s8 %v4053
    %v4278 = vunpack.c.0.s8 %v4054
    %v4279 = vunpack.c.1.s8 %v4048
    %v4280 = vunpack.c.1.s8 %v4049
    %v4281 = vunpack.c.1.s8 %v4050
    %v4282 = vunpack.c.1.s8 %v4051
    %v4283 = vunpack.c.1.s8 %v4052
    %v4284 = vunpack.c.1.s8 %v4053
    %v4285 = vunpack.c.1.s8 %v4054
    %v4286 = vunpack.c.2.s8 %v4048
    %v4287 = vunpack.c.2.s8 %v4049
    %v4288 = vunpack.c.2.s8 %v4050
    %v4289 = vunpack.c.2.s8 %v4051
    %v4290 = vunpack.c.2.s8 %v4052
    %v4291 = vunpack.c.2.s8 %v4053
    %v4292 = vunpack.c.2.s8 %v4054
    %v4293 = vunpack.c.3.s8 %v4048
    %v4294 = vunpack.c.3.s8 %v4049
    %v4295 = vunpack.c.3.s8 %v4050
    %v4296 = vunpack.c.3.s8 %v4051
    %v4297 = vunpack.c.3.s8 %v4052
    %v4298 = vunpack.c.3.s8 %v4053
    %v4299 = vunpack.c.3.s8 %v4054
    %v4300 = vunpack.c.0.s8 %v4055
    %v4301 = vunpack.c.0.s8 %v4056
    %v4302 = vunpack.c.0.s8 %v4057
    %v4303 = vunpack.c.0.s8 %v4058
    %v4304 = vunpack.c.0.s8 %v4059
    %v4305 = vunpack.c.0.s8 %v4060
    %v4306 = vunpack.c.0.s8 %v4061
    %v4307 = vunpack.c.1.s8 %v4055
    %v4308 = vunpack.c.1.s8 %v4056
    %v4309 = vunpack.c.1.s8 %v4057
    %v4310 = vunpack.c.1.s8 %v4058
    %v4311 = vunpack.c.1.s8 %v4059
    %v4312 = vunpack.c.1.s8 %v4060
    %v4313 = vunpack.c.1.s8 %v4061
    %v4314 = vunpack.c.2.s8 %v4055
    %v4315 = vunpack.c.2.s8 %v4056
    %v4316 = vunpack.c.2.s8 %v4057
    %v4317 = vunpack.c.2.s8 %v4058
    %v4318 = vunpack.c.2.s8 %v4059
    %v4319 = vunpack.c.2.s8 %v4060
    %v4320 = vunpack.c.2.s8 %v4061
    %v4321 = vunpack.c.3.s8 %v4055
    %v4322 = vunpack.c.3.s8 %v4056
    %v4323 = vunpack.c.3.s8 %v4057
    %v4324 = vunpack.c.3.s8 %v4058
    %v4325 = vunpack.c.3.s8 %v4059
    %v4326 = vunpack.c.3.s8 %v4060
    %v4327 = vunpack.c.3.s8 %v4061
    %v4328 = vunpack.c.0.s8 %v4062
    %v4329 = vunpack.c.0.s8 %v4063
    %v4330 = vunpack.c.0.s8 %v4064
    %v4331 = vunpack.c.0.s8 %v4065
    %v4332 = vunpack.c.0.s8 %v4066
    %v4333 = vunpack.c.0.s8 %v4067
    %v4334 = vunpack.c.0.s8 %v4068
    %v4335 = vunpack.c.1.s8 %v4062
    %v4336 = vunpack.c.1.s8 %v4063
    %v4337 = vunpack.c.1.s8 %v4064
    %v4338 = vunpack.c.1.s8 %v4065
    %v4339 = vunpack.c.1.s8 %v4066
    %v4340 = vunpack.c.1.s8 %v4067
    %v4341 = vunpack.c.1.s8 %v4068
    %v4342 = vunpack.c.2.s8 %v4062
    %v4343 = vunpack.c.2.s8 %v4063
    %v4344 = vunpack.c.2.s8 %v4064
    %v4345 = vunpack.c.2.s8 %v4065
    %v4346 = vunpack.c.2.s8 %v4066
    %v4347 = vunpack.c.2.s8 %v4067
    %v4348 = vunpack.c.2.s8 %v4068
    %v4349 = vunpack.c.3.s8 %v4062
    %v4350 = vunpack.c.3.s8 %v4063
    %v4351 = vunpack.c.3.s8 %v4064
    %v4352 = vunpack.c.3.s8 %v4065
    %v4353 = vunpack.c.3.s8 %v4066
    %v4354 = vunpack.c.3.s8 %v4067
    %v4355 = vunpack.c.3.s8 %v4068
    %v4356 = vunpack.c.0.s8 %v4069
    %v4357 = vunpack.c.0.s8 %v4070
    %v4358 = vunpack.c.0.s8 %v4071
    %v4359 = vunpack.c.0.s8 %v4072
    %v4360 = vunpack.c.0.s8 %v4073
    %v4361 = vunpack.c.0.s8 %v4074
    %v4362 = vunpack.c.0.s8 %v4075
    %v4363 = vunpack.c.1.s8 %v4069
    %v4364 = vunpack.c.1.s8 %v4070
    %v4365 = vunpack.c.1.s8 %v4071
    %v4366 = vunpack.c.1.s8 %v4072
    %v4367 = vunpack.c.1.s8 %v4073
    %v4368 = vunpack.c.1.s8 %v4074
    %v4369 = vunpack.c.1.s8 %v4075
    %v4370 = vunpack.c.2.s8 %v4069
    %v4371 = vunpack.c.2.s8 %v4070
    %v4372 = vunpack.c.2.s8 %v4071
    %v4373 = vunpack.c.2.s8 %v4072
    %v4374 = vunpack.c.2.s8 %v4073
    %v4375 = vunpack.c.2.s8 %v4074
    %v4376 = vunpack.c.2.s8 %v4075
    %v4377 = vunpack.c.3.s8 %v4069
    %v4378 = vunpack.c.3.s8 %v4070
    %v4379 = vunpack.c.3.s8 %v4071
    %v4380 = vunpack.c.3.s8 %v4072
    %v4381 = vunpack.c.3.s8 %v4073
    %v4382 = vunpack.c.3.s8 %v4074
    %v4383 = vunpack.c.3.s8 %v4075
    %v4384 = vunpack.c.0.s8 %v4076
    %v4385 = vunpack.c.0.s8 %v4077
    %v4386 = vunpack.c.0.s8 %v4078
    %v4387 = vunpack.c.0.s8 %v4079
    %v4388 = vunpack.c.0.s8 %v4080
    %v4389 = vunpack.c.0.s8 %v4081
    %v4390 = vunpack.c.0.s8 %v4082
    %v4391 = vunpack.c.1.s8 %v4076
    %v4392 = vunpack.c.1.s8 %v4077
    %v4393 = vunpack.c.1.s8 %v4078
    %v4394 = vunpack.c.1.s8 %v4079
    %v4395 = vunpack.c.1.s8 %v4080
    %v4396 = vunpack.c.1.s8 %v4081
    %v4397 = vunpack.c.1.s8 %v4082
    %v4398 = vunpack.c.2.s8 %v4076
    %v4399 = vunpack.c.2.s8 %v4077
    %v4400 = vunpack.c.2.s8 %v4078
    %v4401 = vunpack.c.2.s8 %v4079
    %v4402 = vunpack.c.2.s8 %v4080
    %v4403 = vunpack.c.2.s8 %v4081
    %v4404 = vunpack.c.2.s8 %v4082
    %v4405 = vunpack.c.3.s8 %v4076
    %v4406 = vunpack.c.3.s8 %v4077
    %v4407 = vunpack.c.3.s8 %v4078
    %v4408 = vunpack.c.3.s8 %v4079
    %v4409 = vunpack.c.3.s8 %v4080
    %v4410 = vunpack.c.3.s8 %v4081
    %v4411 = vunpack.c.3.s8 %v4082
    %v4412 = vunpack.c.0.s8 %v4083
    %v4413 = vunpack.c.0.s8 %v4084
    %v4414 = vunpack.c.0.s8 %v4085
    %v4415 = vunpack.c.0.s8 %v4086
    %v4416 = vunpack.c.0.s8 %v4087
    %v4417 = vunpack.c.0.s8 %v4088
    %v4418 = vunpack.c.0.s8 %v4089
    %v4419 = vunpack.c.1.s8 %v4083
    %v4420 = vunpack.c.1.s8 %v4084
    %v4421 = vunpack.c.1.s8 %v4085
    %v4422 = vunpack.c.1.s8 %v4086
    %v4423 = vunpack.c.1.s8 %v4087
    %v4424 = vunpack.c.1.s8 %v4088
    %v4425 = vunpack.c.1.s8 %v4089
    %v4426 = vunpack.c.2.s8 %v4083
    %v4427 = vunpack.c.2.s8 %v4084
    %v4428 = vunpack.c.2.s8 %v4085
    %v4429 = vunpack.c.2.s8 %v4086
    %v4430 = vunpack.c.2.s8 %v4087
    %v4431 = vunpack.c.2.s8 %v4088
    %v4432 = vunpack.c.2.s8 %v4089
    %v4433 = vunpack.c.3.s8 %v4083
    %v4434 = vunpack.c.3.s8 %v4084
    %v4435 = vunpack.c.3.s8 %v4085
    %v4436 = vunpack.c.3.s8 %v4086
    %v4437 = vunpack.c.3.s8 %v4087
    %v4438 = vunpack.c.3.s8 %v4088
    %v4439 = vunpack.c.3.s8 %v4089
    %v4440 = vunpack.c.0.s8 %v4090
    %v4441 = vunpack.c.0.s8 %v4091
    %v4442 = vunpack.c.0.s8 %v4092
    %v4443 = vunpack.c.0.s8 %v4093
    %v4444 = vunpack.c.0.s8 %v4094
    %v4445 = vunpack.c.0.s8 %v4095
    %v4446 = vunpack.c.0.s8 %v4096
    %v4447 = vunpack.c.1.s8 %v4090
    %v4448 = vunpack.c.1.s8 %v4091
    %v4449 = vunpack.c.1.s8 %v4092
    %v4450 = vunpack.c.1.s8 %v4093
    %v4451 = vunpack.c.1.s8 %v4094
    %v4452 = vunpack.c.1.s8 %v4095
    %v4453 = vunpack.c.1.s8 %v4096
    %v4454 = vunpack.c.2.s8 %v4090
    %v4455 = vunpack.c.2.s8 %v4091
    %v4456 = vunpack.c.2.s8 %v4092
    %v4457 = vunpack.c.2.s8 %v4093
    %v4458 = vunpack.c.2.s8 %v4094
    %v4459 = vunpack.c.2.s8 %v4095
    %v4460 = vunpack.c.2.s8 %v4096
    %v4461 = vunpack.c.3.s8 %v4090
    %v4462 = vunpack.c.3.s8 %v4091
    %v4463 = vunpack.c.3.s8 %v4092
    %v4464 = vunpack.c.3.s8 %v4093
    %v4465 = vunpack.c.3.s8 %v4094
    %v4466 = vunpack.c.3.s8 %v4095
    %v4467 = vunpack.c.3.s8 %v4096
    %v4468 = vunpack.c.0.s8 %v4097
    %v4469 = vunpack.c.0.s8 %v4098
    %v4470 = vunpack.c.0.s8 %v4099
    %v4471 = vunpack.c.0.s8 %v4100
    %v4472 = vunpack.c.0.s8 %v4101
    %v4473 = vunpack.c.0.s8 %v4102
    %v4474 = vunpack.c.0.s8 %v4103
    %v4475 = vunpack.c.1.s8 %v4097
    %v4476 = vunpack.c.1.s8 %v4098
    %v4477 = vunpack.c.1.s8 %v4099
    %v4478 = vunpack.c.1.s8 %v4100
    %v4479 = vunpack.c.1.s8 %v4101
    %v4480 = vunpack.c.1.s8 %v4102
    %v4481 = vunpack.c.1.s8 %v4103
    %v4482 = vunpack.c.2.s8 %v4097
    %v4483 = vunpack.c.2.s8 %v4098
    %v4484 = vunpack.c.2.s8 %v4099
    %v4485 = vunpack.c.2.s8 %v4100
    %v4486 = vunpack.c.2.s8 %v4101
    %v4487 = vunpack.c.2.s8 %v4102
    %v4488 = vunpack.c.2.s8 %v4103
    %v4489 = vunpack.c.3.s8 %v4097
    %v4490 = vunpack.c.3.s8 %v4098
    %v4491 = vunpack.c.3.s8 %v4099
    %v4492 = vunpack.c.3.s8 %v4100
    %v4493 = vunpack.c.3.s8 %v4101
    %v4494 = vunpack.c.3.s8 %v4102
    %v4495 = vunpack.c.3.s8 %v4103
    %v4496 = vunpack.c.0.s8 %v4104
    %v4497 = vunpack.c.0.s8 %v4105
    %v4498 = vunpack.c.0.s8 %v4106
    %v4499 = vunpack.c.0.s8 %v4107
    %v4500 = vunpack.c.0.s8 %v4108
    %v4501 = vunpack.c.0.s8 %v4109
    %v4502 = vunpack.c.0.s8 %v4110
    %v4503 = vunpack.c.1.s8 %v4104
    %v4504 = vunpack.c.1.s8 %v4105
    %v4505 = vunpack.c.1.s8 %v4106
    %v4506 = vunpack.c.1.s8 %v4107
    %v4507 = vunpack.c.1.s8 %v4108
    %v4508 = vunpack.c.1.s8 %v4109
    %v4509 = vunpack.c.1.s8 %v4110
    %v4510 = vunpack.c.2.s8 %v4104
    %v4511 = vunpack.c.2.s8 %v4105
    %v4512 = vunpack.c.2.s8 %v4106
    %v4513 = vunpack.c.2.s8 %v4107
    %v4514 = vunpack.c.2.s8 %v4108
    %v4515 = vunpack.c.2.s8 %v4109
    %v4516 = vunpack.c.2.s8 %v4110
    %v4517 = vunpack.c.3.s8 %v4104
    %v4518 = vunpack.c.3.s8 %v4105
    %v4519 = vunpack.c.3.s8 %v4106
    %v4520 = vunpack.c.3.s8 %v4107
    %v4521 = vunpack.c.3.s8 %v4108
    %v4522 = vunpack.c.3.s8 %v4109
    %v4523 = vunpack.c.3.s8 %v4110
    %v4524 = vunpack.c.0.s8 %v4111
    %v4525 = vunpack.c.0.s8 %v4112
    %v4526 = vunpack.c.0.s8 %v4113
    %v4527 = vunpack.c.0.s8 %v4114
    %v4528 = vunpack.c.0.s8 %v4115
    %v4529 = vunpack.c.0.s8 %v4116
    %v4530 = vunpack.c.0.s8 %v4117
    %v4531 = vunpack.c.1.s8 %v4111
    %v4532 = vunpack.c.1.s8 %v4112
    %v4533 = vunpack.c.1.s8 %v4113
    %v4534 = vunpack.c.1.s8 %v4114
    %v4535 = vunpack.c.1.s8 %v4115
    %v4536 = vunpack.c.1.s8 %v4116
    %v4537 = vunpack.c.1.s8 %v4117
    %v4538 = vunpack.c.2.s8 %v4111
    %v4539 = vunpack.c.2.s8 %v4112
    %v4540 = vunpack.c.2.s8 %v4113
    %v4541 = vunpack.c.2.s8 %v4114
    %v4542 = vunpack.c.2.s8 %v4115
    %v4543 = vunpack.c.2.s8 %v4116
    %v4544 = vunpack.c.2.s8 %v4117
    %v4545 = vunpack.c.3.s8 %v4111
    %v4546 = vunpack.c.3.s8 %v4112
    %v4547 = vunpack.c.3.s8 %v4113
    %v4548 = vunpack.c.3.s8 %v4114
    %v4549 = vunpack.c.3.s8 %v4115
    %v4550 = vunpack.c.3.s8 %v4116
    %v4551 = vunpack.c.3.s8 %v4117
    %v4552 = vunpack.c.0.s8 %v4118
    %v4553 = vunpack.c.0.s8 %v4119
    %v4554 = vunpack.c.0.s8 %v4120
    %v4555 = vunpack.c.0.s8 %v4121
    %v4556 = vunpack.c.0.s8 %v4122
    %v4557 = vunpack.c.0.s8 %v4123
    %v4558 = vunpack.c.0.s8 %v4124
    %v4559 = vunpack.c.1.s8 %v4118
    %v4560 = vunpack.c.1.s8 %v4119
    %v4561 = vunpack.c.1.s8 %v4120
    %v4562 = vunpack.c.1.s8 %v4121
    %v4563 = vunpack.c.1.s8 %v4122
    %v4564 = vunpack.c.1.s8 %v4123
    %v4565 = vunpack.c.1.s8 %v4124
    %v4566 = vunpack.c.2.s8 %v4118
    %v4567 = vunpack.c.2.s8 %v4119
    %v4568 = vunpack.c.2.s8 %v4120
    %v4569 = vunpack.c.2.s8 %v4121
    %v4570 = vunpack.c.2.s8 %v4122
    %v4571 = vunpack.c.2.s8 %v4123
    %v4572 = vunpack.c.2.s8 %v4124
    %v4573 = vunpack.c.3.s8 %v4118
    %v4574 = vunpack.c.3.s8 %v4119
    %v4575 = vunpack.c.3.s8 %v4120
    %v4576 = vunpack.c.3.s8 %v4121
    %v4577 = vunpack.c.3.s8 %v4122
    %v4578 = vunpack.c.3.s8 %v4123
    %v4579 = vunpack.c.3.s8 %v4124
    %v4580 = vunpack.c.0.s8 %v4125
    %v4581 = vunpack.c.0.s8 %v4126
    %v4582 = vunpack.c.0.s8 %v4127
    %v4583 = vunpack.c.0.s8 %v4128
    %v4584 = vunpack.c.0.s8 %v4129
    %v4585 = vunpack.c.0.s8 %v4130
    %v4586 = vunpack.c.0.s8 %v4131
    %v4587 = vunpack.c.1.s8 %v4125
    %v4588 = vunpack.c.1.s8 %v4126
    %v4589 = vunpack.c.1.s8 %v4127
    %v4590 = vunpack.c.1.s8 %v4128
    %v4591 = vunpack.c.1.s8 %v4129
    %v4592 = vunpack.c.1.s8 %v4130
    %v4593 = vunpack.c.1.s8 %v4131
    %v4594 = vunpack.c.2.s8 %v4125
    %v4595 = vunpack.c.2.s8 %v4126
    %v4596 = vunpack.c.2.s8 %v4127
    %v4597 = vunpack.c.2.s8 %v4128
    %v4598 = vunpack.c.2.s8 %v4129
    %v4599 = vunpack.c.2.s8 %v4130
    %v4600 = vunpack.c.2.s8 %v4131
    %v4601 = vunpack.c.3.s8 %v4125
    %v4602 = vunpack.c.3.s8 %v4126
    %v4603 = vunpack.c.3.s8 %v4127
    %v4604 = vunpack.c.3.s8 %v4128
    %v4605 = vunpack.c.3.s8 %v4129
    %v4606 = vunpack.c.3.s8 %v4130
    %v4607 = vunpack.c.3.s8 %v4131
    %v4608 = vunpack.c.0.s8 %v4132
    %v4609 = vunpack.c.0.s8 %v4133
    %v4610 = vunpack.c.0.s8 %v4134
    %v4611 = vunpack.c.0.s8 %v4135
    %v4612 = vunpack.c.0.s8 %v4136
    %v4613 = vunpack.c.0.s8 %v4137
    %v4614 = vunpack.c.0.s8 %v4138
    %v4615 = vunpack.c.1.s8 %v4132
    %v4616 = vunpack.c.1.s8 %v4133
    %v4617 = vunpack.c.1.s8 %v4134
    %v4618 = vunpack.c.1.s8 %v4135
    %v4619 = vunpack.c.1.s8 %v4136
    %v4620 = vunpack.c.1.s8 %v4137
    %v4621 = vunpack.c.1.s8 %v4138
    %v4622 = vunpack.c.2.s8 %v4132
    %v4623 = vunpack.c.2.s8 %v4133
    %v4624 = vunpack.c.2.s8 %v4134
    %v4625 = vunpack.c.2.s8 %v4135
    %v4626 = vunpack.c.2.s8 %v4136
    %v4627 = vunpack.c.2.s8 %v4137
    %v4628 = vunpack.c.2.s8 %v4138
    %v4629 = vunpack.c.3.s8 %v4132
    %v4630 = vunpack.c.3.s8 %v4133
    %v4631 = vunpack.c.3.s8 %v4134
    %v4632 = vunpack.c.3.s8 %v4135
    %v4633 = vunpack.c.3.s8 %v4136
    %v4634 = vunpack.c.3.s8 %v4137
    %v4635 = vunpack.c.3.s8 %v4138
    %v4636 = vunpack.c.0.s8 %v4139
    %v4637 = vunpack.c.0.s8 %v4140
    %v4638 = vunpack.c.0.s8 %v4141
    %v4639 = vunpack.c.0.s8 %v4142
    %v4640 = vunpack.c.0.s8 %v4143
    %v4641 = vunpack.c.0.s8 %v4144
    %v4642 = vunpack.c.0.s8 %v4145
    %v4643 = vunpack.c.1.s8 %v4139
    %v4644 = vunpack.c.1.s8 %v4140
    %v4645 = vunpack.c.1.s8 %v4141
    %v4646 = vunpack.c.1.s8 %v4142
    %v4647 = vunpack.c.1.s8 %v4143
    %v4648 = vunpack.c.1.s8 %v4144
    %v4649 = vunpack.c.1.s8 %v4145
    %v4650 = vunpack.c.2.s8 %v4139
    %v4651 = vunpack.c.2.s8 %v4140
    %v4652 = vunpack.c.2.s8 %v4141
    %v4653 = vunpack.c.2.s8 %v4142
    %v4654 = vunpack.c.2.s8 %v4143
    %v4655 = vunpack.c.2.s8 %v4144
    %v4656 = vunpack.c.2.s8 %v4145
    %v4657 = vunpack.c.3.s8 %v4139
    %v4658 = vunpack.c.3.s8 %v4140
    %v4659 = vunpack.c.3.s8 %v4141
    %v4660 = vunpack.c.3.s8 %v4142
    %v4661 = vunpack.c.3.s8 %v4143
    %v4662 = vunpack.c.3.s8 %v4144
    %v4663 = vunpack.c.3.s8 %v4145
    %v4664 = vunpack.c.0.s8 %v4146
    %v4665 = vunpack.c.0.s8 %v4147
    %v4666 = vunpack.c.0.s8 %v4148
    %v4667 = vunpack.c.0.s8 %v4149
    %v4668 = vunpack.c.0.s8 %v4150
    %v4669 = vunpack.c.0.s8 %v4151
    %v4670 = vunpack.c.0.s8 %v4152
    %v4671 = vunpack.c.1.s8 %v4146
    %v4672 = vunpack.c.1.s8 %v4147
    %v4673 = vunpack.c.1.s8 %v4148
    %v4674 = vunpack.c.1.s8 %v4149
    %v4675 = vunpack.c.1.s8 %v4150
    %v4676 = vunpack.c.1.s8 %v4151
    %v4677 = vunpack.c.1.s8 %v4152
    %v4678 = vunpack.c.2.s8 %v4146
    %v4679 = vunpack.c.2.s8 %v4147
    %v4680 = vunpack.c.2.s8 %v4148
    %v4681 = vunpack.c.2.s8 %v4149
    %v4682 = vunpack.c.2.s8 %v4150
    %v4683 = vunpack.c.2.s8 %v4151
    %v4684 = vunpack.c.2.s8 %v4152
    %v4685 = vunpack.c.3.s8 %v4146
    %v4686 = vunpack.c.3.s8 %v4147
    %v4687 = vunpack.c.3.s8 %v4148
    %v4688 = vunpack.c.3.s8 %v4149
    %v4689 = vunpack.c.3.s8 %v4150
    %v4690 = vunpack.c.3.s8 %v4151
    %v4691 = vunpack.c.3.s8 %v4152
    %v4692 = vunpack.c.0.s8 %v4153
    %v4693 = vunpack.c.0.s8 %v4154
    %v4694 = vunpack.c.0.s8 %v4155
    %v4695 = vunpack.c.0.s8 %v4156
    %v4696 = vunpack.c.0.s8 %v4157
    %v4697 = vunpack.c.0.s8 %v4158
    %v4698 = vunpack.c.0.s8 %v4159
    %v4699 = vunpack.c.1.s8 %v4153
    %v4700 = vunpack.c.1.s8 %v4154
    %v4701 = vunpack.c.1.s8 %v4155
    %v4702 = vunpack.c.1.s8 %v4156
    %v4703 = vunpack.c.1.s8 %v4157
    %v4704 = vunpack.c.1.s8 %v4158
    %v4705 = vunpack.c.1.s8 %v4159
    %v4706 = vunpack.c.2.s8 %v4153
    %v4707 = vunpack.c.2.s8 %v4154
    %v4708 = vunpack.c.2.s8 %v4155
    %v4709 = vunpack.c.2.s8 %v4156
    %v4710 = vunpack.c.2.s8 %v4157
    %v4711 = vunpack.c.2.s8 %v4158
    %v4712 = vunpack.c.2.s8 %v4159
    %v4713 = vunpack.c.3.s8 %v4153
    %v4714 = vunpack.c.3.s8 %v4154
    %v4715 = vunpack.c.3.s8 %v4155
    %v4716 = vunpack.c.3.s8 %v4156
    %v4717 = vunpack.c.3.s8 %v4157
    %v4718 = vunpack.c.3.s8 %v4158
    %v4719 = vunpack.c.3.s8 %v4159
    %v4720 = vunpack.c.0.s8 %v4160
    %v4721 = vunpack.c.0.s8 %v4161
    %v4722 = vunpack.c.0.s8 %v4162
    %v4723 = vunpack.c.0.s8 %v4163
    %v4724 = vunpack.c.0.s8 %v4164
    %v4725 = vunpack.c.0.s8 %v4165
    %v4726 = vunpack.c.0.s8 %v4166
    %v4727 = vunpack.c.1.s8 %v4160
    %v4728 = vunpack.c.1.s8 %v4161
    %v4729 = vunpack.c.1.s8 %v4162
    %v4730 = vunpack.c.1.s8 %v4163
    %v4731 = vunpack.c.1.s8 %v4164
    %v4732 = vunpack.c.1.s8 %v4165
    %v4733 = vunpack.c.1.s8 %v4166
    %v4734 = vunpack.c.2.s8 %v4160
    %v4735 = vunpack.c.2.s8 %v4161
    %v4736 = vunpack.c.2.s8 %v4162
    %v4737 = vunpack.c.2.s8 %v4163
    %v4738 = vunpack.c.2.s8 %v4164
    %v4739 = vunpack.c.2.s8 %v4165
    %v4740 = vunpack.c.2.s8 %v4166
    %v4741 = vunpack.c.3.s8 %v4160
    %v4742 = vunpack.c.3.s8 %v4161
    %v4743 = vunpack.c.3.s8 %v4162
    %v4744 = vunpack.c.3.s8 %v4163
    %v4745 = vunpack.c.3.s8 %v4164
    %v4746 = vunpack.c.3.s8 %v4165
    %v4747 = vunpack.c.3.s8 %v4166
    %v4748 = vunpack.c.0.s8 %v4167
    %v4749 = vunpack.c.0.s8 %v4168
    %v4750 = vunpack.c.0.s8 %v4169
    %v4751 = vunpack.c.0.s8 %v4170
    %v4752 = vunpack.c.0.s8 %v4171
    %v4753 = vunpack.c.0.s8 %v4172
    %v4754 = vunpack.c.0.s8 %v4173
    %v4755 = vunpack.c.1.s8 %v4167
    %v4756 = vunpack.c.1.s8 %v4168
    %v4757 = vunpack.c.1.s8 %v4169
    %v4758 = vunpack.c.1.s8 %v4170
    %v4759 = vunpack.c.1.s8 %v4171
    %v4760 = vunpack.c.1.s8 %v4172
    %v4761 = vunpack.c.1.s8 %v4173
    %v4762 = vunpack.c.2.s8 %v4167
    %v4763 = vunpack.c.2.s8 %v4168
    %v4764 = vunpack.c.2.s8 %v4169
    %v4765 = vunpack.c.2.s8 %v4170
    %v4766 = vunpack.c.2.s8 %v4171
    %v4767 = vunpack.c.2.s8 %v4172
    %v4768 = vunpack.c.2.s8 %v4173
    %v4769 = vunpack.c.3.s8 %v4167
    %v4770 = vunpack.c.3.s8 %v4168
    %v4771 = vunpack.c.3.s8 %v4169
    %v4772 = vunpack.c.3.s8 %v4170
    %v4773 = vunpack.c.3.s8 %v4171
    %v4774 = vunpack.c.3.s8 %v4172
    %v4775 = vunpack.c.3.s8 %v4173
    %v4776 = vunpack.c.0.s8 %v4174
    %v4777 = vunpack.c.0.s8 %v4175
    %v4778 = vunpack.c.0.s8 %v4176
    %v4779 = vunpack.c.0.s8 %v4177
    %v4780 = vunpack.c.0.s8 %v4178
    %v4781 = vunpack.c.0.s8 %v4179
    %v4782 = vunpack.c.0.s8 %v4180
    %v4783 = vunpack.c.1.s8 %v4174
    %v4784 = vunpack.c.1.s8 %v4175
    %v4785 = vunpack.c.1.s8 %v4176
    %v4786 = vunpack.c.1.s8 %v4177
    %v4787 = vunpack.c.1.s8 %v4178
    %v4788 = vunpack.c.1.s8 %v4179
    %v4789 = vunpack.c.1.s8 %v4180
    %v4790 = vunpack.c.2.s8 %v4174
    %v4791 = vunpack.c.2.s8 %v4175
    %v4792 = vunpack.c.2.s8 %v4176
    %v4793 = vunpack.c.2.s8 %v4177
    %v4794 = vunpack.c.2.s8 %v4178
    %v4795 = vunpack.c.2.s8 %v4179
    %v4796 = vunpack.c.2.s8 %v4180
    %v4797 = vunpack.c.3.s8 %v4174
    %v4798 = vunpack.c.3.s8 %v4175
    %v4799 = vunpack.c.3.s8 %v4176
    %v4800 = vunpack.c.3.s8 %v4177
    %v4801 = vunpack.c.3.s8 %v4178
    %v4802 = vunpack.c.3.s8 %v4179
    %v4803 = vunpack.c.3.s8 %v4180
    %v4804 = vunpack.c.0.s8 %v4181
    %v4805 = vunpack.c.0.s8 %v4182
    %v4806 = vunpack.c.0.s8 %v4183
    %v4807 = vunpack.c.0.s8 %v4184
    %v4808 = vunpack.c.0.s8 %v4185
    %v4809 = vunpack.c.0.s8 %v4186
    %v4810 = vunpack.c.0.s8 %v4187
    %v4811 = vunpack.c.1.s8 %v4181
    %v4812 = vunpack.c.1.s8 %v4182
    %v4813 = vunpack.c.1.s8 %v4183
    %v4814 = vunpack.c.1.s8 %v4184
    %v4815 = vunpack.c.1.s8 %v4185
    %v4816 = vunpack.c.1.s8 %v4186
    %v4817 = vunpack.c.1.s8 %v4187
    %v4818 = vunpack.c.2.s8 %v4181
    %v4819 = vunpack.c.2.s8 %v4182
    %v4820 = vunpack.c.2.s8 %v4183
    %v4821 = vunpack.c.2.s8 %v4184
    %v4822 = vunpack.c.2.s8 %v4185
    %v4823 = vunpack.c.2.s8 %v4186
    %v4824 = vunpack.c.2.s8 %v4187
    %v4825 = vunpack.c.3.s8 %v4181
    %v4826 = vunpack.c.3.s8 %v4182
    %v4827 = vunpack.c.3.s8 %v4183
    %v4828 = vunpack.c.3.s8 %v4184
    %v4829 = vunpack.c.3.s8 %v4185
    %v4830 = vunpack.c.3.s8 %v4186
    %v4831 = vunpack.c.3.s8 %v4187
    %v4832 = vunpack.c.0.s8 %v4188
    %v4833 = vunpack.c.0.s8 %v4189
    %v4834 = vunpack.c.0.s8 %v4190
    %v4835 = vunpack.c.0.s8 %v4191
    %v4836 = vunpack.c.0.s8 %v4192
    %v4837 = vunpack.c.0.s8 %v4193
    %v4838 = vunpack.c.0.s8 %v4194
    %v4839 = vunpack.c.1.s8 %v4188
    %v4840 = vunpack.c.1.s8 %v4189
    %v4841 = vunpack.c.1.s8 %v4190
    %v4842 = vunpack.c.1.s8 %v4191
    %v4843 = vunpack.c.1.s8 %v4192
    %v4844 = vunpack.c.1.s8 %v4193
    %v4845 = vunpack.c.1.s8 %v4194
    %v4846 = vunpack.c.2.s8 %v4188
    %v4847 = vunpack.c.2.s8 %v4189
    %v4848 = vunpack.c.2.s8 %v4190
    %v4849 = vunpack.c.2.s8 %v4191
    %v4850 = vunpack.c.2.s8 %v4192
    %v4851 = vunpack.c.2.s8 %v4193
    %v4852 = vunpack.c.2.s8 %v4194
    %v4853 = vunpack.c.3.s8 %v4188
    %v4854 = vunpack.c.3.s8 %v4189
    %v4855 = vunpack.c.3.s8 %v4190
    %v4856 = vunpack.c.3.s8 %v4191
    %v4857 = vunpack.c.3.s8 %v4192
    %v4858 = vunpack.c.3.s8 %v4193
    %v4859 = vunpack.c.3.s8 %v4194
    %v4860 = vunpack.c.0.s8 %v4195
    %v4861 = vunpack.c.0.s8 %v4196
    %v4862 = vunpack.c.0.s8 %v4197
    %v4863 = vunpack.c.0.s8 %v4198
    %v4864 = vunpack.c.0.s8 %v4199
    %v4865 = vunpack.c.0.s8 %v4200
    %v4866 = vunpack.c.0.s8 %v4201
    %v4867 = vunpack.c.1.s8 %v4195
    %v4868 = vunpack.c.1.s8 %v4196
    %v4869 = vunpack.c.1.s8 %v4197
    %v4870 = vunpack.c.1.s8 %v4198
    %v4871 = vunpack.c.1.s8 %v4199
    %v4872 = vunpack.c.1.s8 %v4200
    %v4873 = vunpack.c.1.s8 %v4201
    %v4874 = vunpack.c.2.s8 %v4195
    %v4875 = vunpack.c.2.s8 %v4196
    %v4876 = vunpack.c.2.s8 %v4197
    %v4877 = vunpack.c.2.s8 %v4198
    %v4878 = vunpack.c.2.s8 %v4199
    %v4879 = vunpack.c.2.s8 %v4200
    %v4880 = vunpack.c.2.s8 %v4201
    %v4881 = vunpack.c.3.s8 %v4195
    %v4882 = vunpack.c.3.s8 %v4196
    %v4883 = vunpack.c.3.s8 %v4197
    %v4884 = vunpack.c.3.s8 %v4198
    %v4885 = vunpack.c.3.s8 %v4199
    %v4886 = vunpack.c.3.s8 %v4200
    %v4887 = vunpack.c.3.s8 %v4201
    %v4888 = vunpack.c.0.s8 %v4202
    %v4889 = vunpack.c.0.s8 %v4203
    %v4890 = vunpack.c.0.s8 %v4204
    %v4891 = vunpack.c.0.s8 %v4205
    %v4892 = vunpack.c.0.s8 %v4206
    %v4893 = vunpack.c.0.s8 %v4207
    %v4894 = vunpack.c.0.s8 %v4208
    %v4895 = vunpack.c.1.s8 %v4202
    %v4896 = vunpack.c.1.s8 %v4203
    %v4897 = vunpack.c.1.s8 %v4204
    %v4898 = vunpack.c.1.s8 %v4205
    %v4899 = vunpack.c.1.s8 %v4206
    %v4900 = vunpack.c.1.s8 %v4207
    %v4901 = vunpack.c.1.s8 %v4208
    %v4902 = vunpack.c.2.s8 %v4202
    %v4903 = vunpack.c.2.s8 %v4203
    %v4904 = vunpack.c.2.s8 %v4204
    %v4905 = vunpack.c.2.s8 %v4205
    %v4906 = vunpack.c.2.s8 %v4206
    %v4907 = vunpack.c.2.s8 %v4207
    %v4908 = vunpack.c.2.s8 %v4208
    %v4909 = vunpack.c.3.s8 %v4202
    %v4910 = vunpack.c.3.s8 %v4203
    %v4911 = vunpack.c.3.s8 %v4204
    %v4912 = vunpack.c.3.s8 %v4205
    %v4913 = vunpack.c.3.s8 %v4206
    %v4914 = vunpack.c.3.s8 %v4207
    %v4915 = vunpack.c.3.s8 %v4208
    %v4916 = vunpack.c.0.s8 %v4209
    %v4917 = vunpack.c.0.s8 %v4210
    %v4918 = vunpack.c.0.s8 %v4211
    %v4919 = vunpack.c.0.s8 %v4212
    %v4920 = vunpack.c.0.s8 %v4213
    %v4921 = vunpack.c.0.s8 %v4214
    %v4922 = vunpack.c.0.s8 %v4215
    %v4923 = vunpack.c.1.s8 %v4209
    %v4924 = vunpack.c.1.s8 %v4210
    %v4925 = vunpack.c.1.s8 %v4211
    %v4926 = vunpack.c.1.s8 %v4212
    %v4927 = vunpack.c.1.s8 %v4213
    %v4928 = vunpack.c.1.s8 %v4214
    %v4929 = vunpack.c.1.s8 %v4215
    %v4930 = vunpack.c.2.s8 %v4209
    %v4931 = vunpack.c.2.s8 %v4210
    %v4932 = vunpack.c.2.s8 %v4211
    %v4933 = vunpack.c.2.s8 %v4212
    %v4934 = vunpack.c.2.s8 %v4213
    %v4935 = vunpack.c.2.s8 %v4214
    %v4936 = vunpack.c.2.s8 %v4215
    %v4937 = vunpack.c.3.s8 %v4209
    %v4938 = vunpack.c.3.s8 %v4210
    %v4939 = vunpack.c.3.s8 %v4211
    %v4940 = vunpack.c.3.s8 %v4212
    %v4941 = vunpack.c.3.s8 %v4213
    %v4942 = vunpack.c.3.s8 %v4214
    %v4943 = vunpack.c.3.s8 %v4215
    %v4944 = vunpack.c.0.s8 %v4216
    %v4945 = vunpack.c.0.s8 %v4217
    %v4946 = vunpack.c.0.s8 %v4218
    %v4947 = vunpack.c.0.s8 %v4219
    %v4948 = vunpack.c.0.s8 %v4220
    %v4949 = vunpack.c.0.s8 %v4221
    %v4950 = vunpack.c.0.s8 %v4222
    %v4951 = vunpack.c.1.s8 %v4216
    %v4952 = vunpack.c.1.s8 %v4217
    %v4953 = vunpack.c.1.s8 %v4218
    %v4954 = vunpack.c.1.s8 %v4219
    %v4955 = vunpack.c.1.s8 %v4220
    %v4956 = vunpack.c.1.s8 %v4221
    %v4957 = vunpack.c.1.s8 %v4222
    %v4958 = vunpack.c.2.s8 %v4216
    %v4959 = vunpack.c.2.s8 %v4217
    %v4960 = vunpack.c.2.s8 %v4218
    %v4961 = vunpack.c.2.s8 %v4219
    %v4962 = vunpack.c.2.s8 %v4220
    %v4963 = vunpack.c.2.s8 %v4221
    %v4964 = vunpack.c.2.s8 %v4222
    %v4965 = vunpack.c.3.s8 %v4216
    %v4966 = vunpack.c.3.s8 %v4217
    %v4967 = vunpack.c.3.s8 %v4218
    %v4968 = vunpack.c.3.s8 %v4219
    %v4969 = vunpack.c.3.s8 %v4220
    %v4970 = vunpack.c.3.s8 %v4221
    %v4971 = vunpack.c.3.s8 %v4222
    %v4972 = vunpack.c.0.s8 %v4223
    %v4973 = vunpack.c.0.s8 %v4224
    %v4974 = vunpack.c.0.s8 %v4225
    %v4975 = vunpack.c.0.s8 %v4226
    %v4976 = vunpack.c.0.s8 %v4227
    %v4977 = vunpack.c.0.s8 %v4228
    %v4978 = vunpack.c.0.s8 %v4229
    %v4979 = vunpack.c.1.s8 %v4223
    %v4980 = vunpack.c.1.s8 %v4224
    %v4981 = vunpack.c.1.s8 %v4225
    %v4982 = vunpack.c.1.s8 %v4226
    %v4983 = vunpack.c.1.s8 %v4227
    %v4984 = vunpack.c.1.s8 %v4228
    %v4985 = vunpack.c.1.s8 %v4229
    %v4986 = vunpack.c.2.s8 %v4223
    %v4987 = vunpack.c.2.s8 %v4224
    %v4988 = vunpack.c.2.s8 %v4225
    %v4989 = vunpack.c.2.s8 %v4226
    %v4990 = vunpack.c.2.s8 %v4227
    %v4991 = vunpack.c.2.s8 %v4228
    %v4992 = vunpack.c.2.s8 %v4229
    %v4993 = vunpack.c.3.s8 %v4223
    %v4994 = vunpack.c.3.s8 %v4224
    %v4995 = vunpack.c.3.s8 %v4225
    %v4996 = vunpack.c.3.s8 %v4226
    %v4997 = vunpack.c.3.s8 %v4227
    %v4998 = vunpack.c.3.s8 %v4228
    %v4999 = vunpack.c.3.s8 %v4229
    %v5000 = vunpack.c.0.s8 %v4230
    %v5001 = vunpack.c.0.s8 %v4231
    %v5002 = vunpack.c.0.s8 %v4232
    %v5003 = vunpack.c.0.s8 %v4233
    %v5004 = vunpack.c.0.s8 %v4234
    %v5005 = vunpack.c.0.s8 %v4235
    %v5006 = vunpack.c.0.s8 %v4236
    %v5007 = vunpack.c.1.s8 %v4230
    %v5008 = vunpack.c.1.s8 %v4231
    %v5009 = vunpack.c.1.s8 %v4232
    %v5010 = vunpack.c.1.s8 %v4233
    %v5011 = vunpack.c.1.s8 %v4234
    %v5012 = vunpack.c.1.s8 %v4235
    %v5013 = vunpack.c.1.s8 %v4236
    %v5014 = vunpack.c.2.s8 %v4230
    %v5015 = vunpack.c.2.s8 %v4231
    %v5016 = vunpack.c.2.s8 %v4232
    %v5017 = vunpack.c.2.s8 %v4233
    %v5018 = vunpack.c.2.s8 %v4234
    %v5019 = vunpack.c.2.s8 %v4235
    %v5020 = vunpack.c.2.s8 %v4236
    %v5021 = vunpack.c.3.s8 %v4230
    %v5022 = vunpack.c.3.s8 %v4231
    %v5023 = vunpack.c.3.s8 %v4232
    %v5024 = vunpack.c.3.s8 %v4233
    %v5025 = vunpack.c.3.s8 %v4234
    %v5026 = vunpack.c.3.s8 %v4235
    %v5027 = vunpack.c.3.s8 %v4236
    %v5028 = vunpack.c.0.s8 %v4237
    %v5029 = vunpack.c.0.s8 %v4238
    %v5030 = vunpack.c.0.s8 %v4239
    %v5031 = vunpack.c.0.s8 %v4240
    %v5032 = vunpack.c.0.s8 %v4241
    %v5033 = vunpack.c.0.s8 %v4242
    %v5034 = vunpack.c.0.s8 %v4243
    %v5035 = vunpack.c.1.s8 %v4237
    %v5036 = vunpack.c.1.s8 %v4238
    %v5037 = vunpack.c.1.s8 %v4239
    %v5038 = vunpack.c.1.s8 %v4240
    %v5039 = vunpack.c.1.s8 %v4241
    %v5040 = vunpack.c.1.s8 %v4242
    %v5041 = vunpack.c.1.s8 %v4243
    %v5042 = vunpack.c.2.s8 %v4237
    %v5043 = vunpack.c.2.s8 %v4238
    %v5044 = vunpack.c.2.s8 %v4239
    %v5045 = vunpack.c.2.s8 %v4240
    %v5046 = vunpack.c.2.s8 %v4241
    %v5047 = vunpack.c.2.s8 %v4242
    %v5048 = vunpack.c.2.s8 %v4243
    %v5049 = vunpack.c.3.s8 %v4237
    %v5050 = vunpack.c.3.s8 %v4238
    %v5051 = vunpack.c.3.s8 %v4239
    %v5052 = vunpack.c.3.s8 %v4240
    %v5053 = vunpack.c.3.s8 %v4241
    %v5054 = vunpack.c.3.s8 %v4242
    %v5055 = vunpack.c.3.s8 %v4243
    %v5056 = vunpack.c.0.s8 %v4244
    %v5057 = vunpack.c.0.s8 %v4245
    %v5058 = vunpack.c.0.s8 %v4246
    %v5059 = vunpack.c.0.s8 %v4247
    %v5060 = vunpack.c.0.s8 %v4248
    %v5061 = vunpack.c.0.s8 %v4249
    %v5062 = vunpack.c.0.s8 %v4250
    %v5063 = vunpack.c.1.s8 %v4244
    %v5064 = vunpack.c.1.s8 %v4245
    %v5065 = vunpack.c.1.s8 %v4246
    %v5066 = vunpack.c.1.s8 %v4247
    %v5067 = vunpack.c.1.s8 %v4248
    %v5068 = vunpack.c.1.s8 %v4249
    %v5069 = vunpack.c.1.s8 %v4250
    %v5070 = vunpack.c.2.s8 %v4244
    %v5071 = vunpack.c.2.s8 %v4245
    %v5072 = vunpack.c.2.s8 %v4246
    %v5073 = vunpack.c.2.s8 %v4247
    %v5074 = vunpack.c.2.s8 %v4248
    %v5075 = vunpack.c.2.s8 %v4249
    %v5076 = vunpack.c.2.s8 %v4250
    %v5077 = vunpack.c.3.s8 %v4244
    %v5078 = vunpack.c.3.s8 %v4245
    %v5079 = vunpack.c.3.s8 %v4246
    %v5080 = vunpack.c.3.s8 %v4247
    %v5081 = vunpack.c.3.s8 %v4248
    %v5082 = vunpack.c.3.s8 %v4249
    %v5083 = vunpack.c.3.s8 %v4250
    %v5084 = vunpack.c.0.s8 %v4251
    %v5085 = vunpack.c.0.s8 %v4252
    %v5086 = vunpack.c.0.s8 %v4253
    %v5087 = vunpack.c.0.s8 %v4254
    %v5088 = vunpack.c.0.s8 %v4255
    %v5089 = vunpack.c.0.s8 %v4256
    %v5090 = vunpack.c.0.s8 %v4257
    %v5091 = vunpack.c.1.s8 %v4251
    %v5092 = vunpack.c.1.s8 %v4252
    %v5093 = vunpack.c.1.s8 %v4253
    %v5094 = vunpack.c.1.s8 %v4254
    %v5095 = vunpack.c.1.s8 %v4255
    %v5096 = vunpack.c.1.s8 %v4256
    %v5097 = vunpack.c.1.s8 %v4257
    %v5098 = vunpack.c.2.s8 %v4251
    %v5099 = vunpack.c.2.s8 %v4252
    %v5100 = vunpack.c.2.s8 %v4253
    %v5101 = vunpack.c.2.s8 %v4254
    %v5102 = vunpack.c.2.s8 %v4255
    %v5103 = vunpack.c.2.s8 %v4256
    %v5104 = vunpack.c.2.s8 %v4257
    %v5105 = vunpack.c.3.s8 %v4251
    %v5106 = vunpack.c.3.s8 %v4252
    %v5107 = vunpack.c.3.s8 %v4253
    %v5108 = vunpack.c.3.s8 %v4254
    %v5109 = vunpack.c.3.s8 %v4255
    %v5110 = vunpack.c.3.s8 %v4256
    %v5111 = vunpack.c.3.s8 %v4257
    %v5112 = vunpack.c.0.s8 %v4258
    %v5113 = vunpack.c.0.s8 %v4259
    %v5114 = vunpack.c.0.s8 %v4260
    %v5115 = vunpack.c.0.s8 %v4261
    %v5116 = vunpack.c.0.s8 %v4262
    %v5117 = vunpack.c.0.s8 %v4263
    %v5118 = vunpack.c.0.s8 %v4264
    %v5119 = vunpack.c.1.s8 %v4258
    %v5120 = vunpack.c.1.s8 %v4259
    %v5121 = vunpack.c.1.s8 %v4260
    %v5122 = vunpack.c.1.s8 %v4261
    %v5123 = vunpack.c.1.s8 %v4262
    %v5124 = vunpack.c.1.s8 %v4263
    %v5125 = vunpack.c.1.s8 %v4264
    %v5126 = vunpack.c.2.s8 %v4258
    %v5127 = vunpack.c.2.s8 %v4259
    %v5128 = vunpack.c.2.s8 %v4260
    %v5129 = vunpack.c.2.s8 %v4261
    %v5130 = vunpack.c.2.s8 %v4262
    %v5131 = vunpack.c.2.s8 %v4263
    %v5132 = vunpack.c.2.s8 %v4264
    %v5133 = vunpack.c.3.s8 %v4258
    %v5134 = vunpack.c.3.s8 %v4259
    %v5135 = vunpack.c.3.s8 %v4260
    %v5136 = vunpack.c.3.s8 %v4261
    %v5137 = vunpack.c.3.s8 %v4262
    %v5138 = vunpack.c.3.s8 %v4263
    %v5139 = vunpack.c.3.s8 %v4264
    %v5140 = vunpack.c.0.s8 %v4265
    %v5141 = vunpack.c.0.s8 %v4266
    %v5142 = vunpack.c.0.s8 %v4267
    %v5143 = vunpack.c.0.s8 %v4268
    %v5144 = vunpack.c.0.s8 %v4269
    %v5145 = vunpack.c.0.s8 %v4270
    %v5146 = vunpack.c.0.s8 %v4271
    %v5147 = vunpack.c.1.s8 %v4265
    %v5148 = vunpack.c.1.s8 %v4266
    %v5149 = vunpack.c.1.s8 %v4267
    %v5150 = vunpack.c.1.s8 %v4268
    %v5151 = vunpack.c.1.s8 %v4269
    %v5152 = vunpack.c.1.s8 %v4270
    %v5153 = vunpack.c.1.s8 %v4271
    %v5154 = vunpack.c.2.s8 %v4265
    %v5155 = vunpack.c.2.s8 %v4266
    %v5156 = vunpack.c.2.s8 %v4267
    %v5157 = vunpack.c.2.s8 %v4268
    %v5158 = vunpack.c.2.s8 %v4269
    %v5159 = vunpack.c.2.s8 %v4270
    %v5160 = vunpack.c.2.s8 %v4271
    %v5161 = vunpack.c.3.s8 %v4265
    %v5162 = vunpack.c.3.s8 %v4266
    %v5163 = vunpack.c.3.s8 %v4267
    %v5164 = vunpack.c.3.s8 %v4268
    %v5165 = vunpack.c.3.s8 %v4269
    %v5166 = vunpack.c.3.s8 %v4270
    %v5167 = vunpack.c.3.s8 %v4271
    %v5168 = vcvt.s32.f32 %v4272
    %v5169 = vcvt.s32.f32 %v4273
    %v5170 = vcvt.s32.f32 %v4274
    %v5171 = vcvt.s32.f32 %v4275
    %v5172 = vcvt.s32.f32 %v4276
    %v5173 = vcvt.s32.f32 %v4277
    %v5174 = vcvt.s32.f32 %v4278
    %v5175 = vcvt.s32.f32 %v4279
    %v5176 = vcvt.s32.f32 %v4280
    %v5177 = vcvt.s32.f32 %v4281
    %v5178 = vcvt.s32.f32 %v4282
    %v5179 = vcvt.s32.f32 %v4283
    %v5180 = vcvt.s32.f32 %v4284
    %v5181 = vcvt.s32.f32 %v4285
    %v5182 = vcvt.s32.f32 %v4286
    %v5183 = vcvt.s32.f32 %v4287
    %v5184 = vcvt.s32.f32 %v4288
    %v5185 = vcvt.s32.f32 %v4289
    %v5186 = vcvt.s32.f32 %v4290
    %v5187 = vcvt.s32.f32 %v4291
    %v5188 = vcvt.s32.f32 %v4292
    %v5189 = vcvt.s32.f32 %v4293
    %v5190 = vcvt.s32.f32 %v4294
    %v5191 = vcvt.s32.f32 %v4295
    %v5192 = vcvt.s32.f32 %v4296
    %v5193 = vcvt.s32.f32 %v4297
    %v5194 = vcvt.s32.f32 %v4298
    %v5195 = vcvt.s32.f32 %v4299
    %v5196 = vcvt.s32.f32 %v4300
    %v5197 = vcvt.s32.f32 %v4301
    %v5198 = vcvt.s32.f32 %v4302
    %v5199 = vcvt.s32.f32 %v4303
    %v5200 = vcvt.s32.f32 %v4304
    %v5201 = vcvt.s32.f32 %v4305
    %v5202 = vcvt.s32.f32 %v4306
    %v5203 = vcvt.s32.f32 %v4307
    %v5204 = vcvt.s32.f32 %v4308
    %v5205 = vcvt.s32.f32 %v4309
    %v5206 = vcvt.s32.f32 %v4310
    %v5207 = vcvt.s32.f32 %v4311
    %v5208 = vcvt.s32.f32 %v4312
    %v5209 = vcvt.s32.f32 %v4313
    %v5210 = vcvt.s32.f32 %v4314
    %v5211 = vcvt.s32.f32 %v4315
    %v5212 = vcvt.s32.f32 %v4316
    %v5213 = vcvt.s32.f32 %v4317
    %v5214 = vcvt.s32.f32 %v4318
    %v5215 = vcvt.s32.f32 %v4319
    %v5216 = vcvt.s32.f32 %v4320
    %v5217 = vcvt.s32.f32 %v4321
    %v5218 = vcvt.s32.f32 %v4322
    %v5219 = vcvt.s32.f32 %v4323
    %v5220 = vcvt.s32.f32 %v4324
    %v5221 = vcvt.s32.f32 %v4325
    %v5222 = vcvt.s32.f32 %v4326
    %v5223 = vcvt.s32.f32 %v4327
    %v5224 = vcvt.s32.f32 %v4328
    %v5225 = vcvt.s32.f32 %v4329
    %v5226 = vcvt.s32.f32 %v4330
    %v5227 = vcvt.s32.f32 %v4331
    %v5228 = vcvt.s32.f32 %v4332
    %v5229 = vcvt.s32.f32 %v4333
    %v5230 = vcvt.s32.f32 %v4334
    %v5231 = vcvt.s32.f32 %v4335
    %v5232 = vcvt.s32.f32 %v4336
    %v5233 = vcvt.s32.f32 %v4337
    %v5234 = vcvt.s32.f32 %v4338
    %v5235 = vcvt.s32.f32 %v4339
    %v5236 = vcvt.s32.f32 %v4340
    %v5237 = vcvt.s32.f32 %v4341
    %v5238 = vcvt.s32.f32 %v4342
    %v5239 = vcvt.s32.f32 %v4343
    %v5240 = vcvt.s32.f32 %v4344
    %v5241 = vcvt.s32.f32 %v4345
    %v5242 = vcvt.s32.f32 %v4346
    %v5243 = vcvt.s32.f32 %v4347
    %v5244 = vcvt.s32.f32 %v4348
    %v5245 = vcvt.s32.f32 %v4349
    %v5246 = vcvt.s32.f32 %v4350
    %v5247 = vcvt.s32.f32 %v4351
    %v5248 = vcvt.s32.f32 %v4352
    %v5249 = vcvt.s32.f32 %v4353
    %v5250 = vcvt.s32.f32 %v4354
    %v5251 = vcvt.s32.f32 %v4355
    %v5252 = vcvt.s32.f32 %v4356
    %v5253 = vcvt.s32.f32 %v4357
    %v5254 = vcvt.s32.f32 %v4358
    %v5255 = vcvt.s32.f32 %v4359
    %v5256 = vcvt.s32.f32 %v4360
    %v5257 = vcvt.s32.f32 %v4361
    %v5258 = vcvt.s32.f32 %v4362
    %v5259 = vcvt.s32.f32 %v4363
    %v5260 = vcvt.s32.f32 %v4364
    %v5261 = vcvt.s32.f32 %v4365
    %v5262 = vcvt.s32.f32 %v4366
    %v5263 = vcvt.s32.f32 %v4367
    %v5264 = vcvt.s32.f32 %v4368
    %v5265 = vcvt.s32.f32 %v4369
    %v5266 = vcvt.s32.f32 %v4370
    %v5267 = vcvt.s32.f32 %v4371
    %v5268 = vcvt.s32.f32 %v4372
    %v5269 = vcvt.s32.f32 %v4373
    %v5270 = vcvt.s32.f32 %v4374
    %v5271 = vcvt.s32.f32 %v4375
    %v5272 = vcvt.s32.f32 %v4376
    %v5273 = vcvt.s32.f32 %v4377
    %v5274 = vcvt.s32.f32 %v4378
    %v5275 = vcvt.s32.f32 %v4379
    %v5276 = vcvt.s32.f32 %v4380
    %v5277 = vcvt.s32.f32 %v4381
    %v5278 = vcvt.s32.f32 %v4382
    %v5279 = vcvt.s32.f32 %v4383
    %v5280 = vcvt.s32.f32 %v4384
    %v5281 = vcvt.s32.f32 %v4385
    %v5282 = vcvt.s32.f32 %v4386
    %v5283 = vcvt.s32.f32 %v4387
    %v5284 = vcvt.s32.f32 %v4388
    %v5285 = vcvt.s32.f32 %v4389
    %v5286 = vcvt.s32.f32 %v4390
    %v5287 = vcvt.s32.f32 %v4391
    %v5288 = vcvt.s32.f32 %v4392
    %v5289 = vcvt.s32.f32 %v4393
    %v5290 = vcvt.s32.f32 %v4394
    %v5291 = vcvt.s32.f32 %v4395
    %v5292 = vcvt.s32.f32 %v4396
    %v5293 = vcvt.s32.f32 %v4397
    %v5294 = vcvt.s32.f32 %v4398
    %v5295 = vcvt.s32.f32 %v4399
    %v5296 = vcvt.s32.f32 %v4400
    %v5297 = vcvt.s32.f32 %v4401
    %v5298 = vcvt.s32.f32 %v4402
    %v5299 = vcvt.s32.f32 %v4403
    %v5300 = vcvt.s32.f32 %v4404
    %v5301 = vcvt.s32.f32 %v4405
    %v5302 = vcvt.s32.f32 %v4406
    %v5303 = vcvt.s32.f32 %v4407
    %v5304 = vcvt.s32.f32 %v4408
    %v5305 = vcvt.s32.f32 %v4409
    %v5306 = vcvt.s32.f32 %v4410
    %v5307 = vcvt.s32.f32 %v4411
    %v5308 = vcvt.s32.f32 %v4412
    %v5309 = vcvt.s32.f32 %v4413
    %v5310 = vcvt.s32.f32 %v4414
    %v5311 = vcvt.s32.f32 %v4415
    %v5312 = vcvt.s32.f32 %v4416
    %v5313 = vcvt.s32.f32 %v4417
    %v5314 = vcvt.s32.f32 %v4418
    %v5315 = vcvt.s32.f32 %v4419
    %v5316 = vcvt.s32.f32 %v4420
    %v5317 = vcvt.s32.f32 %v4421
    %v5318 = vcvt.s32.f32 %v4422
    %v5319 = vcvt.s32.f32 %v4423
    %v5320 = vcvt.s32.f32 %v4424
    %v5321 = vcvt.s32.f32 %v4425
    %v5322 = vcvt.s32.f32 %v4426
    %v5323 = vcvt.s32.f32 %v4427
    %v5324 = vcvt.s32.f32 %v4428
    %v5325 = vcvt.s32.f32 %v4429
    %v5326 = vcvt.s32.f32 %v4430
    %v5327 = vcvt.s32.f32 %v4431
    %v5328 = vcvt.s32.f32 %v4432
    %v5329 = vcvt.s32.f32 %v4433
    %v5330 = vcvt.s32.f32 %v4434
    %v5331 = vcvt.s32.f32 %v4435
    %v5332 = vcvt.s32.f32 %v4436
    %v5333 = vcvt.s32.f32 %v4437
    %v5334 = vcvt.s32.f32 %v4438
    %v5335 = vcvt.s32.f32 %v4439
    %v5336 = vcvt.s32.f32 %v4440
    %v5337 = vcvt.s32.f32 %v4441
    %v5338 = vcvt.s32.f32 %v4442
    %v5339 = vcvt.s32.f32 %v4443
    %v5340 = vcvt.s32.f32 %v4444
    %v5341 = vcvt.s32.f32 %v4445
    %v5342 = vcvt.s32.f32 %v4446
    %v5343 = vcvt.s32.f32 %v4447
    %v5344 = vcvt.s32.f32 %v4448
    %v5345 = vcvt.s32.f32 %v4449
    %v5346 = vcvt.s32.f32 %v4450
    %v5347 = vcvt.s32.f32 %v4451
    %v5348 = vcvt.s32.f32 %v4452
    %v5349 = vcvt.s32.f32 %v4453
    %v5350 = vcvt.s32.f32 %v4454
    %v5351 = vcvt.s32.f32 %v4455
    %v5352 = vcvt.s32.f32 %v4456
    %v5353 = vcvt.s32.f32 %v4457
    %v5354 = vcvt.s32.f32 %v4458
    %v5355 = vcvt.s32.f32 %v4459
    %v5356 = vcvt.s32.f32 %v4460
    %v5357 = vcvt.s32.f32 %v4461
    %v5358 = vcvt.s32.f32 %v4462
    %v5359 = vcvt.s32.f32 %v4463
    %v5360 = vcvt.s32.f32 %v4464
    %v5361 = vcvt.s32.f32 %v4465
    %v5362 = vcvt.s32.f32 %v4466
    %v5363 = vcvt.s32.f32 %v4467
    %v5364 = vcvt.s32.f32 %v4468
    %v5365 = vcvt.s32.f32 %v4469
    %v5366 = vcvt.s32.f32 %v4470
    %v5367 = vcvt.s32.f32 %v4471
    %v5368 = vcvt.s32.f32 %v4472
    %v5369 = vcvt.s32.f32 %v4473
    %v5370 = vcvt.s32.f32 %v4474
    %v5371 = vcvt.s32.f32 %v4475
    %v5372 = vcvt.s32.f32 %v4476
    %v5373 = vcvt.s32.f32 %v4477
    %v5374 = vcvt.s32.f32 %v4478
    %v5375 = vcvt.s32.f32 %v4479
    %v5376 = vcvt.s32.f32 %v4480
    %v5377 = vcvt.s32.f32 %v4481
    %v5378 = vcvt.s32.f32 %v4482
    %v5379 = vcvt.s32.f32 %v4483
    %v5380 = vcvt.s32.f32 %v4484
    %v5381 = vcvt.s32.f32 %v4485
    %v5382 = vcvt.s32.f32 %v4486
    %v5383 = vcvt.s32.f32 %v4487
    %v5384 = vcvt.s32.f32 %v4488
    %v5385 = vcvt.s32.f32 %v4489
    %v5386 = vcvt.s32.f32 %v4490
    %v5387 = vcvt.s32.f32 %v4491
    %v5388 = vcvt.s32.f32 %v4492
    %v5389 = vcvt.s32.f32 %v4493
    %v5390 = vcvt.s32.f32 %v4494
    %v5391 = vcvt.s32.f32 %v4495
    %v5392 = vcvt.s32.f32 %v4496
    %v5393 = vcvt.s32.f32 %v4497
    %v5394 = vcvt.s32.f32 %v4498
    %v5395 = vcvt.s32.f32 %v4499
    %v5396 = vcvt.s32.f32 %v4500
    %v5397 = vcvt.s32.f32 %v4501
    %v5398 = vcvt.s32.f32 %v4502
    %v5399 = vcvt.s32.f32 %v4503
    %v5400 = vcvt.s32.f32 %v4504
    %v5401 = vcvt.s32.f32 %v4505
    %v5402 = vcvt.s32.f32 %v4506
    %v5403 = vcvt.s32.f32 %v4507
    %v5404 = vcvt.s32.f32 %v4508
    %v5405 = vcvt.s32.f32 %v4509
    %v5406 = vcvt.s32.f32 %v4510
    %v5407 = vcvt.s32.f32 %v4511
    %v5408 = vcvt.s32.f32 %v4512
    %v5409 = vcvt.s32.f32 %v4513
    %v5410 = vcvt.s32.f32 %v4514
    %v5411 = vcvt.s32.f32 %v4515
    %v5412 = vcvt.s32.f32 %v4516
    %v5413 = vcvt.s32.f32 %v4517
    %v5414 = vcvt.s32.f32 %v4518
    %v5415 = vcvt.s32.f32 %v4519
    %v5416 = vcvt.s32.f32 %v4520
    %v5417 = vcvt.s32.f32 %v4521
    %v5418 = vcvt.s32.f32 %v4522
    %v5419 = vcvt.s32.f32 %v4523
    %v5420 = vcvt.s32.f32 %v4524
    %v5421 = vcvt.s32.f32 %v4525
    %v5422 = vcvt.s32.f32 %v4526
    %v5423 = vcvt.s32.f32 %v4527
    %v5424 = vcvt.s32.f32 %v4528
    %v5425 = vcvt.s32.f32 %v4529
    %v5426 = vcvt.s32.f32 %v4530
    %v5427 = vcvt.s32.f32 %v4531
    %v5428 = vcvt.s32.f32 %v4532
    %v5429 = vcvt.s32.f32 %v4533
    %v5430 = vcvt.s32.f32 %v4534
    %v5431 = vcvt.s32.f32 %v4535
    %v5432 = vcvt.s32.f32 %v4536
    %v5433 = vcvt.s32.f32 %v4537
    %v5434 = vcvt.s32.f32 %v4538
    %v5435 = vcvt.s32.f32 %v4539
    %v5436 = vcvt.s32.f32 %v4540
    %v5437 = vcvt.s32.f32 %v4541
    %v5438 = vcvt.s32.f32 %v4542
    %v5439 = vcvt.s32.f32 %v4543
    %v5440 = vcvt.s32.f32 %v4544
    %v5441 = vcvt.s32.f32 %v4545
    %v5442 = vcvt.s32.f32 %v4546
    %v5443 = vcvt.s32.f32 %v4547
    %v5444 = vcvt.s32.f32 %v4548
    %v5445 = vcvt.s32.f32 %v4549
    %v5446 = vcvt.s32.f32 %v4550
    %v5447 = vcvt.s32.f32 %v4551
    %v5448 = vcvt.s32.f32 %v4552
    %v5449 = vcvt.s32.f32 %v4553
    %v5450 = vcvt.s32.f32 %v4554
    %v5451 = vcvt.s32.f32 %v4555
    %v5452 = vcvt.s32.f32 %v4556
    %v5453 = vcvt.s32.f32 %v4557
    %v5454 = vcvt.s32.f32 %v4558
    %v5455 = vcvt.s32.f32 %v4559
    %v5456 = vcvt.s32.f32 %v4560
    %v5457 = vcvt.s32.f32 %v4561
    %v5458 = vcvt.s32.f32 %v4562
    %v5459 = vcvt.s32.f32 %v4563
    %v5460 = vcvt.s32.f32 %v4564
    %v5461 = vcvt.s32.f32 %v4565
    %v5462 = vcvt.s32.f32 %v4566
    %v5463 = vcvt.s32.f32 %v4567
    %v5464 = vcvt.s32.f32 %v4568
    %v5465 = vcvt.s32.f32 %v4569
    %v5466 = vcvt.s32.f32 %v4570
    %v5467 = vcvt.s32.f32 %v4571
    %v5468 = vcvt.s32.f32 %v4572
    %v5469 = vcvt.s32.f32 %v4573
    %v5470 = vcvt.s32.f32 %v4574
    %v5471 = vcvt.s32.f32 %v4575
    %v5472 = vcvt.s32.f32 %v4576
    %v5473 = vcvt.s32.f32 %v4577
    %v5474 = vcvt.s32.f32 %v4578
    %v5475 = vcvt.s32.f32 %v4579
    %v5476 = vcvt.s32.f32 %v4580
    %v5477 = vcvt.s32.f32 %v4581
    %v5478 = vcvt.s32.f32 %v4582
    %v5479 = vcvt.s32.f32 %v4583
    %v5480 = vcvt.s32.f32 %v4584
    %v5481 = vcvt.s32.f32 %v4585
    %v5482 = vcvt.s32.f32 %v4586
    %v5483 = vcvt.s32.f32 %v4587
    %v5484 = vcvt.s32.f32 %v4588
    %v5485 = vcvt.s32.f32 %v4589
    %v5486 = vcvt.s32.f32 %v4590
    %v5487 = vcvt.s32.f32 %v4591
    %v5488 = vcvt.s32.f32 %v4592
    %v5489 = vcvt.s32.f32 %v4593
    %v5490 = vcvt.s32.f32 %v4594
    %v5491 = vcvt.s32.f32 %v4595
    %v5492 = vcvt.s32.f32 %v4596
    %v5493 = vcvt.s32.f32 %v4597
    %v5494 = vcvt.s32.f32 %v4598
    %v5495 = vcvt.s32.f32 %v4599
    %v5496 = vcvt.s32.f32 %v4600
    %v5497 = vcvt.s32.f32 %v4601
    %v5498 = vcvt.s32.f32 %v4602
    %v5499 = vcvt.s32.f32 %v4603
    %v5500 = vcvt.s32.f32 %v4604
    %v5501 = vcvt.s32.f32 %v4605
    %v5502 = vcvt.s32.f32 %v4606
    %v5503 = vcvt.s32.f32 %v4607
    %v5504 = vcvt.s32.f32 %v4608
    %v5505 = vcvt.s32.f32 %v4609
    %v5506 = vcvt.s32.f32 %v4610
    %v5507 = vcvt.s32.f32 %v4611
    %v5508 = vcvt.s32.f32 %v4612
    %v5509 = vcvt.s32.f32 %v4613
    %v5510 = vcvt.s32.f32 %v4614
    %v5511 = vcvt.s32.f32 %v4615
    %v5512 = vcvt.s32.f32 %v4616
    %v5513 = vcvt.s32.f32 %v4617
    %v5514 = vcvt.s32.f32 %v4618
    %v5515 = vcvt.s32.f32 %v4619
    %v5516 = vcvt.s32.f32 %v4620
    %v5517 = vcvt.s32.f32 %v4621
    %v5518 = vcvt.s32.f32 %v4622
    %v5519 = vcvt.s32.f32 %v4623
    %v5520 = vcvt.s32.f32 %v4624
    %v5521 = vcvt.s32.f32 %v4625
    %v5522 = vcvt.s32.f32 %v4626
    %v5523 = vcvt.s32.f32 %v4627
    %v5524 = vcvt.s32.f32 %v4628
    %v5525 = vcvt.s32.f32 %v4629
    %v5526 = vcvt.s32.f32 %v4630
    %v5527 = vcvt.s32.f32 %v4631
    %v5528 = vcvt.s32.f32 %v4632
    %v5529 = vcvt.s32.f32 %v4633
    %v5530 = vcvt.s32.f32 %v4634
    %v5531 = vcvt.s32.f32 %v4635
    %v5532 = vcvt.s32.f32 %v4636
    %v5533 = vcvt.s32.f32 %v4637
    %v5534 = vcvt.s32.f32 %v4638
    %v5535 = vcvt.s32.f32 %v4639
    %v5536 = vcvt.s32.f32 %v4640
    %v5537 = vcvt.s32.f32 %v4641
    %v5538 = vcvt.s32.f32 %v4642
    %v5539 = vcvt.s32.f32 %v4643
    %v5540 = vcvt.s32.f32 %v4644
    %v5541 = vcvt.s32.f32 %v4645
    %v5542 = vcvt.s32.f32 %v4646
    %v5543 = vcvt.s32.f32 %v4647
    %v5544 = vcvt.s32.f32 %v4648
    %v5545 = vcvt.s32.f32 %v4649
    %v5546 = vcvt.s32.f32 %v4650
    %v5547 = vcvt.s32.f32 %v4651
    %v5548 = vcvt.s32.f32 %v4652
    %v5549 = vcvt.s32.f32 %v4653
    %v5550 = vcvt.s32.f32 %v4654
    %v5551 = vcvt.s32.f32 %v4655
    %v5552 = vcvt.s32.f32 %v4656
    %v5553 = vcvt.s32.f32 %v4657
    %v5554 = vcvt.s32.f32 %v4658
    %v5555 = vcvt.s32.f32 %v4659
    %v5556 = vcvt.s32.f32 %v4660
    %v5557 = vcvt.s32.f32 %v4661
    %v5558 = vcvt.s32.f32 %v4662
    %v5559 = vcvt.s32.f32 %v4663
    %v5560 = vcvt.s32.f32 %v4664
    %v5561 = vcvt.s32.f32 %v4665
    %v5562 = vcvt.s32.f32 %v4666
    %v5563 = vcvt.s32.f32 %v4667
    %v5564 = vcvt.s32.f32 %v4668
    %v5565 = vcvt.s32.f32 %v4669
    %v5566 = vcvt.s32.f32 %v4670
    %v5567 = vcvt.s32.f32 %v4671
    %v5568 = vcvt.s32.f32 %v4672
    %v5569 = vcvt.s32.f32 %v4673
    %v5570 = vcvt.s32.f32 %v4674
    %v5571 = vcvt.s32.f32 %v4675
    %v5572 = vcvt.s32.f32 %v4676
    %v5573 = vcvt.s32.f32 %v4677
    %v5574 = vcvt.s32.f32 %v4678
    %v5575 = vcvt.s32.f32 %v4679
    %v5576 = vcvt.s32.f32 %v4680
    %v5577 = vcvt.s32.f32 %v4681
    %v5578 = vcvt.s32.f32 %v4682
    %v5579 = vcvt.s32.f32 %v4683
    %v5580 = vcvt.s32.f32 %v4684
    %v5581 = vcvt.s32.f32 %v4685
    %v5582 = vcvt.s32.f32 %v4686
    %v5583 = vcvt.s32.f32 %v4687
    %v5584 = vcvt.s32.f32 %v4688
    %v5585 = vcvt.s32.f32 %v4689
    %v5586 = vcvt.s32.f32 %v4690
    %v5587 = vcvt.s32.f32 %v4691
    %v5588 = vcvt.s32.f32 %v4692
    %v5589 = vcvt.s32.f32 %v4693
    %v5590 = vcvt.s32.f32 %v4694
    %v5591 = vcvt.s32.f32 %v4695
    %v5592 = vcvt.s32.f32 %v4696
    %v5593 = vcvt.s32.f32 %v4697
    %v5594 = vcvt.s32.f32 %v4698
    %v5595 = vcvt.s32.f32 %v4699
    %v5596 = vcvt.s32.f32 %v4700
    %v5597 = vcvt.s32.f32 %v4701
    %v5598 = vcvt.s32.f32 %v4702
    %v5599 = vcvt.s32.f32 %v4703
    %v5600 = vcvt.s32.f32 %v4704
    %v5601 = vcvt.s32.f32 %v4705
    %v5602 = vcvt.s32.f32 %v4706
    %v5603 = vcvt.s32.f32 %v4707
    %v5604 = vcvt.s32.f32 %v4708
    %v5605 = vcvt.s32.f32 %v4709
    %v5606 = vcvt.s32.f32 %v4710
    %v5607 = vcvt.s32.f32 %v4711
    %v5608 = vcvt.s32.f32 %v4712
    %v5609 = vcvt.s32.f32 %v4713
    %v5610 = vcvt.s32.f32 %v4714
    %v5611 = vcvt.s32.f32 %v4715
    %v5612 = vcvt.s32.f32 %v4716
    %v5613 = vcvt.s32.f32 %v4717
    %v5614 = vcvt.s32.f32 %v4718
    %v5615 = vcvt.s32.f32 %v4719
    %v5616 = vcvt.s32.f32 %v4720
    %v5617 = vcvt.s32.f32 %v4721
    %v5618 = vcvt.s32.f32 %v4722
    %v5619 = vcvt.s32.f32 %v4723
    %v5620 = vcvt.s32.f32 %v4724
    %v5621 = vcvt.s32.f32 %v4725
    %v5622 = vcvt.s32.f32 %v4726
    %v5623 = vcvt.s32.f32 %v4727
    %v5624 = vcvt.s32.f32 %v4728
    %v5625 = vcvt.s32.f32 %v4729
    %v5626 = vcvt.s32.f32 %v4730
    %v5627 = vcvt.s32.f32 %v4731
    %v5628 = vcvt.s32.f32 %v4732
    %v5629 = vcvt.s32.f32 %v4733
    %v5630 = vcvt.s32.f32 %v4734
    %v5631 = vcvt.s32.f32 %v4735
    %v5632 = vcvt.s32.f32 %v4736
    %v5633 = vcvt.s32.f32 %v4737
    %v5634 = vcvt.s32.f32 %v4738
    %v5635 = vcvt.s32.f32 %v4739
    %v5636 = vcvt.s32.f32 %v4740
    %v5637 = vcvt.s32.f32 %v4741
    %v5638 = vcvt.s32.f32 %v4742
    %v5639 = vcvt.s32.f32 %v4743
    %v5640 = vcvt.s32.f32 %v4744
    %v5641 = vcvt.s32.f32 %v4745
    %v5642 = vcvt.s32.f32 %v4746
    %v5643 = vcvt.s32.f32 %v4747
    %v5644 = vcvt.s32.f32 %v4748
    %v5645 = vcvt.s32.f32 %v4749
    %v5646 = vcvt.s32.f32 %v4750
    %v5647 = vcvt.s32.f32 %v4751
    %v5648 = vcvt.s32.f32 %v4752
    %v5649 = vcvt.s32.f32 %v4753
    %v5650 = vcvt.s32.f32 %v4754
    %v5651 = vcvt.s32.f32 %v4755
    %v5652 = vcvt.s32.f32 %v4756
    %v5653 = vcvt.s32.f32 %v4757
    %v5654 = vcvt.s32.f32 %v4758
    %v5655 = vcvt.s32.f32 %v4759
    %v5656 = vcvt.s32.f32 %v4760
    %v5657 = vcvt.s32.f32 %v4761
    %v5658 = vcvt.s32.f32 %v4762
    %v5659 = vcvt.s32.f32 %v4763
    %v5660 = vcvt.s32.f32 %v4764
    %v5661 = vcvt.s32.f32 %v4765
    %v5662 = vcvt.s32.f32 %v4766
    %v5663 = vcvt.s32.f32 %v4767
    %v5664 = vcvt.s32.f32 %v4768
    %v5665 = vcvt.s32.f32 %v4769
    %v5666 = vcvt.s32.f32 %v4770
    %v5667 = vcvt.s32.f32 %v4771
    %v5668 = vcvt.s32.f32 %v4772
    %v5669 = vcvt.s32.f32 %v4773
    %v5670 = vcvt.s32.f32 %v4774
    %v5671 = vcvt.s32.f32 %v4775
    %v5672 = vcvt.s32.f32 %v4776
    %v5673 = vcvt.s32.f32 %v4777
    %v5674 = vcvt.s32.f32 %v4778
    %v5675 = vcvt.s32.f32 %v4779
    %v5676 = vcvt.s32.f32 %v4780
    %v5677 = vcvt.s32.f32 %v4781
    %v5678 = vcvt.s32.f32 %v4782
    %v5679 = vcvt.s32.f32 %v4783
    %v5680 = vcvt.s32.f32 %v4784
    %v5681 = vcvt.s32.f32 %v4785
    %v5682 = vcvt.s32.f32 %v4786
    %v5683 = vcvt.s32.f32 %v4787
    %v5684 = vcvt.s32.f32 %v4788
    %v5685 = vcvt.s32.f32 %v4789
    %v5686 = vcvt.s32.f32 %v4790
    %v5687 = vcvt.s32.f32 %v4791
    %v5688 = vcvt.s32.f32 %v4792
    %v5689 = vcvt.s32.f32 %v4793
    %v5690 = vcvt.s32.f32 %v4794
    %v5691 = vcvt.s32.f32 %v4795
    %v5692 = vcvt.s32.f32 %v4796
    %v5693 = vcvt.s32.f32 %v4797
    %v5694 = vcvt.s32.f32 %v4798
    %v5695 = vcvt.s32.f32 %v4799
    %v5696 = vcvt.s32.f32 %v4800
    %v5697 = vcvt.s32.f32 %v4801
    %v5698 = vcvt.s32.f32 %v4802
    %v5699 = vcvt.s32.f32 %v4803
    %v5700 = vcvt.s32.f32 %v4804
    %v5701 = vcvt.s32.f32 %v4805
    %v5702 = vcvt.s32.f32 %v4806
    %v5703 = vcvt.s32.f32 %v4807
    %v5704 = vcvt.s32.f32 %v4808
    %v5705 = vcvt.s32.f32 %v4809
    %v5706 = vcvt.s32.f32 %v4810
    %v5707 = vcvt.s32.f32 %v4811
    %v5708 = vcvt.s32.f32 %v4812
    %v5709 = vcvt.s32.f32 %v4813
    %v5710 = vcvt.s32.f32 %v4814
    %v5711 = vcvt.s32.f32 %v4815
    %v5712 = vcvt.s32.f32 %v4816
    %v5713 = vcvt.s32.f32 %v4817
    %v5714 = vcvt.s32.f32 %v4818
    %v5715 = vcvt.s32.f32 %v4819
    %v5716 = vcvt.s32.f32 %v4820
    %v5717 = vcvt.s32.f32 %v4821
    %v5718 = vcvt.s32.f32 %v4822
    %v5719 = vcvt.s32.f32 %v4823
    %v5720 = vcvt.s32.f32 %v4824
    %v5721 = vcvt.s32.f32 %v4825
    %v5722 = vcvt.s32.f32 %v4826
    %v5723 = vcvt.s32.f32 %v4827
    %v5724 = vcvt.s32.f32 %v4828
    %v5725 = vcvt.s32.f32 %v4829
    %v5726 = vcvt.s32.f32 %v4830
    %v5727 = vcvt.s32.f32 %v4831
    %v5728 = vcvt.s32.f32 %v4832
    %v5729 = vcvt.s32.f32 %v4833
    %v5730 = vcvt.s32.f32 %v4834
    %v5731 = vcvt.s32.f32 %v4835
    %v5732 = vcvt.s32.f32 %v4836
    %v5733 = vcvt.s32.f32 %v4837
    %v5734 = vcvt.s32.f32 %v4838
    %v5735 = vcvt.s32.f32 %v4839
    %v5736 = vcvt.s32.f32 %v4840
    %v5737 = vcvt.s32.f32 %v4841
    %v5738 = vcvt.s32.f32 %v4842
    %v5739 = vcvt.s32.f32 %v4843
    %v5740 = vcvt.s32.f32 %v4844
    %v5741 = vcvt.s32.f32 %v4845
    %v5742 = vcvt.s32.f32 %v4846
    %v5743 = vcvt.s32.f32 %v4847
    %v5744 = vcvt.s32.f32 %v4848
    %v5745 = vcvt.s32.f32 %v4849
    %v5746 = vcvt.s32.f32 %v4850
    %v5747 = vcvt.s32.f32 %v4851
    %v5748 = vcvt.s32.f32 %v4852
    %v5749 = vcvt.s32.f32 %v4853
    %v5750 = vcvt.s32.f32 %v4854
    %v5751 = vcvt.s32.f32 %v4855
    %v5752 = vcvt.s32.f32 %v4856
    %v5753 = vcvt.s32.f32 %v4857
    %v5754 = vcvt.s32.f32 %v4858
    %v5755 = vcvt.s32.f32 %v4859
    %v5756 = vcvt.s32.f32 %v4860
    %v5757 = vcvt.s32.f32 %v4861
    %v5758 = vcvt.s32.f32 %v4862
    %v5759 = vcvt.s32.f32 %v4863
    %v5760 = vcvt.s32.f32 %v4864
    %v5761 = vcvt.s32.f32 %v4865
    %v5762 = vcvt.s32.f32 %v4866
    %v5763 = vcvt.s32.f32 %v4867
    %v5764 = vcvt.s32.f32 %v4868
    %v5765 = vcvt.s32.f32 %v4869
    %v5766 = vcvt.s32.f32 %v4870
    %v5767 = vcvt.s32.f32 %v4871
    %v5768 = vcvt.s32.f32 %v4872
    %v5769 = vcvt.s32.f32 %v4873
    %v5770 = vcvt.s32.f32 %v4874
    %v5771 = vcvt.s32.f32 %v4875
    %v5772 = vcvt.s32.f32 %v4876
    %v5773 = vcvt.s32.f32 %v4877
    %v5774 = vcvt.s32.f32 %v4878
    %v5775 = vcvt.s32.f32 %v4879
    %v5776 = vcvt.s32.f32 %v4880
    %v5777 = vcvt.s32.f32 %v4881
    %v5778 = vcvt.s32.f32 %v4882
    %v5779 = vcvt.s32.f32 %v4883
    %v5780 = vcvt.s32.f32 %v4884
    %v5781 = vcvt.s32.f32 %v4885
    %v5782 = vcvt.s32.f32 %v4886
    %v5783 = vcvt.s32.f32 %v4887
    %v5784 = vcvt.s32.f32 %v4888
    %v5785 = vcvt.s32.f32 %v4889
    %v5786 = vcvt.s32.f32 %v4890
    %v5787 = vcvt.s32.f32 %v4891
    %v5788 = vcvt.s32.f32 %v4892
    %v5789 = vcvt.s32.f32 %v4893
    %v5790 = vcvt.s32.f32 %v4894
    %v5791 = vcvt.s32.f32 %v4895
    %v5792 = vcvt.s32.f32 %v4896
    %v5793 = vcvt.s32.f32 %v4897
    %v5794 = vcvt.s32.f32 %v4898
    %v5795 = vcvt.s32.f32 %v4899
    %v5796 = vcvt.s32.f32 %v4900
    %v5797 = vcvt.s32.f32 %v4901
    %v5798 = vcvt.s32.f32 %v4902
    %v5799 = vcvt.s32.f32 %v4903
    %v5800 = vcvt.s32.f32 %v4904
    %v5801 = vcvt.s32.f32 %v4905
    %v5802 = vcvt.s32.f32 %v4906
    %v5803 = vcvt.s32.f32 %v4907
    %v5804 = vcvt.s32.f32 %v4908
    %v5805 = vcvt.s32.f32 %v4909
    %v5806 = vcvt.s32.f32 %v4910
    %v5807 = vcvt.s32.f32 %v4911
    %v5808 = vcvt.s32.f32 %v4912
    %v5809 = vcvt.s32.f32 %v4913
    %v5810 = vcvt.s32.f32 %v4914
    %v5811 = vcvt.s32.f32 %v4915
    %v5812 = vcvt.s32.f32 %v4916
    %v5813 = vcvt.s32.f32 %v4917
    %v5814 = vcvt.s32.f32 %v4918
    %v5815 = vcvt.s32.f32 %v4919
    %v5816 = vcvt.s32.f32 %v4920
    %v5817 = vcvt.s32.f32 %v4921
    %v5818 = vcvt.s32.f32 %v4922
    %v5819 = vcvt.s32.f32 %v4923
    %v5820 = vcvt.s32.f32 %v4924
    %v5821 = vcvt.s32.f32 %v4925
    %v5822 = vcvt.s32.f32 %v4926
    %v5823 = vcvt.s32.f32 %v4927
    %v5824 = vcvt.s32.f32 %v4928
    %v5825 = vcvt.s32.f32 %v4929
    %v5826 = vcvt.s32.f32 %v4930
    %v5827 = vcvt.s32.f32 %v4931
    %v5828 = vcvt.s32.f32 %v4932
    %v5829 = vcvt.s32.f32 %v4933
    %v5830 = vcvt.s32.f32 %v4934
    %v5831 = vcvt.s32.f32 %v4935
    %v5832 = vcvt.s32.f32 %v4936
    %v5833 = vcvt.s32.f32 %v4937
    %v5834 = vcvt.s32.f32 %v4938
    %v5835 = vcvt.s32.f32 %v4939
    %v5836 = vcvt.s32.f32 %v4940
    %v5837 = vcvt.s32.f32 %v4941
    %v5838 = vcvt.s32.f32 %v4942
    %v5839 = vcvt.s32.f32 %v4943
    %v5840 = vcvt.s32.f32 %v4944
    %v5841 = vcvt.s32.f32 %v4945
    %v5842 = vcvt.s32.f32 %v4946
    %v5843 = vcvt.s32.f32 %v4947
    %v5844 = vcvt.s32.f32 %v4948
    %v5845 = vcvt.s32.f32 %v4949
    %v5846 = vcvt.s32.f32 %v4950
    %v5847 = vcvt.s32.f32 %v4951
    %v5848 = vcvt.s32.f32 %v4952
    %v5849 = vcvt.s32.f32 %v4953
    %v5850 = vcvt.s32.f32 %v4954
    %v5851 = vcvt.s32.f32 %v4955
    %v5852 = vcvt.s32.f32 %v4956
    %v5853 = vcvt.s32.f32 %v4957
    %v5854 = vcvt.s32.f32 %v4958
    %v5855 = vcvt.s32.f32 %v4959
    %v5856 = vcvt.s32.f32 %v4960
    %v5857 = vcvt.s32.f32 %v4961
    %v5858 = vcvt.s32.f32 %v4962
    %v5859 = vcvt.s32.f32 %v4963
    %v5860 = vcvt.s32.f32 %v4964
    %v5861 = vcvt.s32.f32 %v4965
    %v5862 = vcvt.s32.f32 %v4966
    %v5863 = vcvt.s32.f32 %v4967
    %v5864 = vcvt.s32.f32 %v4968
    %v5865 = vcvt.s32.f32 %v4969
    %v5866 = vcvt.s32.f32 %v4970
    %v5867 = vcvt.s32.f32 %v4971
    %v5868 = vcvt.s32.f32 %v4972
    %v5869 = vcvt.s32.f32 %v4973
    %v5870 = vcvt.s32.f32 %v4974
    %v5871 = vcvt.s32.f32 %v4975
    %v5872 = vcvt.s32.f32 %v4976
    %v5873 = vcvt.s32.f32 %v4977
    %v5874 = vcvt.s32.f32 %v4978
    %v5875 = vcvt.s32.f32 %v4979
    %v5876 = vcvt.s32.f32 %v4980
    %v5877 = vcvt.s32.f32 %v4981
    %v5878 = vcvt.s32.f32 %v4982
    %v5879 = vcvt.s32.f32 %v4983
    %v5880 = vcvt.s32.f32 %v4984
    %v5881 = vcvt.s32.f32 %v4985
    %v5882 = vcvt.s32.f32 %v4986
    %v5883 = vcvt.s32.f32 %v4987
    %v5884 = vcvt.s32.f32 %v4988
    %v5885 = vcvt.s32.f32 %v4989
    %v5886 = vcvt.s32.f32 %v4990
    %v5887 = vcvt.s32.f32 %v4991
    %v5888 = vcvt.s32.f32 %v4992
    %v5889 = vcvt.s32.f32 %v4993
    %v5890 = vcvt.s32.f32 %v4994
    %v5891 = vcvt.s32.f32 %v4995
    %v5892 = vcvt.s32.f32 %v4996
    %v5893 = vcvt.s32.f32 %v4997
    %v5894 = vcvt.s32.f32 %v4998
    %v5895 = vcvt.s32.f32 %v4999
    %v5896 = vcvt.s32.f32 %v5000
    %v5897 = vcvt.s32.f32 %v5001
    %v5898 = vcvt.s32.f32 %v5002
    %v5899 = vcvt.s32.f32 %v5003
    %v5900 = vcvt.s32.f32 %v5004
    %v5901 = vcvt.s32.f32 %v5005
    %v5902 = vcvt.s32.f32 %v5006
    %v5903 = vcvt.s32.f32 %v5007
    %v5904 = vcvt.s32.f32 %v5008
    %v5905 = vcvt.s32.f32 %v5009
    %v5906 = vcvt.s32.f32 %v5010
    %v5907 = vcvt.s32.f32 %v5011
    %v5908 = vcvt.s32.f32 %v5012
    %v5909 = vcvt.s32.f32 %v5013
    %v5910 = vcvt.s32.f32 %v5014
    %v5911 = vcvt.s32.f32 %v5015
    %v5912 = vcvt.s32.f32 %v5016
    %v5913 = vcvt.s32.f32 %v5017
    %v5914 = vcvt.s32.f32 %v5018
    %v5915 = vcvt.s32.f32 %v5019
    %v5916 = vcvt.s32.f32 %v5020
    %v5917 = vcvt.s32.f32 %v5021
    %v5918 = vcvt.s32.f32 %v5022
    %v5919 = vcvt.s32.f32 %v5023
    %v5920 = vcvt.s32.f32 %v5024
    %v5921 = vcvt.s32.f32 %v5025
    %v5922 = vcvt.s32.f32 %v5026
    %v5923 = vcvt.s32.f32 %v5027
    %v5924 = vcvt.s32.f32 %v5028
    %v5925 = vcvt.s32.f32 %v5029
    %v5926 = vcvt.s32.f32 %v5030
    %v5927 = vcvt.s32.f32 %v5031
    %v5928 = vcvt.s32.f32 %v5032
    %v5929 = vcvt.s32.f32 %v5033
    %v5930 = vcvt.s32.f32 %v5034
    %v5931 = vcvt.s32.f32 %v5035
    %v5932 = vcvt.s32.f32 %v5036
    %v5933 = vcvt.s32.f32 %v5037
    %v5934 = vcvt.s32.f32 %v5038
    %v5935 = vcvt.s32.f32 %v5039
    %v5936 = vcvt.s32.f32 %v5040
    %v5937 = vcvt.s32.f32 %v5041
    %v5938 = vcvt.s32.f32 %v5042
    %v5939 = vcvt.s32.f32 %v5043
    %v5940 = vcvt.s32.f32 %v5044
    %v5941 = vcvt.s32.f32 %v5045
    %v5942 = vcvt.s32.f32 %v5046
    %v5943 = vcvt.s32.f32 %v5047
    %v5944 = vcvt.s32.f32 %v5048
    %v5945 = vcvt.s32.f32 %v5049
    %v5946 = vcvt.s32.f32 %v5050
    %v5947 = vcvt.s32.f32 %v5051
    %v5948 = vcvt.s32.f32 %v5052
    %v5949 = vcvt.s32.f32 %v5053
    %v5950 = vcvt.s32.f32 %v5054
    %v5951 = vcvt.s32.f32 %v5055
    %v5952 = vcvt.s32.f32 %v5056
    %v5953 = vcvt.s32.f32 %v5057
    %v5954 = vcvt.s32.f32 %v5058
    %v5955 = vcvt.s32.f32 %v5059
    %v5956 = vcvt.s32.f32 %v5060
    %v5957 = vcvt.s32.f32 %v5061
    %v5958 = vcvt.s32.f32 %v5062
    %v5959 = vcvt.s32.f32 %v5063
    %v5960 = vcvt.s32.f32 %v5064
    %v5961 = vcvt.s32.f32 %v5065
    %v5962 = vcvt.s32.f32 %v5066
    %v5963 = vcvt.s32.f32 %v5067
    %v5964 = vcvt.s32.f32 %v5068
    %v5965 = vcvt.s32.f32 %v5069
    %v5966 = vcvt.s32.f32 %v5070
    %v5967 = vcvt.s32.f32 %v5071
    %v5968 = vcvt.s32.f32 %v5072
    %v5969 = vcvt.s32.f32 %v5073
    %v5970 = vcvt.s32.f32 %v5074
    %v5971 = vcvt.s32.f32 %v5075
    %v5972 = vcvt.s32.f32 %v5076
    %v5973 = vcvt.s32.f32 %v5077
    %v5974 = vcvt.s32.f32 %v5078
    %v5975 = vcvt.s32.f32 %v5079
    %v5976 = vcvt.s32.f32 %v5080
    %v5977 = vcvt.s32.f32 %v5081
    %v5978 = vcvt.s32.f32 %v5082
    %v5979 = vcvt.s32.f32 %v5083
    %v5980 = vcvt.s32.f32 %v5084
    %v5981 = vcvt.s32.f32 %v5085
    %v5982 = vcvt.s32.f32 %v5086
    %v5983 = vcvt.s32.f32 %v5087
    %v5984 = vcvt.s32.f32 %v5088
    %v5985 = vcvt.s32.f32 %v5089
    %v5986 = vcvt.s32.f32 %v5090
    %v5987 = vcvt.s32.f32 %v5091
    %v5988 = vcvt.s32.f32 %v5092
    %v5989 = vcvt.s32.f32 %v5093
    %v5990 = vcvt.s32.f32 %v5094
    %v5991 = vcvt.s32.f32 %v5095
    %v5992 = vcvt.s32.f32 %v5096
    %v5993 = vcvt.s32.f32 %v5097
    %v5994 = vcvt.s32.f32 %v5098
    %v5995 = vcvt.s32.f32 %v5099
    %v5996 = vcvt.s32.f32 %v5100
    %v5997 = vcvt.s32.f32 %v5101
    %v5998 = vcvt.s32.f32 %v5102
    %v5999 = vcvt.s32.f32 %v5103
    %v6000 = vcvt.s32.f32 %v5104
    %v6001 = vcvt.s32.f32 %v5105
    %v6002 = vcvt.s32.f32 %v5106
    %v6003 = vcvt.s32.f32 %v5107
    %v6004 = vcvt.s32.f32 %v5108
    %v6005 = vcvt.s32.f32 %v5109
    %v6006 = vcvt.s32.f32 %v5110
    %v6007 = vcvt.s32.f32 %v5111
    %v6008 = vcvt.s32.f32 %v5112
    %v6009 = vcvt.s32.f32 %v5113
    %v6010 = vcvt.s32.f32 %v5114
    %v6011 = vcvt.s32.f32 %v5115
    %v6012 = vcvt.s32.f32 %v5116
    %v6013 = vcvt.s32.f32 %v5117
    %v6014 = vcvt.s32.f32 %v5118
    %v6015 = vcvt.s32.f32 %v5119
    %v6016 = vcvt.s32.f32 %v5120
    %v6017 = vcvt.s32.f32 %v5121
    %v6018 = vcvt.s32.f32 %v5122
    %v6019 = vcvt.s32.f32 %v5123
    %v6020 = vcvt.s32.f32 %v5124
    %v6021 = vcvt.s32.f32 %v5125
    %v6022 = vcvt.s32.f32 %v5126
    %v6023 = vcvt.s32.f32 %v5127
    %v6024 = vcvt.s32.f32 %v5128
    %v6025 = vcvt.s32.f32 %v5129
    %v6026 = vcvt.s32.f32 %v5130
    %v6027 = vcvt.s32.f32 %v5131
    %v6028 = vcvt.s32.f32 %v5132
    %v6029 = vcvt.s32.f32 %v5133
    %v6030 = vcvt.s32.f32 %v5134
    %v6031 = vcvt.s32.f32 %v5135
    %v6032 = vcvt.s32.f32 %v5136
    %v6033 = vcvt.s32.f32 %v5137
    %v6034 = vcvt.s32.f32 %v5138
    %v6035 = vcvt.s32.f32 %v5139
    %v6036 = vcvt.s32.f32 %v5140
    %v6037 = vcvt.s32.f32 %v5141
    %v6038 = vcvt.s32.f32 %v5142
    %v6039 = vcvt.s32.f32 %v5143
    %v6040 = vcvt.s32.f32 %v5144
    %v6041 = vcvt.s32.f32 %v5145
    %v6042 = vcvt.s32.f32 %v5146
    %v6043 = vcvt.s32.f32 %v5147
    %v6044 = vcvt.s32.f32 %v5148
    %v6045 = vcvt.s32.f32 %v5149
    %v6046 = vcvt.s32.f32 %v5150
    %v6047 = vcvt.s32.f32 %v5151
    %v6048 = vcvt.s32.f32 %v5152
    %v6049 = vcvt.s32.f32 %v5153
    %v6050 = vcvt.s32.f32 %v5154
    %v6051 = vcvt.s32.f32 %v5155
    %v6052 = vcvt.s32.f32 %v5156
    %v6053 = vcvt.s32.f32 %v5157
    %v6054 = vcvt.s32.f32 %v5158
    %v6055 = vcvt.s32.f32 %v5159
    %v6056 = vcvt.s32.f32 %v5160
    %v6057 = vcvt.s32.f32 %v5161
    %v6058 = vcvt.s32.f32 %v5162
    %v6059 = vcvt.s32.f32 %v5163
    %v6060 = vcvt.s32.f32 %v5164
    %v6061 = vcvt.s32.f32 %v5165
    %v6062 = vcvt.s32.f32 %v5166
    %v6063 = vcvt.s32.f32 %v5167
    %v6064 = vpack.c.bf16 %v5175, %v5168
    %v6065 = vpack.c.bf16 %v5176, %v5169
    %v6066 = vpack.c.bf16 %v5177, %v5170
    %v6067 = vpack.c.bf16 %v5178, %v5171
    %v6068 = vpack.c.bf16 %v5179, %v5172
    %v6069 = vpack.c.bf16 %v5180, %v5173
    %v6070 = vpack.c.bf16 %v5181, %v5174
    %v6071 = vpack.c.bf16 %v5189, %v5182
    %v6072 = vpack.c.bf16 %v5190, %v5183
    %v6073 = vpack.c.bf16 %v5191, %v5184
    %v6074 = vpack.c.bf16 %v5192, %v5185
    %v6075 = vpack.c.bf16 %v5193, %v5186
    %v6076 = vpack.c.bf16 %v5194, %v5187
    %v6077 = vpack.c.bf16 %v5195, %v5188
    %v6078 = vpack.c.bf16 %v5203, %v5196
    %v6079 = vpack.c.bf16 %v5204, %v5197
    %v6080 = vpack.c.bf16 %v5205, %v5198
    %v6081 = vpack.c.bf16 %v5206, %v5199
    %v6082 = vpack.c.bf16 %v5207, %v5200
    %v6083 = vpack.c.bf16 %v5208, %v5201
    %v6084 = vpack.c.bf16 %v5209, %v5202
    %v6085 = vpack.c.bf16 %v5217, %v5210
    %v6086 = vpack.c.bf16 %v5218, %v5211
    %v6087 = vpack.c.bf16 %v5219, %v5212
    %v6088 = vpack.c.bf16 %v5220, %v5213
    %v6089 = vpack.c.bf16 %v5221, %v5214
    %v6090 = vpack.c.bf16 %v5222, %v5215
    %v6091 = vpack.c.bf16 %v5223, %v5216
    %v6092 = vpack.c.bf16 %v5231, %v5224
    %v6093 = vpack.c.bf16 %v5232, %v5225
    %v6094 = vpack.c.bf16 %v5233, %v5226
    %v6095 = vpack.c.bf16 %v5234, %v5227
    %v6096 = vpack.c.bf16 %v5235, %v5228
    %v6097 = vpack.c.bf16 %v5236, %v5229
    %v6098 = vpack.c.bf16 %v5237, %v5230
    %v6099 = vpack.c.bf16 %v5245, %v5238
    %v6100 = vpack.c.bf16 %v5246, %v5239
    %v6101 = vpack.c.bf16 %v5247, %v5240
    %v6102 = vpack.c.bf16 %v5248, %v5241
    %v6103 = vpack.c.bf16 %v5249, %v5242
    %v6104 = vpack.c.bf16 %v5250, %v5243
    %v6105 = vpack.c.bf16 %v5251, %v5244
    %v6106 = vpack.c.bf16 %v5259, %v5252
    %v6107 = vpack.c.bf16 %v5260, %v5253
    %v6108 = vpack.c.bf16 %v5261, %v5254
    %v6109 = vpack.c.bf16 %v5262, %v5255
    %v6110 = vpack.c.bf16 %v5263, %v5256
    %v6111 = vpack.c.bf16 %v5264, %v5257
    %v6112 = vpack.c.bf16 %v5265, %v5258
    %v6113 = vpack.c.bf16 %v5273, %v5266
    %v6114 = vpack.c.bf16 %v5274, %v5267
    %v6115 = vpack.c.bf16 %v5275, %v5268
    %v6116 = vpack.c.bf16 %v5276, %v5269
    %v6117 = vpack.c.bf16 %v5277, %v5270
    %v6118 = vpack.c.bf16 %v5278, %v5271
    %v6119 = vpack.c.bf16 %v5279, %v5272
    %v6120 = vpack.c.bf16 %v5287, %v5280
    %v6121 = vpack.c.bf16 %v5288, %v5281
    %v6122 = vpack.c.bf16 %v5289, %v5282
    %v6123 = vpack.c.bf16 %v5290, %v5283
    %v6124 = vpack.c.bf16 %v5291, %v5284
    %v6125 = vpack.c.bf16 %v5292, %v5285
    %v6126 = vpack.c.bf16 %v5293, %v5286
    %v6127 = vpack.c.bf16 %v5301, %v5294
    %v6128 = vpack.c.bf16 %v5302, %v5295
    %v6129 = vpack.c.bf16 %v5303, %v5296
    %v6130 = vpack.c.bf16 %v5304, %v5297
    %v6131 = vpack.c.bf16 %v5305, %v5298
    %v6132 = vpack.c.bf16 %v5306, %v5299
    %v6133 = vpack.c.bf16 %v5307, %v5300
    %v6134 = vpack.c.bf16 %v5315, %v5308
    %v6135 = vpack.c.bf16 %v5316, %v5309
    %v6136 = vpack.c.bf16 %v5317, %v5310
    %v6137 = vpack.c.bf16 %v5318, %v5311
    %v6138 = vpack.c.bf16 %v5319, %v5312
    %v6139 = vpack.c.bf16 %v5320, %v5313
    %v6140 = vpack.c.bf16 %v5321, %v5314
    %v6141 = vpack.c.bf16 %v5329, %v5322
    %v6142 = vpack.c.bf16 %v5330, %v5323
    %v6143 = vpack.c.bf16 %v5331, %v5324
    %v6144 = vpack.c.bf16 %v5332, %v5325
    %v6145 = vpack.c.bf16 %v5333, %v5326
    %v6146 = vpack.c.bf16 %v5334, %v5327
    %v6147 = vpack.c.bf16 %v5335, %v5328
    %v6148 = vpack.c.bf16 %v5343, %v5336
    %v6149 = vpack.c.bf16 %v5344, %v5337
    %v6150 = vpack.c.bf16 %v5345, %v5338
    %v6151 = vpack.c.bf16 %v5346, %v5339
    %v6152 = vpack.c.bf16 %v5347, %v5340
    %v6153 = vpack.c.bf16 %v5348, %v5341
    %v6154 = vpack.c.bf16 %v5349, %v5342
    %v6155 = vpack.c.bf16 %v5357, %v5350
    %v6156 = vpack.c.bf16 %v5358, %v5351
    %v6157 = vpack.c.bf16 %v5359, %v5352
    %v6158 = vpack.c.bf16 %v5360, %v5353
    %v6159 = vpack.c.bf16 %v5361, %v5354
    %v6160 = vpack.c.bf16 %v5362, %v5355
    %v6161 = vpack.c.bf16 %v5363, %v5356
    %v6162 = vpack.c.bf16 %v5371, %v5364
    %v6163 = vpack.c.bf16 %v5372, %v5365
    %v6164 = vpack.c.bf16 %v5373, %v5366
    %v6165 = vpack.c.bf16 %v5374, %v5367
    %v6166 = vpack.c.bf16 %v5375, %v5368
    %v6167 = vpack.c.bf16 %v5376, %v5369
    %v6168 = vpack.c.bf16 %v5377, %v5370
    %v6169 = vpack.c.bf16 %v5385, %v5378
    %v6170 = vpack.c.bf16 %v5386, %v5379
    %v6171 = vpack.c.bf16 %v5387, %v5380
    %v6172 = vpack.c.bf16 %v5388, %v5381
    %v6173 = vpack.c.bf16 %v5389, %v5382
    %v6174 = vpack.c.bf16 %v5390, %v5383
    %v6175 = vpack.c.bf16 %v5391, %v5384
    %v6176 = vpack.c.bf16 %v5399, %v5392
    %v6177 = vpack.c.bf16 %v5400, %v5393
    %v6178 = vpack.c.bf16 %v5401, %v5394
    %v6179 = vpack.c.bf16 %v5402, %v5395
    %v6180 = vpack.c.bf16 %v5403, %v5396
    %v6181 = vpack.c.bf16 %v5404, %v5397
    %v6182 = vpack.c.bf16 %v5405, %v5398
    %v6183 = vpack.c.bf16 %v5413, %v5406
    %v6184 = vpack.c.bf16 %v5414, %v5407
    %v6185 = vpack.c.bf16 %v5415, %v5408
    %v6186 = vpack.c.bf16 %v5416, %v5409
    %v6187 = vpack.c.bf16 %v5417, %v5410
    %v6188 = vpack.c.bf16 %v5418, %v5411
    %v6189 = vpack.c.bf16 %v5419, %v5412
    %v6190 = vpack.c.bf16 %v5427, %v5420
    %v6191 = vpack.c.bf16 %v5428, %v5421
    %v6192 = vpack.c.bf16 %v5429, %v5422
    %v6193 = vpack.c.bf16 %v5430, %v5423
    %v6194 = vpack.c.bf16 %v5431, %v5424
    %v6195 = vpack.c.bf16 %v5432, %v5425
    %v6196 = vpack.c.bf16 %v5433, %v5426
    %v6197 = vpack.c.bf16 %v5441, %v5434
    %v6198 = vpack.c.bf16 %v5442, %v5435
    %v6199 = vpack.c.bf16 %v5443, %v5436
    %v6200 = vpack.c.bf16 %v5444, %v5437
    %v6201 = vpack.c.bf16 %v5445, %v5438
    %v6202 = vpack.c.bf16 %v5446, %v5439
    %v6203 = vpack.c.bf16 %v5447, %v5440
    %v6204 = vpack.c.bf16 %v5455, %v5448
    %v6205 = vpack.c.bf16 %v5456, %v5449
    %v6206 = vpack.c.bf16 %v5457, %v5450
    %v6207 = vpack.c.bf16 %v5458, %v5451
    %v6208 = vpack.c.bf16 %v5459, %v5452
    %v6209 = vpack.c.bf16 %v5460, %v5453
    %v6210 = vpack.c.bf16 %v5461, %v5454
    %v6211 = vpack.c.bf16 %v5469, %v5462
    %v6212 = vpack.c.bf16 %v5470, %v5463
    %v6213 = vpack.c.bf16 %v5471, %v5464
    %v6214 = vpack.c.bf16 %v5472, %v5465
    %v6215 = vpack.c.bf16 %v5473, %v5466
    %v6216 = vpack.c.bf16 %v5474, %v5467
    %v6217 = vpack.c.bf16 %v5475, %v5468
    %v6218 = vpack.c.bf16 %v5483, %v5476
    %v6219 = vpack.c.bf16 %v5484, %v5477
    %v6220 = vpack.c.bf16 %v5485, %v5478
    %v6221 = vpack.c.bf16 %v5486, %v5479
    %v6222 = vpack.c.bf16 %v5487, %v5480
    %v6223 = vpack.c.bf16 %v5488, %v5481
    %v6224 = vpack.c.bf16 %v5489, %v5482
    %v6225 = vpack.c.bf16 %v5497, %v5490
    %v6226 = vpack.c.bf16 %v5498, %v5491
    %v6227 = vpack.c.bf16 %v5499, %v5492
    %v6228 = vpack.c.bf16 %v5500, %v5493
    %v6229 = vpack.c.bf16 %v5501, %v5494
    %v6230 = vpack.c.bf16 %v5502, %v5495
    %v6231 = vpack.c.bf16 %v5503, %v5496
    %v6232 = vpack.c.bf16 %v5511, %v5504
    %v6233 = vpack.c.bf16 %v5512, %v5505
    %v6234 = vpack.c.bf16 %v5513, %v5506
    %v6235 = vpack.c.bf16 %v5514, %v5507
    %v6236 = vpack.c.bf16 %v5515, %v5508
    %v6237 = vpack.c.bf16 %v5516, %v5509
    %v6238 = vpack.c.bf16 %v5517, %v5510
    %v6239 = vpack.c.bf16 %v5525, %v5518
    %v6240 = vpack.c.bf16 %v5526, %v5519
    %v6241 = vpack.c.bf16 %v5527, %v5520
    %v6242 = vpack.c.bf16 %v5528, %v5521
    %v6243 = vpack.c.bf16 %v5529, %v5522
    %v6244 = vpack.c.bf16 %v5530, %v5523
    %v6245 = vpack.c.bf16 %v5531, %v5524
    %v6246 = vpack.c.bf16 %v5539, %v5532
    %v6247 = vpack.c.bf16 %v5540, %v5533
    %v6248 = vpack.c.bf16 %v5541, %v5534
    %v6249 = vpack.c.bf16 %v5542, %v5535
    %v6250 = vpack.c.bf16 %v5543, %v5536
    %v6251 = vpack.c.bf16 %v5544, %v5537
    %v6252 = vpack.c.bf16 %v5545, %v5538
    %v6253 = vpack.c.bf16 %v5553, %v5546
    %v6254 = vpack.c.bf16 %v5554, %v5547
    %v6255 = vpack.c.bf16 %v5555, %v5548
    %v6256 = vpack.c.bf16 %v5556, %v5549
    %v6257 = vpack.c.bf16 %v5557, %v5550
    %v6258 = vpack.c.bf16 %v5558, %v5551
    %v6259 = vpack.c.bf16 %v5559, %v5552
    %v6260 = vpack.c.bf16 %v5567, %v5560
    %v6261 = vpack.c.bf16 %v5568, %v5561
    %v6262 = vpack.c.bf16 %v5569, %v5562
    %v6263 = vpack.c.bf16 %v5570, %v5563
    %v6264 = vpack.c.bf16 %v5571, %v5564
    %v6265 = vpack.c.bf16 %v5572, %v5565
    %v6266 = vpack.c.bf16 %v5573, %v5566
    %v6267 = vpack.c.bf16 %v5581, %v5574
    %v6268 = vpack.c.bf16 %v5582, %v5575
    %v6269 = vpack.c.bf16 %v5583, %v5576
    %v6270 = vpack.c.bf16 %v5584, %v5577
    %v6271 = vpack.c.bf16 %v5585, %v5578
    %v6272 = vpack.c.bf16 %v5586, %v5579
    %v6273 = vpack.c.bf16 %v5587, %v5580
    %v6274 = vpack.c.bf16 %v5595, %v5588
    %v6275 = vpack.c.bf16 %v5596, %v5589
    %v6276 = vpack.c.bf16 %v5597, %v5590
    %v6277 = vpack.c.bf16 %v5598, %v5591
    %v6278 = vpack.c.bf16 %v5599, %v5592
    %v6279 = vpack.c.bf16 %v5600, %v5593
    %v6280 = vpack.c.bf16 %v5601, %v5594
    %v6281 = vpack.c.bf16 %v5609, %v5602
    %v6282 = vpack.c.bf16 %v5610, %v5603
    %v6283 = vpack.c.bf16 %v5611, %v5604
    %v6284 = vpack.c.bf16 %v5612, %v5605
    %v6285 = vpack.c.bf16 %v5613, %v5606
    %v6286 = vpack.c.bf16 %v5614, %v5607
    %v6287 = vpack.c.bf16 %v5615, %v5608
    %v6288 = vpack.c.bf16 %v5623, %v5616
    %v6289 = vpack.c.bf16 %v5624, %v5617
    %v6290 = vpack.c.bf16 %v5625, %v5618
    %v6291 = vpack.c.bf16 %v5626, %v5619
    %v6292 = vpack.c.bf16 %v5627, %v5620
    %v6293 = vpack.c.bf16 %v5628, %v5621
    %v6294 = vpack.c.bf16 %v5629, %v5622
    %v6295 = vpack.c.bf16 %v5637, %v5630
    %v6296 = vpack.c.bf16 %v5638, %v5631
    %v6297 = vpack.c.bf16 %v5639, %v5632
    %v6298 = vpack.c.bf16 %v5640, %v5633
    %v6299 = vpack.c.bf16 %v5641, %v5634
    %v6300 = vpack.c.bf16 %v5642, %v5635
    %v6301 = vpack.c.bf16 %v5643, %v5636
    %v6302 = vpack.c.bf16 %v5651, %v5644
    %v6303 = vpack.c.bf16 %v5652, %v5645
    %v6304 = vpack.c.bf16 %v5653, %v5646
    %v6305 = vpack.c.bf16 %v5654, %v5647
    %v6306 = vpack.c.bf16 %v5655, %v5648
    %v6307 = vpack.c.bf16 %v5656, %v5649
    %v6308 = vpack.c.bf16 %v5657, %v5650
    %v6309 = vpack.c.bf16 %v5665, %v5658
    %v6310 = vpack.c.bf16 %v5666, %v5659
    %v6311 = vpack.c.bf16 %v5667, %v5660
    %v6312 = vpack.c.bf16 %v5668, %v5661
    %v6313 = vpack.c.bf16 %v5669, %v5662
    %v6314 = vpack.c.bf16 %v5670, %v5663
    %v6315 = vpack.c.bf16 %v5671, %v5664
    %v6316 = vpack.c.bf16 %v5679, %v5672
    %v6317 = vpack.c.bf16 %v5680, %v5673
    %v6318 = vpack.c.bf16 %v5681, %v5674
    %v6319 = vpack.c.bf16 %v5682, %v5675
    %v6320 = vpack.c.bf16 %v5683, %v5676
    %v6321 = vpack.c.bf16 %v5684, %v5677
    %v6322 = vpack.c.bf16 %v5685, %v5678
    %v6323 = vpack.c.bf16 %v5693, %v5686
    %v6324 = vpack.c.bf16 %v5694, %v5687
    %v6325 = vpack.c.bf16 %v5695, %v5688
    %v6326 = vpack.c.bf16 %v5696, %v5689
    %v6327 = vpack.c.bf16 %v5697, %v5690
    %v6328 = vpack.c.bf16 %v5698, %v5691
    %v6329 = vpack.c.bf16 %v5699, %v5692
    %v6330 = vpack.c.bf16 %v5707, %v5700
    %v6331 = vpack.c.bf16 %v5708, %v5701
    %v6332 = vpack.c.bf16 %v5709, %v5702
    %v6333 = vpack.c.bf16 %v5710, %v5703
    %v6334 = vpack.c.bf16 %v5711, %v5704
    %v6335 = vpack.c.bf16 %v5712, %v5705
    %v6336 = vpack.c.bf16 %v5713, %v5706
    %v6337 = vpack.c.bf16 %v5721, %v5714
    %v6338 = vpack.c.bf16 %v5722, %v5715
    %v6339 = vpack.c.bf16 %v5723, %v5716
    %v6340 = vpack.c.bf16 %v5724, %v5717
    %v6341 = vpack.c.bf16 %v5725, %v5718
    %v6342 = vpack.c.bf16 %v5726, %v5719
    %v6343 = vpack.c.bf16 %v5727, %v5720
    %v6344 = vpack.c.bf16 %v5735, %v5728
    %v6345 = vpack.c.bf16 %v5736, %v5729
    %v6346 = vpack.c.bf16 %v5737, %v5730
    %v6347 = vpack.c.bf16 %v5738, %v5731
    %v6348 = vpack.c.bf16 %v5739, %v5732
    %v6349 = vpack.c.bf16 %v5740, %v5733
    %v6350 = vpack.c.bf16 %v5741, %v5734
    %v6351 = vpack.c.bf16 %v5749, %v5742
    %v6352 = vpack.c.bf16 %v5750, %v5743
    %v6353 = vpack.c.bf16 %v5751, %v5744
    %v6354 = vpack.c.bf16 %v5752, %v5745
    %v6355 = vpack.c.bf16 %v5753, %v5746
    %v6356 = vpack.c.bf16 %v5754, %v5747
    %v6357 = vpack.c.bf16 %v5755, %v5748
    %v6358 = vpack.c.bf16 %v5763, %v5756
    %v6359 = vpack.c.bf16 %v5764, %v5757
    %v6360 = vpack.c.bf16 %v5765, %v5758
    %v6361 = vpack.c.bf16 %v5766, %v5759
    %v6362 = vpack.c.bf16 %v5767, %v5760
    %v6363 = vpack.c.bf16 %v5768, %v5761
    %v6364 = vpack.c.bf16 %v5769, %v5762
    %v6365 = vpack.c.bf16 %v5777, %v5770
    %v6366 = vpack.c.bf16 %v5778, %v5771
    %v6367 = vpack.c.bf16 %v5779, %v5772
    %v6368 = vpack.c.bf16 %v5780, %v5773
    %v6369 = vpack.c.bf16 %v5781, %v5774
    %v6370 = vpack.c.bf16 %v5782, %v5775
    %v6371 = vpack.c.bf16 %v5783, %v5776
    %v6372 = vpack.c.bf16 %v5791, %v5784
    %v6373 = vpack.c.bf16 %v5792, %v5785
    %v6374 = vpack.c.bf16 %v5793, %v5786
    %v6375 = vpack.c.bf16 %v5794, %v5787
    %v6376 = vpack.c.bf16 %v5795, %v5788
    %v6377 = vpack.c.bf16 %v5796, %v5789
    %v6378 = vpack.c.bf16 %v5797, %v5790
    %v6379 = vpack.c.bf16 %v5805, %v5798
    %v6380 = vpack.c.bf16 %v5806, %v5799
    %v6381 = vpack.c.bf16 %v5807, %v5800
    %v6382 = vpack.c.bf16 %v5808, %v5801
    %v6383 = vpack.c.bf16 %v5809, %v5802
    %v6384 = vpack.c.bf16 %v5810, %v5803
    %v6385 = vpack.c.bf16 %v5811, %v5804
    %v6386 = vpack.c.bf16 %v5819, %v5812
    %v6387 = vpack.c.bf16 %v5820, %v5813
    %v6388 = vpack.c.bf16 %v5821, %v5814
    %v6389 = vpack.c.bf16 %v5822, %v5815
    %v6390 = vpack.c.bf16 %v5823, %v5816
    %v6391 = vpack.c.bf16 %v5824, %v5817
    %v6392 = vpack.c.bf16 %v5825, %v5818
    %v6393 = vpack.c.bf16 %v5833, %v5826
    %v6394 = vpack.c.bf16 %v5834, %v5827
    %v6395 = vpack.c.bf16 %v5835, %v5828
    %v6396 = vpack.c.bf16 %v5836, %v5829
    %v6397 = vpack.c.bf16 %v5837, %v5830
    %v6398 = vpack.c.bf16 %v5838, %v5831
    %v6399 = vpack.c.bf16 %v5839, %v5832
    %v6400 = vpack.c.bf16 %v5847, %v5840
    %v6401 = vpack.c.bf16 %v5848, %v5841
    %v6402 = vpack.c.bf16 %v5849, %v5842
    %v6403 = vpack.c.bf16 %v5850, %v5843
    %v6404 = vpack.c.bf16 %v5851, %v5844
    %v6405 = vpack.c.bf16 %v5852, %v5845
    %v6406 = vpack.c.bf16 %v5853, %v5846
    %v6407 = vpack.c.bf16 %v5861, %v5854
    %v6408 = vpack.c.bf16 %v5862, %v5855
    %v6409 = vpack.c.bf16 %v5863, %v5856
    %v6410 = vpack.c.bf16 %v5864, %v5857
    %v6411 = vpack.c.bf16 %v5865, %v5858
    %v6412 = vpack.c.bf16 %v5866, %v5859
    %v6413 = vpack.c.bf16 %v5867, %v5860
    %v6414 = vpack.c.bf16 %v5875, %v5868
    %v6415 = vpack.c.bf16 %v5876, %v5869
    %v6416 = vpack.c.bf16 %v5877, %v5870
    %v6417 = vpack.c.bf16 %v5878, %v5871
    %v6418 = vpack.c.bf16 %v5879, %v5872
    %v6419 = vpack.c.bf16 %v5880, %v5873
    %v6420 = vpack.c.bf16 %v5881, %v5874
    %v6421 = vpack.c.bf16 %v5889, %v5882
    %v6422 = vpack.c.bf16 %v5890, %v5883
    %v6423 = vpack.c.bf16 %v5891, %v5884
    %v6424 = vpack.c.bf16 %v5892, %v5885
    %v6425 = vpack.c.bf16 %v5893, %v5886
    %v6426 = vpack.c.bf16 %v5894, %v5887
    %v6427 = vpack.c.bf16 %v5895, %v5888
    %v6428 = vpack.c.bf16 %v5903, %v5896
    %v6429 = vpack.c.bf16 %v5904, %v5897
    %v6430 = vpack.c.bf16 %v5905, %v5898
    %v6431 = vpack.c.bf16 %v5906, %v5899
    %v6432 = vpack.c.bf16 %v5907, %v5900
    %v6433 = vpack.c.bf16 %v5908, %v5901
    %v6434 = vpack.c.bf16 %v5909, %v5902
    %v6435 = vpack.c.bf16 %v5917, %v5910
    %v6436 = vpack.c.bf16 %v5918, %v5911
    %v6437 = vpack.c.bf16 %v5919, %v5912
    %v6438 = vpack.c.bf16 %v5920, %v5913
    %v6439 = vpack.c.bf16 %v5921, %v5914
    %v6440 = vpack.c.bf16 %v5922, %v5915
    %v6441 = vpack.c.bf16 %v5923, %v5916
    %v6442 = vpack.c.bf16 %v5931, %v5924
    %v6443 = vpack.c.bf16 %v5932, %v5925
    %v6444 = vpack.c.bf16 %v5933, %v5926
    %v6445 = vpack.c.bf16 %v5934, %v5927
    %v6446 = vpack.c.bf16 %v5935, %v5928
    %v6447 = vpack.c.bf16 %v5936, %v5929
    %v6448 = vpack.c.bf16 %v5937, %v5930
    %v6449 = vpack.c.bf16 %v5945, %v5938
    %v6450 = vpack.c.bf16 %v5946, %v5939
    %v6451 = vpack.c.bf16 %v5947, %v5940
    %v6452 = vpack.c.bf16 %v5948, %v5941
    %v6453 = vpack.c.bf16 %v5949, %v5942
    %v6454 = vpack.c.bf16 %v5950, %v5943
    %v6455 = vpack.c.bf16 %v5951, %v5944
    %v6456 = vpack.c.bf16 %v5959, %v5952
    %v6457 = vpack.c.bf16 %v5960, %v5953
    %v6458 = vpack.c.bf16 %v5961, %v5954
    %v6459 = vpack.c.bf16 %v5962, %v5955
    %v6460 = vpack.c.bf16 %v5963, %v5956
    %v6461 = vpack.c.bf16 %v5964, %v5957
    %v6462 = vpack.c.bf16 %v5965, %v5958
    %v6463 = vpack.c.bf16 %v5973, %v5966
    %v6464 = vpack.c.bf16 %v5974, %v5967
    %v6465 = vpack.c.bf16 %v5975, %v5968
    %v6466 = vpack.c.bf16 %v5976, %v5969
    %v6467 = vpack.c.bf16 %v5977, %v5970
    %v6468 = vpack.c.bf16 %v5978, %v5971
    %v6469 = vpack.c.bf16 %v5979, %v5972
    %v6470 = vpack.c.bf16 %v5987, %v5980
    %v6471 = vpack.c.bf16 %v5988, %v5981
    %v6472 = vpack.c.bf16 %v5989, %v5982
    %v6473 = vpack.c.bf16 %v5990, %v5983
    %v6474 = vpack.c.bf16 %v5991, %v5984
    %v6475 = vpack.c.bf16 %v5992, %v5985
    %v6476 = vpack.c.bf16 %v5993, %v5986
    %v6477 = vpack.c.bf16 %v6001, %v5994
    %v6478 = vpack.c.bf16 %v6002, %v5995
    %v6479 = vpack.c.bf16 %v6003, %v5996
    %v6480 = vpack.c.bf16 %v6004, %v5997
    %v6481 = vpack.c.bf16 %v6005, %v5998
    %v6482 = vpack.c.bf16 %v6006, %v5999
    %v6483 = vpack.c.bf16 %v6007, %v6000
    %v6484 = vpack.c.bf16 %v6015, %v6008
    %v6485 = vpack.c.bf16 %v6016, %v6009
    %v6486 = vpack.c.bf16 %v6017, %v6010
    %v6487 = vpack.c.bf16 %v6018, %v6011
    %v6488 = vpack.c.bf16 %v6019, %v6012
    %v6489 = vpack.c.bf16 %v6020, %v6013
    %v6490 = vpack.c.bf16 %v6021, %v6014
    %v6491 = vpack.c.bf16 %v6029, %v6022
    %v6492 = vpack.c.bf16 %v6030, %v6023
    %v6493 = vpack.c.bf16 %v6031, %v6024
    %v6494 = vpack.c.bf16 %v6032, %v6025
    %v6495 = vpack.c.bf16 %v6033, %v6026
    %v6496 = vpack.c.bf16 %v6034, %v6027
    %v6497 = vpack.c.bf16 %v6035, %v6028
    %v6498 = vpack.c.bf16 %v6043, %v6036
    %v6499 = vpack.c.bf16 %v6044, %v6037
    %v6500 = vpack.c.bf16 %v6045, %v6038
    %v6501 = vpack.c.bf16 %v6046, %v6039
    %v6502 = vpack.c.bf16 %v6047, %v6040
    %v6503 = vpack.c.bf16 %v6048, %v6041
    %v6504 = vpack.c.bf16 %v6049, %v6042
    %v6505 = vpack.c.bf16 %v6057, %v6050
    %v6506 = vpack.c.bf16 %v6058, %v6051
    %v6507 = vpack.c.bf16 %v6059, %v6052
    %v6508 = vpack.c.bf16 %v6060, %v6053
    %v6509 = vpack.c.bf16 %v6061, %v6054
    %v6510 = vpack.c.bf16 %v6062, %v6055
    %v6511 = vpack.c.bf16 %v6063, %v6056
    %6512 = vmatpush.bf16.msra.mxu0 %v6113
    %6513 = vmatpush.bf16.msra.mxu0 %v6106
    %6514 = vmatpush.bf16.msra.mxu0 %v6099
    %6515 = vmatpush.bf16.msra.mxu0 %v6092
    %6516 = vmatpush.bf16.msra.mxu0 %v6085
    %6517 = vmatpush.bf16.msra.mxu0 %v6078
    %6518 = vmatpush.bf16.msra.mxu0 %v6071
    %6519 = vmatpush.bf16.msra.mxu0 %v6064
    %6520 = vmatmul.bf16.gmra.mxu0 %v4040
    %v6521 = vpop.f32.mrf.mxu0
    %v6522 = vadd.f32 0.0, %v6521
    %v6523 = vpop.f32.mrf.mxu0
    %6524 = vdwg.mxu0
    %6525 = vmatpush.bf16.msra.mxu0 %v6169
    %6526 = vmatpush.bf16.msra.mxu0 %v6162
    %6527 = vmatpush.bf16.msra.mxu0 %v6155
    %6528 = vmatpush.bf16.msra.mxu0 %v6148
    %6529 = vmatpush.bf16.msra.mxu0 %v6141
    %6530 = vmatpush.bf16.msra.mxu0 %v6134
    %6531 = vmatpush.bf16.msra.mxu0 %v6127
    %6532 = vmatpush.bf16.msra.mxu0 %v6120
    %6533 = vmatmul.bf16.gmra.mxu0 %v4041
    %v6534 = vpop.f32.mrf.mxu0
    %v6535 = vadd.f32 %v6522, %v6534
    %v6536 = vpop.f32.mrf.mxu0
    %6537 = vdwg.mxu0
    %6538 = vmatpush.bf16.msra.mxu0 %v6225
    %6539 = vmatpush.bf16.msra.mxu0 %v6218
    %6540 = vmatpush.bf16.msra.mxu0 %v6211
    %6541 = vmatpush.bf16.msra.mxu0 %v6204
    %6542 = vmatpush.bf16.msra.mxu0 %v6197
    %6543 = vmatpush.bf16.msra.mxu0 %v6190
    %6544 = vmatpush.bf16.msra.mxu0 %v6183
    %6545 = vmatpush.bf16.msra.mxu0 %v6176
    %6546 = vmatmul.bf16.gmra.mxu0 %v4042
    %v6547 = vpop.f32.mrf.mxu0
    %v6548 = vadd.f32 %v6535, %v6547
    %v6549 = vpop.f32.mrf.mxu0
    %6550 = vdwg.mxu0
    %6551 = vmatpush.bf16.msra.mxu0 %v6281
    %6552 = vmatpush.bf16.msra.mxu0 %v6274
    %6553 = vmatpush.bf16.msra.mxu0 %v6267
    %6554 = vmatpush.bf16.msra.mxu0 %v6260
    %6555 = vmatpush.bf16.msra.mxu0 %v6253
    %6556 = vmatpush.bf16.msra.mxu0 %v6246
    %6557 = vmatpush.bf16.msra.mxu0 %v6239
    %6558 = vmatpush.bf16.msra.mxu0 %v6232
    %6559 = vmatmul.bf16.gmra.mxu0 %v4043
    %v6560 = vpop.f32.mrf.mxu0
    %v6561 = vadd.f32 %v6548, %v6560
    %v6562 = vpop.f32.mrf.mxu0
    %6563 = vdwg.mxu0
    %6564 = vmatpush.bf16.msra.mxu0 %v6337
    %6565 = vmatpush.bf16.msra.mxu0 %v6330
    %6566 = vmatpush.bf16.msra.mxu0 %v6323
    %6567 = vmatpush.bf16.msra.mxu0 %v6316
    %6568 = vmatpush.bf16.msra.mxu0 %v6309
    %6569 = vmatpush.bf16.msra.mxu0 %v6302
    %6570 = vmatpush.bf16.msra.mxu0 %v6295
    %6571 = vmatpush.bf16.msra.mxu0 %v6288
    %6572 = vmatmul.bf16.gmra.mxu0 %v4044
    %v6573 = vpop.f32.mrf.mxu0
    %v6574 = vadd.f32 %v6561, %v6573
    %v6575 = vpop.f32.mrf.mxu0
    %6576 = vdwg.mxu0
    %6577 = vmatpush.bf16.msra.mxu0 %v6393
    %6578 = vmatpush.bf16.msra.mxu0 %v6386
    %6579 = vmatpush.bf16.msra.mxu0 %v6379
    %6580 = vmatpush.bf16.msra.mxu0 %v6372
    %6581 = vmatpush.bf16.msra.mxu0 %v6365
    %6582 = vmatpush.bf16.msra.mxu0 %v6358
    %6583 = vmatpush.bf16.msra.mxu0 %v6351
    %6584 = vmatpush.bf16.msra.mxu0 %v6344
    %6585 = vmatmul.bf16.gmra.mxu0 %v4045
    %v6586 = vpop.f32.mrf.mxu0
    %v6587 = vadd.f32 %v6574, %v6586
    %v6588 = vpop.f32.mrf.mxu0
    %6589 = vdwg.mxu0
    %6590 = vmatpush.bf16.msra.mxu0 %v6449
    %6591 = vmatpush.bf16.msra.mxu0 %v6442
    %6592 = vmatpush.bf16.msra.mxu0 %v6435
    %6593 = vmatpush.bf16.msra.mxu0 %v6428
    %6594 = vmatpush.bf16.msra.mxu0 %v6421
    %6595 = vmatpush.bf16.msra.mxu0 %v6414
    %6596 = vmatpush.bf16.msra.mxu0 %v6407
    %6597 = vmatpush.bf16.msra.mxu0 %v6400
    %6598 = vmatmul.bf16.gmra.mxu0 %v4046
    %v6599 = vpop.f32.mrf.mxu0
    %v6600 = vadd.f32 %v6587, %v6599
    %v6601 = vpop.f32.mrf.mxu0
    %6602 = vdwg.mxu0
    %6603 = vmatpush.bf16.msra.mxu0 %v6505
    %6604 = vmatpush.bf16.msra.mxu0 %v6498
    %6605 = vmatpush.bf16.msra.mxu0 %v6491
    %6606 = vmatpush.bf16.msra.mxu0 %v6484
    %6607 = vmatpush.bf16.msra.mxu0 %v6477
    %6608 = vmatpush.bf16.msra.mxu0 %v6470
    %6609 = vmatpush.bf16.msra.mxu0 %v6463
    %6610 = vmatpush.bf16.msra.mxu0 %v6456
    %6611 = vmatmul.bf16.gmra.mxu0 %v4047
    %v6612 = vpop.f32.mrf.mxu0
    %v6613 = vadd.f32 %v6600, %v6612
    %v6614 = vpop.f32.mrf.mxu0
    %6615 = vdwg.mxu0
    %6616 = vmatpush.bf16.msra.mxu0 %v6114
    %6617 = vmatpush.bf16.msra.mxu0 %v6107
    %6618 = vmatpush.bf16.msra.mxu0 %v6100
    %6619 = vmatpush.bf16.msra.mxu0 %v6093
    %6620 = vmatpush.bf16.msra.mxu0 %v6086
    %6621 = vmatpush.bf16.msra.mxu0 %v6079
    %6622 = vmatpush.bf16.msra.mxu0 %v6072
    %6623 = vmatpush.bf16.msra.mxu0 %v6065
    %6624 = vmatmul.bf16.gmra.mxu0 %v4040
    %v6625 = vpop.f32.mrf.mxu0
    %v6626 = vadd.f32 0.0, %v6625
    %v6627 = vpop.f32.mrf.mxu0
    %6628 = vdwg.mxu0
    %6629 = vmatpush.bf16.msra.mxu0 %v6170
    %6630 = vmatpush.bf16.msra.mxu0 %v6163
    %6631 = vmatpush.bf16.msra.mxu0 %v6156
    %6632 = vmatpush.bf16.msra.mxu0 %v6149
    %6633 = vmatpush.bf16.msra.mxu0 %v6142
    %6634 = vmatpush.bf16.msra.mxu0 %v6135
    %6635 = vmatpush.bf16.msra.mxu0 %v6128
    %6636 = vmatpush.bf16.msra.mxu0 %v6121
    %6637 = vmatmul.bf16.gmra.mxu0 %v4041
    %v6638 = vpop.f32.mrf.mxu0
    %v6639 = vadd.f32 %v6626, %v6638
    %v6640 = vpop.f32.mrf.mxu0
    %6641 = vdwg.mxu0
    %6642 = vmatpush.bf16.msra.mxu0 %v6226
    %6643 = vmatpush.bf16.msra.mxu0 %v6219
    %6644 = vmatpush.bf16.msra.mxu0 %v6212
    %6645 = vmatpush.bf16.msra.mxu0 %v6205
    %6646 = vmatpush.bf16.msra.mxu0 %v6198
    %6647 = vmatpush.bf16.msra.mxu0 %v6191
    %6648 = vmatpush.bf16.msra.mxu0 %v6184
    %6649 = vmatpush.bf16.msra.mxu0 %v6177
    %6650 = vmatmul.bf16.gmra.mxu0 %v4042
    %v6651 = vpop.f32.mrf.mxu0
    %v6652 = vadd.f32 %v6639, %v6651
    %v6653 = vpop.f32.mrf.mxu0
    %6654 = vdwg.mxu0
    %6655 = vmatpush.bf16.msra.mxu0 %v6282
    %6656 = vmatpush.bf16.msra.mxu0 %v6275
    %6657 = vmatpush.bf16.msra.mxu0 %v6268
    %6658 = vmatpush.bf16.msra.mxu0 %v6261
    %6659 = vmatpush.bf16.msra.mxu0 %v6254
    %6660 = vmatpush.bf16.msra.mxu0 %v6247
    %6661 = vmatpush.bf16.msra.mxu0 %v6240
    %6662 = vmatpush.bf16.msra.mxu0 %v6233
    %6663 = vmatmul.bf16.gmra.mxu0 %v4043
    %v6664 = vpop.f32.mrf.mxu0
    %v6665 = vadd.f32 %v6652, %v6664
    %v6666 = vpop.f32.mrf.mxu0
    %6667 = vdwg.mxu0
    %6668 = vmatpush.bf16.msra.mxu0 %v6338
    %6669 = vmatpush.bf16.msra.mxu0 %v6331
    %6670 = vmatpush.bf16.msra.mxu0 %v6324
    %6671 = vmatpush.bf16.msra.mxu0 %v6317
    %6672 = vmatpush.bf16.msra.mxu0 %v6310
    %6673 = vmatpush.bf16.msra.mxu0 %v6303
    %6674 = vmatpush.bf16.msra.mxu0 %v6296
    %6675 = vmatpush.bf16.msra.mxu0 %v6289
    %6676 = vmatmul.bf16.gmra.mxu0 %v4044
    %v6677 = vpop.f32.mrf.mxu0
    %v6678 = vadd.f32 %v6665, %v6677
    %v6679 = vpop.f32.mrf.mxu0
    %6680 = vdwg.mxu0
    %6681 = vmatpush.bf16.msra.mxu0 %v6394
    %6682 = vmatpush.bf16.msra.mxu0 %v6387
    %6683 = vmatpush.bf16.msra.mxu0 %v6380
    %6684 = vmatpush.bf16.msra.mxu0 %v6373
    %6685 = vmatpush.bf16.msra.mxu0 %v6366
    %6686 = vmatpush.bf16.msra.mxu0 %v6359
    %6687 = vmatpush.bf16.msra.mxu0 %v6352
    %6688 = vmatpush.bf16.msra.mxu0 %v6345
    %6689 = vmatmul.bf16.gmra.mxu0 %v4045
    %v6690 = vpop.f32.mrf.mxu0
    %v6691 = vadd.f32 %v6678, %v6690
    %v6692 = vpop.f32.mrf.mxu0
    %6693 = vdwg.mxu0
    %6694 = vmatpush.bf16.msra.mxu0 %v6450
    %6695 = vmatpush.bf16.msra.mxu0 %v6443
    %6696 = vmatpush.bf16.msra.mxu0 %v6436
    %6697 = vmatpush.bf16.msra.mxu0 %v6429
    %6698 = vmatpush.bf16.msra.mxu0 %v6422
    %6699 = vmatpush.bf16.msra.mxu0 %v6415
    %6700 = vmatpush.bf16.msra.mxu0 %v6408
    %6701 = vmatpush.bf16.msra.mxu0 %v6401
    %6702 = vmatmul.bf16.gmra.mxu0 %v4046
    %v6703 = vpop.f32.mrf.mxu0
    %v6704 = vadd.f32 %v6691, %v6703
    %v6705 = vpop.f32.mrf.mxu0
    %6706 = vdwg.mxu0
    %6707 = vmatpush.bf16.msra.mxu0 %v6506
    %6708 = vmatpush.bf16.msra.mxu0 %v6499
    %6709 = vmatpush.bf16.msra.mxu0 %v6492
    %6710 = vmatpush.bf16.msra.mxu0 %v6485
    %6711 = vmatpush.bf16.msra.mxu0 %v6478
    %6712 = vmatpush.bf16.msra.mxu0 %v6471
    %6713 = vmatpush.bf16.msra.mxu0 %v6464
    %6714 = vmatpush.bf16.msra.mxu0 %v6457
    %6715 = vmatmul.bf16.gmra.mxu0 %v4047
    %v6716 = vpop.f32.mrf.mxu0
    %v6717 = vadd.f32 %v6704, %v6716
    %v6718 = vpop.f32.mrf.mxu0
    %6719 = vdwg.mxu0
    %6720 = vmatpush.bf16.msra.mxu0 %v6115
    %6721 = vmatpush.bf16.msra.mxu0 %v6108
    %6722 = vmatpush.bf16.msra.mxu0 %v6101
    %6723 = vmatpush.bf16.msra.mxu0 %v6094
    %6724 = vmatpush.bf16.msra.mxu0 %v6087
    %6725 = vmatpush.bf16.msra.mxu0 %v6080
    %6726 = vmatpush.bf16.msra.mxu0 %v6073
    %6727 = vmatpush.bf16.msra.mxu0 %v6066
    %6728 = vmatmul.bf16.gmra.mxu0 %v4040
    %v6729 = vpop.f32.mrf.mxu0
    %v6730 = vadd.f32 0.0, %v6729
    %v6731 = vpop.f32.mrf.mxu0
    %6732 = vdwg.mxu0
    %6733 = vmatpush.bf16.msra.mxu0 %v6171
    %6734 = vmatpush.bf16.msra.mxu0 %v6164
    %6735 = vmatpush.bf16.msra.mxu0 %v6157
    %6736 = vmatpush.bf16.msra.mxu0 %v6150
    %6737 = vmatpush.bf16.msra.mxu0 %v6143
    %6738 = vmatpush.bf16.msra.mxu0 %v6136
    %6739 = vmatpush.bf16.msra.mxu0 %v6129
    %6740 = vmatpush.bf16.msra.mxu0 %v6122
    %6741 = vmatmul.bf16.gmra.mxu0 %v4041
    %v6742 = vpop.f32.mrf.mxu0
    %v6743 = vadd.f32 %v6730, %v6742
    %v6744 = vpop.f32.mrf.mxu0
    %6745 = vdwg.mxu0
    %6746 = vmatpush.bf16.msra.mxu0 %v6227
    %6747 = vmatpush.bf16.msra.mxu0 %v6220
    %6748 = vmatpush.bf16.msra.mxu0 %v6213
    %6749 = vmatpush.bf16.msra.mxu0 %v6206
    %6750 = vmatpush.bf16.msra.mxu0 %v6199
    %6751 = vmatpush.bf16.msra.mxu0 %v6192
    %6752 = vmatpush.bf16.msra.mxu0 %v6185
    %6753 = vmatpush.bf16.msra.mxu0 %v6178
    %6754 = vmatmul.bf16.gmra.mxu0 %v4042
    %v6755 = vpop.f32.mrf.mxu0
    %v6756 = vadd.f32 %v6743, %v6755
    %v6757 = vpop.f32.mrf.mxu0
    %6758 = vdwg.mxu0
    %6759 = vmatpush.bf16.msra.mxu0 %v6283
    %6760 = vmatpush.bf16.msra.mxu0 %v6276
    %6761 = vmatpush.bf16.msra.mxu0 %v6269
    %6762 = vmatpush.bf16.msra.mxu0 %v6262
    %6763 = vmatpush.bf16.msra.mxu0 %v6255
    %6764 = vmatpush.bf16.msra.mxu0 %v6248
    %6765 = vmatpush.bf16.msra.mxu0 %v6241
    %6766 = vmatpush.bf16.msra.mxu0 %v6234
    %6767 = vmatmul.bf16.gmra.mxu0 %v4043
    %v6768 = vpop.f32.mrf.mxu0
    %v6769 = vadd.f32 %v6756, %v6768
    %v6770 = vpop.f32.mrf.mxu0
    %6771 = vdwg.mxu0
    %6772 = vmatpush.bf16.msra.mxu0 %v6339
    %6773 = vmatpush.bf16.msra.mxu0 %v6332
    %6774 = vmatpush.bf16.msra.mxu0 %v6325
    %6775 = vmatpush.bf16.msra.mxu0 %v6318
    %6776 = vmatpush.bf16.msra.mxu0 %v6311
    %6777 = vmatpush.bf16.msra.mxu0 %v6304
    %6778 = vmatpush.bf16.msra.mxu0 %v6297
    %6779 = vmatpush.bf16.msra.mxu0 %v6290
    %6780 = vmatmul.bf16.gmra.mxu0 %v4044
    %v6781 = vpop.f32.mrf.mxu0
    %v6782 = vadd.f32 %v6769, %v6781
    %v6783 = vpop.f32.mrf.mxu0
    %6784 = vdwg.mxu0
    %6785 = vmatpush.bf16.msra.mxu0 %v6395
    %6786 = vmatpush.bf16.msra.mxu0 %v6388
    %6787 = vmatpush.bf16.msra.mxu0 %v6381
    %6788 = vmatpush.bf16.msra.mxu0 %v6374
    %6789 = vmatpush.bf16.msra.mxu0 %v6367
    %6790 = vmatpush.bf16.msra.mxu0 %v6360
    %6791 = vmatpush.bf16.msra.mxu0 %v6353
    %6792 = vmatpush.bf16.msra.mxu0 %v6346
    %6793 = vmatmul.bf16.gmra.mxu0 %v4045
    %v6794 = vpop.f32.mrf.mxu0
    %v6795 = vadd.f32 %v6782, %v6794
    %v6796 = vpop.f32.mrf.mxu0
    %6797 = vdwg.mxu0
    %6798 = vmatpush.bf16.msra.mxu0 %v6451
    %6799 = vmatpush.bf16.msra.mxu0 %v6444
    %6800 = vmatpush.bf16.msra.mxu0 %v6437
    %6801 = vmatpush.bf16.msra.mxu0 %v6430
    %6802 = vmatpush.bf16.msra.mxu0 %v6423
    %6803 = vmatpush.bf16.msra.mxu0 %v6416
    %6804 = vmatpush.bf16.msra.mxu0 %v6409
    %6805 = vmatpush.bf16.msra.mxu0 %v6402
    %6806 = vmatmul.bf16.gmra.mxu0 %v4046
    %v6807 = vpop.f32.mrf.mxu0
    %v6808 = vadd.f32 %v6795, %v6807
    %v6809 = vpop.f32.mrf.mxu0
    %6810 = vdwg.mxu0
    %6811 = vmatpush.bf16.msra.mxu0 %v6507
    %6812 = vmatpush.bf16.msra.mxu0 %v6500
    %6813 = vmatpush.bf16.msra.mxu0 %v6493
    %6814 = vmatpush.bf16.msra.mxu0 %v6486
    %6815 = vmatpush.bf16.msra.mxu0 %v6479
    %6816 = vmatpush.bf16.msra.mxu0 %v6472
    %6817 = vmatpush.bf16.msra.mxu0 %v6465
    %6818 = vmatpush.bf16.msra.mxu0 %v6458
    %6819 = vmatmul.bf16.gmra.mxu0 %v4047
    %v6820 = vpop.f32.mrf.mxu0
    %v6821 = vadd.f32 %v6808, %v6820
    %v6822 = vpop.f32.mrf.mxu0
    %6823 = vdwg.mxu0
    %6824 = vmatpush.bf16.msra.mxu0 %v6116
    %6825 = vmatpush.bf16.msra.mxu0 %v6109
    %6826 = vmatpush.bf16.msra.mxu0 %v6102
    %6827 = vmatpush.bf16.msra.mxu0 %v6095
    %6828 = vmatpush.bf16.msra.mxu0 %v6088
    %6829 = vmatpush.bf16.msra.mxu0 %v6081
    %6830 = vmatpush.bf16.msra.mxu0 %v6074
    %6831 = vmatpush.bf16.msra.mxu0 %v6067
    %6832 = vmatmul.bf16.gmra.mxu0 %v4040
    %v6833 = vpop.f32.mrf.mxu0
    %v6834 = vadd.f32 0.0, %v6833
    %v6835 = vpop.f32.mrf.mxu0
    %6836 = vdwg.mxu0
    %6837 = vmatpush.bf16.msra.mxu0 %v6172
    %6838 = vmatpush.bf16.msra.mxu0 %v6165
    %6839 = vmatpush.bf16.msra.mxu0 %v6158
    %6840 = vmatpush.bf16.msra.mxu0 %v6151
    %6841 = vmatpush.bf16.msra.mxu0 %v6144
    %6842 = vmatpush.bf16.msra.mxu0 %v6137
    %6843 = vmatpush.bf16.msra.mxu0 %v6130
    %6844 = vmatpush.bf16.msra.mxu0 %v6123
    %6845 = vmatmul.bf16.gmra.mxu0 %v4041
    %v6846 = vpop.f32.mrf.mxu0
    %v6847 = vadd.f32 %v6834, %v6846
    %v6848 = vpop.f32.mrf.mxu0
    %6849 = vdwg.mxu0
    %6850 = vmatpush.bf16.msra.mxu0 %v6228
    %6851 = vmatpush.bf16.msra.mxu0 %v6221
    %6852 = vmatpush.bf16.msra.mxu0 %v6214
    %6853 = vmatpush.bf16.msra.mxu0 %v6207
    %6854 = vmatpush.bf16.msra.mxu0 %v6200
    %6855 = vmatpush.bf16.msra.mxu0 %v6193
    %6856 = vmatpush.bf16.msra.mxu0 %v6186
    %6857 = vmatpush.bf16.msra.mxu0 %v6179
    %6858 = vmatmul.bf16.gmra.mxu0 %v4042
    %v6859 = vpop.f32.mrf.mxu0
    %v6860 = vadd.f32 %v6847, %v6859
    %v6861 = vpop.f32.mrf.mxu0
    %6862 = vdwg.mxu0
    %6863 = vmatpush.bf16.msra.mxu0 %v6284
    %6864 = vmatpush.bf16.msra.mxu0 %v6277
    %6865 = vmatpush.bf16.msra.mxu0 %v6270
    %6866 = vmatpush.bf16.msra.mxu0 %v6263
    %6867 = vmatpush.bf16.msra.mxu0 %v6256
    %6868 = vmatpush.bf16.msra.mxu0 %v6249
    %6869 = vmatpush.bf16.msra.mxu0 %v6242
    %6870 = vmatpush.bf16.msra.mxu0 %v6235
    %6871 = vmatmul.bf16.gmra.mxu0 %v4043
    %v6872 = vpop.f32.mrf.mxu0
    %v6873 = vadd.f32 %v6860, %v6872
    %v6874 = vpop.f32.mrf.mxu0
    %6875 = vdwg.mxu0
    %6876 = vmatpush.bf16.msra.mxu0 %v6340
    %6877 = vmatpush.bf16.msra.mxu0 %v6333
    %6878 = vmatpush.bf16.msra.mxu0 %v6326
    %6879 = vmatpush.bf16.msra.mxu0 %v6319
    %6880 = vmatpush.bf16.msra.mxu0 %v6312
    %6881 = vmatpush.bf16.msra.mxu0 %v6305
    %6882 = vmatpush.bf16.msra.mxu0 %v6298
    %6883 = vmatpush.bf16.msra.mxu0 %v6291
    %6884 = vmatmul.bf16.gmra.mxu0 %v4044
    %v6885 = vpop.f32.mrf.mxu0
    %v6886 = vadd.f32 %v6873, %v6885
    %v6887 = vpop.f32.mrf.mxu0
    %6888 = vdwg.mxu0
    %6889 = vmatpush.bf16.msra.mxu0 %v6396
    %6890 = vmatpush.bf16.msra.mxu0 %v6389
    %6891 = vmatpush.bf16.msra.mxu0 %v6382
    %6892 = vmatpush.bf16.msra.mxu0 %v6375
    %6893 = vmatpush.bf16.msra.mxu0 %v6368
    %6894 = vmatpush.bf16.msra.mxu0 %v6361
    %6895 = vmatpush.bf16.msra.mxu0 %v6354
    %6896 = vmatpush.bf16.msra.mxu0 %v6347
    %6897 = vmatmul.bf16.gmra.mxu0 %v4045
    %v6898 = vpop.f32.mrf.mxu0
    %v6899 = vadd.f32 %v6886, %v6898
    %v6900 = vpop.f32.mrf.mxu0
    %6901 = vdwg.mxu0
    %6902 = vmatpush.bf16.msra.mxu0 %v6452
    %6903 = vmatpush.bf16.msra.mxu0 %v6445
    %6904 = vmatpush.bf16.msra.mxu0 %v6438
    %6905 = vmatpush.bf16.msra.mxu0 %v6431
    %6906 = vmatpush.bf16.msra.mxu0 %v6424
    %6907 = vmatpush.bf16.msra.mxu0 %v6417
    %6908 = vmatpush.bf16.msra.mxu0 %v6410
    %6909 = vmatpush.bf16.msra.mxu0 %v6403
    %6910 = vmatmul.bf16.gmra.mxu0 %v4046
    %v6911 = vpop.f32.mrf.mxu0
    %v6912 = vadd.f32 %v6899, %v6911
    %v6913 = vpop.f32.mrf.mxu0
    %6914 = vdwg.mxu0
    %6915 = vmatpush.bf16.msra.mxu0 %v6508
    %6916 = vmatpush.bf16.msra.mxu0 %v6501
    %6917 = vmatpush.bf16.msra.mxu0 %v6494
    %6918 = vmatpush.bf16.msra.mxu0 %v6487
    %6919 = vmatpush.bf16.msra.mxu0 %v6480
    %6920 = vmatpush.bf16.msra.mxu0 %v6473
    %6921 = vmatpush.bf16.msra.mxu0 %v6466
    %6922 = vmatpush.bf16.msra.mxu0 %v6459
    %6923 = vmatmul.bf16.gmra.mxu0 %v4047
    %v6924 = vpop.f32.mrf.mxu0
    %v6925 = vadd.f32 %v6912, %v6924
    %v6926 = vpop.f32.mrf.mxu0
    %6927 = vdwg.mxu0
    %6928 = vmatpush.bf16.msra.mxu0 %v6117
    %6929 = vmatpush.bf16.msra.mxu0 %v6110
    %6930 = vmatpush.bf16.msra.mxu0 %v6103
    %6931 = vmatpush.bf16.msra.mxu0 %v6096
    %6932 = vmatpush.bf16.msra.mxu0 %v6089
    %6933 = vmatpush.bf16.msra.mxu0 %v6082
    %6934 = vmatpush.bf16.msra.mxu0 %v6075
    %6935 = vmatpush.bf16.msra.mxu0 %v6068
    %6936 = vmatmul.bf16.gmra.mxu0 %v4040
    %v6937 = vpop.f32.mrf.mxu0
    %v6938 = vadd.f32 0.0, %v6937
    %v6939 = vpop.f32.mrf.mxu0
    %6940 = vdwg.mxu0
    %6941 = vmatpush.bf16.msra.mxu0 %v6173
    %6942 = vmatpush.bf16.msra.mxu0 %v6166
    %6943 = vmatpush.bf16.msra.mxu0 %v6159
    %6944 = vmatpush.bf16.msra.mxu0 %v6152
    %6945 = vmatpush.bf16.msra.mxu0 %v6145
    %6946 = vmatpush.bf16.msra.mxu0 %v6138
    %6947 = vmatpush.bf16.msra.mxu0 %v6131
    %6948 = vmatpush.bf16.msra.mxu0 %v6124
    %6949 = vmatmul.bf16.gmra.mxu0 %v4041
    %v6950 = vpop.f32.mrf.mxu0
    %v6951 = vadd.f32 %v6938, %v6950
    %v6952 = vpop.f32.mrf.mxu0
    %6953 = vdwg.mxu0
    %6954 = vmatpush.bf16.msra.mxu0 %v6229
    %6955 = vmatpush.bf16.msra.mxu0 %v6222
    %6956 = vmatpush.bf16.msra.mxu0 %v6215
    %6957 = vmatpush.bf16.msra.mxu0 %v6208
    %6958 = vmatpush.bf16.msra.mxu0 %v6201
    %6959 = vmatpush.bf16.msra.mxu0 %v6194
    %6960 = vmatpush.bf16.msra.mxu0 %v6187
    %6961 = vmatpush.bf16.msra.mxu0 %v6180
    %6962 = vmatmul.bf16.gmra.mxu0 %v4042
    %v6963 = vpop.f32.mrf.mxu0
    %v6964 = vadd.f32 %v6951, %v6963
    %v6965 = vpop.f32.mrf.mxu0
    %6966 = vdwg.mxu0
    %6967 = vmatpush.bf16.msra.mxu0 %v6285
    %6968 = vmatpush.bf16.msra.mxu0 %v6278
    %6969 = vmatpush.bf16.msra.mxu0 %v6271
    %6970 = vmatpush.bf16.msra.mxu0 %v6264
    %6971 = vmatpush.bf16.msra.mxu0 %v6257
    %6972 = vmatpush.bf16.msra.mxu0 %v6250
    %6973 = vmatpush.bf16.msra.mxu0 %v6243
    %6974 = vmatpush.bf16.msra.mxu0 %v6236
    %6975 = vmatmul.bf16.gmra.mxu0 %v4043
    %v6976 = vpop.f32.mrf.mxu0
    %v6977 = vadd.f32 %v6964, %v6976
    %v6978 = vpop.f32.mrf.mxu0
    %6979 = vdwg.mxu0
    %6980 = vmatpush.bf16.msra.mxu0 %v6341
    %6981 = vmatpush.bf16.msra.mxu0 %v6334
    %6982 = vmatpush.bf16.msra.mxu0 %v6327
    %6983 = vmatpush.bf16.msra.mxu0 %v6320
    %6984 = vmatpush.bf16.msra.mxu0 %v6313
    %6985 = vmatpush.bf16.msra.mxu0 %v6306
    %6986 = vmatpush.bf16.msra.mxu0 %v6299
    %6987 = vmatpush.bf16.msra.mxu0 %v6292
    %6988 = vmatmul.bf16.gmra.mxu0 %v4044
    %v6989 = vpop.f32.mrf.mxu0
    %v6990 = vadd.f32 %v6977, %v6989
    %v6991 = vpop.f32.mrf.mxu0
    %6992 = vdwg.mxu0
    %6993 = vmatpush.bf16.msra.mxu0 %v6397
    %6994 = vmatpush.bf16.msra.mxu0 %v6390
    %6995 = vmatpush.bf16.msra.mxu0 %v6383
    %6996 = vmatpush.bf16.msra.mxu0 %v6376
    %6997 = vmatpush.bf16.msra.mxu0 %v6369
    %6998 = vmatpush.bf16.msra.mxu0 %v6362
    %6999 = vmatpush.bf16.msra.mxu0 %v6355
    %7000 = vmatpush.bf16.msra.mxu0 %v6348
    %7001 = vmatmul.bf16.gmra.mxu0 %v4045
    %v7002 = vpop.f32.mrf.mxu0
    %v7003 = vadd.f32 %v6990, %v7002
    %v7004 = vpop.f32.mrf.mxu0
    %7005 = vdwg.mxu0
    %7006 = vmatpush.bf16.msra.mxu0 %v6453
    %7007 = vmatpush.bf16.msra.mxu0 %v6446
    %7008 = vmatpush.bf16.msra.mxu0 %v6439
    %7009 = vmatpush.bf16.msra.mxu0 %v6432
    %7010 = vmatpush.bf16.msra.mxu0 %v6425
    %7011 = vmatpush.bf16.msra.mxu0 %v6418
    %7012 = vmatpush.bf16.msra.mxu0 %v6411
    %7013 = vmatpush.bf16.msra.mxu0 %v6404
    %7014 = vmatmul.bf16.gmra.mxu0 %v4046
    %v7015 = vpop.f32.mrf.mxu0
    %v7016 = vadd.f32 %v7003, %v7015
    %v7017 = vpop.f32.mrf.mxu0
    %7018 = vdwg.mxu0
    %7019 = vmatpush.bf16.msra.mxu0 %v6509
    %7020 = vmatpush.bf16.msra.mxu0 %v6502
    %7021 = vmatpush.bf16.msra.mxu0 %v6495
    %7022 = vmatpush.bf16.msra.mxu0 %v6488
    %7023 = vmatpush.bf16.msra.mxu0 %v6481
    %7024 = vmatpush.bf16.msra.mxu0 %v6474
    %7025 = vmatpush.bf16.msra.mxu0 %v6467
    %7026 = vmatpush.bf16.msra.mxu0 %v6460
    %7027 = vmatmul.bf16.gmra.mxu0 %v4047
    %v7028 = vpop.f32.mrf.mxu0
    %v7029 = vadd.f32 %v7016, %v7028
    %v7030 = vpop.f32.mrf.mxu0
    %7031 = vdwg.mxu0
    %7032 = vmatpush.bf16.msra.mxu0 %v6118
    %7033 = vmatpush.bf16.msra.mxu0 %v6111
    %7034 = vmatpush.bf16.msra.mxu0 %v6104
    %7035 = vmatpush.bf16.msra.mxu0 %v6097
    %7036 = vmatpush.bf16.msra.mxu0 %v6090
    %7037 = vmatpush.bf16.msra.mxu0 %v6083
    %7038 = vmatpush.bf16.msra.mxu0 %v6076
    %7039 = vmatpush.bf16.msra.mxu0 %v6069
    %7040 = vmatmul.bf16.gmra.mxu0 %v4040
    %v7041 = vpop.f32.mrf.mxu0
    %v7042 = vadd.f32 0.0, %v7041
    %v7043 = vpop.f32.mrf.mxu0
    %7044 = vdwg.mxu0
    %7045 = vmatpush.bf16.msra.mxu0 %v6174
    %7046 = vmatpush.bf16.msra.mxu0 %v6167
    %7047 = vmatpush.bf16.msra.mxu0 %v6160
    %7048 = vmatpush.bf16.msra.mxu0 %v6153
    %7049 = vmatpush.bf16.msra.mxu0 %v6146
    %7050 = vmatpush.bf16.msra.mxu0 %v6139
    %7051 = vmatpush.bf16.msra.mxu0 %v6132
    %7052 = vmatpush.bf16.msra.mxu0 %v6125
    %7053 = vmatmul.bf16.gmra.mxu0 %v4041
    %v7054 = vpop.f32.mrf.mxu0
    %v7055 = vadd.f32 %v7042, %v7054
    %v7056 = vpop.f32.mrf.mxu0
    %7057 = vdwg.mxu0
    %7058 = vmatpush.bf16.msra.mxu0 %v6230
    %7059 = vmatpush.bf16.msra.mxu0 %v6223
    %7060 = vmatpush.bf16.msra.mxu0 %v6216
    %7061 = vmatpush.bf16.msra.mxu0 %v6209
    %7062 = vmatpush.bf16.msra.mxu0 %v6202
    %7063 = vmatpush.bf16.msra.mxu0 %v6195
    %7064 = vmatpush.bf16.msra.mxu0 %v6188
    %7065 = vmatpush.bf16.msra.mxu0 %v6181
    %7066 = vmatmul.bf16.gmra.mxu0 %v4042
    %v7067 = vpop.f32.mrf.mxu0
    %v7068 = vadd.f32 %v7055, %v7067
    %v7069 = vpop.f32.mrf.mxu0
    %7070 = vdwg.mxu0
    %7071 = vmatpush.bf16.msra.mxu0 %v6286
    %7072 = vmatpush.bf16.msra.mxu0 %v6279
    %7073 = vmatpush.bf16.msra.mxu0 %v6272
    %7074 = vmatpush.bf16.msra.mxu0 %v6265
    %7075 = vmatpush.bf16.msra.mxu0 %v6258
    %7076 = vmatpush.bf16.msra.mxu0 %v6251
    %7077 = vmatpush.bf16.msra.mxu0 %v6244
    %7078 = vmatpush.bf16.msra.mxu0 %v6237
    %7079 = vmatmul.bf16.gmra.mxu0 %v4043
    %v7080 = vpop.f32.mrf.mxu0
    %v7081 = vadd.f32 %v7068, %v7080
    %v7082 = vpop.f32.mrf.mxu0
    %7083 = vdwg.mxu0
    %7084 = vmatpush.bf16.msra.mxu0 %v6342
    %7085 = vmatpush.bf16.msra.mxu0 %v6335
    %7086 = vmatpush.bf16.msra.mxu0 %v6328
    %7087 = vmatpush.bf16.msra.mxu0 %v6321
    %7088 = vmatpush.bf16.msra.mxu0 %v6314
    %7089 = vmatpush.bf16.msra.mxu0 %v6307
    %7090 = vmatpush.bf16.msra.mxu0 %v6300
    %7091 = vmatpush.bf16.msra.mxu0 %v6293
    %7092 = vmatmul.bf16.gmra.mxu0 %v4044
    %v7093 = vpop.f32.mrf.mxu0
    %v7094 = vadd.f32 %v7081, %v7093
    %v7095 = vpop.f32.mrf.mxu0
    %7096 = vdwg.mxu0
    %7097 = vmatpush.bf16.msra.mxu0 %v6398
    %7098 = vmatpush.bf16.msra.mxu0 %v6391
    %7099 = vmatpush.bf16.msra.mxu0 %v6384
    %7100 = vmatpush.bf16.msra.mxu0 %v6377
    %7101 = vmatpush.bf16.msra.mxu0 %v6370
    %7102 = vmatpush.bf16.msra.mxu0 %v6363
    %7103 = vmatpush.bf16.msra.mxu0 %v6356
    %7104 = vmatpush.bf16.msra.mxu0 %v6349
    %7105 = vmatmul.bf16.gmra.mxu0 %v4045
    %v7106 = vpop.f32.mrf.mxu0
    %v7107 = vadd.f32 %v7094, %v7106
    %v7108 = vpop.f32.mrf.mxu0
    %7109 = vdwg.mxu0
    %7110 = vmatpush.bf16.msra.mxu0 %v6454
    %7111 = vmatpush.bf16.msra.mxu0 %v6447
    %7112 = vmatpush.bf16.msra.mxu0 %v6440
    %7113 = vmatpush.bf16.msra.mxu0 %v6433
    %7114 = vmatpush.bf16.msra.mxu0 %v6426
    %7115 = vmatpush.bf16.msra.mxu0 %v6419
    %7116 = vmatpush.bf16.msra.mxu0 %v6412
    %7117 = vmatpush.bf16.msra.mxu0 %v6405
    %7118 = vmatmul.bf16.gmra.mxu0 %v4046
    %v7119 = vpop.f32.mrf.mxu0
    %v7120 = vadd.f32 %v7107, %v7119
    %v7121 = vpop.f32.mrf.mxu0
    %7122 = vdwg.mxu0
    %7123 = vmatpush.bf16.msra.mxu0 %v6510
    %7124 = vmatpush.bf16.msra.mxu0 %v6503
    %7125 = vmatpush.bf16.msra.mxu0 %v6496
    %7126 = vmatpush.bf16.msra.mxu0 %v6489
    %7127 = vmatpush.bf16.msra.mxu0 %v6482
    %7128 = vmatpush.bf16.msra.mxu0 %v6475
    %7129 = vmatpush.bf16.msra.mxu0 %v6468
    %7130 = vmatpush.bf16.msra.mxu0 %v6461
    %7131 = vmatmul.bf16.gmra.mxu0 %v4047
    %v7132 = vpop.f32.mrf.mxu0
    %v7133 = vadd.f32 %v7120, %v7132
    %v7134 = vpop.f32.mrf.mxu0
    %7135 = vdwg.mxu0
    %7136 = vmatpush.bf16.msra.mxu0 %v6119
    %7137 = vmatpush.bf16.msra.mxu0 %v6112
    %7138 = vmatpush.bf16.msra.mxu0 %v6105
    %7139 = vmatpush.bf16.msra.mxu0 %v6098
    %7140 = vmatpush.bf16.msra.mxu0 %v6091
    %7141 = vmatpush.bf16.msra.mxu0 %v6084
    %7142 = vmatpush.bf16.msra.mxu0 %v6077
    %7143 = vmatpush.bf16.msra.mxu0 %v6070
    %7144 = vmatmul.bf16.gmra.mxu0 %v4040
    %v7145 = vpop.f32.mrf.mxu0
    %v7146 = vadd.f32 0.0, %v7145
    %v7147 = vpop.f32.mrf.mxu0
    %7148 = vdwg.mxu0
    %7149 = vmatpush.bf16.msra.mxu0 %v6175
    %7150 = vmatpush.bf16.msra.mxu0 %v6168
    %7151 = vmatpush.bf16.msra.mxu0 %v6161
    %7152 = vmatpush.bf16.msra.mxu0 %v6154
    %7153 = vmatpush.bf16.msra.mxu0 %v6147
    %7154 = vmatpush.bf16.msra.mxu0 %v6140
    %7155 = vmatpush.bf16.msra.mxu0 %v6133
    %7156 = vmatpush.bf16.msra.mxu0 %v6126
    %7157 = vmatmul.bf16.gmra.mxu0 %v4041
    %v7158 = vpop.f32.mrf.mxu0
    %v7159 = vadd.f32 %v7146, %v7158
    %v7160 = vpop.f32.mrf.mxu0
    %7161 = vdwg.mxu0
    %7162 = vmatpush.bf16.msra.mxu0 %v6231
    %7163 = vmatpush.bf16.msra.mxu0 %v6224
    %7164 = vmatpush.bf16.msra.mxu0 %v6217
    %7165 = vmatpush.bf16.msra.mxu0 %v6210
    %7166 = vmatpush.bf16.msra.mxu0 %v6203
    %7167 = vmatpush.bf16.msra.mxu0 %v6196
    %7168 = vmatpush.bf16.msra.mxu0 %v6189
    %7169 = vmatpush.bf16.msra.mxu0 %v6182
    %7170 = vmatmul.bf16.gmra.mxu0 %v4042
    %v7171 = vpop.f32.mrf.mxu0
    %v7172 = vadd.f32 %v7159, %v7171
    %v7173 = vpop.f32.mrf.mxu0
    %7174 = vdwg.mxu0
    %7175 = vmatpush.bf16.msra.mxu0 %v6287
    %7176 = vmatpush.bf16.msra.mxu0 %v6280
    %7177 = vmatpush.bf16.msra.mxu0 %v6273
    %7178 = vmatpush.bf16.msra.mxu0 %v6266
    %7179 = vmatpush.bf16.msra.mxu0 %v6259
    %7180 = vmatpush.bf16.msra.mxu0 %v6252
    %7181 = vmatpush.bf16.msra.mxu0 %v6245
    %7182 = vmatpush.bf16.msra.mxu0 %v6238
    %7183 = vmatmul.bf16.gmra.mxu0 %v4043
    %v7184 = vpop.f32.mrf.mxu0
    %v7185 = vadd.f32 %v7172, %v7184
    %v7186 = vpop.f32.mrf.mxu0
    %7187 = vdwg.mxu0
    %7188 = vmatpush.bf16.msra.mxu0 %v6343
    %7189 = vmatpush.bf16.msra.mxu0 %v6336
    %7190 = vmatpush.bf16.msra.mxu0 %v6329
    %7191 = vmatpush.bf16.msra.mxu0 %v6322
    %7192 = vmatpush.bf16.msra.mxu0 %v6315
    %7193 = vmatpush.bf16.msra.mxu0 %v6308
    %7194 = vmatpush.bf16.msra.mxu0 %v6301
    %7195 = vmatpush.bf16.msra.mxu0 %v6294
    %7196 = vmatmul.bf16.gmra.mxu0 %v4044
    %v7197 = vpop.f32.mrf.mxu0
    %v7198 = vadd.f32 %v7185, %v7197
    %v7199 = vpop.f32.mrf.mxu0
    %7200 = vdwg.mxu0
    %7201 = vmatpush.bf16.msra.mxu0 %v6399
    %7202 = vmatpush.bf16.msra.mxu0 %v6392
    %7203 = vmatpush.bf16.msra.mxu0 %v6385
    %7204 = vmatpush.bf16.msra.mxu0 %v6378
    %7205 = vmatpush.bf16.msra.mxu0 %v6371
    %7206 = vmatpush.bf16.msra.mxu0 %v6364
    %7207 = vmatpush.bf16.msra.mxu0 %v6357
    %7208 = vmatpush.bf16.msra.mxu0 %v6350
    %7209 = vmatmul.bf16.gmra.mxu0 %v4045
    %v7210 = vpop.f32.mrf.mxu0
    %v7211 = vadd.f32 %v7198, %v7210
    %v7212 = vpop.f32.mrf.mxu0
    %7213 = vdwg.mxu0
    %7214 = vmatpush.bf16.msra.mxu0 %v6455
    %7215 = vmatpush.bf16.msra.mxu0 %v6448
    %7216 = vmatpush.bf16.msra.mxu0 %v6441
    %7217 = vmatpush.bf16.msra.mxu0 %v6434
    %7218 = vmatpush.bf16.msra.mxu0 %v6427
    %7219 = vmatpush.bf16.msra.mxu0 %v6420
    %7220 = vmatpush.bf16.msra.mxu0 %v6413
    %7221 = vmatpush.bf16.msra.mxu0 %v6406
    %7222 = vmatmul.bf16.gmra.mxu0 %v4046
    %v7223 = vpop.f32.mrf.mxu0
    %v7224 = vadd.f32 %v7211, %v7223
    %v7225 = vpop.f32.mrf.mxu0
    %7226 = vdwg.mxu0
    %7227 = vmatpush.bf16.msra.mxu0 %v6511
    %7228 = vmatpush.bf16.msra.mxu0 %v6504
    %7229 = vmatpush.bf16.msra.mxu0 %v6497
    %7230 = vmatpush.bf16.msra.mxu0 %v6490
    %7231 = vmatpush.bf16.msra.mxu0 %v6483
    %7232 = vmatpush.bf16.msra.mxu0 %v6476
    %7233 = vmatpush.bf16.msra.mxu0 %v6469
    %7234 = vmatpush.bf16.msra.mxu0 %v6462
    %7235 = vmatmul.bf16.gmra.mxu0 %v4047
    %v7236 = vpop.f32.mrf.mxu0
    %v7237 = vadd.f32 %v7224, %v7236
    %v7238 = vpop.f32.mrf.mxu0
    %7239 = vdwg.mxu0
    %v7240 = vld [vmem:[#allocation14] sm:$0xff]
    %v7242 = vperm.slane %v7240, 0
    %v7243 = vperm.slane %v7240, 1
    %v7244 = vperm.slane %v7240, 2
    %v7245 = vperm.slane %v7240, 3
    %v7246 = vperm.slane %v7240, 4
    %v7247 = vperm.slane %v7240, 5
    %v7248 = vperm.slane %v7240, 6
    %v7256 = vmul.f32 %v6613, %v7242
    %v7257 = vmul.f32 %v6717, %v7243
    %v7258 = vmul.f32 %v6821, %v7244
    %v7259 = vmul.f32 %v6925, %v7245
    %v7260 = vmul.f32 %v7029, %v7246
    %v7261 = vmul.f32 %v7133, %v7247
    %v7262 = vmul.f32 %v7237, %v7248
    %v7263 = vld [vmem:[%s8] sm:$0xff]
    %v7265 = vperm.slane %v7263, 0
    %v7266 = vperm.slane %v7263, 1
    %v7267 = vperm.slane %v7263, 2
    %v7268 = vperm.slane %v7263, 3
    %v7269 = vperm.slane %v7263, 4
    %v7270 = vperm.slane %v7263, 5
    %v7271 = vperm.slane %v7263, 6
    %v7279 = vadd.f32 %v7256, %v7265
    %v7280 = vadd.f32 %v7257, %v7266
    %v7281 = vadd.f32 %v7258, %v7267
    %v7282 = vadd.f32 %v7259, %v7268
    %v7283 = vadd.f32 %v7260, %v7269
    %v7284 = vadd.f32 %v7261, %v7270
    %v7285 = vadd.f32 %v7262, %v7271
    %v7286 = vxor.u32 %v7279, 2147483648
    %v7287 = vxor.u32 %v7280, 2147483648
    %v7288 = vxor.u32 %v7281, 2147483648
    %v7289 = vxor.u32 %v7282, 2147483648
    %v7290 = vxor.u32 %v7283, 2147483648
    %v7291 = vxor.u32 %v7284, 2147483648
    %v7292 = vxor.u32 %v7285, 2147483648
    %v7293 = vmul.f32 %v7286, 1.442695
    %v7294 = vpow.pop %v7293
    %v7295 = vmul.f32 %v7287, 1.442695
    %v7296 = vpow.pop %v7295
    %v7297 = vmul.f32 %v7288, 1.442695
    %v7298 = vpow.pop %v7297
    %v7299 = vmul.f32 %v7289, 1.442695
    %v7300 = vpow.pop %v7299
    %v7301 = vmul.f32 %v7290, 1.442695
    %v7302 = vpow.pop %v7301
    %v7303 = vmul.f32 %v7291, 1.442695
    %v7304 = vpow.pop %v7303
    %v7305 = vmul.f32 %v7292, 1.442695
    %v7306 = vpow.pop %v7305
    %v7307 = vadd.f32 %v7294, 1.0
    %v7308 = vadd.f32 %v7296, 1.0
    %v7309 = vadd.f32 %v7298, 1.0
    %v7310 = vadd.f32 %v7300, 1.0
    %v7311 = vadd.f32 %v7302, 1.0
    %v7312 = vadd.f32 %v7304, 1.0
    %v7313 = vadd.f32 %v7306, 1.0
    %v7314 = vrcp.pop %v7307
    %v7315 = vmul.f32 %v7307, %v7314
    %v7316 = vsub.f32 1.0, %v7315
    %v7317 = vmul.f32 %v7314, %v7316
    %v7318 = vadd.f32 %v7314, %v7317
    %vm7319 = vweird.f32 %v7307
    %vm7320 = vweird.f32 %v7314
    %vm7321 = vmor %vm7319, %vm7320
    %v7322 = vsel %vm7321, %v7314, %v7318
    %v7323 = vand.u32 2147483647, %v7307
    %vm7324 = vcmp.eq.f32.partialorder %v7323, 8.507059e+37
    %v7325 = vand.u32 %v7307, 2147483648
    %v7326 = vor.u32 1.1754944e-38, %v7325
    %v7327 = vsel %vm7324, %v7326, %v7322
    %v7328 = vmul.f32 1.0, %v7327
    %v7329 = vrcp.pop %v7308
    %v7330 = vmul.f32 %v7308, %v7329
    %v7331 = vsub.f32 1.0, %v7330
    %v7332 = vmul.f32 %v7329, %v7331
    %v7333 = vadd.f32 %v7329, %v7332
    %vm7334 = vweird.f32 %v7308
    %vm7335 = vweird.f32 %v7329
    %vm7336 = vmor %vm7334, %vm7335
    %v7337 = vsel %vm7336, %v7329, %v7333
    %v7338 = vand.u32 2147483647, %v7308
    %vm7339 = vcmp.eq.f32.partialorder %v7338, 8.507059e+37
    %v7340 = vand.u32 %v7308, 2147483648
    %v7341 = vor.u32 1.1754944e-38, %v7340
    %v7342 = vsel %vm7339, %v7341, %v7337
    %v7343 = vmul.f32 1.0, %v7342
    %v7344 = vrcp.pop %v7309
    %v7345 = vmul.f32 %v7309, %v7344
    %v7346 = vsub.f32 1.0, %v7345
    %v7347 = vmul.f32 %v7344, %v7346
    %v7348 = vadd.f32 %v7344, %v7347
    %vm7349 = vweird.f32 %v7309
    %vm7350 = vweird.f32 %v7344
    %vm7351 = vmor %vm7349, %vm7350
    %v7352 = vsel %vm7351, %v7344, %v7348
    %v7353 = vand.u32 2147483647, %v7309
    %vm7354 = vcmp.eq.f32.partialorder %v7353, 8.507059e+37
    %v7355 = vand.u32 %v7309, 2147483648
    %v7356 = vor.u32 1.1754944e-38, %v7355
    %v7357 = vsel %vm7354, %v7356, %v7352
    %v7358 = vmul.f32 1.0, %v7357
    %v7359 = vrcp.pop %v7310
    %v7360 = vmul.f32 %v7310, %v7359
    %v7361 = vsub.f32 1.0, %v7360
    %v7362 = vmul.f32 %v7359, %v7361
    %v7363 = vadd.f32 %v7359, %v7362
    %vm7364 = vweird.f32 %v7310
    %vm7365 = vweird.f32 %v7359
    %vm7366 = vmor %vm7364, %vm7365
    %v7367 = vsel %vm7366, %v7359, %v7363
    %v7368 = vand.u32 2147483647, %v7310
    %vm7369 = vcmp.eq.f32.partialorder %v7368, 8.507059e+37
    %v7370 = vand.u32 %v7310, 2147483648
    %v7371 = vor.u32 1.1754944e-38, %v7370
    %v7372 = vsel %vm7369, %v7371, %v7367
    %v7373 = vmul.f32 1.0, %v7372
    %v7374 = vrcp.pop %v7311
    %v7375 = vmul.f32 %v7311, %v7374
    %v7376 = vsub.f32 1.0, %v7375
    %v7377 = vmul.f32 %v7374, %v7376
    %v7378 = vadd.f32 %v7374, %v7377
    %vm7379 = vweird.f32 %v7311
    %vm7380 = vweird.f32 %v7374
    %vm7381 = vmor %vm7379, %vm7380
    %v7382 = vsel %vm7381, %v7374, %v7378
    %v7383 = vand.u32 2147483647, %v7311
    %vm7384 = vcmp.eq.f32.partialorder %v7383, 8.507059e+37
    %v7385 = vand.u32 %v7311, 2147483648
    %v7386 = vor.u32 1.1754944e-38, %v7385
    %v7387 = vsel %vm7384, %v7386, %v7382
    %v7388 = vmul.f32 1.0, %v7387
    %v7389 = vrcp.pop %v7312
    %v7390 = vmul.f32 %v7312, %v7389
    %v7391 = vsub.f32 1.0, %v7390
    %v7392 = vmul.f32 %v7389, %v7391
    %v7393 = vadd.f32 %v7389, %v7392
    %vm7394 = vweird.f32 %v7312
    %vm7395 = vweird.f32 %v7389
    %vm7396 = vmor %vm7394, %vm7395
    %v7397 = vsel %vm7396, %v7389, %v7393
    %v7398 = vand.u32 2147483647, %v7312
    %vm7399 = vcmp.eq.f32.partialorder %v7398, 8.507059e+37
    %v7400 = vand.u32 %v7312, 2147483648
    %v7401 = vor.u32 1.1754944e-38, %v7400
    %v7402 = vsel %vm7399, %v7401, %v7397
    %v7403 = vmul.f32 1.0, %v7402
    %v7404 = vrcp.pop %v7313
    %v7405 = vmul.f32 %v7313, %v7404
    %v7406 = vsub.f32 1.0, %v7405
    %v7407 = vmul.f32 %v7404, %v7406
    %v7408 = vadd.f32 %v7404, %v7407
    %vm7409 = vweird.f32 %v7313
    %vm7410 = vweird.f32 %v7404
    %vm7411 = vmor %vm7409, %vm7410
    %v7412 = vsel %vm7411, %v7404, %v7408
    %v7413 = vand.u32 2147483647, %v7313
    %vm7414 = vcmp.eq.f32.partialorder %v7413, 8.507059e+37
    %v7415 = vand.u32 %v7313, 2147483648
    %v7416 = vor.u32 1.1754944e-38, %v7415
    %v7417 = vsel %vm7414, %v7416, %v7412
    %v7418 = vmul.f32 1.0, %v7417
    %7419 = vst [vmem:[#allocation16] sm:$0xff] %v7328
    %7420 = vst [vmem:[#allocation16 + $0x8] sm:$0xff] %v7343
    %7421 = vst [vmem:[#allocation16 + $0x10] sm:$0xff] %v7358
    %7422 = vst [vmem:[#allocation16 + $0x18] sm:$0xff] %v7373
    %7423 = vst [vmem:[#allocation16 + $0x20] sm:$0xff] %v7388
    %7424 = vst [vmem:[#allocation16 + $0x28] sm:$0xff] %v7403
    %7425 = vst [vmem:[#allocation16 + $0x30] sm:$0xff] %v7418
    // Predicated region
    $region70: #{tpu_custom_call.1} parent=1 // pred_check
      _
    $region71: #{tpu_custom_call.1} parent=1 // pred_check_branch
      %7427 = sbr.rel (0) target = $region73
    $region72: #{tpu_custom_call.1} parent=1 // pred_region
      %7429 = vsyncadd [#allocation4], 0
      %s7431 = sshll.u32 [#allocation16], 4
      %s7432 = int_to_ptr.vmem [resolvable:$true] %s7431
      %s7433 = sshll.u32 %s9, 4
      %s7434 = int_to_ptr.hbm [resolvable:$true] %s7433
      %7436 = dma.vmem_to_hbm [thread:$0]  %s7432, 896, %s7434, [#allocation4]
    $region73: #{tpu_custom_call.1} parent=1 // pred_fallthru
      _
    // Predicated region
    $region74: #{tpu_custom_call.1} parent=1 // pred_check
      _
    $region75: #{tpu_custom_call.1} parent=1 // pred_check_branch
      %7438 = sbr.rel (0) target = $region77
    $region76: #{tpu_custom_call.1} parent=1 // pred_region
      %7440 = dma.done [#allocation4], 896
    $region77: #{tpu_custom_call.1} parent=1 // pred_fallthru
      _
    %7441 = vsyncpa [#allocation3], 1
    %7442 = vsyncpa [#allocation6], 1
    %7443 = vsyncpa [#allocation9], 1
    %7444 = vsyncpa [#allocation12], 1
    %7445 = vsyncpa [#allocation15], 1
    %7446 = vsyncpa [#allocation4], 1

</llo_original>
